<compile_context>
chip_gen: v7x
topology: tpu7x:2x2x1
jax: 0.10.0
libtpu: 0.0.40
codegen_flags: <defaults>
</compile_context>

<pallas_src>
import jax
import jax.numpy as jnp
from jax.experimental import pallas as pl
from jax.experimental.pallas import tpu as pltpu


# ----------------------------- fused Pallas kernel -----------------------------

def _make_fused_kernel(H1, W1, H2, W2, Cin, Ch, Cmid, Cout, padY, padX):
    """Per-batch-element fused kernel; all static shapes closed over."""
    f32 = jnp.float32
    rT, rB = 1 + padY, 1 + padY + 2 * H1          # ConvTranspose rect (rows) inside padded plane
    cL, cR = 1 + padX, 1 + padX + 2 * W1          # ConvTranspose rect (cols)

    def kernel(x1_ref, x2_ref, wup4_ref, bup_ref, wsk_ref, bsk_ref, pwb_ref,
               w1p_ref, b1_ref, w2p_ref, b2_ref,
               o_ref, cat1_ref, cat3_ref, mid1_ref, mid3_ref):
        cdt = cat1_ref.dtype

        # ---- halo-only zero fill (interiors are fully overwritten every step) ----
        # cat1: joint F.pad frame of the up branch + 1-px conv halo, across all channels.
        cat1_ref[0:rT, :, :] = jnp.zeros((rT, W2 + 2, Cin), cdt)
        cat1_ref[rB:H2 + 2, :, :] = jnp.zeros((H2 + 2 - rB, W2 + 2, Cin), cdt)
        cat1_ref[:, 0:cL, :] = jnp.zeros((H2 + 2, cL, Cin), cdt)
        cat1_ref[:, cR:W2 + 2, :] = jnp.zeros((H2 + 2, W2 + 2 - cR, Cin), cdt)
        # mid1: 1-px conv halo only.
        mid1_ref[0:1, :, :] = jnp.zeros((1, W2 + 2, Cmid), cdt)
        mid1_ref[H2 + 1:H2 + 2, :, :] = jnp.zeros((1, W2 + 2, Cmid), cdt)
        mid1_ref[:, 0:1, :] = jnp.zeros((H2 + 2, 1, Cmid), cdt)
        mid1_ref[:, W2 + 1:W2 + 2, :] = jnp.zeros((H2 + 2, 1, Cmid), cdt)

        # ---- ConvTranspose2d(Cin, Ch, k=2, s=2): ONE matmul for all 4 taps ----
        # y4[p, (2*dy+dx)*Ch + o] = sum_c x1[p, c] * W[dy, dx, c, o]
        y4 = jnp.dot(x1_ref[0], wup4_ref[...], preferred_element_type=f32)   # (H1*W1, 4*Ch)

        # Whole-plane stride-2 interleave along W on the MXU: pwb[dx][h, w, j] = (w == 2j + dx),
        # built once in the wrapper (hoisted) and pre-broadcast over H1 -> plain batched matmul.
        pwb0 = pwb_ref[0, :, :, :]
        pwb1 = pwb_ref[1, :, :, :]
        planes = []
        for dy in range(2):
            t0 = y4[:, (2 * dy + 0) * Ch:(2 * dy + 1) * Ch].reshape(H1, W1, Ch)
            t1 = y4[:, (2 * dy + 1) * Ch:(2 * dy + 2) * Ch].reshape(H1, W1, Ch)
            p = (jnp.einsum('hwj,hjc->hwc', pwb0, t0, preferred_element_type=f32)
                 + jnp.einsum('hwj,hjc->hwc', pwb1, t1, preferred_element_type=f32))
            planes.append(p[:, None])                                        # (H1, 1, 2*W1, Ch)
        # H-interleave: outer-axis concat + layout-trivial leading-dim merge; bias added once.
        up = jnp.concatenate(planes, axis=1).reshape(2 * H1, 2 * W1, Ch) + bup_ref[...]
        cat1_ref[rT:rB, cL:cR, 0:Ch] = up.astype(cdt)                        # ONE store

        # ---- skip path: Conv2d(Cskip, Ch, k=1) == one pixelwise matmul ----
        s = jnp.dot(x2_ref[0], wsk_ref[...], preferred_element_type=f32) + bsk_ref[...]
        cat1_ref[1:1 + H2, 1:1 + W2, Ch:Cin] = s.reshape(H2, W2, Ch).astype(cdt)

        # ---- DoubleConv stage 1: dx-packed slab, then 3 matmuls with K = 3*Cin ----
        # cat3[r, x, dx*Cin + c] = cat1[r, x+dx, c]   (3 shifted copies, done once)
        for k in range(3):
            cat3_ref[:, :, k * Cin:(k + 1) * Cin] = cat1_ref[:, k:k + W2, :]
        h = jnp.dot(cat3_ref[0:H2, :, :].reshape(H2 * W2, 3 * Cin), w1p_ref[0, :, :],
                    preferred_element_type=f32)
        h = h + jnp.dot(cat3_ref[1:1 + H2, :, :].reshape(H2 * W2, 3 * Cin), w1p_ref[1, :, :],
                        preferred_element_type=f32)
        h = h + jnp.dot(cat3_ref[2:2 + H2, :, :].reshape(H2 * W2, 3 * Cin), w1p_ref[2, :, :],
                        preferred_element_type=f32)
        h = jnp.maximum(h + b1_ref[...], 0.0)                                # folded BN + ReLU

        # ---- DoubleConv stage 2: same structure, intermediate never leaves VMEM ----
        mid1_ref[1:1 + H2, 1:1 + W2, :] = h.reshape(H2, W2, Cmid).astype(cdt)
        for k in range(3):
            mid3_ref[:, :, k * Cmid:(k + 1) * Cmid] = mid1_ref[:, k:k + W2, :]
        o = jnp.dot(mid3_ref[0:H2, :, :].reshape(H2 * W2, 3 * Cmid), w2p_ref[0, :, :],
                    preferred_element_type=f32)
        o = o + jnp.dot(mid3_ref[1:1 + H2, :, :].reshape(H2 * W2, 3 * Cmid), w2p_ref[1, :, :],
                        preferred_element_type=f32)
        o = o + jnp.dot(mid3_ref[2:2 + H2, :, :].reshape(H2 * W2, 3 * Cmid), w2p_ref[2, :, :],
                        preferred_element_type=f32)
        o = jnp.maximum(o + b2_ref[...], 0.0)                                # (H2*W2, Cout)
        o_ref[...] = o.reshape(1, H2, W2, Cout).astype(o_ref.dtype)

    return kernel


# ----------------------------- wrapper -----------------------------

def upsample_da_pallas(x1_nchw, x2_nchw, p, compute_dtype=jnp.float32):
    N, Cin, H1, W1 = x1_nchw.shape
    _, Cs, H2, W2 = x2_nchw.shape
    Ch = Cin // 2
    Cmid = p['c1_b'].shape[0]
    Cout = p['c2_b'].shape[0]
    dY, dX = H2 - 2 * H1, W2 - 2 * W1
    assert dY >= 0 and dX >= 0   # TODO(synk): negative F.pad (cropping) not supported.
    padY, padX = dY // 2, dX // 2

    cd = compute_dtype
    # NHWC with spatial flattened: each block is a (pixels, channels) matrix for the MXU.
    x1 = jnp.transpose(x1_nchw, (0, 2, 3, 1)).reshape(N, H1 * W1, Cin).astype(cd)
    x2 = jnp.transpose(x2_nchw, (0, 2, 3, 1)).reshape(N, H2 * W2, Cs).astype(cd)

    # ConvTranspose weight (Cin, Ch, 2, 2) -> (Cin, 4*Ch); column = (dy, dx)-major, out-ch minor.
    wup4 = jnp.transpose(p['up_w'], (0, 2, 3, 1)).reshape(Cin, 4 * Ch).astype(cd)
    bup = p['up_b'].reshape(1, Ch).astype(jnp.float32)
    wsk = jnp.transpose(p['skip_w'][:, :, 0, 0], (1, 0)).astype(cd)          # (Cs, Ch)
    bsk = p['skip_b'].reshape(1, Ch).astype(jnp.float32)
    # dx-packed 3x3 weights (row index = dx*C + c), matching the in-kernel cat3/mid3 slabs.
    w1p = p['c1_w_hwio'].reshape(3, 3 * Cin, Cmid).astype(cd)                # (3, 3*Cin, Cmid)
    b1 = p['c1_b'].reshape(1, Cmid).astype(jnp.float32)
    w2p = p['c2_w_hwio'].reshape(3, 3 * Cmid, Cout).astype(cd)               # (3, 3*Cmid, Cout)
    b2 = p['c2_b'].reshape(1, Cout).astype(jnp.float32)

    # Parity-select interleave constants (hoisted out of the kernel, loaded once):
    # pw[dx][w, j] = (w == 2*j + dx), pre-broadcast over H1 so the kernel does a batched matmul.
    w_ids = jax.lax.broadcasted_iota(jnp.int32, (2 * W1, W1), 0)
    j_ids = jax.lax.broadcasted_iota(jnp.int32, (2 * W1, W1), 1)
    pw = jnp.stack([(w_ids == 2 * j_ids + dx).astype(jnp.float32) for dx in range(2)])
    pwb = jnp.broadcast_to(pw[:, None], (2, H1, 2 * W1, W1))

    flops = int(N * (
        (H1 * W1) * Cin * (4 * Ch) * 2                   # fused ConvTranspose matmul
        + 2 * 2 * H1 * (2 * W1) * W1 * Ch * 2            # parity-interleave batched matmuls
        + (H2 * W2) * Cs * Ch * 2                        # 1x1 skip conv
        + 3 * (H2 * W2) * (3 * Cin) * Cmid * 2           # DoubleConv stage 1 (dx-packed)
        + 3 * (H2 * W2) * (3 * Cmid) * Cout * 2))        # DoubleConv stage 2 (dx-packed)
    bytes_accessed = int(4 * (x1.size + x2.size + wup4.size + wsk.size + pwb.size
                              + w1p.size + w2p.size + bup.size + bsk.size + b1.size + b2.size
                              + N * H2 * W2 * Cout))

    kernel = _make_fused_kernel(H1, W1, H2, W2, Cin, Ch, Cmid, Cout, padY, padX)

    out_nhwc = pl.pallas_call(
        kernel,
        out_shape=jax.ShapeDtypeStruct((N, H2, W2, Cout), jnp.float32),
        grid=(N,),
        in_specs=[
            pl.BlockSpec((1, H1 * W1, Cin), lambda n: (n, 0, 0)),
            pl.BlockSpec((1, H2 * W2, Cs), lambda n: (n, 0, 0)),
            pl.BlockSpec((Cin, 4 * Ch), lambda n: (0, 0)),
            pl.BlockSpec((1, Ch), lambda n: (0, 0)),
            pl.BlockSpec((Cs, Ch), lambda n: (0, 0)),
            pl.BlockSpec((1, Ch), lambda n: (0, 0)),
            pl.BlockSpec((2, H1, 2 * W1, W1), lambda n: (0, 0, 0, 0)),
            pl.BlockSpec((3, 3 * Cin, Cmid), lambda n: (0, 0, 0)),
            pl.BlockSpec((1, Cmid), lambda n: (0, 0)),
            pl.BlockSpec((3, 3 * Cmid, Cout), lambda n: (0, 0, 0)),
            pl.BlockSpec((1, Cout), lambda n: (0, 0)),
        ],
        out_specs=pl.BlockSpec((1, H2, W2, Cout), lambda n: (n, 0, 0, 0)),
        scratch_shapes=[
            pltpu.VMEM((H2 + 2, W2 + 2, Cin), cd),       # padded concat(up, skip) input to conv1
            pltpu.VMEM((H2 + 2, W2, 3 * Cin), cd),       # dx-packed slab for conv1
            pltpu.VMEM((H2 + 2, W2 + 2, Cmid), cd),      # padded DoubleConv intermediate
            pltpu.VMEM((H2 + 2, W2, 3 * Cmid), cd),      # dx-packed slab for conv2
        ],
        compiler_params=pltpu.CompilerParams(dimension_semantics=("parallel",)),
        cost_estimate=pl.CostEstimate(flops=flops, transcendentals=0,
                                      bytes_accessed=bytes_accessed),
    )(x1, x2, wup4, bup, wsk, bsk, pwb, w1p, b1, w2p, b2)

    return jnp.transpose(out_nhwc, (0, 3, 1, 2))         # back to NCHW


# ----------------------------- parameters -----------------------------

def fold_bn(w_oihw, b, gamma, beta, mean, var, eps=1e-5):
    scale = gamma / jnp.sqrt(var + eps)
    return w_oihw * scale[:, None, None, None], (b - mean) * scale + beta


def make_params(key, in_channels, out_channels, skip_channels):
    Ch = in_channels // 2
    Cmid = out_channels
    ks = jax.random.split(key, 16)

    def rnd(k, shape, scale=0.1):
        return scale * jax.random.normal(k, shape, jnp.float32)

    up_w = rnd(ks[0], (in_channels, Ch, 2, 2))          # ConvTranspose2d weight (Cin, Cout, kH, kW)
    up_b = rnd(ks[1], (Ch,))
    skip_w = rnd(ks[2], (Ch, skip_channels, 1, 1))      # Conv2d 1x1 weight (O, I, 1, 1)
    skip_b = rnd(ks[3], (Ch,))
    c1_w = rnd(ks[4], (Cmid, in_channels, 3, 3))        # DoubleConv conv1 (O, I, 3, 3)
    c1_b = rnd(ks[5], (Cmid,))
    bn1 = (1.0 + rnd(ks[6], (Cmid,)), rnd(ks[7], (Cmid,)),
           rnd(ks[8], (Cmid,)), 1.0 + 0.1 * jax.random.uniform(ks[9], (Cmid,)))
    c2_w = rnd(ks[10], (out_channels, Cmid, 3, 3))      # DoubleConv conv2
    c2_b = rnd(ks[11], (out_channels,))
    bn2 = (1.0 + rnd(ks[12], (out_channels,)), rnd(ks[13], (out_channels,)),
           rnd(ks[14], (out_channels,)), 1.0 + 0.1 * jax.random.uniform(ks[15], (out_channels,)))

    c1_wf, c1_bf = fold_bn(c1_w, c1_b, *bn1)
    c2_wf, c2_bf = fold_bn(c2_w, c2_b, *bn2)
    return dict(
        up_w=up_w, up_b=up_b, skip_w=skip_w, skip_b=skip_b,
        c1_w_oihw=c1_wf, c1_b=c1_bf, c1_w_hwio=jnp.transpose(c1_wf, (2, 3, 1, 0)),
        c2_w_oihw=c2_wf, c2_b=c2_bf, c2_w_hwio=jnp.transpose(c2_wf, (2, 3, 1, 0)),
    )


# ----------------------------- pure-JAX reference -----------------------------

def upsample_da_reference(x1, x2, p):
    N, Cin, H1, W1 = x1.shape
    _, Cs, H2, W2 = x2.shape
    Ch = Cin // 2
    y = jnp.einsum('nchw,copq->nohpwq', x1, p['up_w']).reshape(N, Ch, 2 * H1, 2 * W1)
    y = y + p['up_b'][None, :, None, None]
    s = jnp.einsum('nchw,oc->nohw', x2, p['skip_w'][:, :, 0, 0]) + p['skip_b'][None, :, None, None]
    dY, dX = H2 - 2 * H1, W2 - 2 * W1
    y = jnp.pad(y, ((0, 0), (0, 0), (dY // 2, dY - dY // 2), (dX // 2, dX - dX // 2)))
    x = jnp.concatenate([y, s], axis=1)

    def conv3(x, w, b):
        out = jax.lax.conv_general_dilated(
            x, w, window_strides=(1, 1), padding=((1, 1), (1, 1)),
            dimension_numbers=('NCHW', 'OIHW', 'NCHW'))
        return jnp.maximum(out + b[None, :, None, None], 0.0)

    h = conv3(x, p['c1_w_oihw'], p['c1_b'])
    return conv3(h, p['c2_w_oihw'], p['c2_b'])


if __name__ == "__main__":
    key = jax.random.PRNGKey(0)
    k1, k2, kp = jax.random.split(key, 3)
    in_channels, out_channels, skip_channels = 8, 8, 6
    N, H1, W1 = 2, 8, 8      # x1 (deep feature) spatial
    H2, W2 = 16, 16          # x2 (skip) spatial = 2x

    x1 = jax.random.normal(k1, (N, in_channels, H1, W1), jnp.float32)
    x2 = jax.random.normal(k2, (N, skip_channels, H2, W2), jnp.float32)
    params = make_params(kp, in_channels, out_channels, skip_channels)

    fwd = jax.jit(upsample_da_pallas)
    out = jax.block_until_ready(fwd(x1, x2, params))
    ref = jax.block_until_ready(upsample_da_reference(x1, x2, params))

    assert out.shape == (N, out_channels, H2, W2), out.shape
    max_err = float(jnp.max(jnp.abs(out - ref)))
    assert jnp.allclose(out, ref, rtol=1e-4, atol=1e-4), max_err
    print("KERNEL_OK")
</pallas_src>

<mosaic_0001>
module attributes {stable_mosaic.version = 11 : i64} {
  func.func @kernel(%arg0: i32, %arg1: memref<1x64x8xf32, #tpu.memory_space<vmem>>, %arg2: memref<1x256x6xf32, #tpu.memory_space<vmem>>, %arg3: memref<8x16xf32, #tpu.memory_space<vmem>>, %arg4: memref<1x4xf32, #tpu.memory_space<vmem>>, %arg5: memref<6x4xf32, #tpu.memory_space<vmem>>, %arg6: memref<1x4xf32, #tpu.memory_space<vmem>>, %arg7: memref<2x8x16x8xf32, #tpu.memory_space<vmem>>, %arg8: memref<3x24x8xf32, #tpu.memory_space<vmem>>, %arg9: memref<1x8xf32, #tpu.memory_space<vmem>>, %arg10: memref<3x24x8xf32, #tpu.memory_space<vmem>>, %arg11: memref<1x8xf32, #tpu.memory_space<vmem>>, %arg12: memref<1x16x16x8xf32, #tpu.memory_space<vmem>>, %arg13: memref<18x18x8xf32, #tpu.memory_space<vmem>>, %arg14: memref<18x16x24xf32, #tpu.memory_space<vmem>>, %arg15: memref<18x18x8xf32, #tpu.memory_space<vmem>>, %arg16: memref<18x16x24xf32, #tpu.memory_space<vmem>>) attributes {dimension_semantics = [#tpu.dimension_semantics<parallel>], iteration_bounds = array<i64: 2>, scalar_prefetch = 0 : i64, scratch_operands = 4 : i64, tpu.core_type = #tpu.core_type<tc>, window_params = [{transform_indices = @transform_0, window_bounds = array<i64: 1, 64, 8>}, {transform_indices = @transform_1, window_bounds = array<i64: 1, 256, 6>}, {pipeline_mode = #tpu.pipeline_mode<synchronous>, transform_indices = @transform_2, window_bounds = array<i64: 8, 16>}, {pipeline_mode = #tpu.pipeline_mode<synchronous>, transform_indices = @transform_3, window_bounds = array<i64: 1, 4>}, {pipeline_mode = #tpu.pipeline_mode<synchronous>, transform_indices = @transform_4, window_bounds = array<i64: 6, 4>}, {pipeline_mode = #tpu.pipeline_mode<synchronous>, transform_indices = @transform_5, window_bounds = array<i64: 1, 4>}, {pipeline_mode = #tpu.pipeline_mode<synchronous>, transform_indices = @transform_6, window_bounds = array<i64: 2, 8, 16, 8>}, {pipeline_mode = #tpu.pipeline_mode<synchronous>, transform_indices = @transform_7, window_bounds = array<i64: 3, 24, 8>}, {pipeline_mode = #tpu.pipeline_mode<synchronous>, transform_indices = @transform_8, window_bounds = array<i64: 1, 8>}, {pipeline_mode = #tpu.pipeline_mode<synchronous>, transform_indices = @transform_9, window_bounds = array<i64: 3, 24, 8>}, {pipeline_mode = #tpu.pipeline_mode<synchronous>, transform_indices = @transform_10, window_bounds = array<i64: 1, 8>}, {transform_indices = @transform_11, window_bounds = array<i64: 1, 16, 16, 8>}]} {
    %cst = arith.constant 0.000000e+00 : f32
    %0 = vector.broadcast %cst : f32 to vector<1x18x8xf32>
    %c0 = arith.constant 0 : index
    %c0_0 = arith.constant 0 : index
    %c0_1 = arith.constant 0 : index
    %1 = vector.load %arg13[%c0, %c0_0, %c0_1] : memref<18x18x8xf32, #tpu.memory_space<vmem>>, vector<1x18x8xf32>
    tpu.vector_store %arg13[%c0, %c0_0, %c0_1], %0 {strides = array<i32>} : memref<18x18x8xf32, #tpu.memory_space<vmem>>, vector<1x18x8xf32>,
    %cst_2 = arith.constant 0.000000e+00 : f32
    %2 = vector.broadcast %cst_2 : f32 to vector<1x18x8xf32>
    %c17 = arith.constant 17 : index
    %c0_3 = arith.constant 0 : index
    %c0_4 = arith.constant 0 : index
    %3 = vector.load %arg13[%c17, %c0_3, %c0_4] : memref<18x18x8xf32, #tpu.memory_space<vmem>>, vector<1x18x8xf32>
    tpu.vector_store %arg13[%c17, %c0_3, %c0_4], %2 {strides = array<i32>} : memref<18x18x8xf32, #tpu.memory_space<vmem>>, vector<1x18x8xf32>,
    %cst_5 = arith.constant 0.000000e+00 : f32
    %4 = vector.broadcast %cst_5 : f32 to vector<18x1x8xf32>
    %c0_6 = arith.constant 0 : index
    %c0_7 = arith.constant 0 : index
    %c0_8 = arith.constant 0 : index
    %5 = vector.load %arg13[%c0_6, %c0_7, %c0_8] : memref<18x18x8xf32, #tpu.memory_space<vmem>>, vector<18x1x8xf32>
    tpu.vector_store %arg13[%c0_6, %c0_7, %c0_8], %4 {strides = array<i32>} : memref<18x18x8xf32, #tpu.memory_space<vmem>>, vector<18x1x8xf32>,
    %cst_9 = arith.constant 0.000000e+00 : f32
    %6 = vector.broadcast %cst_9 : f32 to vector<18x1x8xf32>
    %c0_10 = arith.constant 0 : index
    %c17_11 = arith.constant 17 : index
    %c0_12 = arith.constant 0 : index
    %7 = vector.load %arg13[%c0_10, %c17_11, %c0_12] : memref<18x18x8xf32, #tpu.memory_space<vmem>>, vector<18x1x8xf32>
    tpu.vector_store %arg13[%c0_10, %c17_11, %c0_12], %6 {strides = array<i32>} : memref<18x18x8xf32, #tpu.memory_space<vmem>>, vector<18x1x8xf32>,
    %cst_13 = arith.constant 0.000000e+00 : f32
    %8 = vector.broadcast %cst_13 : f32 to vector<1x18x8xf32>
    %c0_14 = arith.constant 0 : index
    %c0_15 = arith.constant 0 : index
    %c0_16 = arith.constant 0 : index
    %9 = vector.load %arg15[%c0_14, %c0_15, %c0_16] : memref<18x18x8xf32, #tpu.memory_space<vmem>>, vector<1x18x8xf32>
    tpu.vector_store %arg15[%c0_14, %c0_15, %c0_16], %8 {strides = array<i32>} : memref<18x18x8xf32, #tpu.memory_space<vmem>>, vector<1x18x8xf32>,
    %cst_17 = arith.constant 0.000000e+00 : f32
    %10 = vector.broadcast %cst_17 : f32 to vector<1x18x8xf32>
    %c17_18 = arith.constant 17 : index
    %c0_19 = arith.constant 0 : index
    %c0_20 = arith.constant 0 : index
    %11 = vector.load %arg15[%c17_18, %c0_19, %c0_20] : memref<18x18x8xf32, #tpu.memory_space<vmem>>, vector<1x18x8xf32>
    tpu.vector_store %arg15[%c17_18, %c0_19, %c0_20], %10 {strides = array<i32>} : memref<18x18x8xf32, #tpu.memory_space<vmem>>, vector<1x18x8xf32>,
    %cst_21 = arith.constant 0.000000e+00 : f32
    %12 = vector.broadcast %cst_21 : f32 to vector<18x1x8xf32>
    %c0_22 = arith.constant 0 : index
    %c0_23 = arith.constant 0 : index
    %c0_24 = arith.constant 0 : index
    %13 = vector.load %arg15[%c0_22, %c0_23, %c0_24] : memref<18x18x8xf32, #tpu.memory_space<vmem>>, vector<18x1x8xf32>
    tpu.vector_store %arg15[%c0_22, %c0_23, %c0_24], %12 {strides = array<i32>} : memref<18x18x8xf32, #tpu.memory_space<vmem>>, vector<18x1x8xf32>,
    %cst_25 = arith.constant 0.000000e+00 : f32
    %14 = vector.broadcast %cst_25 : f32 to vector<18x1x8xf32>
    %c0_26 = arith.constant 0 : index
    %c17_27 = arith.constant 17 : index
    %c0_28 = arith.constant 0 : index
    %15 = vector.load %arg15[%c0_26, %c17_27, %c0_28] : memref<18x18x8xf32, #tpu.memory_space<vmem>>, vector<18x1x8xf32>
    tpu.vector_store %arg15[%c0_26, %c17_27, %c0_28], %14 {strides = array<i32>} : memref<18x18x8xf32, #tpu.memory_space<vmem>>, vector<18x1x8xf32>,
    %c0_29 = arith.constant 0 : index
    %c0_30 = arith.constant 0 : index
    %c0_31 = arith.constant 0 : index
    %16 = vector.load %arg1[%c0_29, %c0_30, %c0_31] : memref<1x64x8xf32, #tpu.memory_space<vmem>>, vector<1x64x8xf32>
    %17 = vector.shape_cast %16 : vector<1x64x8xf32> to vector<64x8xf32>
    %c0_32 = arith.constant 0 : index
    %c0_33 = arith.constant 0 : index
    %18 = vector.load %arg3[%c0_32, %c0_33] : memref<8x16xf32, #tpu.memory_space<vmem>>, vector<8x16xf32>
    %cst_34 = arith.constant dense<0.000000e+00> : vector<64x16xf32>
    %19 = tpu.matmul %17, %18, %cst_34 {dimension_numbers = #tpu.dot_dimension_numbers<[1], [0], [0], [1], [0, 0, 1, 1], [], []>} : vector<64x8xf32>, vector<8x16xf32>, vector<64x16xf32> -> vector<64x16xf32>
    %c0_35 = arith.constant 0 : index
    %c0_36 = arith.constant 0 : index
    %c0_37 = arith.constant 0 : index
    %c0_38 = arith.constant 0 : index
    %20 = vector.load %arg7[%c0_35, %c0_36, %c0_37, %c0_38] : memref<2x8x16x8xf32, #tpu.memory_space<vmem>>, vector<1x8x16x8xf32>
    %21 = vector.shape_cast %20 : vector<1x8x16x8xf32> to vector<8x16x8xf32>
    %c1 = arith.constant 1 : index
    %c0_39 = arith.constant 0 : index
    %c0_40 = arith.constant 0 : index
    %c0_41 = arith.constant 0 : index
    %22 = vector.load %arg7[%c1, %c0_39, %c0_40, %c0_41] : memref<2x8x16x8xf32, #tpu.memory_space<vmem>>, vector<1x8x16x8xf32>
    %23 = vector.shape_cast %22 : vector<1x8x16x8xf32> to vector<8x16x8xf32>
    %24 = vector.extract_strided_slice %19 {offsets = [0, 0], sizes = [64, 4], strides = [1, 1]} : vector<64x16xf32> to vector<64x4xf32>
    %25 = vector.shape_cast %24 : vector<64x4xf32> to vector<8x8x4xf32>
    %26 = vector.extract_strided_slice %19 {offsets = [0, 4], sizes = [64, 4], strides = [1, 1]} : vector<64x16xf32> to vector<64x4xf32>
    %27 = vector.shape_cast %26 : vector<64x4xf32> to vector<8x8x4xf32>
    "tpu.trace_start"() <{level = 10 : i32, message = "hwj,hjc->hwc"}> : () -> ()
    %cst_42 = arith.constant dense<0.000000e+00> : vector<8x16x4xf32>
    %28 = tpu.matmul %21, %25, %cst_42 {dimension_numbers = #tpu.dot_dimension_numbers<[2], [1], [1], [2], [0, 0, 0, 1, 1, 2], [0], [0]>} : vector<8x16x8xf32>, vector<8x8x4xf32>, vector<8x16x4xf32> -> vector<8x16x4xf32>
    %cst_43 = arith.constant dense<0.000000e+00> : vector<8x16x4xf32>
    %29 = tpu.matmul %23, %27, %cst_43 {dimension_numbers = #tpu.dot_dimension_numbers<[2], [1], [1], [2], [0, 0, 0, 1, 1, 2], [0], [0]>} : vector<8x16x8xf32>, vector<8x8x4xf32>, vector<8x16x4xf32> -> vector<8x16x4xf32>
    "tpu.trace_stop"() : () -> ()
    %30 = arith.addf %28, %29 : vector<8x16x4xf32>
    %31 = vector.shape_cast %30 : vector<8x16x4xf32> to vector<8x1x16x4xf32>
    %32 = vector.extract_strided_slice %19 {offsets = [0, 8], sizes = [64, 4], strides = [1, 1]} : vector<64x16xf32> to vector<64x4xf32>
    %33 = vector.shape_cast %32 : vector<64x4xf32> to vector<8x8x4xf32>
    %34 = vector.extract_strided_slice %19 {offsets = [0, 12], sizes = [64, 4], strides = [1, 1]} : vector<64x16xf32> to vector<64x4xf32>
    %35 = vector.shape_cast %34 : vector<64x4xf32> to vector<8x8x4xf32>
    "tpu.trace_start"() <{level = 10 : i32, message = "hwj,hjc->hwc"}> : () -> ()
    %cst_44 = arith.constant dense<0.000000e+00> : vector<8x16x4xf32>
    %36 = tpu.matmul %21, %33, %cst_44 {dimension_numbers = #tpu.dot_dimension_numbers<[2], [1], [1], [2], [0, 0, 0, 1, 1, 2], [0], [0]>} : vector<8x16x8xf32>, vector<8x8x4xf32>, vector<8x16x4xf32> -> vector<8x16x4xf32>
    %cst_45 = arith.constant dense<0.000000e+00> : vector<8x16x4xf32>
    %37 = tpu.matmul %23, %35, %cst_45 {dimension_numbers = #tpu.dot_dimension_numbers<[2], [1], [1], [2], [0, 0, 0, 1, 1, 2], [0], [0]>} : vector<8x16x8xf32>, vector<8x8x4xf32>, vector<8x16x4xf32> -> vector<8x16x4xf32>
    "tpu.trace_stop"() : () -> ()
    %38 = arith.addf %36, %37 : vector<8x16x4xf32>
    %39 = vector.shape_cast %38 : vector<8x16x4xf32> to vector<8x1x16x4xf32>
    %40 = tpu.concatenate %31, %39 in 1 : vector<8x1x16x4xf32>, vector<8x1x16x4xf32> -> vector<8x2x16x4xf32>
    %41 = vector.shape_cast %40 : vector<8x2x16x4xf32> to vector<16x16x4xf32>
    %c0_46 = arith.constant 0 : index
    %c0_47 = arith.constant 0 : index
    %42 = vector.load %arg4[%c0_46, %c0_47] : memref<1x4xf32, #tpu.memory_space<vmem>>, vector<1x4xf32>
    %43 = vector.shape_cast %42 : vector<1x4xf32> to vector<1x1x4xf32>
    %44 = vector.broadcast %43 : vector<1x1x4xf32> to vector<16x16x4xf32>
    %45 = arith.addf %41, %44 : vector<16x16x4xf32>
    %c1_48 = arith.constant 1 : index
    %c1_49 = arith.constant 1 : index
    %c0_50 = arith.constant 0 : index
    %46 = vector.load %arg13[%c1_48, %c1_49, %c0_50] : memref<18x18x8xf32, #tpu.memory_space<vmem>>, vector<16x16x4xf32>
    tpu.vector_store %arg13[%c1_48, %c1_49, %c0_50], %45 {strides = array<i32>} : memref<18x18x8xf32, #tpu.memory_space<vmem>>, vector<16x16x4xf32>,
    %c0_51 = arith.constant 0 : index
    %c0_52 = arith.constant 0 : index
    %c0_53 = arith.constant 0 : index
    %47 = vector.load %arg2[%c0_51, %c0_52, %c0_53] : memref<1x256x6xf32, #tpu.memory_space<vmem>>, vector<1x256x6xf32>
    %48 = vector.shape_cast %47 : vector<1x256x6xf32> to vector<256x6xf32>
    %c0_54 = arith.constant 0 : index
    %c0_55 = arith.constant 0 : index
    %49 = vector.load %arg5[%c0_54, %c0_55] : memref<6x4xf32, #tpu.memory_space<vmem>>, vector<6x4xf32>
    %cst_56 = arith.constant dense<0.000000e+00> : vector<256x4xf32>
    %50 = tpu.matmul %48, %49, %cst_56 {dimension_numbers = #tpu.dot_dimension_numbers<[1], [0], [0], [1], [0, 0, 1, 1], [], []>} : vector<256x6xf32>, vector<6x4xf32>, vector<256x4xf32> -> vector<256x4xf32>
    %c0_57 = arith.constant 0 : index
    %c0_58 = arith.constant 0 : index
    %51 = vector.load %arg6[%c0_57, %c0_58] : memref<1x4xf32, #tpu.memory_space<vmem>>, vector<1x4xf32>
    %52 = vector.broadcast %51 : vector<1x4xf32> to vector<256x4xf32>
    %53 = arith.addf %50, %52 : vector<256x4xf32>
    %54 = vector.shape_cast %53 : vector<256x4xf32> to vector<16x16x4xf32>
    %c1_59 = arith.constant 1 : index
    %c1_60 = arith.constant 1 : index
    %c4 = arith.constant 4 : index
    %55 = vector.load %arg13[%c1_59, %c1_60, %c4] : memref<18x18x8xf32, #tpu.memory_space<vmem>>, vector<16x16x4xf32>
    tpu.vector_store %arg13[%c1_59, %c1_60, %c4], %54 {strides = array<i32>} : memref<18x18x8xf32, #tpu.memory_space<vmem>>, vector<16x16x4xf32>,
    %c0_61 = arith.constant 0 : index
    %c0_62 = arith.constant 0 : index
    %c0_63 = arith.constant 0 : index
    %56 = vector.load %arg13[%c0_61, %c0_62, %c0_63] : memref<18x18x8xf32, #tpu.memory_space<vmem>>, vector<18x16x8xf32>
    %c0_64 = arith.constant 0 : index
    %c0_65 = arith.constant 0 : index
    %c0_66 = arith.constant 0 : index
    %57 = vector.load %arg14[%c0_64, %c0_65, %c0_66] : memref<18x16x24xf32, #tpu.memory_space<vmem>>, vector<18x16x8xf32>
    tpu.vector_store %arg14[%c0_64, %c0_65, %c0_66], %56 {strides = array<i32>} : memref<18x16x24xf32, #tpu.memory_space<vmem>>, vector<18x16x8xf32>,
    %c0_67 = arith.constant 0 : index
    %c1_68 = arith.constant 1 : index
    %c0_69 = arith.constant 0 : index
    %58 = vector.load %arg13[%c0_67, %c1_68, %c0_69] : memref<18x18x8xf32, #tpu.memory_space<vmem>>, vector<18x16x8xf32>
    %c0_70 = arith.constant 0 : index
    %c0_71 = arith.constant 0 : index
    %c8 = arith.constant 8 : index
    %59 = vector.load %arg14[%c0_70, %c0_71, %c8] : memref<18x16x24xf32, #tpu.memory_space<vmem>>, vector<18x16x8xf32>
    tpu.vector_store %arg14[%c0_70, %c0_71, %c8], %58 {strides = array<i32>} : memref<18x16x24xf32, #tpu.memory_space<vmem>>, vector<18x16x8xf32>,
    %c0_72 = arith.constant 0 : index
    %c2 = arith.constant 2 : index
    %c0_73 = arith.constant 0 : index
    %60 = vector.load %arg13[%c0_72, %c2, %c0_73] : memref<18x18x8xf32, #tpu.memory_space<vmem>>, vector<18x16x8xf32>
    %c0_74 = arith.constant 0 : index
    %c0_75 = arith.constant 0 : index
    %c16 = arith.constant 16 : index
    %61 = vector.load %arg14[%c0_74, %c0_75, %c16] : memref<18x16x24xf32, #tpu.memory_space<vmem>>, vector<18x16x8xf32>
    tpu.vector_store %arg14[%c0_74, %c0_75, %c16], %60 {strides = array<i32>} : memref<18x16x24xf32, #tpu.memory_space<vmem>>, vector<18x16x8xf32>,
    %c0_76 = arith.constant 0 : index
    %c0_77 = arith.constant 0 : index
    %c0_78 = arith.constant 0 : index
    %62 = vector.load %arg14[%c0_76, %c0_77, %c0_78] : memref<18x16x24xf32, #tpu.memory_space<vmem>>, vector<16x16x24xf32>
    %63 = vector.shape_cast %62 : vector<16x16x24xf32> to vector<256x24xf32>
    %c0_79 = arith.constant 0 : index
    %c0_80 = arith.constant 0 : index
    %c0_81 = arith.constant 0 : index
    %64 = vector.load %arg8[%c0_79, %c0_80, %c0_81] : memref<3x24x8xf32, #tpu.memory_space<vmem>>, vector<1x24x8xf32>
    %65 = vector.shape_cast %64 : vector<1x24x8xf32> to vector<24x8xf32>
    %cst_82 = arith.constant dense<0.000000e+00> : vector<256x8xf32>
    %66 = tpu.matmul %63, %65, %cst_82 {dimension_numbers = #tpu.dot_dimension_numbers<[1], [0], [0], [1], [0, 0, 1, 1], [], []>} : vector<256x24xf32>, vector<24x8xf32>, vector<256x8xf32> -> vector<256x8xf32>
    %c1_83 = arith.constant 1 : index
    %c0_84 = arith.constant 0 : index
    %c0_85 = arith.constant 0 : index
    %67 = vector.load %arg14[%c1_83, %c0_84, %c0_85] : memref<18x16x24xf32, #tpu.memory_space<vmem>>, vector<16x16x24xf32>
    %68 = vector.shape_cast %67 : vector<16x16x24xf32> to vector<256x24xf32>
    %c1_86 = arith.constant 1 : index
    %c0_87 = arith.constant 0 : index
    %c0_88 = arith.constant 0 : index
    %69 = vector.load %arg8[%c1_86, %c0_87, %c0_88] : memref<3x24x8xf32, #tpu.memory_space<vmem>>, vector<1x24x8xf32>
    %70 = vector.shape_cast %69 : vector<1x24x8xf32> to vector<24x8xf32>
    %cst_89 = arith.constant dense<0.000000e+00> : vector<256x8xf32>
    %71 = tpu.matmul %68, %70, %cst_89 {dimension_numbers = #tpu.dot_dimension_numbers<[1], [0], [0], [1], [0, 0, 1, 1], [], []>} : vector<256x24xf32>, vector<24x8xf32>, vector<256x8xf32> -> vector<256x8xf32>
    %72 = arith.addf %66, %71 : vector<256x8xf32>
    %c2_90 = arith.constant 2 : index
    %c0_91 = arith.constant 0 : index
    %c0_92 = arith.constant 0 : index
    %73 = vector.load %arg14[%c2_90, %c0_91, %c0_92] : memref<18x16x24xf32, #tpu.memory_space<vmem>>, vector<16x16x24xf32>
    %74 = vector.shape_cast %73 : vector<16x16x24xf32> to vector<256x24xf32>
    %c2_93 = arith.constant 2 : index
    %c0_94 = arith.constant 0 : index
    %c0_95 = arith.constant 0 : index
    %75 = vector.load %arg8[%c2_93, %c0_94, %c0_95] : memref<3x24x8xf32, #tpu.memory_space<vmem>>, vector<1x24x8xf32>
    %76 = vector.shape_cast %75 : vector<1x24x8xf32> to vector<24x8xf32>
    %cst_96 = arith.constant dense<0.000000e+00> : vector<256x8xf32>
    %77 = tpu.matmul %74, %76, %cst_96 {dimension_numbers = #tpu.dot_dimension_numbers<[1], [0], [0], [1], [0, 0, 1, 1], [], []>} : vector<256x24xf32>, vector<24x8xf32>, vector<256x8xf32> -> vector<256x8xf32>
    %78 = arith.addf %72, %77 : vector<256x8xf32>
    %c0_97 = arith.constant 0 : index
    %c0_98 = arith.constant 0 : index
    %79 = vector.load %arg9[%c0_97, %c0_98] : memref<1x8xf32, #tpu.memory_space<vmem>>, vector<1x8xf32>
    %80 = vector.broadcast %79 : vector<1x8xf32> to vector<256x8xf32>
    %81 = arith.addf %78, %80 : vector<256x8xf32>
    %cst_99 = arith.constant 0.000000e+00 : f32
    %82 = vector.broadcast %cst_99 : f32 to vector<256x8xf32>
    %83 = arith.maximumf %81, %82 : vector<256x8xf32>
    %84 = vector.shape_cast %83 : vector<256x8xf32> to vector<16x16x8xf32>
    %c1_100 = arith.constant 1 : index
    %c1_101 = arith.constant 1 : index
    %c0_102 = arith.constant 0 : index
    %85 = vector.load %arg15[%c1_100, %c1_101, %c0_102] : memref<18x18x8xf32, #tpu.memory_space<vmem>>, vector<16x16x8xf32>
    tpu.vector_store %arg15[%c1_100, %c1_101, %c0_102], %84 {strides = array<i32>} : memref<18x18x8xf32, #tpu.memory_space<vmem>>, vector<16x16x8xf32>,
    %c0_103 = arith.constant 0 : index
    %c0_104 = arith.constant 0 : index
    %c0_105 = arith.constant 0 : index
    %86 = vector.load %arg15[%c0_103, %c0_104, %c0_105] : memref<18x18x8xf32, #tpu.memory_space<vmem>>, vector<18x16x8xf32>
    %c0_106 = arith.constant 0 : index
    %c0_107 = arith.constant 0 : index
    %c0_108 = arith.constant 0 : index
    %87 = vector.load %arg16[%c0_106, %c0_107, %c0_108] : memref<18x16x24xf32, #tpu.memory_space<vmem>>, vector<18x16x8xf32>
    tpu.vector_store %arg16[%c0_106, %c0_107, %c0_108], %86 {strides = array<i32>} : memref<18x16x24xf32, #tpu.memory_space<vmem>>, vector<18x16x8xf32>,
    %c0_109 = arith.constant 0 : index
    %c1_110 = arith.constant 1 : index
    %c0_111 = arith.constant 0 : index
    %88 = vector.load %arg15[%c0_109, %c1_110, %c0_111] : memref<18x18x8xf32, #tpu.memory_space<vmem>>, vector<18x16x8xf32>
    %c0_112 = arith.constant 0 : index
    %c0_113 = arith.constant 0 : index
    %c8_114 = arith.constant 8 : index
    %89 = vector.load %arg16[%c0_112, %c0_113, %c8_114] : memref<18x16x24xf32, #tpu.memory_space<vmem>>, vector<18x16x8xf32>
    tpu.vector_store %arg16[%c0_112, %c0_113, %c8_114], %88 {strides = array<i32>} : memref<18x16x24xf32, #tpu.memory_space<vmem>>, vector<18x16x8xf32>,
    %c0_115 = arith.constant 0 : index
    %c2_116 = arith.constant 2 : index
    %c0_117 = arith.constant 0 : index
    %90 = vector.load %arg15[%c0_115, %c2_116, %c0_117] : memref<18x18x8xf32, #tpu.memory_space<vmem>>, vector<18x16x8xf32>
    %c0_118 = arith.constant 0 : index
    %c0_119 = arith.constant 0 : index
    %c16_120 = arith.constant 16 : index
    %91 = vector.load %arg16[%c0_118, %c0_119, %c16_120] : memref<18x16x24xf32, #tpu.memory_space<vmem>>, vector<18x16x8xf32>
    tpu.vector_store %arg16[%c0_118, %c0_119, %c16_120], %90 {strides = array<i32>} : memref<18x16x24xf32, #tpu.memory_space<vmem>>, vector<18x16x8xf32>,
    %c0_121 = arith.constant 0 : index
    %c0_122 = arith.constant 0 : index
    %c0_123 = arith.constant 0 : index
    %92 = vector.load %arg16[%c0_121, %c0_122, %c0_123] : memref<18x16x24xf32, #tpu.memory_space<vmem>>, vector<16x16x24xf32>
    %93 = vector.shape_cast %92 : vector<16x16x24xf32> to vector<256x24xf32>
    %c0_124 = arith.constant 0 : index
    %c0_125 = arith.constant 0 : index
    %c0_126 = arith.constant 0 : index
    %94 = vector.load %arg10[%c0_124, %c0_125, %c0_126] : memref<3x24x8xf32, #tpu.memory_space<vmem>>, vector<1x24x8xf32>
    %95 = vector.shape_cast %94 : vector<1x24x8xf32> to vector<24x8xf32>
    %cst_127 = arith.constant dense<0.000000e+00> : vector<256x8xf32>
    %96 = tpu.matmul %93, %95, %cst_127 {dimension_numbers = #tpu.dot_dimension_numbers<[1], [0], [0], [1], [0, 0, 1, 1], [], []>} : vector<256x24xf32>, vector<24x8xf32>, vector<256x8xf32> -> vector<256x8xf32>
    %c1_128 = arith.constant 1 : index
    %c0_129 = arith.constant 0 : index
    %c0_130 = arith.constant 0 : index
    %97 = vector.load %arg16[%c1_128, %c0_129, %c0_130] : memref<18x16x24xf32, #tpu.memory_space<vmem>>, vector<16x16x24xf32>
    %98 = vector.shape_cast %97 : vector<16x16x24xf32> to vector<256x24xf32>
    %c1_131 = arith.constant 1 : index
    %c0_132 = arith.constant 0 : index
    %c0_133 = arith.constant 0 : index
    %99 = vector.load %arg10[%c1_131, %c0_132, %c0_133] : memref<3x24x8xf32, #tpu.memory_space<vmem>>, vector<1x24x8xf32>
    %100 = vector.shape_cast %99 : vector<1x24x8xf32> to vector<24x8xf32>
    %cst_134 = arith.constant dense<0.000000e+00> : vector<256x8xf32>
    %101 = tpu.matmul %98, %100, %cst_134 {dimension_numbers = #tpu.dot_dimension_numbers<[1], [0], [0], [1], [0, 0, 1, 1], [], []>} : vector<256x24xf32>, vector<24x8xf32>, vector<256x8xf32> -> vector<256x8xf32>
    %102 = arith.addf %96, %101 : vector<256x8xf32>
    %c2_135 = arith.constant 2 : index
    %c0_136 = arith.constant 0 : index
    %c0_137 = arith.constant 0 : index
    %103 = vector.load %arg16[%c2_135, %c0_136, %c0_137] : memref<18x16x24xf32, #tpu.memory_space<vmem>>, vector<16x16x24xf32>
    %104 = vector.shape_cast %103 : vector<16x16x24xf32> to vector<256x24xf32>
    %c2_138 = arith.constant 2 : index
    %c0_139 = arith.constant 0 : index
    %c0_140 = arith.constant 0 : index
    %105 = vector.load %arg10[%c2_138, %c0_139, %c0_140] : memref<3x24x8xf32, #tpu.memory_space<vmem>>, vector<1x24x8xf32>
    %106 = vector.shape_cast %105 : vector<1x24x8xf32> to vector<24x8xf32>
    %cst_141 = arith.constant dense<0.000000e+00> : vector<256x8xf32>
    %107 = tpu.matmul %104, %106, %cst_141 {dimension_numbers = #tpu.dot_dimension_numbers<[1], [0], [0], [1], [0, 0, 1, 1], [], []>} : vector<256x24xf32>, vector<24x8xf32>, vector<256x8xf32> -> vector<256x8xf32>
    %108 = arith.addf %102, %107 : vector<256x8xf32>
    %c0_142 = arith.constant 0 : index
    %c0_143 = arith.constant 0 : index
    %109 = vector.load %arg11[%c0_142, %c0_143] : memref<1x8xf32, #tpu.memory_space<vmem>>, vector<1x8xf32>
    %110 = vector.broadcast %109 : vector<1x8xf32> to vector<256x8xf32>
    %111 = arith.addf %108, %110 : vector<256x8xf32>
    %cst_144 = arith.constant 0.000000e+00 : f32
    %112 = vector.broadcast %cst_144 : f32 to vector<256x8xf32>
    %113 = arith.maximumf %111, %112 : vector<256x8xf32>
    %114 = vector.shape_cast %113 : vector<256x8xf32> to vector<1x16x16x8xf32>
    %c0_145 = arith.constant 0 : index
    %c0_146 = arith.constant 0 : index
    %c0_147 = arith.constant 0 : index
    %c0_148 = arith.constant 0 : index
    %115 = vector.load %arg12[%c0_145, %c0_146, %c0_147, %c0_148] : memref<1x16x16x8xf32, #tpu.memory_space<vmem>>, vector<1x16x16x8xf32>
    tpu.vector_store %arg12[%c0_145, %c0_146, %c0_147, %c0_148], %114 {strides = array<i32>} : memref<1x16x16x8xf32, #tpu.memory_space<vmem>>, vector<1x16x16x8xf32>,
    return
  }
  func.func @transform_0(%arg0: i32) -> (i32, i32, i32) {
    %c0_i32 = arith.constant 0 : i32
    %c0_i32_0 = arith.constant 0 : i32
    %c0_i32_1 = arith.constant 0 : i32
    return %arg0, %c0_i32, %c0_i32_0 : i32, i32, i32
  }
  func.func @transform_1(%arg0: i32) -> (i32, i32, i32) {
    %c0_i32 = arith.constant 0 : i32
    %c0_i32_0 = arith.constant 0 : i32
    %c0_i32_1 = arith.constant 0 : i32
    return %arg0, %c0_i32, %c0_i32_0 : i32, i32, i32
  }
  func.func @transform_2(%arg0: i32) -> (i32, i32) {
    %c0_i32 = arith.constant 0 : i32
    %c0_i32_0 = arith.constant 0 : i32
    %c0_i32_1 = arith.constant 0 : i32
    return %c0_i32, %c0_i32_0 : i32, i32
  }
  func.func @transform_3(%arg0: i32) -> (i32, i32) {
    %c0_i32 = arith.constant 0 : i32
    %c0_i32_0 = arith.constant 0 : i32
    %c0_i32_1 = arith.constant 0 : i32
    return %c0_i32, %c0_i32_0 : i32, i32
  }
  func.func @transform_4(%arg0: i32) -> (i32, i32) {
    %c0_i32 = arith.constant 0 : i32
    %c0_i32_0 = arith.constant 0 : i32
    %c0_i32_1 = arith.constant 0 : i32
    return %c0_i32, %c0_i32_0 : i32, i32
  }
  func.func @transform_5(%arg0: i32) -> (i32, i32) {
    %c0_i32 = arith.constant 0 : i32
    %c0_i32_0 = arith.constant 0 : i32
    %c0_i32_1 = arith.constant 0 : i32
    return %c0_i32, %c0_i32_0 : i32, i32
  }
  func.func @transform_6(%arg0: i32) -> (i32, i32, i32, i32) {
    %c0_i32 = arith.constant 0 : i32
    %c0_i32_0 = arith.constant 0 : i32
    %c0_i32_1 = arith.constant 0 : i32
    %c0_i32_2 = arith.constant 0 : i32
    %c0_i32_3 = arith.constant 0 : i32
    return %c0_i32, %c0_i32_0, %c0_i32_1, %c0_i32_2 : i32, i32, i32, i32
  }
  func.func @transform_7(%arg0: i32) -> (i32, i32, i32) {
    %c0_i32 = arith.constant 0 : i32
    %c0_i32_0 = arith.constant 0 : i32
    %c0_i32_1 = arith.constant 0 : i32
    %c0_i32_2 = arith.constant 0 : i32
    return %c0_i32, %c0_i32_0, %c0_i32_1 : i32, i32, i32
  }
  func.func @transform_8(%arg0: i32) -> (i32, i32) {
    %c0_i32 = arith.constant 0 : i32
    %c0_i32_0 = arith.constant 0 : i32
    %c0_i32_1 = arith.constant 0 : i32
    return %c0_i32, %c0_i32_0 : i32, i32
  }
  func.func @transform_9(%arg0: i32) -> (i32, i32, i32) {
    %c0_i32 = arith.constant 0 : i32
    %c0_i32_0 = arith.constant 0 : i32
    %c0_i32_1 = arith.constant 0 : i32
    %c0_i32_2 = arith.constant 0 : i32
    return %c0_i32, %c0_i32_0, %c0_i32_1 : i32, i32, i32
  }
  func.func @transform_10(%arg0: i32) -> (i32, i32) {
    %c0_i32 = arith.constant 0 : i32
    %c0_i32_0 = arith.constant 0 : i32
    %c0_i32_1 = arith.constant 0 : i32
    return %c0_i32, %c0_i32_0 : i32, i32
  }
  func.func @transform_11(%arg0: i32) -> (i32, i32, i32, i32) {
    %c0_i32 = arith.constant 0 : i32
    %c0_i32_0 = arith.constant 0 : i32
    %c0_i32_1 = arith.constant 0 : i32
    %c0_i32_2 = arith.constant 0 : i32
    return %arg0, %c0_i32, %c0_i32_0, %c0_i32_1 : i32, i32, i32, i32
  }
}

</mosaic_0001>

<llo_original>
// kernel: upsample_da_pallas.1
$region0: #{upsample_da_pallas.1}
  #allocation0 [shape = 'u32[]', space=smem, size = 0x4, offset = 0x4, fixed_abs, tag = 'smem constant byte address 0x4 - core index']
  #allocation1 [shape = 'u32[144,128]{1,0:T(1,128)}', space=vmem, size = 0x12000, scoped, tag = 'internal scratch']
  #allocation2 [shape = 'f32[18,18,8]{2,1,0:T(8,128)}', space=vmem, size = 0x36000, scoped, tag = 'scratch operand']
  #allocation3 [shape = 'f32[18,16,24]{2,1,0:T(8,128)}', space=vmem, size = 0x24000, scoped, tag = 'scratch operand']
  #allocation4 [shape = 'f32[18,18,8]{2,1,0:T(8,128)}', space=vmem, size = 0x36000, scoped, tag = 'scratch operand']
  #allocation5 [shape = 'f32[18,16,24]{2,1,0:T(8,128)}', space=vmem, size = 0x24000, scoped, tag = 'scratch operand']
  %s0 = inlined_call_operand.vmem [shape: f32[2,64,8], index: 0, kind: input, shape index: {}]
  %s1 = inlined_call_operand.vmem [shape: f32[2,256,6], index: 1, kind: input, shape index: {}]
  %s2 = inlined_call_operand.vmem [shape: f32[8,16], index: 2, kind: input, shape index: {}]
  %s3 = inlined_call_operand.vmem [shape: f32[1,4], index: 3, kind: input, shape index: {}]
  %s4 = inlined_call_operand.vmem [shape: f32[6,4], index: 4, kind: input, shape index: {}]
  %s5 = inlined_call_operand.vmem [shape: f32[1,4], index: 5, kind: input, shape index: {}]
  %s6 = inlined_call_operand.vmem [shape: f32[2,8,16,8], index: 6, kind: input, shape index: {}]
  %s7 = inlined_call_operand.vmem [shape: f32[3,24,8], index: 7, kind: input, shape index: {}]
  %s8 = inlined_call_operand.vmem [shape: f32[1,8], index: 8, kind: input, shape index: {}]
  %s9 = inlined_call_operand.vmem [shape: f32[3,24,8], index: 9, kind: input, shape index: {}]
  %s10 = inlined_call_operand.vmem [shape: f32[1,8], index: 10, kind: input, shape index: {}]
  %s11 = inlined_call_operand.vmem [shape: f32[2,16,16,8], index: 11, kind: output, shape index: {}]
  %s12 = sld [smem:[#allocation0]]
  $region77: #{upsample_da_pallas.1} parent=0
    _
  %s14 = ssub.s32 1, %s12
  %s15 = scalar_select 0, %s14, %s12
  loop: start=0, step=1, limit=4
  $region2: #{upsample_da_pallas.1} parent=0 // loop_pre_header
    _
  $region3: #{upsample_da_pallas.1} parent=0 // loop_header
    %s17 = sphi 0, %s21
    %p18 = scmp.ge.s32.totalorder %s17, 4
    %s27 = sphi 0, %s29
    %s30 = sphi 0, %s27
    %s31 = sphi 0, %s30
    %s47 = sphi 0, %s31
    %s53 = sphi 0, %s55
    %s56 = sphi 0, %s53
    %s57 = sphi 0, %s56
    %s73 = sphi 0, %s57
    %s77 = sphi 0, %s77
    %s79 = sphi 0, %s77
    %s80 = sphi 0, %s79
    %s94 = sphi 0, %s80
    %s98 = sphi 0, %s98
    %s100 = sphi 0, %s98
    %s101 = sphi 0, %s100
    %s115 = sphi 0, %s101
    %s119 = sphi 0, %s119
    %s121 = sphi 0, %s119
    %s122 = sphi 0, %s121
    %s136 = sphi 0, %s122
    %s140 = sphi 0, %s140
    %s142 = sphi 0, %s140
    %s143 = sphi 0, %s142
    %s157 = sphi 0, %s143
    %s161 = sphi 0, %s161
    %s163 = sphi 0, %s161
    %s164 = sphi 0, %s163
    %s178 = sphi 0, %s164
    %s182 = sphi 0, %s182
    %s184 = sphi 0, %s182
    %s185 = sphi 0, %s184
    %s199 = sphi 0, %s185
    %s203 = sphi 0, %s203
    %s205 = sphi 0, %s203
    %s206 = sphi 0, %s205
    %s220 = sphi 0, %s206
    %s224 = sphi 0, %s224
    %s226 = sphi 0, %s224
    %s227 = sphi 0, %s226
    %s241 = sphi 0, %s227
    %s245 = sphi 0, %s245
    %s247 = sphi 0, %s245
    %s248 = sphi 0, %s247
    %s262 = sphi 0, %s248
    %s268 = sphi 0, %s270
    %s271 = sphi 0, %s268
    %s272 = sphi 0, %s271
    %s288 = sphi 0, %s272
  $region4: #{upsample_da_pallas.1} parent=0 // loop_header_branch
    %20 = sbr.rel (%p18) target = $region8
  $region5: #{upsample_da_pallas.1} parent=0 // loop_body
    %s22 = ssub.s32 %s17, 1
    %s23 = ssub.s32 %s17, 2
    %s24 = sadd.s32 %s17, 1
    %s25 = ssub.s32 %s17, %s24
    %p26 = scmp.eq.s32.totalorder %s25, 0
    %s28 = sadd.s32 %s27, 1
    %s29 = scalar_select %p26, %s27, %s28
    %p32 = pneg %p26
    %p33 = scmp.eq.s32.totalorder %s17, 1
    %p34 = por %p32, %p33
    %p35 = scmp.ne.s32.totalorder %s27, %s30
    %p36 = scmp.eq.s32.totalorder %s17, 0
    %p37 = por %p35, %p36
    %p38 = scmp.ne.s32.totalorder %s27, %s30
    %p39 = scmp.eq.s32.totalorder %s22, 1
    %p40 = por %p38, %p39
    %p41 = scmp.ne.s32.totalorder %s30, %s31
    %p42 = scmp.eq.s32.totalorder %s22, 0
    %p43 = por %p41, %p42
    %p44 = scmp.ne.s32.totalorder %s30, %s31
    %p45 = scmp.eq.s32.totalorder %s23, 1
    %p46 = por %p44, %p45
    %p48 = scmp.ne.s32.totalorder %s31, %s47
    %p49 = scmp.eq.s32.totalorder %s23, 0
    %p50 = por %p48, %p49
    %s51 = ssub.s32 %s17, %s24
    %p52 = scmp.eq.s32.totalorder %s51, 0
    %s54 = sadd.s32 %s53, 1
    %s55 = scalar_select %p52, %s53, %s54
    %p58 = pneg %p52
    %p59 = scmp.eq.s32.totalorder %s17, 1
    %p60 = por %p58, %p59
    %p61 = scmp.ne.s32.totalorder %s53, %s56
    %p62 = scmp.eq.s32.totalorder %s17, 0
    %p63 = por %p61, %p62
    %p64 = scmp.ne.s32.totalorder %s53, %s56
    %p65 = scmp.eq.s32.totalorder %s22, 1
    %p66 = por %p64, %p65
    %p67 = scmp.ne.s32.totalorder %s56, %s57
    %p68 = scmp.eq.s32.totalorder %s22, 0
    %p69 = por %p67, %p68
    %p70 = scmp.ne.s32.totalorder %s56, %s57
    %p71 = scmp.eq.s32.totalorder %s23, 1
    %p72 = por %p70, %p71
    %p74 = scmp.ne.s32.totalorder %s57, %s73
    %p75 = scmp.eq.s32.totalorder %s23, 0
    %p76 = por %p74, %p75
    %s78 = sadd.s32 %s77, 1
    %p81 = scmp.eq.s32.totalorder %s17, 1
    %p82 = scmp.ne.s32.totalorder %s77, %s79
    %p83 = scmp.eq.s32.totalorder %s17, 0
    %p84 = por %p82, %p83
    %p85 = scmp.ne.s32.totalorder %s77, %s79
    %p86 = scmp.eq.s32.totalorder %s22, 1
    %p87 = por %p85, %p86
    %p88 = scmp.ne.s32.totalorder %s79, %s80
    %p89 = scmp.eq.s32.totalorder %s22, 0
    %p90 = por %p88, %p89
    %p91 = scmp.ne.s32.totalorder %s79, %s80
    %p92 = scmp.eq.s32.totalorder %s23, 1
    %p93 = por %p91, %p92
    %p95 = scmp.ne.s32.totalorder %s80, %s94
    %p96 = scmp.eq.s32.totalorder %s23, 0
    %p97 = por %p95, %p96
    %s99 = sadd.s32 %s98, 1
    %p102 = scmp.eq.s32.totalorder %s17, 1
    %p103 = scmp.ne.s32.totalorder %s98, %s100
    %p104 = scmp.eq.s32.totalorder %s17, 0
    %p105 = por %p103, %p104
    %p106 = scmp.ne.s32.totalorder %s98, %s100
    %p107 = scmp.eq.s32.totalorder %s22, 1
    %p108 = por %p106, %p107
    %p109 = scmp.ne.s32.totalorder %s100, %s101
    %p110 = scmp.eq.s32.totalorder %s22, 0
    %p111 = por %p109, %p110
    %p112 = scmp.ne.s32.totalorder %s100, %s101
    %p113 = scmp.eq.s32.totalorder %s23, 1
    %p114 = por %p112, %p113
    %p116 = scmp.ne.s32.totalorder %s101, %s115
    %p117 = scmp.eq.s32.totalorder %s23, 0
    %p118 = por %p116, %p117
    %s120 = sadd.s32 %s119, 1
    %p123 = scmp.eq.s32.totalorder %s17, 1
    %p124 = scmp.ne.s32.totalorder %s119, %s121
    %p125 = scmp.eq.s32.totalorder %s17, 0
    %p126 = por %p124, %p125
    %p127 = scmp.ne.s32.totalorder %s119, %s121
    %p128 = scmp.eq.s32.totalorder %s22, 1
    %p129 = por %p127, %p128
    %p130 = scmp.ne.s32.totalorder %s121, %s122
    %p131 = scmp.eq.s32.totalorder %s22, 0
    %p132 = por %p130, %p131
    %p133 = scmp.ne.s32.totalorder %s121, %s122
    %p134 = scmp.eq.s32.totalorder %s23, 1
    %p135 = por %p133, %p134
    %p137 = scmp.ne.s32.totalorder %s122, %s136
    %p138 = scmp.eq.s32.totalorder %s23, 0
    %p139 = por %p137, %p138
    %s141 = sadd.s32 %s140, 1
    %p144 = scmp.eq.s32.totalorder %s17, 1
    %p145 = scmp.ne.s32.totalorder %s140, %s142
    %p146 = scmp.eq.s32.totalorder %s17, 0
    %p147 = por %p145, %p146
    %p148 = scmp.ne.s32.totalorder %s140, %s142
    %p149 = scmp.eq.s32.totalorder %s22, 1
    %p150 = por %p148, %p149
    %p151 = scmp.ne.s32.totalorder %s142, %s143
    %p152 = scmp.eq.s32.totalorder %s22, 0
    %p153 = por %p151, %p152
    %p154 = scmp.ne.s32.totalorder %s142, %s143
    %p155 = scmp.eq.s32.totalorder %s23, 1
    %p156 = por %p154, %p155
    %p158 = scmp.ne.s32.totalorder %s143, %s157
    %p159 = scmp.eq.s32.totalorder %s23, 0
    %p160 = por %p158, %p159
    %s162 = sadd.s32 %s161, 1
    %p165 = scmp.eq.s32.totalorder %s17, 1
    %p166 = scmp.ne.s32.totalorder %s161, %s163
    %p167 = scmp.eq.s32.totalorder %s17, 0
    %p168 = por %p166, %p167
    %p169 = scmp.ne.s32.totalorder %s161, %s163
    %p170 = scmp.eq.s32.totalorder %s22, 1
    %p171 = por %p169, %p170
    %p172 = scmp.ne.s32.totalorder %s163, %s164
    %p173 = scmp.eq.s32.totalorder %s22, 0
    %p174 = por %p172, %p173
    %p175 = scmp.ne.s32.totalorder %s163, %s164
    %p176 = scmp.eq.s32.totalorder %s23, 1
    %p177 = por %p175, %p176
    %p179 = scmp.ne.s32.totalorder %s164, %s178
    %p180 = scmp.eq.s32.totalorder %s23, 0
    %p181 = por %p179, %p180
    %s183 = sadd.s32 %s182, 1
    %p186 = scmp.eq.s32.totalorder %s17, 1
    %p187 = scmp.ne.s32.totalorder %s182, %s184
    %p188 = scmp.eq.s32.totalorder %s17, 0
    %p189 = por %p187, %p188
    %p190 = scmp.ne.s32.totalorder %s182, %s184
    %p191 = scmp.eq.s32.totalorder %s22, 1
    %p192 = por %p190, %p191
    %p193 = scmp.ne.s32.totalorder %s184, %s185
    %p194 = scmp.eq.s32.totalorder %s22, 0
    %p195 = por %p193, %p194
    %p196 = scmp.ne.s32.totalorder %s184, %s185
    %p197 = scmp.eq.s32.totalorder %s23, 1
    %p198 = por %p196, %p197
    %p200 = scmp.ne.s32.totalorder %s185, %s199
    %p201 = scmp.eq.s32.totalorder %s23, 0
    %p202 = por %p200, %p201
    %s204 = sadd.s32 %s203, 1
    %p207 = scmp.eq.s32.totalorder %s17, 1
    %p208 = scmp.ne.s32.totalorder %s203, %s205
    %p209 = scmp.eq.s32.totalorder %s17, 0
    %p210 = por %p208, %p209
    %p211 = scmp.ne.s32.totalorder %s203, %s205
    %p212 = scmp.eq.s32.totalorder %s22, 1
    %p213 = por %p211, %p212
    %p214 = scmp.ne.s32.totalorder %s205, %s206
    %p215 = scmp.eq.s32.totalorder %s22, 0
    %p216 = por %p214, %p215
    %p217 = scmp.ne.s32.totalorder %s205, %s206
    %p218 = scmp.eq.s32.totalorder %s23, 1
    %p219 = por %p217, %p218
    %p221 = scmp.ne.s32.totalorder %s206, %s220
    %p222 = scmp.eq.s32.totalorder %s23, 0
    %p223 = por %p221, %p222
    %s225 = sadd.s32 %s224, 1
    %p228 = scmp.eq.s32.totalorder %s17, 1
    %p229 = scmp.ne.s32.totalorder %s224, %s226
    %p230 = scmp.eq.s32.totalorder %s17, 0
    %p231 = por %p229, %p230
    %p232 = scmp.ne.s32.totalorder %s224, %s226
    %p233 = scmp.eq.s32.totalorder %s22, 1
    %p234 = por %p232, %p233
    %p235 = scmp.ne.s32.totalorder %s226, %s227
    %p236 = scmp.eq.s32.totalorder %s22, 0
    %p237 = por %p235, %p236
    %p238 = scmp.ne.s32.totalorder %s226, %s227
    %p239 = scmp.eq.s32.totalorder %s23, 1
    %p240 = por %p238, %p239
    %p242 = scmp.ne.s32.totalorder %s227, %s241
    %p243 = scmp.eq.s32.totalorder %s23, 0
    %p244 = por %p242, %p243
    %s246 = sadd.s32 %s245, 1
    %p249 = scmp.eq.s32.totalorder %s17, 1
    %p250 = scmp.ne.s32.totalorder %s245, %s247
    %p251 = scmp.eq.s32.totalorder %s17, 0
    %p252 = por %p250, %p251
    %p253 = scmp.ne.s32.totalorder %s245, %s247
    %p254 = scmp.eq.s32.totalorder %s22, 1
    %p255 = por %p253, %p254
    %p256 = scmp.ne.s32.totalorder %s247, %s248
    %p257 = scmp.eq.s32.totalorder %s22, 0
    %p258 = por %p256, %p257
    %p259 = scmp.ne.s32.totalorder %s247, %s248
    %p260 = scmp.eq.s32.totalorder %s23, 1
    %p261 = por %p259, %p260
    %p263 = scmp.ne.s32.totalorder %s248, %s262
    %p264 = scmp.eq.s32.totalorder %s23, 0
    %p265 = por %p263, %p264
    %s266 = ssub.s32 %s17, %s24
    %p267 = scmp.eq.s32.totalorder %s266, 0
    %s269 = sadd.s32 %s268, 1
    %s270 = scalar_select %p267, %s268, %s269
    %p273 = pneg %p267
    %p274 = scmp.eq.s32.totalorder %s17, 1
    %p275 = por %p273, %p274
    %p276 = scmp.ne.s32.totalorder %s268, %s271
    %p277 = scmp.eq.s32.totalorder %s17, 0
    %p278 = por %p276, %p277
    %p279 = scmp.ne.s32.totalorder %s268, %s271
    %p280 = scmp.eq.s32.totalorder %s22, 1
    %p281 = por %p279, %p280
    %p282 = scmp.ne.s32.totalorder %s271, %s272
    %p283 = scmp.eq.s32.totalorder %s22, 0
    %p284 = por %p282, %p283
    %p285 = scmp.ne.s32.totalorder %s271, %s272
    %p286 = scmp.eq.s32.totalorder %s23, 1
    %p287 = por %p285, %p286
    %p289 = scmp.ne.s32.totalorder %s272, %s288
    %p290 = scmp.eq.s32.totalorder %s23, 0
    %p291 = por %p289, %p290
    %p292 = scmp.le.s32.totalorder 1, %s17
    %p293 = scmp.lt.s32.totalorder %s17, 3
    %p294 = pnand %p292, %p293
    %p295 = pneg %p294
    // Predicated region
    $region9: #{upsample_da_pallas.1} parent=5 // pred_check
      _
    $region10: #{upsample_da_pallas.1} parent=5 // pred_check_branch
      %297 = sbr.rel (%p294) target = $region12
    $region11: #{upsample_da_pallas.1} parent=5 // pred_region
      %s298 = ssub.s32 %s17, 1
      // Predicated region
      $region13: #{upsample_da_pallas.1} parent=11 // pred_check
        %p299 = pneg %p90
      $region14: #{upsample_da_pallas.1} parent=11 // pred_check_branch
        %301 = sbr.rel (%p299) target = $region16
      $region15: #{upsample_da_pallas.1} parent=11 // pred_region
        _
      $region16: #{upsample_da_pallas.1} parent=11 // pred_fallthru
        _
      // Predicated region
      $region17: #{upsample_da_pallas.1} parent=11 // pred_check
        %p302 = pneg %p111
      $region18: #{upsample_da_pallas.1} parent=11 // pred_check_branch
        %304 = sbr.rel (%p302) target = $region20
      $region19: #{upsample_da_pallas.1} parent=11 // pred_region
        _
      $region20: #{upsample_da_pallas.1} parent=11 // pred_fallthru
        _
      // Predicated region
      $region21: #{upsample_da_pallas.1} parent=11 // pred_check
        %p305 = pneg %p132
      $region22: #{upsample_da_pallas.1} parent=11 // pred_check_branch
        %307 = sbr.rel (%p305) target = $region24
      $region23: #{upsample_da_pallas.1} parent=11 // pred_region
        _
      $region24: #{upsample_da_pallas.1} parent=11 // pred_fallthru
        _
      // Predicated region
      $region25: #{upsample_da_pallas.1} parent=11 // pred_check
        %p308 = pneg %p153
      $region26: #{upsample_da_pallas.1} parent=11 // pred_check_branch
        %310 = sbr.rel (%p308) target = $region28
      $region27: #{upsample_da_pallas.1} parent=11 // pred_region
        _
      $region28: #{upsample_da_pallas.1} parent=11 // pred_fallthru
        _
      // Predicated region
      $region29: #{upsample_da_pallas.1} parent=11 // pred_check
        %p311 = pneg %p174
      $region30: #{upsample_da_pallas.1} parent=11 // pred_check_branch
        %313 = sbr.rel (%p311) target = $region32
      $region31: #{upsample_da_pallas.1} parent=11 // pred_region
        _
      $region32: #{upsample_da_pallas.1} parent=11 // pred_fallthru
        _
      // Predicated region
      $region33: #{upsample_da_pallas.1} parent=11 // pred_check
        %p314 = pneg %p195
      $region34: #{upsample_da_pallas.1} parent=11 // pred_check_branch
        %316 = sbr.rel (%p314) target = $region36
      $region35: #{upsample_da_pallas.1} parent=11 // pred_region
        _
      $region36: #{upsample_da_pallas.1} parent=11 // pred_fallthru
        _
      // Predicated region
      $region37: #{upsample_da_pallas.1} parent=11 // pred_check
        %p317 = pneg %p216
      $region38: #{upsample_da_pallas.1} parent=11 // pred_check_branch
        %319 = sbr.rel (%p317) target = $region40
      $region39: #{upsample_da_pallas.1} parent=11 // pred_region
        _
      $region40: #{upsample_da_pallas.1} parent=11 // pred_fallthru
        _
      // Predicated region
      $region41: #{upsample_da_pallas.1} parent=11 // pred_check
        %p320 = pneg %p237
      $region42: #{upsample_da_pallas.1} parent=11 // pred_check_branch
        %322 = sbr.rel (%p320) target = $region44
      $region43: #{upsample_da_pallas.1} parent=11 // pred_region
        _
      $region44: #{upsample_da_pallas.1} parent=11 // pred_fallthru
        _
      // Predicated region
      $region45: #{upsample_da_pallas.1} parent=11 // pred_check
        %p323 = pneg %p258
      $region46: #{upsample_da_pallas.1} parent=11 // pred_check_branch
        %325 = sbr.rel (%p323) target = $region48
      $region47: #{upsample_da_pallas.1} parent=11 // pred_region
        _
      $region48: #{upsample_da_pallas.1} parent=11 // pred_fallthru
        _
    $region12: #{upsample_da_pallas.1} parent=5 // pred_fallthru
      _
    %p326 = scmp.lt.s32.totalorder %s17, 2
    // Predicated region
    $region49: #{upsample_da_pallas.1} parent=5 // pred_check
      %p327 = pneg %p326
    $region50: #{upsample_da_pallas.1} parent=5 // pred_check_branch
      %329 = sbr.rel (%p327) target = $region52
    $region51: #{upsample_da_pallas.1} parent=5 // pred_region
      // Predicated region
      $region53: #{upsample_da_pallas.1} parent=51 // pred_check
        %p330 = pneg %p37
      $region54: #{upsample_da_pallas.1} parent=51 // pred_check_branch
        %332 = sbr.rel (%p330) target = $region56
      $region55: #{upsample_da_pallas.1} parent=51 // pred_region
        %p333 = scmp.lt.s32.totalorder %s17, 1
        %s334 = scalar_select %p333, %s17, 1
        %s335 = smul.addr %s334, 8
        %s336 = smul.addr %s335, 8
        %s337 = scalar_lea.vmem %s0, %s336
      $region56: #{upsample_da_pallas.1} parent=51 // pred_fallthru
        _
      // Predicated region
      $region57: #{upsample_da_pallas.1} parent=51 // pred_check
        %p338 = pneg %p63
      $region58: #{upsample_da_pallas.1} parent=51 // pred_check_branch
        %340 = sbr.rel (%p338) target = $region60
      $region59: #{upsample_da_pallas.1} parent=51 // pred_region
        %p341 = scmp.lt.s32.totalorder %s17, 1
        %s342 = scalar_select %p341, %s17, 1
        %s343 = smul.addr %s342, 32
        %s344 = smul.addr %s343, 8
        %s345 = scalar_lea.vmem %s1, %s344
      $region60: #{upsample_da_pallas.1} parent=51 // pred_fallthru
        _
    $region52: #{upsample_da_pallas.1} parent=5 // pred_fallthru
      _
    %p346 = scmp.le.s32.totalorder 1, %s17
    %p347 = scmp.lt.s32.totalorder %s17, 3
    %p348 = pnand %p346, %p347
    %p349 = pneg %p348
    // Predicated region
    $region61: #{upsample_da_pallas.1} parent=5 // pred_check
      _
    $region62: #{upsample_da_pallas.1} parent=5 // pred_check_branch
      %351 = sbr.rel (%p348) target = $region64
    $region63: #{upsample_da_pallas.1} parent=5 // pred_region
      %s352 = ssub.s32 %s17, 1
      %p353 = scmp.lt.s32.totalorder %s22, 1
      %s354 = scalar_select %p353, %s22, 1
      %s355 = smul.addr %s354, 8
      %s356 = smul.addr %s355, 8
      %s357 = scalar_lea.vmem %s0, %s356
      %p358 = pneg %p43
      %p359 = pneg %p40
      %p360 = scmp.lt.s32.totalorder %s22, 1
      %s361 = scalar_select %p360, %s22, 1
      %s362 = smul.addr %s361, 32
      %s363 = smul.addr %s362, 8
      %s364 = scalar_lea.vmem %s1, %s363
      %p365 = pneg %p69
      %p366 = pneg %p66
      %p367 = pneg %p90
      %p368 = pneg %p87
      %p369 = pneg %p111
      %p370 = pneg %p108
      %p371 = pneg %p132
      %p372 = pneg %p129
      %p373 = pneg %p153
      %p374 = pneg %p150
      %p375 = pneg %p174
      %p376 = pneg %p171
      %p377 = pneg %p195
      %p378 = pneg %p192
      %p379 = pneg %p216
      %p380 = pneg %p213
      %p381 = pneg %p237
      %p382 = pneg %p234
      %p383 = pneg %p258
      %p384 = pneg %p255
      %p385 = pneg %p284
      %p386 = pneg %p281
      %p387 = scmp.lt.s32.totalorder %s22, 1
      %s388 = scalar_select %p387, %s22, 1
      %s389 = smul.addr %s388, 32
      %s390 = smul.addr %s389, 8
      %s391 = scalar_lea.vmem %s11, %s390
      %p392 = scmp.lt.s32.totalorder %s22, 1
      %s393 = scalar_select %p392, %s22, 1
      %s394 = smul.addr %s393, 8
      %s395 = smul.addr %s394, 8
      %s396 = scalar_lea.vmem %s0, %s395
      %p397 = scmp.lt.s32.totalorder %s22, 1
      %s398 = scalar_select %p397, %s22, 1
      %s399 = smul.addr %s398, 32
      %s400 = smul.addr %s399, 8
      %s401 = scalar_lea.vmem %s1, %s400
      %p402 = scmp.lt.s32.totalorder %s22, 1
      %s403 = scalar_select %p402, %s22, 1
      %s404 = smul.addr %s403, 32
      %s405 = smul.addr %s404, 8
      %s406 = scalar_lea.vmem %s11, %s405
      %vm407 = vcmask 64512
      %408 = vst.msk [vmem:[#allocation2] sm:$0xff] %vm407, 0.0
      %409 = vst.msk [vmem:[#allocation2 + $0x8] sm:$0xff] %vm407, 0.0
      %vm410 = vcmask 58368
      %411 = vst.msk [vmem:[#allocation2 + $0x10] sm:$0x3] %vm410, 0.0
      %s412 = scalar_lea.vmem [#allocation2], 408
      %413 = vst.msk [vmem:[%s412] sm:$0xff] %vm407, 0.0
      %414 = vst.msk [vmem:[%s412 + $0x8] sm:$0xff] %vm407, 0.0
      %415 = vst.msk [vmem:[%s412 + $0x10] sm:$0x3] %vm410, 0.0
      %vm416 = vcmask 57344
      %417 = vst.msk [vmem:[#allocation2] sm:$0x1] %vm416, 0.0
      %418 = vst.msk [vmem:[#allocation2 + $0x18] sm:$0x1] %vm416, 0.0
      %419 = vst.msk [vmem:[#allocation2 + $0x30] sm:$0x1] %vm416, 0.0
      %420 = vst.msk [vmem:[#allocation2 + $0x48] sm:$0x1] %vm416, 0.0
      %421 = vst.msk [vmem:[#allocation2 + $0x60] sm:$0x1] %vm416, 0.0
      %422 = vst.msk [vmem:[#allocation2 + $0x78] sm:$0x1] %vm416, 0.0
      %423 = vst.msk [vmem:[#allocation2 + $0x90] sm:$0x1] %vm416, 0.0
      %424 = vst.msk [vmem:[#allocation2 + $0xa8] sm:$0x1] %vm416, 0.0
      %425 = vst.msk [vmem:[#allocation2 + $0xc0] sm:$0x1] %vm416, 0.0
      %426 = vst.msk [vmem:[#allocation2 + $0xd8] sm:$0x1] %vm416, 0.0
      %427 = vst.msk [vmem:[#allocation2 + $0xf0] sm:$0x1] %vm416, 0.0
      %428 = vst.msk [vmem:[#allocation2 + $0x108] sm:$0x1] %vm416, 0.0
      %429 = vst.msk [vmem:[#allocation2 + $0x120] sm:$0x1] %vm416, 0.0
      %430 = vst.msk [vmem:[#allocation2 + $0x138] sm:$0x1] %vm416, 0.0
      %431 = vst.msk [vmem:[#allocation2 + $0x150] sm:$0x1] %vm416, 0.0
      %432 = vst.msk [vmem:[#allocation2 + $0x168] sm:$0x1] %vm416, 0.0
      %433 = vst.msk [vmem:[#allocation2 + $0x180] sm:$0x1] %vm416, 0.0
      %434 = vst.msk [vmem:[#allocation2 + $0x198] sm:$0x1] %vm416, 0.0
      %435 = vst.msk [vmem:[#allocation2 + $0x11] sm:$0x1] %vm416, 0.0
      %436 = vst.msk [vmem:[#allocation2 + $0x29] sm:$0x1] %vm416, 0.0
      %437 = vst.msk [vmem:[#allocation2 + $0x41] sm:$0x1] %vm416, 0.0
      %438 = vst.msk [vmem:[#allocation2 + $0x59] sm:$0x1] %vm416, 0.0
      %439 = vst.msk [vmem:[#allocation2 + $0x71] sm:$0x1] %vm416, 0.0
      %440 = vst.msk [vmem:[#allocation2 + $0x89] sm:$0x1] %vm416, 0.0
      %441 = vst.msk [vmem:[#allocation2 + $0xa1] sm:$0x1] %vm416, 0.0
      %442 = vst.msk [vmem:[#allocation2 + $0xb9] sm:$0x1] %vm416, 0.0
      %443 = vst.msk [vmem:[#allocation2 + $0xd1] sm:$0x1] %vm416, 0.0
      %444 = vst.msk [vmem:[#allocation2 + $0xe9] sm:$0x1] %vm416, 0.0
      %445 = vst.msk [vmem:[#allocation2 + $0x101] sm:$0x1] %vm416, 0.0
      %446 = vst.msk [vmem:[#allocation2 + $0x119] sm:$0x1] %vm416, 0.0
      %447 = vst.msk [vmem:[#allocation2 + $0x131] sm:$0x1] %vm416, 0.0
      %448 = vst.msk [vmem:[#allocation2 + $0x149] sm:$0x1] %vm416, 0.0
      %449 = vst.msk [vmem:[#allocation2 + $0x161] sm:$0x1] %vm416, 0.0
      %450 = vst.msk [vmem:[#allocation2 + $0x179] sm:$0x1] %vm416, 0.0
      %451 = vst.msk [vmem:[#allocation2 + $0x191] sm:$0x1] %vm416, 0.0
      %452 = vst.msk [vmem:[#allocation2 + $0x1a9] sm:$0x1] %vm416, 0.0
      %453 = vst.msk [vmem:[#allocation4] sm:$0xff] %vm407, 0.0
      %454 = vst.msk [vmem:[#allocation4 + $0x8] sm:$0xff] %vm407, 0.0
      %455 = vst.msk [vmem:[#allocation4 + $0x10] sm:$0x3] %vm410, 0.0
      %s456 = scalar_lea.vmem [#allocation4], 408
      %457 = vst.msk [vmem:[%s456] sm:$0xff] %vm407, 0.0
      %458 = vst.msk [vmem:[%s456 + $0x8] sm:$0xff] %vm407, 0.0
      %459 = vst.msk [vmem:[%s456 + $0x10] sm:$0x3] %vm410, 0.0
      %460 = vst.msk [vmem:[#allocation4] sm:$0x1] %vm416, 0.0
      %461 = vst.msk [vmem:[#allocation4 + $0x18] sm:$0x1] %vm416, 0.0
      %462 = vst.msk [vmem:[#allocation4 + $0x30] sm:$0x1] %vm416, 0.0
      %463 = vst.msk [vmem:[#allocation4 + $0x48] sm:$0x1] %vm416, 0.0
      %464 = vst.msk [vmem:[#allocation4 + $0x60] sm:$0x1] %vm416, 0.0
      %465 = vst.msk [vmem:[#allocation4 + $0x78] sm:$0x1] %vm416, 0.0
      %466 = vst.msk [vmem:[#allocation4 + $0x90] sm:$0x1] %vm416, 0.0
      %467 = vst.msk [vmem:[#allocation4 + $0xa8] sm:$0x1] %vm416, 0.0
      %468 = vst.msk [vmem:[#allocation4 + $0xc0] sm:$0x1] %vm416, 0.0
      %469 = vst.msk [vmem:[#allocation4 + $0xd8] sm:$0x1] %vm416, 0.0
      %470 = vst.msk [vmem:[#allocation4 + $0xf0] sm:$0x1] %vm416, 0.0
      %471 = vst.msk [vmem:[#allocation4 + $0x108] sm:$0x1] %vm416, 0.0
      %472 = vst.msk [vmem:[#allocation4 + $0x120] sm:$0x1] %vm416, 0.0
      %473 = vst.msk [vmem:[#allocation4 + $0x138] sm:$0x1] %vm416, 0.0
      %474 = vst.msk [vmem:[#allocation4 + $0x150] sm:$0x1] %vm416, 0.0
      %475 = vst.msk [vmem:[#allocation4 + $0x168] sm:$0x1] %vm416, 0.0
      %476 = vst.msk [vmem:[#allocation4 + $0x180] sm:$0x1] %vm416, 0.0
      %477 = vst.msk [vmem:[#allocation4 + $0x198] sm:$0x1] %vm416, 0.0
      %478 = vst.msk [vmem:[#allocation4 + $0x11] sm:$0x1] %vm416, 0.0
      %479 = vst.msk [vmem:[#allocation4 + $0x29] sm:$0x1] %vm416, 0.0
      %480 = vst.msk [vmem:[#allocation4 + $0x41] sm:$0x1] %vm416, 0.0
      %481 = vst.msk [vmem:[#allocation4 + $0x59] sm:$0x1] %vm416, 0.0
      %482 = vst.msk [vmem:[#allocation4 + $0x71] sm:$0x1] %vm416, 0.0
      %483 = vst.msk [vmem:[#allocation4 + $0x89] sm:$0x1] %vm416, 0.0
      %484 = vst.msk [vmem:[#allocation4 + $0xa1] sm:$0x1] %vm416, 0.0
      %485 = vst.msk [vmem:[#allocation4 + $0xb9] sm:$0x1] %vm416, 0.0
      %486 = vst.msk [vmem:[#allocation4 + $0xd1] sm:$0x1] %vm416, 0.0
      %487 = vst.msk [vmem:[#allocation4 + $0xe9] sm:$0x1] %vm416, 0.0
      %488 = vst.msk [vmem:[#allocation4 + $0x101] sm:$0x1] %vm416, 0.0
      %489 = vst.msk [vmem:[#allocation4 + $0x119] sm:$0x1] %vm416, 0.0
      %490 = vst.msk [vmem:[#allocation4 + $0x131] sm:$0x1] %vm416, 0.0
      %491 = vst.msk [vmem:[#allocation4 + $0x149] sm:$0x1] %vm416, 0.0
      %492 = vst.msk [vmem:[#allocation4 + $0x161] sm:$0x1] %vm416, 0.0
      %493 = vst.msk [vmem:[#allocation4 + $0x179] sm:$0x1] %vm416, 0.0
      %494 = vst.msk [vmem:[#allocation4 + $0x191] sm:$0x1] %vm416, 0.0
      %495 = vst.msk [vmem:[#allocation4 + $0x1a9] sm:$0x1] %vm416, 0.0
      %v496 = vld [vmem:[%s396] sm:$0xff]
      %v497 = vld [vmem:[%s396 + $0x8] sm:$0xff]
      %v498 = vld [vmem:[%s396 + $0x10] sm:$0xff]
      %v499 = vld [vmem:[%s396 + $0x18] sm:$0xff]
      %v500 = vld [vmem:[%s396 + $0x20] sm:$0xff]
      %v501 = vld [vmem:[%s396 + $0x28] sm:$0xff]
      %v502 = vld [vmem:[%s396 + $0x30] sm:$0xff]
      %v503 = vld [vmem:[%s396 + $0x38] sm:$0xff]
      %v504 = vld [vmem:[%s2] sm:$0xff]
      %v506 = vsel %vm407, %v496, 0
      %v509 = vsel %vm407, %v497, 0
      %v512 = vsel %vm407, %v498, 0
      %v515 = vsel %vm407, %v499, 0
      %v518 = vsel %vm407, %v500, 0
      %v521 = vsel %vm407, %v501, 0
      %v524 = vsel %vm407, %v502, 0
      %v527 = vsel %vm407, %v503, 0
      %529 = vmatprep.subr.mxu0 0.0
      %530 = vmatpush1.msra.mxu0 %v504
      %531 = vmatprep.subr.mxu0 0.0
      %532 = vmatpush1.msra.mxu0 0.0
      %533 = vmatprep.subr.mxu0 0.0
      %534 = vmatpush1.msra.mxu0 0.0
      %535 = vmatprep.subr.mxu0 0.0
      %536 = vmatpush1.msra.mxu0 0.0
      %537 = vmatprep.subr.mxu0 0.0
      %538 = vmatpush1.msra.mxu0 0.0
      %539 = vmatprep.subr.mxu0 0.0
      %540 = vmatpush1.msra.mxu0 0.0
      %541 = vmatprep.subr.mxu0 0.0
      %542 = vmatpush1.msra.mxu0 0.0
      %543 = vmatprep.subr.mxu0 0.0
      %544 = vmatpush1.msra.mxu0 0.0
      %545 = vmatprep.subr.mxu0 0.0
      %546 = vmatpush1.msra.mxu0 0.0
      %547 = vmatprep.subr.mxu0 0.0
      %548 = vmatpush1.msra.mxu0 0.0
      %549 = vmatprep.subr.mxu0 0.0
      %550 = vmatpush1.msra.mxu0 0.0
      %551 = vmatprep.subr.mxu0 0.0
      %552 = vmatpush1.msra.mxu0 0.0
      %553 = vmatprep.subr.mxu0 0.0
      %554 = vmatpush1.msra.mxu0 0.0
      %555 = vmatprep.subr.mxu0 0.0
      %556 = vmatpush1.msra.mxu0 0.0
      %557 = vmatprep.subr.mxu0 0.0
      %558 = vmatpush1.msra.mxu0 0.0
      %559 = vmatprep.subr.mxu0 0.0
      %560 = vmatpush1.msra.mxu0 0.0
      %561 = vmatprep.subr.mxu0 0.0
      %562 = vmatpush1.msra.mxu0 0.0
      %563 = vmatprep.subr.mxu0 0.0
      %564 = vmatpush1.msra.mxu0 0.0
      %565 = vmatprep.subr.mxu0 0.0
      %566 = vmatpush1.msra.mxu0 0.0
      %567 = vmatprep.subr.mxu0 0.0
      %568 = vmatpush1.msra.mxu0 0.0
      %569 = vmatprep.subr.mxu0 0.0
      %570 = vmatpush1.msra.mxu0 0.0
      %571 = vmatprep.subr.mxu0 0.0
      %572 = vmatpush1.msra.mxu0 0.0
      %573 = vmatprep.subr.mxu0 0.0
      %574 = vmatpush1.msra.mxu0 0.0
      %575 = vmatprep.subr.mxu0 0.0
      %576 = vmatpush1.msra.mxu0 0.0
      %577 = vmatprep.subr.mxu0 0.0
      %578 = vmatpush1.msra.mxu0 0.0
      %579 = vmatprep.subr.mxu0 0.0
      %580 = vmatpush1.msra.mxu0 0.0
      %581 = vmatprep.subr.mxu0 0.0
      %582 = vmatpush1.msra.mxu0 0.0
      %583 = vmatprep.subr.mxu0 0.0
      %584 = vmatpush1.msra.mxu0 0.0
      %585 = vmatprep.subr.mxu0 0.0
      %586 = vmatpush1.msra.mxu0 0.0
      %587 = vmatprep.subr.mxu0 0.0
      %588 = vmatpush1.msra.mxu0 0.0
      %589 = vmatprep.subr.mxu0 0.0
      %590 = vmatpush1.msra.mxu0 0.0
      %591 = vmatprep.subr.mxu0 0.0
      %592 = vmatpush1.msra.mxu0 0.0
      %593 = vmatprep.mubr.f32.mxu0 0.0
      %594 = vmatmul.mubr.f32.gmra.mrb[0].mxu0 %v506
      %v595 = vpop.f32.mrb[0].mxu0
      %v596 = vadd.f32 0.0, %v595
      %v597 = vpop.f32.mrb[0].mxu0
      %598 = vmatprep.mubr.f32.mxu0 0.0
      %599 = vmatmul.mubr.f32.gmra.mrb[0].mxu0 %v509
      %v600 = vpop.f32.mrb[0].mxu0
      %v601 = vadd.f32 0.0, %v600
      %v602 = vpop.f32.mrb[0].mxu0
      %603 = vmatprep.mubr.f32.mxu0 0.0
      %604 = vmatmul.mubr.f32.gmra.mrb[0].mxu0 %v512
      %v605 = vpop.f32.mrb[0].mxu0
      %v606 = vadd.f32 0.0, %v605
      %v607 = vpop.f32.mrb[0].mxu0
      %608 = vmatprep.mubr.f32.mxu0 0.0
      %609 = vmatmul.mubr.f32.gmra.mrb[0].mxu0 %v515
      %v610 = vpop.f32.mrb[0].mxu0
      %v611 = vadd.f32 0.0, %v610
      %v612 = vpop.f32.mrb[0].mxu0
      %613 = vmatprep.mubr.f32.mxu0 0.0
      %614 = vmatmul.mubr.f32.gmra.mrb[0].mxu0 %v518
      %v615 = vpop.f32.mrb[0].mxu0
      %v616 = vadd.f32 0.0, %v615
      %v617 = vpop.f32.mrb[0].mxu0
      %618 = vmatprep.mubr.f32.mxu0 0.0
      %619 = vmatmul.mubr.f32.gmra.mrb[0].mxu0 %v521
      %v620 = vpop.f32.mrb[0].mxu0
      %v621 = vadd.f32 0.0, %v620
      %v622 = vpop.f32.mrb[0].mxu0
      %623 = vmatprep.mubr.f32.mxu0 0.0
      %624 = vmatmul.mubr.f32.gmra.mrb[0].mxu0 %v524
      %v625 = vpop.f32.mrb[0].mxu0
      %v626 = vadd.f32 0.0, %v625
      %v627 = vpop.f32.mrb[0].mxu0
      %628 = vmatprep.mubr.f32.mxu0 0.0
      %629 = vmatmul.mubr.f32.gmra.mrb[0].mxu0 %v527
      %v630 = vpop.f32.mrb[0].mxu0
      %v631 = vadd.f32 0.0, %v630
      %v632 = vpop.f32.mrb[0].mxu0
      %633 = vdwg.mxu0
      %v634 = vld [vmem:[%s6] sm:$0xff]
      %v635 = vld [vmem:[%s6 + $0x8] sm:$0xff]
      %v636 = vld [vmem:[%s6 + $0x10] sm:$0xff]
      %v637 = vld [vmem:[%s6 + $0x18] sm:$0xff]
      %v638 = vld [vmem:[%s6 + $0x20] sm:$0xff]
      %v639 = vld [vmem:[%s6 + $0x28] sm:$0xff]
      %v640 = vld [vmem:[%s6 + $0x30] sm:$0xff]
      %v641 = vld [vmem:[%s6 + $0x38] sm:$0xff]
      %v642 = vld [vmem:[%s6 + $0x40] sm:$0xff]
      %v643 = vld [vmem:[%s6 + $0x48] sm:$0xff]
      %v644 = vld [vmem:[%s6 + $0x50] sm:$0xff]
      %v645 = vld [vmem:[%s6 + $0x58] sm:$0xff]
      %v646 = vld [vmem:[%s6 + $0x60] sm:$0xff]
      %v647 = vld [vmem:[%s6 + $0x68] sm:$0xff]
      %v648 = vld [vmem:[%s6 + $0x70] sm:$0xff]
      %v649 = vld [vmem:[%s6 + $0x78] sm:$0xff]
      %s650 = scalar_lea.vmem %s6, 128
      %v651 = vld [vmem:[%s650] sm:$0xff]
      %v652 = vld [vmem:[%s650 + $0x8] sm:$0xff]
      %v653 = vld [vmem:[%s650 + $0x10] sm:$0xff]
      %v654 = vld [vmem:[%s650 + $0x18] sm:$0xff]
      %v655 = vld [vmem:[%s650 + $0x20] sm:$0xff]
      %v656 = vld [vmem:[%s650 + $0x28] sm:$0xff]
      %v657 = vld [vmem:[%s650 + $0x30] sm:$0xff]
      %v658 = vld [vmem:[%s650 + $0x38] sm:$0xff]
      %v659 = vld [vmem:[%s650 + $0x40] sm:$0xff]
      %v660 = vld [vmem:[%s650 + $0x48] sm:$0xff]
      %v661 = vld [vmem:[%s650 + $0x50] sm:$0xff]
      %v662 = vld [vmem:[%s650 + $0x58] sm:$0xff]
      %v663 = vld [vmem:[%s650 + $0x60] sm:$0xff]
      %v664 = vld [vmem:[%s650 + $0x68] sm:$0xff]
      %v665 = vld [vmem:[%s650 + $0x70] sm:$0xff]
      %v666 = vld [vmem:[%s650 + $0x78] sm:$0xff]
      %668 = vrot.lane.b32.xlu0 %v596, 124
      %v669 = vpop.permute.xlu0 %668
      %v672 = vsel %vm407, %v651, 0
      %v675 = vsel %vm407, %v652, 0
      %677 = vmatprep.subr.mxu0 0.0
      %678 = vmatpush1.msra.mxu0 %v669
      %679 = vmatprep.subr.mxu0 0.0
      %680 = vmatpush1.msra.mxu0 0.0
      %681 = vmatprep.subr.mxu0 0.0
      %682 = vmatpush1.msra.mxu0 0.0
      %683 = vmatprep.subr.mxu0 0.0
      %684 = vmatpush1.msra.mxu0 0.0
      %685 = vmatprep.subr.mxu0 0.0
      %686 = vmatpush1.msra.mxu0 0.0
      %687 = vmatprep.subr.mxu0 0.0
      %688 = vmatpush1.msra.mxu0 0.0
      %689 = vmatprep.subr.mxu0 0.0
      %690 = vmatpush1.msra.mxu0 0.0
      %691 = vmatprep.subr.mxu0 0.0
      %692 = vmatpush1.msra.mxu0 0.0
      %693 = vmatprep.subr.mxu0 0.0
      %694 = vmatpush1.msra.mxu0 0.0
      %695 = vmatprep.subr.mxu0 0.0
      %696 = vmatpush1.msra.mxu0 0.0
      %697 = vmatprep.subr.mxu0 0.0
      %698 = vmatpush1.msra.mxu0 0.0
      %699 = vmatprep.subr.mxu0 0.0
      %700 = vmatpush1.msra.mxu0 0.0
      %701 = vmatprep.subr.mxu0 0.0
      %702 = vmatpush1.msra.mxu0 0.0
      %703 = vmatprep.subr.mxu0 0.0
      %704 = vmatpush1.msra.mxu0 0.0
      %705 = vmatprep.subr.mxu0 0.0
      %706 = vmatpush1.msra.mxu0 0.0
      %707 = vmatprep.subr.mxu0 0.0
      %708 = vmatpush1.msra.mxu0 0.0
      %709 = vmatprep.subr.mxu0 0.0
      %710 = vmatpush1.msra.mxu0 0.0
      %711 = vmatprep.subr.mxu0 0.0
      %712 = vmatpush1.msra.mxu0 0.0
      %713 = vmatprep.subr.mxu0 0.0
      %714 = vmatpush1.msra.mxu0 0.0
      %715 = vmatprep.subr.mxu0 0.0
      %716 = vmatpush1.msra.mxu0 0.0
      %717 = vmatprep.subr.mxu0 0.0
      %718 = vmatpush1.msra.mxu0 0.0
      %719 = vmatprep.subr.mxu0 0.0
      %720 = vmatpush1.msra.mxu0 0.0
      %721 = vmatprep.subr.mxu0 0.0
      %722 = vmatpush1.msra.mxu0 0.0
      %723 = vmatprep.subr.mxu0 0.0
      %724 = vmatpush1.msra.mxu0 0.0
      %725 = vmatprep.subr.mxu0 0.0
      %726 = vmatpush1.msra.mxu0 0.0
      %727 = vmatprep.subr.mxu0 0.0
      %728 = vmatpush1.msra.mxu0 0.0
      %729 = vmatprep.subr.mxu0 0.0
      %730 = vmatpush1.msra.mxu0 0.0
      %731 = vmatprep.subr.mxu0 0.0
      %732 = vmatpush1.msra.mxu0 0.0
      %733 = vmatprep.subr.mxu0 0.0
      %734 = vmatpush1.msra.mxu0 0.0
      %735 = vmatprep.subr.mxu0 0.0
      %736 = vmatpush1.msra.mxu0 0.0
      %737 = vmatprep.subr.mxu0 0.0
      %738 = vmatpush1.msra.mxu0 0.0
      %739 = vmatprep.subr.mxu0 0.0
      %740 = vmatpush1.msra.mxu0 0.0
      %741 = vmatprep.mubr.f32.mxu0 0.0
      %742 = vmatmul.mubr.f32.gmra.mrb[0].mxu0 %v672
      %v743 = vpop.f32.mrb[0].mxu0
      %v744 = vadd.f32 0.0, %v743
      %v745 = vpop.f32.mrb[0].mxu0
      %746 = vmatprep.mubr.f32.mxu0 0.0
      %747 = vmatmul.mubr.f32.gmra.mrb[0].mxu0 %v675
      %v748 = vpop.f32.mrb[0].mxu0
      %v749 = vadd.f32 0.0, %v748
      %v750 = vpop.f32.mrb[0].mxu0
      %751 = vdwg.mxu0
      %753 = vrot.lane.b32.xlu0 %v601, 124
      %v754 = vpop.permute.xlu0 %753
      %v757 = vsel %vm407, %v653, 0
      %v760 = vsel %vm407, %v654, 0
      %762 = vmatprep.subr.mxu0 0.0
      %763 = vmatpush1.msra.mxu0 %v754
      %764 = vmatprep.subr.mxu0 0.0
      %765 = vmatpush1.msra.mxu0 0.0
      %766 = vmatprep.subr.mxu0 0.0
      %767 = vmatpush1.msra.mxu0 0.0
      %768 = vmatprep.subr.mxu0 0.0
      %769 = vmatpush1.msra.mxu0 0.0
      %770 = vmatprep.subr.mxu0 0.0
      %771 = vmatpush1.msra.mxu0 0.0
      %772 = vmatprep.subr.mxu0 0.0
      %773 = vmatpush1.msra.mxu0 0.0
      %774 = vmatprep.subr.mxu0 0.0
      %775 = vmatpush1.msra.mxu0 0.0
      %776 = vmatprep.subr.mxu0 0.0
      %777 = vmatpush1.msra.mxu0 0.0
      %778 = vmatprep.subr.mxu0 0.0
      %779 = vmatpush1.msra.mxu0 0.0
      %780 = vmatprep.subr.mxu0 0.0
      %781 = vmatpush1.msra.mxu0 0.0
      %782 = vmatprep.subr.mxu0 0.0
      %783 = vmatpush1.msra.mxu0 0.0
      %784 = vmatprep.subr.mxu0 0.0
      %785 = vmatpush1.msra.mxu0 0.0
      %786 = vmatprep.subr.mxu0 0.0
      %787 = vmatpush1.msra.mxu0 0.0
      %788 = vmatprep.subr.mxu0 0.0
      %789 = vmatpush1.msra.mxu0 0.0
      %790 = vmatprep.subr.mxu0 0.0
      %791 = vmatpush1.msra.mxu0 0.0
      %792 = vmatprep.subr.mxu0 0.0
      %793 = vmatpush1.msra.mxu0 0.0
      %794 = vmatprep.subr.mxu0 0.0
      %795 = vmatpush1.msra.mxu0 0.0
      %796 = vmatprep.subr.mxu0 0.0
      %797 = vmatpush1.msra.mxu0 0.0
      %798 = vmatprep.subr.mxu0 0.0
      %799 = vmatpush1.msra.mxu0 0.0
      %800 = vmatprep.subr.mxu0 0.0
      %801 = vmatpush1.msra.mxu0 0.0
      %802 = vmatprep.subr.mxu0 0.0
      %803 = vmatpush1.msra.mxu0 0.0
      %804 = vmatprep.subr.mxu0 0.0
      %805 = vmatpush1.msra.mxu0 0.0
      %806 = vmatprep.subr.mxu0 0.0
      %807 = vmatpush1.msra.mxu0 0.0
      %808 = vmatprep.subr.mxu0 0.0
      %809 = vmatpush1.msra.mxu0 0.0
      %810 = vmatprep.subr.mxu0 0.0
      %811 = vmatpush1.msra.mxu0 0.0
      %812 = vmatprep.subr.mxu0 0.0
      %813 = vmatpush1.msra.mxu0 0.0
      %814 = vmatprep.subr.mxu0 0.0
      %815 = vmatpush1.msra.mxu0 0.0
      %816 = vmatprep.subr.mxu0 0.0
      %817 = vmatpush1.msra.mxu0 0.0
      %818 = vmatprep.subr.mxu0 0.0
      %819 = vmatpush1.msra.mxu0 0.0
      %820 = vmatprep.subr.mxu0 0.0
      %821 = vmatpush1.msra.mxu0 0.0
      %822 = vmatprep.subr.mxu0 0.0
      %823 = vmatpush1.msra.mxu0 0.0
      %824 = vmatprep.subr.mxu0 0.0
      %825 = vmatpush1.msra.mxu0 0.0
      %826 = vmatprep.mubr.f32.mxu0 0.0
      %827 = vmatmul.mubr.f32.gmra.mrb[0].mxu0 %v757
      %v828 = vpop.f32.mrb[0].mxu0
      %v829 = vadd.f32 0.0, %v828
      %v830 = vpop.f32.mrb[0].mxu0
      %831 = vmatprep.mubr.f32.mxu0 0.0
      %832 = vmatmul.mubr.f32.gmra.mrb[0].mxu0 %v760
      %v833 = vpop.f32.mrb[0].mxu0
      %v834 = vadd.f32 0.0, %v833
      %v835 = vpop.f32.mrb[0].mxu0
      %836 = vdwg.mxu0
      %838 = vrot.lane.b32.xlu0 %v606, 124
      %v839 = vpop.permute.xlu0 %838
      %v842 = vsel %vm407, %v655, 0
      %v845 = vsel %vm407, %v656, 0
      %847 = vmatprep.subr.mxu0 0.0
      %848 = vmatpush1.msra.mxu0 %v839
      %849 = vmatprep.subr.mxu0 0.0
      %850 = vmatpush1.msra.mxu0 0.0
      %851 = vmatprep.subr.mxu0 0.0
      %852 = vmatpush1.msra.mxu0 0.0
      %853 = vmatprep.subr.mxu0 0.0
      %854 = vmatpush1.msra.mxu0 0.0
      %855 = vmatprep.subr.mxu0 0.0
      %856 = vmatpush1.msra.mxu0 0.0
      %857 = vmatprep.subr.mxu0 0.0
      %858 = vmatpush1.msra.mxu0 0.0
      %859 = vmatprep.subr.mxu0 0.0
      %860 = vmatpush1.msra.mxu0 0.0
      %861 = vmatprep.subr.mxu0 0.0
      %862 = vmatpush1.msra.mxu0 0.0
      %863 = vmatprep.subr.mxu0 0.0
      %864 = vmatpush1.msra.mxu0 0.0
      %865 = vmatprep.subr.mxu0 0.0
      %866 = vmatpush1.msra.mxu0 0.0
      %867 = vmatprep.subr.mxu0 0.0
      %868 = vmatpush1.msra.mxu0 0.0
      %869 = vmatprep.subr.mxu0 0.0
      %870 = vmatpush1.msra.mxu0 0.0
      %871 = vmatprep.subr.mxu0 0.0
      %872 = vmatpush1.msra.mxu0 0.0
      %873 = vmatprep.subr.mxu0 0.0
      %874 = vmatpush1.msra.mxu0 0.0
      %875 = vmatprep.subr.mxu0 0.0
      %876 = vmatpush1.msra.mxu0 0.0
      %877 = vmatprep.subr.mxu0 0.0
      %878 = vmatpush1.msra.mxu0 0.0
      %879 = vmatprep.subr.mxu0 0.0
      %880 = vmatpush1.msra.mxu0 0.0
      %881 = vmatprep.subr.mxu0 0.0
      %882 = vmatpush1.msra.mxu0 0.0
      %883 = vmatprep.subr.mxu0 0.0
      %884 = vmatpush1.msra.mxu0 0.0
      %885 = vmatprep.subr.mxu0 0.0
      %886 = vmatpush1.msra.mxu0 0.0
      %887 = vmatprep.subr.mxu0 0.0
      %888 = vmatpush1.msra.mxu0 0.0
      %889 = vmatprep.subr.mxu0 0.0
      %890 = vmatpush1.msra.mxu0 0.0
      %891 = vmatprep.subr.mxu0 0.0
      %892 = vmatpush1.msra.mxu0 0.0
      %893 = vmatprep.subr.mxu0 0.0
      %894 = vmatpush1.msra.mxu0 0.0
      %895 = vmatprep.subr.mxu0 0.0
      %896 = vmatpush1.msra.mxu0 0.0
      %897 = vmatprep.subr.mxu0 0.0
      %898 = vmatpush1.msra.mxu0 0.0
      %899 = vmatprep.subr.mxu0 0.0
      %900 = vmatpush1.msra.mxu0 0.0
      %901 = vmatprep.subr.mxu0 0.0
      %902 = vmatpush1.msra.mxu0 0.0
      %903 = vmatprep.subr.mxu0 0.0
      %904 = vmatpush1.msra.mxu0 0.0
      %905 = vmatprep.subr.mxu0 0.0
      %906 = vmatpush1.msra.mxu0 0.0
      %907 = vmatprep.subr.mxu0 0.0
      %908 = vmatpush1.msra.mxu0 0.0
      %909 = vmatprep.subr.mxu0 0.0
      %910 = vmatpush1.msra.mxu0 0.0
      %911 = vmatprep.mubr.f32.mxu0 0.0
      %912 = vmatmul.mubr.f32.gmra.mrb[0].mxu0 %v842
      %v913 = vpop.f32.mrb[0].mxu0
      %v914 = vadd.f32 0.0, %v913
      %v915 = vpop.f32.mrb[0].mxu0
      %916 = vmatprep.mubr.f32.mxu0 0.0
      %917 = vmatmul.mubr.f32.gmra.mrb[0].mxu0 %v845
      %v918 = vpop.f32.mrb[0].mxu0
      %v919 = vadd.f32 0.0, %v918
      %v920 = vpop.f32.mrb[0].mxu0
      %921 = vdwg.mxu0
      %923 = vrot.lane.b32.xlu0 %v611, 124
      %v924 = vpop.permute.xlu0 %923
      %v927 = vsel %vm407, %v657, 0
      %v930 = vsel %vm407, %v658, 0
      %932 = vmatprep.subr.mxu0 0.0
      %933 = vmatpush1.msra.mxu0 %v924
      %934 = vmatprep.subr.mxu0 0.0
      %935 = vmatpush1.msra.mxu0 0.0
      %936 = vmatprep.subr.mxu0 0.0
      %937 = vmatpush1.msra.mxu0 0.0
      %938 = vmatprep.subr.mxu0 0.0
      %939 = vmatpush1.msra.mxu0 0.0
      %940 = vmatprep.subr.mxu0 0.0
      %941 = vmatpush1.msra.mxu0 0.0
      %942 = vmatprep.subr.mxu0 0.0
      %943 = vmatpush1.msra.mxu0 0.0
      %944 = vmatprep.subr.mxu0 0.0
      %945 = vmatpush1.msra.mxu0 0.0
      %946 = vmatprep.subr.mxu0 0.0
      %947 = vmatpush1.msra.mxu0 0.0
      %948 = vmatprep.subr.mxu0 0.0
      %949 = vmatpush1.msra.mxu0 0.0
      %950 = vmatprep.subr.mxu0 0.0
      %951 = vmatpush1.msra.mxu0 0.0
      %952 = vmatprep.subr.mxu0 0.0
      %953 = vmatpush1.msra.mxu0 0.0
      %954 = vmatprep.subr.mxu0 0.0
      %955 = vmatpush1.msra.mxu0 0.0
      %956 = vmatprep.subr.mxu0 0.0
      %957 = vmatpush1.msra.mxu0 0.0
      %958 = vmatprep.subr.mxu0 0.0
      %959 = vmatpush1.msra.mxu0 0.0
      %960 = vmatprep.subr.mxu0 0.0
      %961 = vmatpush1.msra.mxu0 0.0
      %962 = vmatprep.subr.mxu0 0.0
      %963 = vmatpush1.msra.mxu0 0.0
      %964 = vmatprep.subr.mxu0 0.0
      %965 = vmatpush1.msra.mxu0 0.0
      %966 = vmatprep.subr.mxu0 0.0
      %967 = vmatpush1.msra.mxu0 0.0
      %968 = vmatprep.subr.mxu0 0.0
      %969 = vmatpush1.msra.mxu0 0.0
      %970 = vmatprep.subr.mxu0 0.0
      %971 = vmatpush1.msra.mxu0 0.0
      %972 = vmatprep.subr.mxu0 0.0
      %973 = vmatpush1.msra.mxu0 0.0
      %974 = vmatprep.subr.mxu0 0.0
      %975 = vmatpush1.msra.mxu0 0.0
      %976 = vmatprep.subr.mxu0 0.0
      %977 = vmatpush1.msra.mxu0 0.0
      %978 = vmatprep.subr.mxu0 0.0
      %979 = vmatpush1.msra.mxu0 0.0
      %980 = vmatprep.subr.mxu0 0.0
      %981 = vmatpush1.msra.mxu0 0.0
      %982 = vmatprep.subr.mxu0 0.0
      %983 = vmatpush1.msra.mxu0 0.0
      %984 = vmatprep.subr.mxu0 0.0
      %985 = vmatpush1.msra.mxu0 0.0
      %986 = vmatprep.subr.mxu0 0.0
      %987 = vmatpush1.msra.mxu0 0.0
      %988 = vmatprep.subr.mxu0 0.0
      %989 = vmatpush1.msra.mxu0 0.0
      %990 = vmatprep.subr.mxu0 0.0
      %991 = vmatpush1.msra.mxu0 0.0
      %992 = vmatprep.subr.mxu0 0.0
      %993 = vmatpush1.msra.mxu0 0.0
      %994 = vmatprep.subr.mxu0 0.0
      %995 = vmatpush1.msra.mxu0 0.0
      %996 = vmatprep.mubr.f32.mxu0 0.0
      %997 = vmatmul.mubr.f32.gmra.mrb[0].mxu0 %v927
      %v998 = vpop.f32.mrb[0].mxu0
      %v999 = vadd.f32 0.0, %v998
      %v1000 = vpop.f32.mrb[0].mxu0
      %1001 = vmatprep.mubr.f32.mxu0 0.0
      %1002 = vmatmul.mubr.f32.gmra.mrb[0].mxu0 %v930
      %v1003 = vpop.f32.mrb[0].mxu0
      %v1004 = vadd.f32 0.0, %v1003
      %v1005 = vpop.f32.mrb[0].mxu0
      %1006 = vdwg.mxu0
      %1008 = vrot.lane.b32.xlu0 %v616, 124
      %v1009 = vpop.permute.xlu0 %1008
      %v1012 = vsel %vm407, %v659, 0
      %v1015 = vsel %vm407, %v660, 0
      %1017 = vmatprep.subr.mxu0 0.0
      %1018 = vmatpush1.msra.mxu0 %v1009
      %1019 = vmatprep.subr.mxu0 0.0
      %1020 = vmatpush1.msra.mxu0 0.0
      %1021 = vmatprep.subr.mxu0 0.0
      %1022 = vmatpush1.msra.mxu0 0.0
      %1023 = vmatprep.subr.mxu0 0.0
      %1024 = vmatpush1.msra.mxu0 0.0
      %1025 = vmatprep.subr.mxu0 0.0
      %1026 = vmatpush1.msra.mxu0 0.0
      %1027 = vmatprep.subr.mxu0 0.0
      %1028 = vmatpush1.msra.mxu0 0.0
      %1029 = vmatprep.subr.mxu0 0.0
      %1030 = vmatpush1.msra.mxu0 0.0
      %1031 = vmatprep.subr.mxu0 0.0
      %1032 = vmatpush1.msra.mxu0 0.0
      %1033 = vmatprep.subr.mxu0 0.0
      %1034 = vmatpush1.msra.mxu0 0.0
      %1035 = vmatprep.subr.mxu0 0.0
      %1036 = vmatpush1.msra.mxu0 0.0
      %1037 = vmatprep.subr.mxu0 0.0
      %1038 = vmatpush1.msra.mxu0 0.0
      %1039 = vmatprep.subr.mxu0 0.0
      %1040 = vmatpush1.msra.mxu0 0.0
      %1041 = vmatprep.subr.mxu0 0.0
      %1042 = vmatpush1.msra.mxu0 0.0
      %1043 = vmatprep.subr.mxu0 0.0
      %1044 = vmatpush1.msra.mxu0 0.0
      %1045 = vmatprep.subr.mxu0 0.0
      %1046 = vmatpush1.msra.mxu0 0.0
      %1047 = vmatprep.subr.mxu0 0.0
      %1048 = vmatpush1.msra.mxu0 0.0
      %1049 = vmatprep.subr.mxu0 0.0
      %1050 = vmatpush1.msra.mxu0 0.0
      %1051 = vmatprep.subr.mxu0 0.0
      %1052 = vmatpush1.msra.mxu0 0.0
      %1053 = vmatprep.subr.mxu0 0.0
      %1054 = vmatpush1.msra.mxu0 0.0
      %1055 = vmatprep.subr.mxu0 0.0
      %1056 = vmatpush1.msra.mxu0 0.0
      %1057 = vmatprep.subr.mxu0 0.0
      %1058 = vmatpush1.msra.mxu0 0.0
      %1059 = vmatprep.subr.mxu0 0.0
      %1060 = vmatpush1.msra.mxu0 0.0
      %1061 = vmatprep.subr.mxu0 0.0
      %1062 = vmatpush1.msra.mxu0 0.0
      %1063 = vmatprep.subr.mxu0 0.0
      %1064 = vmatpush1.msra.mxu0 0.0
      %1065 = vmatprep.subr.mxu0 0.0
      %1066 = vmatpush1.msra.mxu0 0.0
      %1067 = vmatprep.subr.mxu0 0.0
      %1068 = vmatpush1.msra.mxu0 0.0
      %1069 = vmatprep.subr.mxu0 0.0
      %1070 = vmatpush1.msra.mxu0 0.0
      %1071 = vmatprep.subr.mxu0 0.0
      %1072 = vmatpush1.msra.mxu0 0.0
      %1073 = vmatprep.subr.mxu0 0.0
      %1074 = vmatpush1.msra.mxu0 0.0
      %1075 = vmatprep.subr.mxu0 0.0
      %1076 = vmatpush1.msra.mxu0 0.0
      %1077 = vmatprep.subr.mxu0 0.0
      %1078 = vmatpush1.msra.mxu0 0.0
      %1079 = vmatprep.subr.mxu0 0.0
      %1080 = vmatpush1.msra.mxu0 0.0
      %1081 = vmatprep.mubr.f32.mxu0 0.0
      %1082 = vmatmul.mubr.f32.gmra.mrb[0].mxu0 %v1012
      %v1083 = vpop.f32.mrb[0].mxu0
      %v1084 = vadd.f32 0.0, %v1083
      %v1085 = vpop.f32.mrb[0].mxu0
      %1086 = vmatprep.mubr.f32.mxu0 0.0
      %1087 = vmatmul.mubr.f32.gmra.mrb[0].mxu0 %v1015
      %v1088 = vpop.f32.mrb[0].mxu0
      %v1089 = vadd.f32 0.0, %v1088
      %v1090 = vpop.f32.mrb[0].mxu0
      %1091 = vdwg.mxu0
      %1093 = vrot.lane.b32.xlu0 %v621, 124
      %v1094 = vpop.permute.xlu0 %1093
      %v1097 = vsel %vm407, %v661, 0
      %v1100 = vsel %vm407, %v662, 0
      %1102 = vmatprep.subr.mxu0 0.0
      %1103 = vmatpush1.msra.mxu0 %v1094
      %1104 = vmatprep.subr.mxu0 0.0
      %1105 = vmatpush1.msra.mxu0 0.0
      %1106 = vmatprep.subr.mxu0 0.0
      %1107 = vmatpush1.msra.mxu0 0.0
      %1108 = vmatprep.subr.mxu0 0.0
      %1109 = vmatpush1.msra.mxu0 0.0
      %1110 = vmatprep.subr.mxu0 0.0
      %1111 = vmatpush1.msra.mxu0 0.0
      %1112 = vmatprep.subr.mxu0 0.0
      %1113 = vmatpush1.msra.mxu0 0.0
      %1114 = vmatprep.subr.mxu0 0.0
      %1115 = vmatpush1.msra.mxu0 0.0
      %1116 = vmatprep.subr.mxu0 0.0
      %1117 = vmatpush1.msra.mxu0 0.0
      %1118 = vmatprep.subr.mxu0 0.0
      %1119 = vmatpush1.msra.mxu0 0.0
      %1120 = vmatprep.subr.mxu0 0.0
      %1121 = vmatpush1.msra.mxu0 0.0
      %1122 = vmatprep.subr.mxu0 0.0
      %1123 = vmatpush1.msra.mxu0 0.0
      %1124 = vmatprep.subr.mxu0 0.0
      %1125 = vmatpush1.msra.mxu0 0.0
      %1126 = vmatprep.subr.mxu0 0.0
      %1127 = vmatpush1.msra.mxu0 0.0
      %1128 = vmatprep.subr.mxu0 0.0
      %1129 = vmatpush1.msra.mxu0 0.0
      %1130 = vmatprep.subr.mxu0 0.0
      %1131 = vmatpush1.msra.mxu0 0.0
      %1132 = vmatprep.subr.mxu0 0.0
      %1133 = vmatpush1.msra.mxu0 0.0
      %1134 = vmatprep.subr.mxu0 0.0
      %1135 = vmatpush1.msra.mxu0 0.0
      %1136 = vmatprep.subr.mxu0 0.0
      %1137 = vmatpush1.msra.mxu0 0.0
      %1138 = vmatprep.subr.mxu0 0.0
      %1139 = vmatpush1.msra.mxu0 0.0
      %1140 = vmatprep.subr.mxu0 0.0
      %1141 = vmatpush1.msra.mxu0 0.0
      %1142 = vmatprep.subr.mxu0 0.0
      %1143 = vmatpush1.msra.mxu0 0.0
      %1144 = vmatprep.subr.mxu0 0.0
      %1145 = vmatpush1.msra.mxu0 0.0
      %1146 = vmatprep.subr.mxu0 0.0
      %1147 = vmatpush1.msra.mxu0 0.0
      %1148 = vmatprep.subr.mxu0 0.0
      %1149 = vmatpush1.msra.mxu0 0.0
      %1150 = vmatprep.subr.mxu0 0.0
      %1151 = vmatpush1.msra.mxu0 0.0
      %1152 = vmatprep.subr.mxu0 0.0
      %1153 = vmatpush1.msra.mxu0 0.0
      %1154 = vmatprep.subr.mxu0 0.0
      %1155 = vmatpush1.msra.mxu0 0.0
      %1156 = vmatprep.subr.mxu0 0.0
      %1157 = vmatpush1.msra.mxu0 0.0
      %1158 = vmatprep.subr.mxu0 0.0
      %1159 = vmatpush1.msra.mxu0 0.0
      %1160 = vmatprep.subr.mxu0 0.0
      %1161 = vmatpush1.msra.mxu0 0.0
      %1162 = vmatprep.subr.mxu0 0.0
      %1163 = vmatpush1.msra.mxu0 0.0
      %1164 = vmatprep.subr.mxu0 0.0
      %1165 = vmatpush1.msra.mxu0 0.0
      %1166 = vmatprep.mubr.f32.mxu0 0.0
      %1167 = vmatmul.mubr.f32.gmra.mrb[0].mxu0 %v1097
      %v1168 = vpop.f32.mrb[0].mxu0
      %v1169 = vadd.f32 0.0, %v1168
      %v1170 = vpop.f32.mrb[0].mxu0
      %1171 = vmatprep.mubr.f32.mxu0 0.0
      %1172 = vmatmul.mubr.f32.gmra.mrb[0].mxu0 %v1100
      %v1173 = vpop.f32.mrb[0].mxu0
      %v1174 = vadd.f32 0.0, %v1173
      %v1175 = vpop.f32.mrb[0].mxu0
      %1176 = vdwg.mxu0
      %1178 = vrot.lane.b32.xlu0 %v626, 124
      %v1179 = vpop.permute.xlu0 %1178
      %v1182 = vsel %vm407, %v663, 0
      %v1185 = vsel %vm407, %v664, 0
      %1187 = vmatprep.subr.mxu0 0.0
      %1188 = vmatpush1.msra.mxu0 %v1179
      %1189 = vmatprep.subr.mxu0 0.0
      %1190 = vmatpush1.msra.mxu0 0.0
      %1191 = vmatprep.subr.mxu0 0.0
      %1192 = vmatpush1.msra.mxu0 0.0
      %1193 = vmatprep.subr.mxu0 0.0
      %1194 = vmatpush1.msra.mxu0 0.0
      %1195 = vmatprep.subr.mxu0 0.0
      %1196 = vmatpush1.msra.mxu0 0.0
      %1197 = vmatprep.subr.mxu0 0.0
      %1198 = vmatpush1.msra.mxu0 0.0
      %1199 = vmatprep.subr.mxu0 0.0
      %1200 = vmatpush1.msra.mxu0 0.0
      %1201 = vmatprep.subr.mxu0 0.0
      %1202 = vmatpush1.msra.mxu0 0.0
      %1203 = vmatprep.subr.mxu0 0.0
      %1204 = vmatpush1.msra.mxu0 0.0
      %1205 = vmatprep.subr.mxu0 0.0
      %1206 = vmatpush1.msra.mxu0 0.0
      %1207 = vmatprep.subr.mxu0 0.0
      %1208 = vmatpush1.msra.mxu0 0.0
      %1209 = vmatprep.subr.mxu0 0.0
      %1210 = vmatpush1.msra.mxu0 0.0
      %1211 = vmatprep.subr.mxu0 0.0
      %1212 = vmatpush1.msra.mxu0 0.0
      %1213 = vmatprep.subr.mxu0 0.0
      %1214 = vmatpush1.msra.mxu0 0.0
      %1215 = vmatprep.subr.mxu0 0.0
      %1216 = vmatpush1.msra.mxu0 0.0
      %1217 = vmatprep.subr.mxu0 0.0
      %1218 = vmatpush1.msra.mxu0 0.0
      %1219 = vmatprep.subr.mxu0 0.0
      %1220 = vmatpush1.msra.mxu0 0.0
      %1221 = vmatprep.subr.mxu0 0.0
      %1222 = vmatpush1.msra.mxu0 0.0
      %1223 = vmatprep.subr.mxu0 0.0
      %1224 = vmatpush1.msra.mxu0 0.0
      %1225 = vmatprep.subr.mxu0 0.0
      %1226 = vmatpush1.msra.mxu0 0.0
      %1227 = vmatprep.subr.mxu0 0.0
      %1228 = vmatpush1.msra.mxu0 0.0
      %1229 = vmatprep.subr.mxu0 0.0
      %1230 = vmatpush1.msra.mxu0 0.0
      %1231 = vmatprep.subr.mxu0 0.0
      %1232 = vmatpush1.msra.mxu0 0.0
      %1233 = vmatprep.subr.mxu0 0.0
      %1234 = vmatpush1.msra.mxu0 0.0
      %1235 = vmatprep.subr.mxu0 0.0
      %1236 = vmatpush1.msra.mxu0 0.0
      %1237 = vmatprep.subr.mxu0 0.0
      %1238 = vmatpush1.msra.mxu0 0.0
      %1239 = vmatprep.subr.mxu0 0.0
      %1240 = vmatpush1.msra.mxu0 0.0
      %1241 = vmatprep.subr.mxu0 0.0
      %1242 = vmatpush1.msra.mxu0 0.0
      %1243 = vmatprep.subr.mxu0 0.0
      %1244 = vmatpush1.msra.mxu0 0.0
      %1245 = vmatprep.subr.mxu0 0.0
      %1246 = vmatpush1.msra.mxu0 0.0
      %1247 = vmatprep.subr.mxu0 0.0
      %1248 = vmatpush1.msra.mxu0 0.0
      %1249 = vmatprep.subr.mxu0 0.0
      %1250 = vmatpush1.msra.mxu0 0.0
      %1251 = vmatprep.mubr.f32.mxu0 0.0
      %1252 = vmatmul.mubr.f32.gmra.mrb[0].mxu0 %v1182
      %v1253 = vpop.f32.mrb[0].mxu0
      %v1254 = vadd.f32 0.0, %v1253
      %v1255 = vpop.f32.mrb[0].mxu0
      %1256 = vmatprep.mubr.f32.mxu0 0.0
      %1257 = vmatmul.mubr.f32.gmra.mrb[0].mxu0 %v1185
      %v1258 = vpop.f32.mrb[0].mxu0
      %v1259 = vadd.f32 0.0, %v1258
      %v1260 = vpop.f32.mrb[0].mxu0
      %1261 = vdwg.mxu0
      %1263 = vrot.lane.b32.xlu0 %v631, 124
      %v1264 = vpop.permute.xlu0 %1263
      %v1267 = vsel %vm407, %v665, 0
      %v1270 = vsel %vm407, %v666, 0
      %1272 = vmatprep.subr.mxu0 0.0
      %1273 = vmatpush1.msra.mxu0 %v1264
      %1274 = vmatprep.subr.mxu0 0.0
      %1275 = vmatpush1.msra.mxu0 0.0
      %1276 = vmatprep.subr.mxu0 0.0
      %1277 = vmatpush1.msra.mxu0 0.0
      %1278 = vmatprep.subr.mxu0 0.0
      %1279 = vmatpush1.msra.mxu0 0.0
      %1280 = vmatprep.subr.mxu0 0.0
      %1281 = vmatpush1.msra.mxu0 0.0
      %1282 = vmatprep.subr.mxu0 0.0
      %1283 = vmatpush1.msra.mxu0 0.0
      %1284 = vmatprep.subr.mxu0 0.0
      %1285 = vmatpush1.msra.mxu0 0.0
      %1286 = vmatprep.subr.mxu0 0.0
      %1287 = vmatpush1.msra.mxu0 0.0
      %1288 = vmatprep.subr.mxu0 0.0
      %1289 = vmatpush1.msra.mxu0 0.0
      %1290 = vmatprep.subr.mxu0 0.0
      %1291 = vmatpush1.msra.mxu0 0.0
      %1292 = vmatprep.subr.mxu0 0.0
      %1293 = vmatpush1.msra.mxu0 0.0
      %1294 = vmatprep.subr.mxu0 0.0
      %1295 = vmatpush1.msra.mxu0 0.0
      %1296 = vmatprep.subr.mxu0 0.0
      %1297 = vmatpush1.msra.mxu0 0.0
      %1298 = vmatprep.subr.mxu0 0.0
      %1299 = vmatpush1.msra.mxu0 0.0
      %1300 = vmatprep.subr.mxu0 0.0
      %1301 = vmatpush1.msra.mxu0 0.0
      %1302 = vmatprep.subr.mxu0 0.0
      %1303 = vmatpush1.msra.mxu0 0.0
      %1304 = vmatprep.subr.mxu0 0.0
      %1305 = vmatpush1.msra.mxu0 0.0
      %1306 = vmatprep.subr.mxu0 0.0
      %1307 = vmatpush1.msra.mxu0 0.0
      %1308 = vmatprep.subr.mxu0 0.0
      %1309 = vmatpush1.msra.mxu0 0.0
      %1310 = vmatprep.subr.mxu0 0.0
      %1311 = vmatpush1.msra.mxu0 0.0
      %1312 = vmatprep.subr.mxu0 0.0
      %1313 = vmatpush1.msra.mxu0 0.0
      %1314 = vmatprep.subr.mxu0 0.0
      %1315 = vmatpush1.msra.mxu0 0.0
      %1316 = vmatprep.subr.mxu0 0.0
      %1317 = vmatpush1.msra.mxu0 0.0
      %1318 = vmatprep.subr.mxu0 0.0
      %1319 = vmatpush1.msra.mxu0 0.0
      %1320 = vmatprep.subr.mxu0 0.0
      %1321 = vmatpush1.msra.mxu0 0.0
      %1322 = vmatprep.subr.mxu0 0.0
      %1323 = vmatpush1.msra.mxu0 0.0
      %1324 = vmatprep.subr.mxu0 0.0
      %1325 = vmatpush1.msra.mxu0 0.0
      %1326 = vmatprep.subr.mxu0 0.0
      %1327 = vmatpush1.msra.mxu0 0.0
      %1328 = vmatprep.subr.mxu0 0.0
      %1329 = vmatpush1.msra.mxu0 0.0
      %1330 = vmatprep.subr.mxu0 0.0
      %1331 = vmatpush1.msra.mxu0 0.0
      %1332 = vmatprep.subr.mxu0 0.0
      %1333 = vmatpush1.msra.mxu0 0.0
      %1334 = vmatprep.subr.mxu0 0.0
      %1335 = vmatpush1.msra.mxu0 0.0
      %1336 = vmatprep.mubr.f32.mxu0 0.0
      %1337 = vmatmul.mubr.f32.gmra.mrb[0].mxu0 %v1267
      %v1338 = vpop.f32.mrb[0].mxu0
      %v1339 = vadd.f32 0.0, %v1338
      %v1340 = vpop.f32.mrb[0].mxu0
      %1341 = vmatprep.mubr.f32.mxu0 0.0
      %1342 = vmatmul.mubr.f32.gmra.mrb[0].mxu0 %v1270
      %v1343 = vpop.f32.mrb[0].mxu0
      %v1344 = vadd.f32 0.0, %v1343
      %v1345 = vpop.f32.mrb[0].mxu0
      %1346 = vdwg.mxu0
      %v1348 = vsel %vm407, %v634, 0
      %v1351 = vsel %vm407, %v635, 0
      %1353 = vmatprep.subr.mxu0 0.0
      %1354 = vmatpush1.msra.mxu0 %v596
      %1355 = vmatprep.subr.mxu0 0.0
      %1356 = vmatpush1.msra.mxu0 0.0
      %1357 = vmatprep.subr.mxu0 0.0
      %1358 = vmatpush1.msra.mxu0 0.0
      %1359 = vmatprep.subr.mxu0 0.0
      %1360 = vmatpush1.msra.mxu0 0.0
      %1361 = vmatprep.subr.mxu0 0.0
      %1362 = vmatpush1.msra.mxu0 0.0
      %1363 = vmatprep.subr.mxu0 0.0
      %1364 = vmatpush1.msra.mxu0 0.0
      %1365 = vmatprep.subr.mxu0 0.0
      %1366 = vmatpush1.msra.mxu0 0.0
      %1367 = vmatprep.subr.mxu0 0.0
      %1368 = vmatpush1.msra.mxu0 0.0
      %1369 = vmatprep.subr.mxu0 0.0
      %1370 = vmatpush1.msra.mxu0 0.0
      %1371 = vmatprep.subr.mxu0 0.0
      %1372 = vmatpush1.msra.mxu0 0.0
      %1373 = vmatprep.subr.mxu0 0.0
      %1374 = vmatpush1.msra.mxu0 0.0
      %1375 = vmatprep.subr.mxu0 0.0
      %1376 = vmatpush1.msra.mxu0 0.0
      %1377 = vmatprep.subr.mxu0 0.0
      %1378 = vmatpush1.msra.mxu0 0.0
      %1379 = vmatprep.subr.mxu0 0.0
      %1380 = vmatpush1.msra.mxu0 0.0
      %1381 = vmatprep.subr.mxu0 0.0
      %1382 = vmatpush1.msra.mxu0 0.0
      %1383 = vmatprep.subr.mxu0 0.0
      %1384 = vmatpush1.msra.mxu0 0.0
      %1385 = vmatprep.subr.mxu0 0.0
      %1386 = vmatpush1.msra.mxu0 0.0
      %1387 = vmatprep.subr.mxu0 0.0
      %1388 = vmatpush1.msra.mxu0 0.0
      %1389 = vmatprep.subr.mxu0 0.0
      %1390 = vmatpush1.msra.mxu0 0.0
      %1391 = vmatprep.subr.mxu0 0.0
      %1392 = vmatpush1.msra.mxu0 0.0
      %1393 = vmatprep.subr.mxu0 0.0
      %1394 = vmatpush1.msra.mxu0 0.0
      %1395 = vmatprep.subr.mxu0 0.0
      %1396 = vmatpush1.msra.mxu0 0.0
      %1397 = vmatprep.subr.mxu0 0.0
      %1398 = vmatpush1.msra.mxu0 0.0
      %1399 = vmatprep.subr.mxu0 0.0
      %1400 = vmatpush1.msra.mxu0 0.0
      %1401 = vmatprep.subr.mxu0 0.0
      %1402 = vmatpush1.msra.mxu0 0.0
      %1403 = vmatprep.subr.mxu0 0.0
      %1404 = vmatpush1.msra.mxu0 0.0
      %1405 = vmatprep.subr.mxu0 0.0
      %1406 = vmatpush1.msra.mxu0 0.0
      %1407 = vmatprep.subr.mxu0 0.0
      %1408 = vmatpush1.msra.mxu0 0.0
      %1409 = vmatprep.subr.mxu0 0.0
      %1410 = vmatpush1.msra.mxu0 0.0
      %1411 = vmatprep.subr.mxu0 0.0
      %1412 = vmatpush1.msra.mxu0 0.0
      %1413 = vmatprep.subr.mxu0 0.0
      %1414 = vmatpush1.msra.mxu0 0.0
      %1415 = vmatprep.subr.mxu0 0.0
      %1416 = vmatpush1.msra.mxu0 0.0
      %1417 = vmatprep.mubr.f32.mxu0 0.0
      %1418 = vmatmul.mubr.f32.gmra.mrb[0].mxu0 %v1348
      %v1419 = vpop.f32.mrb[0].mxu0
      %v1420 = vadd.f32 %v744, %v1419
      %v1421 = vpop.f32.mrb[0].mxu0
      %1422 = vmatprep.mubr.f32.mxu0 0.0
      %1423 = vmatmul.mubr.f32.gmra.mrb[0].mxu0 %v1351
      %v1424 = vpop.f32.mrb[0].mxu0
      %v1425 = vadd.f32 %v749, %v1424
      %v1426 = vpop.f32.mrb[0].mxu0
      %1427 = vdwg.mxu0
      %v1429 = vsel %vm407, %v636, 0
      %v1432 = vsel %vm407, %v637, 0
      %1434 = vmatprep.subr.mxu0 0.0
      %1435 = vmatpush1.msra.mxu0 %v601
      %1436 = vmatprep.subr.mxu0 0.0
      %1437 = vmatpush1.msra.mxu0 0.0
      %1438 = vmatprep.subr.mxu0 0.0
      %1439 = vmatpush1.msra.mxu0 0.0
      %1440 = vmatprep.subr.mxu0 0.0
      %1441 = vmatpush1.msra.mxu0 0.0
      %1442 = vmatprep.subr.mxu0 0.0
      %1443 = vmatpush1.msra.mxu0 0.0
      %1444 = vmatprep.subr.mxu0 0.0
      %1445 = vmatpush1.msra.mxu0 0.0
      %1446 = vmatprep.subr.mxu0 0.0
      %1447 = vmatpush1.msra.mxu0 0.0
      %1448 = vmatprep.subr.mxu0 0.0
      %1449 = vmatpush1.msra.mxu0 0.0
      %1450 = vmatprep.subr.mxu0 0.0
      %1451 = vmatpush1.msra.mxu0 0.0
      %1452 = vmatprep.subr.mxu0 0.0
      %1453 = vmatpush1.msra.mxu0 0.0
      %1454 = vmatprep.subr.mxu0 0.0
      %1455 = vmatpush1.msra.mxu0 0.0
      %1456 = vmatprep.subr.mxu0 0.0
      %1457 = vmatpush1.msra.mxu0 0.0
      %1458 = vmatprep.subr.mxu0 0.0
      %1459 = vmatpush1.msra.mxu0 0.0
      %1460 = vmatprep.subr.mxu0 0.0
      %1461 = vmatpush1.msra.mxu0 0.0
      %1462 = vmatprep.subr.mxu0 0.0
      %1463 = vmatpush1.msra.mxu0 0.0
      %1464 = vmatprep.subr.mxu0 0.0
      %1465 = vmatpush1.msra.mxu0 0.0
      %1466 = vmatprep.subr.mxu0 0.0
      %1467 = vmatpush1.msra.mxu0 0.0
      %1468 = vmatprep.subr.mxu0 0.0
      %1469 = vmatpush1.msra.mxu0 0.0
      %1470 = vmatprep.subr.mxu0 0.0
      %1471 = vmatpush1.msra.mxu0 0.0
      %1472 = vmatprep.subr.mxu0 0.0
      %1473 = vmatpush1.msra.mxu0 0.0
      %1474 = vmatprep.subr.mxu0 0.0
      %1475 = vmatpush1.msra.mxu0 0.0
      %1476 = vmatprep.subr.mxu0 0.0
      %1477 = vmatpush1.msra.mxu0 0.0
      %1478 = vmatprep.subr.mxu0 0.0
      %1479 = vmatpush1.msra.mxu0 0.0
      %1480 = vmatprep.subr.mxu0 0.0
      %1481 = vmatpush1.msra.mxu0 0.0
      %1482 = vmatprep.subr.mxu0 0.0
      %1483 = vmatpush1.msra.mxu0 0.0
      %1484 = vmatprep.subr.mxu0 0.0
      %1485 = vmatpush1.msra.mxu0 0.0
      %1486 = vmatprep.subr.mxu0 0.0
      %1487 = vmatpush1.msra.mxu0 0.0
      %1488 = vmatprep.subr.mxu0 0.0
      %1489 = vmatpush1.msra.mxu0 0.0
      %1490 = vmatprep.subr.mxu0 0.0
      %1491 = vmatpush1.msra.mxu0 0.0
      %1492 = vmatprep.subr.mxu0 0.0
      %1493 = vmatpush1.msra.mxu0 0.0
      %1494 = vmatprep.subr.mxu0 0.0
      %1495 = vmatpush1.msra.mxu0 0.0
      %1496 = vmatprep.subr.mxu0 0.0
      %1497 = vmatpush1.msra.mxu0 0.0
      %1498 = vmatprep.mubr.f32.mxu0 0.0
      %1499 = vmatmul.mubr.f32.gmra.mrb[0].mxu0 %v1429
      %v1500 = vpop.f32.mrb[0].mxu0
      %v1501 = vadd.f32 %v829, %v1500
      %v1502 = vpop.f32.mrb[0].mxu0
      %1503 = vmatprep.mubr.f32.mxu0 0.0
      %1504 = vmatmul.mubr.f32.gmra.mrb[0].mxu0 %v1432
      %v1505 = vpop.f32.mrb[0].mxu0
      %v1506 = vadd.f32 %v834, %v1505
      %v1507 = vpop.f32.mrb[0].mxu0
      %1508 = vdwg.mxu0
      %v1510 = vsel %vm407, %v638, 0
      %v1513 = vsel %vm407, %v639, 0
      %1515 = vmatprep.subr.mxu0 0.0
      %1516 = vmatpush1.msra.mxu0 %v606
      %1517 = vmatprep.subr.mxu0 0.0
      %1518 = vmatpush1.msra.mxu0 0.0
      %1519 = vmatprep.subr.mxu0 0.0
      %1520 = vmatpush1.msra.mxu0 0.0
      %1521 = vmatprep.subr.mxu0 0.0
      %1522 = vmatpush1.msra.mxu0 0.0
      %1523 = vmatprep.subr.mxu0 0.0
      %1524 = vmatpush1.msra.mxu0 0.0
      %1525 = vmatprep.subr.mxu0 0.0
      %1526 = vmatpush1.msra.mxu0 0.0
      %1527 = vmatprep.subr.mxu0 0.0
      %1528 = vmatpush1.msra.mxu0 0.0
      %1529 = vmatprep.subr.mxu0 0.0
      %1530 = vmatpush1.msra.mxu0 0.0
      %1531 = vmatprep.subr.mxu0 0.0
      %1532 = vmatpush1.msra.mxu0 0.0
      %1533 = vmatprep.subr.mxu0 0.0
      %1534 = vmatpush1.msra.mxu0 0.0
      %1535 = vmatprep.subr.mxu0 0.0
      %1536 = vmatpush1.msra.mxu0 0.0
      %1537 = vmatprep.subr.mxu0 0.0
      %1538 = vmatpush1.msra.mxu0 0.0
      %1539 = vmatprep.subr.mxu0 0.0
      %1540 = vmatpush1.msra.mxu0 0.0
      %1541 = vmatprep.subr.mxu0 0.0
      %1542 = vmatpush1.msra.mxu0 0.0
      %1543 = vmatprep.subr.mxu0 0.0
      %1544 = vmatpush1.msra.mxu0 0.0
      %1545 = vmatprep.subr.mxu0 0.0
      %1546 = vmatpush1.msra.mxu0 0.0
      %1547 = vmatprep.subr.mxu0 0.0
      %1548 = vmatpush1.msra.mxu0 0.0
      %1549 = vmatprep.subr.mxu0 0.0
      %1550 = vmatpush1.msra.mxu0 0.0
      %1551 = vmatprep.subr.mxu0 0.0
      %1552 = vmatpush1.msra.mxu0 0.0
      %1553 = vmatprep.subr.mxu0 0.0
      %1554 = vmatpush1.msra.mxu0 0.0
      %1555 = vmatprep.subr.mxu0 0.0
      %1556 = vmatpush1.msra.mxu0 0.0
      %1557 = vmatprep.subr.mxu0 0.0
      %1558 = vmatpush1.msra.mxu0 0.0
      %1559 = vmatprep.subr.mxu0 0.0
      %1560 = vmatpush1.msra.mxu0 0.0
      %1561 = vmatprep.subr.mxu0 0.0
      %1562 = vmatpush1.msra.mxu0 0.0
      %1563 = vmatprep.subr.mxu0 0.0
      %1564 = vmatpush1.msra.mxu0 0.0
      %1565 = vmatprep.subr.mxu0 0.0
      %1566 = vmatpush1.msra.mxu0 0.0
      %1567 = vmatprep.subr.mxu0 0.0
      %1568 = vmatpush1.msra.mxu0 0.0
      %1569 = vmatprep.subr.mxu0 0.0
      %1570 = vmatpush1.msra.mxu0 0.0
      %1571 = vmatprep.subr.mxu0 0.0
      %1572 = vmatpush1.msra.mxu0 0.0
      %1573 = vmatprep.subr.mxu0 0.0
      %1574 = vmatpush1.msra.mxu0 0.0
      %1575 = vmatprep.subr.mxu0 0.0
      %1576 = vmatpush1.msra.mxu0 0.0
      %1577 = vmatprep.subr.mxu0 0.0
      %1578 = vmatpush1.msra.mxu0 0.0
      %1579 = vmatprep.mubr.f32.mxu0 0.0
      %1580 = vmatmul.mubr.f32.gmra.mrb[0].mxu0 %v1510
      %v1581 = vpop.f32.mrb[0].mxu0
      %v1582 = vadd.f32 %v914, %v1581
      %v1583 = vpop.f32.mrb[0].mxu0
      %1584 = vmatprep.mubr.f32.mxu0 0.0
      %1585 = vmatmul.mubr.f32.gmra.mrb[0].mxu0 %v1513
      %v1586 = vpop.f32.mrb[0].mxu0
      %v1587 = vadd.f32 %v919, %v1586
      %v1588 = vpop.f32.mrb[0].mxu0
      %1589 = vdwg.mxu0
      %v1591 = vsel %vm407, %v640, 0
      %v1594 = vsel %vm407, %v641, 0
      %1596 = vmatprep.subr.mxu0 0.0
      %1597 = vmatpush1.msra.mxu0 %v611
      %1598 = vmatprep.subr.mxu0 0.0
      %1599 = vmatpush1.msra.mxu0 0.0
      %1600 = vmatprep.subr.mxu0 0.0
      %1601 = vmatpush1.msra.mxu0 0.0
      %1602 = vmatprep.subr.mxu0 0.0
      %1603 = vmatpush1.msra.mxu0 0.0
      %1604 = vmatprep.subr.mxu0 0.0
      %1605 = vmatpush1.msra.mxu0 0.0
      %1606 = vmatprep.subr.mxu0 0.0
      %1607 = vmatpush1.msra.mxu0 0.0
      %1608 = vmatprep.subr.mxu0 0.0
      %1609 = vmatpush1.msra.mxu0 0.0
      %1610 = vmatprep.subr.mxu0 0.0
      %1611 = vmatpush1.msra.mxu0 0.0
      %1612 = vmatprep.subr.mxu0 0.0
      %1613 = vmatpush1.msra.mxu0 0.0
      %1614 = vmatprep.subr.mxu0 0.0
      %1615 = vmatpush1.msra.mxu0 0.0
      %1616 = vmatprep.subr.mxu0 0.0
      %1617 = vmatpush1.msra.mxu0 0.0
      %1618 = vmatprep.subr.mxu0 0.0
      %1619 = vmatpush1.msra.mxu0 0.0
      %1620 = vmatprep.subr.mxu0 0.0
      %1621 = vmatpush1.msra.mxu0 0.0
      %1622 = vmatprep.subr.mxu0 0.0
      %1623 = vmatpush1.msra.mxu0 0.0
      %1624 = vmatprep.subr.mxu0 0.0
      %1625 = vmatpush1.msra.mxu0 0.0
      %1626 = vmatprep.subr.mxu0 0.0
      %1627 = vmatpush1.msra.mxu0 0.0
      %1628 = vmatprep.subr.mxu0 0.0
      %1629 = vmatpush1.msra.mxu0 0.0
      %1630 = vmatprep.subr.mxu0 0.0
      %1631 = vmatpush1.msra.mxu0 0.0
      %1632 = vmatprep.subr.mxu0 0.0
      %1633 = vmatpush1.msra.mxu0 0.0
      %1634 = vmatprep.subr.mxu0 0.0
      %1635 = vmatpush1.msra.mxu0 0.0
      %1636 = vmatprep.subr.mxu0 0.0
      %1637 = vmatpush1.msra.mxu0 0.0
      %1638 = vmatprep.subr.mxu0 0.0
      %1639 = vmatpush1.msra.mxu0 0.0
      %1640 = vmatprep.subr.mxu0 0.0
      %1641 = vmatpush1.msra.mxu0 0.0
      %1642 = vmatprep.subr.mxu0 0.0
      %1643 = vmatpush1.msra.mxu0 0.0
      %1644 = vmatprep.subr.mxu0 0.0
      %1645 = vmatpush1.msra.mxu0 0.0
      %1646 = vmatprep.subr.mxu0 0.0
      %1647 = vmatpush1.msra.mxu0 0.0
      %1648 = vmatprep.subr.mxu0 0.0
      %1649 = vmatpush1.msra.mxu0 0.0
      %1650 = vmatprep.subr.mxu0 0.0
      %1651 = vmatpush1.msra.mxu0 0.0
      %1652 = vmatprep.subr.mxu0 0.0
      %1653 = vmatpush1.msra.mxu0 0.0
      %1654 = vmatprep.subr.mxu0 0.0
      %1655 = vmatpush1.msra.mxu0 0.0
      %1656 = vmatprep.subr.mxu0 0.0
      %1657 = vmatpush1.msra.mxu0 0.0
      %1658 = vmatprep.subr.mxu0 0.0
      %1659 = vmatpush1.msra.mxu0 0.0
      %1660 = vmatprep.mubr.f32.mxu0 0.0
      %1661 = vmatmul.mubr.f32.gmra.mrb[0].mxu0 %v1591
      %v1662 = vpop.f32.mrb[0].mxu0
      %v1663 = vadd.f32 %v999, %v1662
      %v1664 = vpop.f32.mrb[0].mxu0
      %1665 = vmatprep.mubr.f32.mxu0 0.0
      %1666 = vmatmul.mubr.f32.gmra.mrb[0].mxu0 %v1594
      %v1667 = vpop.f32.mrb[0].mxu0
      %v1668 = vadd.f32 %v1004, %v1667
      %v1669 = vpop.f32.mrb[0].mxu0
      %1670 = vdwg.mxu0
      %v1672 = vsel %vm407, %v642, 0
      %v1675 = vsel %vm407, %v643, 0
      %1677 = vmatprep.subr.mxu0 0.0
      %1678 = vmatpush1.msra.mxu0 %v616
      %1679 = vmatprep.subr.mxu0 0.0
      %1680 = vmatpush1.msra.mxu0 0.0
      %1681 = vmatprep.subr.mxu0 0.0
      %1682 = vmatpush1.msra.mxu0 0.0
      %1683 = vmatprep.subr.mxu0 0.0
      %1684 = vmatpush1.msra.mxu0 0.0
      %1685 = vmatprep.subr.mxu0 0.0
      %1686 = vmatpush1.msra.mxu0 0.0
      %1687 = vmatprep.subr.mxu0 0.0
      %1688 = vmatpush1.msra.mxu0 0.0
      %1689 = vmatprep.subr.mxu0 0.0
      %1690 = vmatpush1.msra.mxu0 0.0
      %1691 = vmatprep.subr.mxu0 0.0
      %1692 = vmatpush1.msra.mxu0 0.0
      %1693 = vmatprep.subr.mxu0 0.0
      %1694 = vmatpush1.msra.mxu0 0.0
      %1695 = vmatprep.subr.mxu0 0.0
      %1696 = vmatpush1.msra.mxu0 0.0
      %1697 = vmatprep.subr.mxu0 0.0
      %1698 = vmatpush1.msra.mxu0 0.0
      %1699 = vmatprep.subr.mxu0 0.0
      %1700 = vmatpush1.msra.mxu0 0.0
      %1701 = vmatprep.subr.mxu0 0.0
      %1702 = vmatpush1.msra.mxu0 0.0
      %1703 = vmatprep.subr.mxu0 0.0
      %1704 = vmatpush1.msra.mxu0 0.0
      %1705 = vmatprep.subr.mxu0 0.0
      %1706 = vmatpush1.msra.mxu0 0.0
      %1707 = vmatprep.subr.mxu0 0.0
      %1708 = vmatpush1.msra.mxu0 0.0
      %1709 = vmatprep.subr.mxu0 0.0
      %1710 = vmatpush1.msra.mxu0 0.0
      %1711 = vmatprep.subr.mxu0 0.0
      %1712 = vmatpush1.msra.mxu0 0.0
      %1713 = vmatprep.subr.mxu0 0.0
      %1714 = vmatpush1.msra.mxu0 0.0
      %1715 = vmatprep.subr.mxu0 0.0
      %1716 = vmatpush1.msra.mxu0 0.0
      %1717 = vmatprep.subr.mxu0 0.0
      %1718 = vmatpush1.msra.mxu0 0.0
      %1719 = vmatprep.subr.mxu0 0.0
      %1720 = vmatpush1.msra.mxu0 0.0
      %1721 = vmatprep.subr.mxu0 0.0
      %1722 = vmatpush1.msra.mxu0 0.0
      %1723 = vmatprep.subr.mxu0 0.0
      %1724 = vmatpush1.msra.mxu0 0.0
      %1725 = vmatprep.subr.mxu0 0.0
      %1726 = vmatpush1.msra.mxu0 0.0
      %1727 = vmatprep.subr.mxu0 0.0
      %1728 = vmatpush1.msra.mxu0 0.0
      %1729 = vmatprep.subr.mxu0 0.0
      %1730 = vmatpush1.msra.mxu0 0.0
      %1731 = vmatprep.subr.mxu0 0.0
      %1732 = vmatpush1.msra.mxu0 0.0
      %1733 = vmatprep.subr.mxu0 0.0
      %1734 = vmatpush1.msra.mxu0 0.0
      %1735 = vmatprep.subr.mxu0 0.0
      %1736 = vmatpush1.msra.mxu0 0.0
      %1737 = vmatprep.subr.mxu0 0.0
      %1738 = vmatpush1.msra.mxu0 0.0
      %1739 = vmatprep.subr.mxu0 0.0
      %1740 = vmatpush1.msra.mxu0 0.0
      %1741 = vmatprep.mubr.f32.mxu0 0.0
      %1742 = vmatmul.mubr.f32.gmra.mrb[0].mxu0 %v1672
      %v1743 = vpop.f32.mrb[0].mxu0
      %v1744 = vadd.f32 %v1084, %v1743
      %v1745 = vpop.f32.mrb[0].mxu0
      %1746 = vmatprep.mubr.f32.mxu0 0.0
      %1747 = vmatmul.mubr.f32.gmra.mrb[0].mxu0 %v1675
      %v1748 = vpop.f32.mrb[0].mxu0
      %v1749 = vadd.f32 %v1089, %v1748
      %v1750 = vpop.f32.mrb[0].mxu0
      %1751 = vdwg.mxu0
      %v1753 = vsel %vm407, %v644, 0
      %v1756 = vsel %vm407, %v645, 0
      %1758 = vmatprep.subr.mxu0 0.0
      %1759 = vmatpush1.msra.mxu0 %v621
      %1760 = vmatprep.subr.mxu0 0.0
      %1761 = vmatpush1.msra.mxu0 0.0
      %1762 = vmatprep.subr.mxu0 0.0
      %1763 = vmatpush1.msra.mxu0 0.0
      %1764 = vmatprep.subr.mxu0 0.0
      %1765 = vmatpush1.msra.mxu0 0.0
      %1766 = vmatprep.subr.mxu0 0.0
      %1767 = vmatpush1.msra.mxu0 0.0
      %1768 = vmatprep.subr.mxu0 0.0
      %1769 = vmatpush1.msra.mxu0 0.0
      %1770 = vmatprep.subr.mxu0 0.0
      %1771 = vmatpush1.msra.mxu0 0.0
      %1772 = vmatprep.subr.mxu0 0.0
      %1773 = vmatpush1.msra.mxu0 0.0
      %1774 = vmatprep.subr.mxu0 0.0
      %1775 = vmatpush1.msra.mxu0 0.0
      %1776 = vmatprep.subr.mxu0 0.0
      %1777 = vmatpush1.msra.mxu0 0.0
      %1778 = vmatprep.subr.mxu0 0.0
      %1779 = vmatpush1.msra.mxu0 0.0
      %1780 = vmatprep.subr.mxu0 0.0
      %1781 = vmatpush1.msra.mxu0 0.0
      %1782 = vmatprep.subr.mxu0 0.0
      %1783 = vmatpush1.msra.mxu0 0.0
      %1784 = vmatprep.subr.mxu0 0.0
      %1785 = vmatpush1.msra.mxu0 0.0
      %1786 = vmatprep.subr.mxu0 0.0
      %1787 = vmatpush1.msra.mxu0 0.0
      %1788 = vmatprep.subr.mxu0 0.0
      %1789 = vmatpush1.msra.mxu0 0.0
      %1790 = vmatprep.subr.mxu0 0.0
      %1791 = vmatpush1.msra.mxu0 0.0
      %1792 = vmatprep.subr.mxu0 0.0
      %1793 = vmatpush1.msra.mxu0 0.0
      %1794 = vmatprep.subr.mxu0 0.0
      %1795 = vmatpush1.msra.mxu0 0.0
      %1796 = vmatprep.subr.mxu0 0.0
      %1797 = vmatpush1.msra.mxu0 0.0
      %1798 = vmatprep.subr.mxu0 0.0
      %1799 = vmatpush1.msra.mxu0 0.0
      %1800 = vmatprep.subr.mxu0 0.0
      %1801 = vmatpush1.msra.mxu0 0.0
      %1802 = vmatprep.subr.mxu0 0.0
      %1803 = vmatpush1.msra.mxu0 0.0
      %1804 = vmatprep.subr.mxu0 0.0
      %1805 = vmatpush1.msra.mxu0 0.0
      %1806 = vmatprep.subr.mxu0 0.0
      %1807 = vmatpush1.msra.mxu0 0.0
      %1808 = vmatprep.subr.mxu0 0.0
      %1809 = vmatpush1.msra.mxu0 0.0
      %1810 = vmatprep.subr.mxu0 0.0
      %1811 = vmatpush1.msra.mxu0 0.0
      %1812 = vmatprep.subr.mxu0 0.0
      %1813 = vmatpush1.msra.mxu0 0.0
      %1814 = vmatprep.subr.mxu0 0.0
      %1815 = vmatpush1.msra.mxu0 0.0
      %1816 = vmatprep.subr.mxu0 0.0
      %1817 = vmatpush1.msra.mxu0 0.0
      %1818 = vmatprep.subr.mxu0 0.0
      %1819 = vmatpush1.msra.mxu0 0.0
      %1820 = vmatprep.subr.mxu0 0.0
      %1821 = vmatpush1.msra.mxu0 0.0
      %1822 = vmatprep.mubr.f32.mxu0 0.0
      %1823 = vmatmul.mubr.f32.gmra.mrb[0].mxu0 %v1753
      %v1824 = vpop.f32.mrb[0].mxu0
      %v1825 = vadd.f32 %v1169, %v1824
      %v1826 = vpop.f32.mrb[0].mxu0
      %1827 = vmatprep.mubr.f32.mxu0 0.0
      %1828 = vmatmul.mubr.f32.gmra.mrb[0].mxu0 %v1756
      %v1829 = vpop.f32.mrb[0].mxu0
      %v1830 = vadd.f32 %v1174, %v1829
      %v1831 = vpop.f32.mrb[0].mxu0
      %1832 = vdwg.mxu0
      %v1834 = vsel %vm407, %v646, 0
      %v1837 = vsel %vm407, %v647, 0
      %1839 = vmatprep.subr.mxu0 0.0
      %1840 = vmatpush1.msra.mxu0 %v626
      %1841 = vmatprep.subr.mxu0 0.0
      %1842 = vmatpush1.msra.mxu0 0.0
      %1843 = vmatprep.subr.mxu0 0.0
      %1844 = vmatpush1.msra.mxu0 0.0
      %1845 = vmatprep.subr.mxu0 0.0
      %1846 = vmatpush1.msra.mxu0 0.0
      %1847 = vmatprep.subr.mxu0 0.0
      %1848 = vmatpush1.msra.mxu0 0.0
      %1849 = vmatprep.subr.mxu0 0.0
      %1850 = vmatpush1.msra.mxu0 0.0
      %1851 = vmatprep.subr.mxu0 0.0
      %1852 = vmatpush1.msra.mxu0 0.0
      %1853 = vmatprep.subr.mxu0 0.0
      %1854 = vmatpush1.msra.mxu0 0.0
      %1855 = vmatprep.subr.mxu0 0.0
      %1856 = vmatpush1.msra.mxu0 0.0
      %1857 = vmatprep.subr.mxu0 0.0
      %1858 = vmatpush1.msra.mxu0 0.0
      %1859 = vmatprep.subr.mxu0 0.0
      %1860 = vmatpush1.msra.mxu0 0.0
      %1861 = vmatprep.subr.mxu0 0.0
      %1862 = vmatpush1.msra.mxu0 0.0
      %1863 = vmatprep.subr.mxu0 0.0
      %1864 = vmatpush1.msra.mxu0 0.0
      %1865 = vmatprep.subr.mxu0 0.0
      %1866 = vmatpush1.msra.mxu0 0.0
      %1867 = vmatprep.subr.mxu0 0.0
      %1868 = vmatpush1.msra.mxu0 0.0
      %1869 = vmatprep.subr.mxu0 0.0
      %1870 = vmatpush1.msra.mxu0 0.0
      %1871 = vmatprep.subr.mxu0 0.0
      %1872 = vmatpush1.msra.mxu0 0.0
      %1873 = vmatprep.subr.mxu0 0.0
      %1874 = vmatpush1.msra.mxu0 0.0
      %1875 = vmatprep.subr.mxu0 0.0
      %1876 = vmatpush1.msra.mxu0 0.0
      %1877 = vmatprep.subr.mxu0 0.0
      %1878 = vmatpush1.msra.mxu0 0.0
      %1879 = vmatprep.subr.mxu0 0.0
      %1880 = vmatpush1.msra.mxu0 0.0
      %1881 = vmatprep.subr.mxu0 0.0
      %1882 = vmatpush1.msra.mxu0 0.0
      %1883 = vmatprep.subr.mxu0 0.0
      %1884 = vmatpush1.msra.mxu0 0.0
      %1885 = vmatprep.subr.mxu0 0.0
      %1886 = vmatpush1.msra.mxu0 0.0
      %1887 = vmatprep.subr.mxu0 0.0
      %1888 = vmatpush1.msra.mxu0 0.0
      %1889 = vmatprep.subr.mxu0 0.0
      %1890 = vmatpush1.msra.mxu0 0.0
      %1891 = vmatprep.subr.mxu0 0.0
      %1892 = vmatpush1.msra.mxu0 0.0
      %1893 = vmatprep.subr.mxu0 0.0
      %1894 = vmatpush1.msra.mxu0 0.0
      %1895 = vmatprep.subr.mxu0 0.0
      %1896 = vmatpush1.msra.mxu0 0.0
      %1897 = vmatprep.subr.mxu0 0.0
      %1898 = vmatpush1.msra.mxu0 0.0
      %1899 = vmatprep.subr.mxu0 0.0
      %1900 = vmatpush1.msra.mxu0 0.0
      %1901 = vmatprep.subr.mxu0 0.0
      %1902 = vmatpush1.msra.mxu0 0.0
      %1903 = vmatprep.mubr.f32.mxu0 0.0
      %1904 = vmatmul.mubr.f32.gmra.mrb[0].mxu0 %v1834
      %v1905 = vpop.f32.mrb[0].mxu0
      %v1906 = vadd.f32 %v1254, %v1905
      %v1907 = vpop.f32.mrb[0].mxu0
      %1908 = vmatprep.mubr.f32.mxu0 0.0
      %1909 = vmatmul.mubr.f32.gmra.mrb[0].mxu0 %v1837
      %v1910 = vpop.f32.mrb[0].mxu0
      %v1911 = vadd.f32 %v1259, %v1910
      %v1912 = vpop.f32.mrb[0].mxu0
      %1913 = vdwg.mxu0
      %v1915 = vsel %vm407, %v648, 0
      %v1918 = vsel %vm407, %v649, 0
      %1920 = vmatprep.subr.mxu0 0.0
      %1921 = vmatpush1.msra.mxu0 %v631
      %1922 = vmatprep.subr.mxu0 0.0
      %1923 = vmatpush1.msra.mxu0 0.0
      %1924 = vmatprep.subr.mxu0 0.0
      %1925 = vmatpush1.msra.mxu0 0.0
      %1926 = vmatprep.subr.mxu0 0.0
      %1927 = vmatpush1.msra.mxu0 0.0
      %1928 = vmatprep.subr.mxu0 0.0
      %1929 = vmatpush1.msra.mxu0 0.0
      %1930 = vmatprep.subr.mxu0 0.0
      %1931 = vmatpush1.msra.mxu0 0.0
      %1932 = vmatprep.subr.mxu0 0.0
      %1933 = vmatpush1.msra.mxu0 0.0
      %1934 = vmatprep.subr.mxu0 0.0
      %1935 = vmatpush1.msra.mxu0 0.0
      %1936 = vmatprep.subr.mxu0 0.0
      %1937 = vmatpush1.msra.mxu0 0.0
      %1938 = vmatprep.subr.mxu0 0.0
      %1939 = vmatpush1.msra.mxu0 0.0
      %1940 = vmatprep.subr.mxu0 0.0
      %1941 = vmatpush1.msra.mxu0 0.0
      %1942 = vmatprep.subr.mxu0 0.0
      %1943 = vmatpush1.msra.mxu0 0.0
      %1944 = vmatprep.subr.mxu0 0.0
      %1945 = vmatpush1.msra.mxu0 0.0
      %1946 = vmatprep.subr.mxu0 0.0
      %1947 = vmatpush1.msra.mxu0 0.0
      %1948 = vmatprep.subr.mxu0 0.0
      %1949 = vmatpush1.msra.mxu0 0.0
      %1950 = vmatprep.subr.mxu0 0.0
      %1951 = vmatpush1.msra.mxu0 0.0
      %1952 = vmatprep.subr.mxu0 0.0
      %1953 = vmatpush1.msra.mxu0 0.0
      %1954 = vmatprep.subr.mxu0 0.0
      %1955 = vmatpush1.msra.mxu0 0.0
      %1956 = vmatprep.subr.mxu0 0.0
      %1957 = vmatpush1.msra.mxu0 0.0
      %1958 = vmatprep.subr.mxu0 0.0
      %1959 = vmatpush1.msra.mxu0 0.0
      %1960 = vmatprep.subr.mxu0 0.0
      %1961 = vmatpush1.msra.mxu0 0.0
      %1962 = vmatprep.subr.mxu0 0.0
      %1963 = vmatpush1.msra.mxu0 0.0
      %1964 = vmatprep.subr.mxu0 0.0
      %1965 = vmatpush1.msra.mxu0 0.0
      %1966 = vmatprep.subr.mxu0 0.0
      %1967 = vmatpush1.msra.mxu0 0.0
      %1968 = vmatprep.subr.mxu0 0.0
      %1969 = vmatpush1.msra.mxu0 0.0
      %1970 = vmatprep.subr.mxu0 0.0
      %1971 = vmatpush1.msra.mxu0 0.0
      %1972 = vmatprep.subr.mxu0 0.0
      %1973 = vmatpush1.msra.mxu0 0.0
      %1974 = vmatprep.subr.mxu0 0.0
      %1975 = vmatpush1.msra.mxu0 0.0
      %1976 = vmatprep.subr.mxu0 0.0
      %1977 = vmatpush1.msra.mxu0 0.0
      %1978 = vmatprep.subr.mxu0 0.0
      %1979 = vmatpush1.msra.mxu0 0.0
      %1980 = vmatprep.subr.mxu0 0.0
      %1981 = vmatpush1.msra.mxu0 0.0
      %1982 = vmatprep.subr.mxu0 0.0
      %1983 = vmatpush1.msra.mxu0 0.0
      %1984 = vmatprep.mubr.f32.mxu0 0.0
      %1985 = vmatmul.mubr.f32.gmra.mrb[0].mxu0 %v1915
      %v1986 = vpop.f32.mrb[0].mxu0
      %v1987 = vadd.f32 %v1339, %v1986
      %v1988 = vpop.f32.mrb[0].mxu0
      %1989 = vmatprep.mubr.f32.mxu0 0.0
      %1990 = vmatmul.mubr.f32.gmra.mrb[0].mxu0 %v1918
      %v1991 = vpop.f32.mrb[0].mxu0
      %v1992 = vadd.f32 %v1344, %v1991
      %v1993 = vpop.f32.mrb[0].mxu0
      %1994 = vdwg.mxu0
      %1995 = vrot.lane.b32.xlu0 %v596, 116
      %v1996 = vpop.permute.xlu0 %1995
      %1998 = vmatprep.subr.mxu0 0.0
      %1999 = vmatpush1.msra.mxu0 %v1996
      %2000 = vmatprep.subr.mxu0 0.0
      %2001 = vmatpush1.msra.mxu0 0.0
      %2002 = vmatprep.subr.mxu0 0.0
      %2003 = vmatpush1.msra.mxu0 0.0
      %2004 = vmatprep.subr.mxu0 0.0
      %2005 = vmatpush1.msra.mxu0 0.0
      %2006 = vmatprep.subr.mxu0 0.0
      %2007 = vmatpush1.msra.mxu0 0.0
      %2008 = vmatprep.subr.mxu0 0.0
      %2009 = vmatpush1.msra.mxu0 0.0
      %2010 = vmatprep.subr.mxu0 0.0
      %2011 = vmatpush1.msra.mxu0 0.0
      %2012 = vmatprep.subr.mxu0 0.0
      %2013 = vmatpush1.msra.mxu0 0.0
      %2014 = vmatprep.subr.mxu0 0.0
      %2015 = vmatpush1.msra.mxu0 0.0
      %2016 = vmatprep.subr.mxu0 0.0
      %2017 = vmatpush1.msra.mxu0 0.0
      %2018 = vmatprep.subr.mxu0 0.0
      %2019 = vmatpush1.msra.mxu0 0.0
      %2020 = vmatprep.subr.mxu0 0.0
      %2021 = vmatpush1.msra.mxu0 0.0
      %2022 = vmatprep.subr.mxu0 0.0
      %2023 = vmatpush1.msra.mxu0 0.0
      %2024 = vmatprep.subr.mxu0 0.0
      %2025 = vmatpush1.msra.mxu0 0.0
      %2026 = vmatprep.subr.mxu0 0.0
      %2027 = vmatpush1.msra.mxu0 0.0
      %2028 = vmatprep.subr.mxu0 0.0
      %2029 = vmatpush1.msra.mxu0 0.0
      %2030 = vmatprep.subr.mxu0 0.0
      %2031 = vmatpush1.msra.mxu0 0.0
      %2032 = vmatprep.subr.mxu0 0.0
      %2033 = vmatpush1.msra.mxu0 0.0
      %2034 = vmatprep.subr.mxu0 0.0
      %2035 = vmatpush1.msra.mxu0 0.0
      %2036 = vmatprep.subr.mxu0 0.0
      %2037 = vmatpush1.msra.mxu0 0.0
      %2038 = vmatprep.subr.mxu0 0.0
      %2039 = vmatpush1.msra.mxu0 0.0
      %2040 = vmatprep.subr.mxu0 0.0
      %2041 = vmatpush1.msra.mxu0 0.0
      %2042 = vmatprep.subr.mxu0 0.0
      %2043 = vmatpush1.msra.mxu0 0.0
      %2044 = vmatprep.subr.mxu0 0.0
      %2045 = vmatpush1.msra.mxu0 0.0
      %2046 = vmatprep.subr.mxu0 0.0
      %2047 = vmatpush1.msra.mxu0 0.0
      %2048 = vmatprep.subr.mxu0 0.0
      %2049 = vmatpush1.msra.mxu0 0.0
      %2050 = vmatprep.subr.mxu0 0.0
      %2051 = vmatpush1.msra.mxu0 0.0
      %2052 = vmatprep.subr.mxu0 0.0
      %2053 = vmatpush1.msra.mxu0 0.0
      %2054 = vmatprep.subr.mxu0 0.0
      %2055 = vmatpush1.msra.mxu0 0.0
      %2056 = vmatprep.subr.mxu0 0.0
      %2057 = vmatpush1.msra.mxu0 0.0
      %2058 = vmatprep.subr.mxu0 0.0
      %2059 = vmatpush1.msra.mxu0 0.0
      %2060 = vmatprep.subr.mxu0 0.0
      %2061 = vmatpush1.msra.mxu0 0.0
      %2062 = vmatprep.mubr.f32.mxu0 0.0
      %2063 = vmatmul.mubr.f32.gmra.mrb[0].mxu0 %v672
      %v2064 = vpop.f32.mrb[0].mxu0
      %v2065 = vadd.f32 0.0, %v2064
      %v2066 = vpop.f32.mrb[0].mxu0
      %2067 = vmatprep.mubr.f32.mxu0 0.0
      %2068 = vmatmul.mubr.f32.gmra.mrb[0].mxu0 %v675
      %v2069 = vpop.f32.mrb[0].mxu0
      %v2070 = vadd.f32 0.0, %v2069
      %v2071 = vpop.f32.mrb[0].mxu0
      %2072 = vdwg.mxu0
      %2073 = vrot.lane.b32.xlu0 %v601, 116
      %v2074 = vpop.permute.xlu0 %2073
      %2076 = vmatprep.subr.mxu0 0.0
      %2077 = vmatpush1.msra.mxu0 %v2074
      %2078 = vmatprep.subr.mxu0 0.0
      %2079 = vmatpush1.msra.mxu0 0.0
      %2080 = vmatprep.subr.mxu0 0.0
      %2081 = vmatpush1.msra.mxu0 0.0
      %2082 = vmatprep.subr.mxu0 0.0
      %2083 = vmatpush1.msra.mxu0 0.0
      %2084 = vmatprep.subr.mxu0 0.0
      %2085 = vmatpush1.msra.mxu0 0.0
      %2086 = vmatprep.subr.mxu0 0.0
      %2087 = vmatpush1.msra.mxu0 0.0
      %2088 = vmatprep.subr.mxu0 0.0
      %2089 = vmatpush1.msra.mxu0 0.0
      %2090 = vmatprep.subr.mxu0 0.0
      %2091 = vmatpush1.msra.mxu0 0.0
      %2092 = vmatprep.subr.mxu0 0.0
      %2093 = vmatpush1.msra.mxu0 0.0
      %2094 = vmatprep.subr.mxu0 0.0
      %2095 = vmatpush1.msra.mxu0 0.0
      %2096 = vmatprep.subr.mxu0 0.0
      %2097 = vmatpush1.msra.mxu0 0.0
      %2098 = vmatprep.subr.mxu0 0.0
      %2099 = vmatpush1.msra.mxu0 0.0
      %2100 = vmatprep.subr.mxu0 0.0
      %2101 = vmatpush1.msra.mxu0 0.0
      %2102 = vmatprep.subr.mxu0 0.0
      %2103 = vmatpush1.msra.mxu0 0.0
      %2104 = vmatprep.subr.mxu0 0.0
      %2105 = vmatpush1.msra.mxu0 0.0
      %2106 = vmatprep.subr.mxu0 0.0
      %2107 = vmatpush1.msra.mxu0 0.0
      %2108 = vmatprep.subr.mxu0 0.0
      %2109 = vmatpush1.msra.mxu0 0.0
      %2110 = vmatprep.subr.mxu0 0.0
      %2111 = vmatpush1.msra.mxu0 0.0
      %2112 = vmatprep.subr.mxu0 0.0
      %2113 = vmatpush1.msra.mxu0 0.0
      %2114 = vmatprep.subr.mxu0 0.0
      %2115 = vmatpush1.msra.mxu0 0.0
      %2116 = vmatprep.subr.mxu0 0.0
      %2117 = vmatpush1.msra.mxu0 0.0
      %2118 = vmatprep.subr.mxu0 0.0
      %2119 = vmatpush1.msra.mxu0 0.0
      %2120 = vmatprep.subr.mxu0 0.0
      %2121 = vmatpush1.msra.mxu0 0.0
      %2122 = vmatprep.subr.mxu0 0.0
      %2123 = vmatpush1.msra.mxu0 0.0
      %2124 = vmatprep.subr.mxu0 0.0
      %2125 = vmatpush1.msra.mxu0 0.0
      %2126 = vmatprep.subr.mxu0 0.0
      %2127 = vmatpush1.msra.mxu0 0.0
      %2128 = vmatprep.subr.mxu0 0.0
      %2129 = vmatpush1.msra.mxu0 0.0
      %2130 = vmatprep.subr.mxu0 0.0
      %2131 = vmatpush1.msra.mxu0 0.0
      %2132 = vmatprep.subr.mxu0 0.0
      %2133 = vmatpush1.msra.mxu0 0.0
      %2134 = vmatprep.subr.mxu0 0.0
      %2135 = vmatpush1.msra.mxu0 0.0
      %2136 = vmatprep.subr.mxu0 0.0
      %2137 = vmatpush1.msra.mxu0 0.0
      %2138 = vmatprep.subr.mxu0 0.0
      %2139 = vmatpush1.msra.mxu0 0.0
      %2140 = vmatprep.mubr.f32.mxu0 0.0
      %2141 = vmatmul.mubr.f32.gmra.mrb[0].mxu0 %v757
      %v2142 = vpop.f32.mrb[0].mxu0
      %v2143 = vadd.f32 0.0, %v2142
      %v2144 = vpop.f32.mrb[0].mxu0
      %2145 = vmatprep.mubr.f32.mxu0 0.0
      %2146 = vmatmul.mubr.f32.gmra.mrb[0].mxu0 %v760
      %v2147 = vpop.f32.mrb[0].mxu0
      %v2148 = vadd.f32 0.0, %v2147
      %v2149 = vpop.f32.mrb[0].mxu0
      %2150 = vdwg.mxu0
      %2151 = vrot.lane.b32.xlu0 %v606, 116
      %v2152 = vpop.permute.xlu0 %2151
      %2154 = vmatprep.subr.mxu0 0.0
      %2155 = vmatpush1.msra.mxu0 %v2152
      %2156 = vmatprep.subr.mxu0 0.0
      %2157 = vmatpush1.msra.mxu0 0.0
      %2158 = vmatprep.subr.mxu0 0.0
      %2159 = vmatpush1.msra.mxu0 0.0
      %2160 = vmatprep.subr.mxu0 0.0
      %2161 = vmatpush1.msra.mxu0 0.0
      %2162 = vmatprep.subr.mxu0 0.0
      %2163 = vmatpush1.msra.mxu0 0.0
      %2164 = vmatprep.subr.mxu0 0.0
      %2165 = vmatpush1.msra.mxu0 0.0
      %2166 = vmatprep.subr.mxu0 0.0
      %2167 = vmatpush1.msra.mxu0 0.0
      %2168 = vmatprep.subr.mxu0 0.0
      %2169 = vmatpush1.msra.mxu0 0.0
      %2170 = vmatprep.subr.mxu0 0.0
      %2171 = vmatpush1.msra.mxu0 0.0
      %2172 = vmatprep.subr.mxu0 0.0
      %2173 = vmatpush1.msra.mxu0 0.0
      %2174 = vmatprep.subr.mxu0 0.0
      %2175 = vmatpush1.msra.mxu0 0.0
      %2176 = vmatprep.subr.mxu0 0.0
      %2177 = vmatpush1.msra.mxu0 0.0
      %2178 = vmatprep.subr.mxu0 0.0
      %2179 = vmatpush1.msra.mxu0 0.0
      %2180 = vmatprep.subr.mxu0 0.0
      %2181 = vmatpush1.msra.mxu0 0.0
      %2182 = vmatprep.subr.mxu0 0.0
      %2183 = vmatpush1.msra.mxu0 0.0
      %2184 = vmatprep.subr.mxu0 0.0
      %2185 = vmatpush1.msra.mxu0 0.0
      %2186 = vmatprep.subr.mxu0 0.0
      %2187 = vmatpush1.msra.mxu0 0.0
      %2188 = vmatprep.subr.mxu0 0.0
      %2189 = vmatpush1.msra.mxu0 0.0
      %2190 = vmatprep.subr.mxu0 0.0
      %2191 = vmatpush1.msra.mxu0 0.0
      %2192 = vmatprep.subr.mxu0 0.0
      %2193 = vmatpush1.msra.mxu0 0.0
      %2194 = vmatprep.subr.mxu0 0.0
      %2195 = vmatpush1.msra.mxu0 0.0
      %2196 = vmatprep.subr.mxu0 0.0
      %2197 = vmatpush1.msra.mxu0 0.0
      %2198 = vmatprep.subr.mxu0 0.0
      %2199 = vmatpush1.msra.mxu0 0.0
      %2200 = vmatprep.subr.mxu0 0.0
      %2201 = vmatpush1.msra.mxu0 0.0
      %2202 = vmatprep.subr.mxu0 0.0
      %2203 = vmatpush1.msra.mxu0 0.0
      %2204 = vmatprep.subr.mxu0 0.0
      %2205 = vmatpush1.msra.mxu0 0.0
      %2206 = vmatprep.subr.mxu0 0.0
      %2207 = vmatpush1.msra.mxu0 0.0
      %2208 = vmatprep.subr.mxu0 0.0
      %2209 = vmatpush1.msra.mxu0 0.0
      %2210 = vmatprep.subr.mxu0 0.0
      %2211 = vmatpush1.msra.mxu0 0.0
      %2212 = vmatprep.subr.mxu0 0.0
      %2213 = vmatpush1.msra.mxu0 0.0
      %2214 = vmatprep.subr.mxu0 0.0
      %2215 = vmatpush1.msra.mxu0 0.0
      %2216 = vmatprep.subr.mxu0 0.0
      %2217 = vmatpush1.msra.mxu0 0.0
      %2218 = vmatprep.mubr.f32.mxu0 0.0
      %2219 = vmatmul.mubr.f32.gmra.mrb[0].mxu0 %v842
      %v2220 = vpop.f32.mrb[0].mxu0
      %v2221 = vadd.f32 0.0, %v2220
      %v2222 = vpop.f32.mrb[0].mxu0
      %2223 = vmatprep.mubr.f32.mxu0 0.0
      %2224 = vmatmul.mubr.f32.gmra.mrb[0].mxu0 %v845
      %v2225 = vpop.f32.mrb[0].mxu0
      %v2226 = vadd.f32 0.0, %v2225
      %v2227 = vpop.f32.mrb[0].mxu0
      %2228 = vdwg.mxu0
      %2229 = vrot.lane.b32.xlu0 %v611, 116
      %v2230 = vpop.permute.xlu0 %2229
      %2232 = vmatprep.subr.mxu0 0.0
      %2233 = vmatpush1.msra.mxu0 %v2230
      %2234 = vmatprep.subr.mxu0 0.0
      %2235 = vmatpush1.msra.mxu0 0.0
      %2236 = vmatprep.subr.mxu0 0.0
      %2237 = vmatpush1.msra.mxu0 0.0
      %2238 = vmatprep.subr.mxu0 0.0
      %2239 = vmatpush1.msra.mxu0 0.0
      %2240 = vmatprep.subr.mxu0 0.0
      %2241 = vmatpush1.msra.mxu0 0.0
      %2242 = vmatprep.subr.mxu0 0.0
      %2243 = vmatpush1.msra.mxu0 0.0
      %2244 = vmatprep.subr.mxu0 0.0
      %2245 = vmatpush1.msra.mxu0 0.0
      %2246 = vmatprep.subr.mxu0 0.0
      %2247 = vmatpush1.msra.mxu0 0.0
      %2248 = vmatprep.subr.mxu0 0.0
      %2249 = vmatpush1.msra.mxu0 0.0
      %2250 = vmatprep.subr.mxu0 0.0
      %2251 = vmatpush1.msra.mxu0 0.0
      %2252 = vmatprep.subr.mxu0 0.0
      %2253 = vmatpush1.msra.mxu0 0.0
      %2254 = vmatprep.subr.mxu0 0.0
      %2255 = vmatpush1.msra.mxu0 0.0
      %2256 = vmatprep.subr.mxu0 0.0
      %2257 = vmatpush1.msra.mxu0 0.0
      %2258 = vmatprep.subr.mxu0 0.0
      %2259 = vmatpush1.msra.mxu0 0.0
      %2260 = vmatprep.subr.mxu0 0.0
      %2261 = vmatpush1.msra.mxu0 0.0
      %2262 = vmatprep.subr.mxu0 0.0
      %2263 = vmatpush1.msra.mxu0 0.0
      %2264 = vmatprep.subr.mxu0 0.0
      %2265 = vmatpush1.msra.mxu0 0.0
      %2266 = vmatprep.subr.mxu0 0.0
      %2267 = vmatpush1.msra.mxu0 0.0
      %2268 = vmatprep.subr.mxu0 0.0
      %2269 = vmatpush1.msra.mxu0 0.0
      %2270 = vmatprep.subr.mxu0 0.0
      %2271 = vmatpush1.msra.mxu0 0.0
      %2272 = vmatprep.subr.mxu0 0.0
      %2273 = vmatpush1.msra.mxu0 0.0
      %2274 = vmatprep.subr.mxu0 0.0
      %2275 = vmatpush1.msra.mxu0 0.0
      %2276 = vmatprep.subr.mxu0 0.0
      %2277 = vmatpush1.msra.mxu0 0.0
      %2278 = vmatprep.subr.mxu0 0.0
      %2279 = vmatpush1.msra.mxu0 0.0
      %2280 = vmatprep.subr.mxu0 0.0
      %2281 = vmatpush1.msra.mxu0 0.0
      %2282 = vmatprep.subr.mxu0 0.0
      %2283 = vmatpush1.msra.mxu0 0.0
      %2284 = vmatprep.subr.mxu0 0.0
      %2285 = vmatpush1.msra.mxu0 0.0
      %2286 = vmatprep.subr.mxu0 0.0
      %2287 = vmatpush1.msra.mxu0 0.0
      %2288 = vmatprep.subr.mxu0 0.0
      %2289 = vmatpush1.msra.mxu0 0.0
      %2290 = vmatprep.subr.mxu0 0.0
      %2291 = vmatpush1.msra.mxu0 0.0
      %2292 = vmatprep.subr.mxu0 0.0
      %2293 = vmatpush1.msra.mxu0 0.0
      %2294 = vmatprep.subr.mxu0 0.0
      %2295 = vmatpush1.msra.mxu0 0.0
      %2296 = vmatprep.mubr.f32.mxu0 0.0
      %2297 = vmatmul.mubr.f32.gmra.mrb[0].mxu0 %v927
      %v2298 = vpop.f32.mrb[0].mxu0
      %v2299 = vadd.f32 0.0, %v2298
      %v2300 = vpop.f32.mrb[0].mxu0
      %2301 = vmatprep.mubr.f32.mxu0 0.0
      %2302 = vmatmul.mubr.f32.gmra.mrb[0].mxu0 %v930
      %v2303 = vpop.f32.mrb[0].mxu0
      %v2304 = vadd.f32 0.0, %v2303
      %v2305 = vpop.f32.mrb[0].mxu0
      %2306 = vdwg.mxu0
      %2307 = vrot.lane.b32.xlu0 %v616, 116
      %v2308 = vpop.permute.xlu0 %2307
      %2310 = vmatprep.subr.mxu0 0.0
      %2311 = vmatpush1.msra.mxu0 %v2308
      %2312 = vmatprep.subr.mxu0 0.0
      %2313 = vmatpush1.msra.mxu0 0.0
      %2314 = vmatprep.subr.mxu0 0.0
      %2315 = vmatpush1.msra.mxu0 0.0
      %2316 = vmatprep.subr.mxu0 0.0
      %2317 = vmatpush1.msra.mxu0 0.0
      %2318 = vmatprep.subr.mxu0 0.0
      %2319 = vmatpush1.msra.mxu0 0.0
      %2320 = vmatprep.subr.mxu0 0.0
      %2321 = vmatpush1.msra.mxu0 0.0
      %2322 = vmatprep.subr.mxu0 0.0
      %2323 = vmatpush1.msra.mxu0 0.0
      %2324 = vmatprep.subr.mxu0 0.0
      %2325 = vmatpush1.msra.mxu0 0.0
      %2326 = vmatprep.subr.mxu0 0.0
      %2327 = vmatpush1.msra.mxu0 0.0
      %2328 = vmatprep.subr.mxu0 0.0
      %2329 = vmatpush1.msra.mxu0 0.0
      %2330 = vmatprep.subr.mxu0 0.0
      %2331 = vmatpush1.msra.mxu0 0.0
      %2332 = vmatprep.subr.mxu0 0.0
      %2333 = vmatpush1.msra.mxu0 0.0
      %2334 = vmatprep.subr.mxu0 0.0
      %2335 = vmatpush1.msra.mxu0 0.0
      %2336 = vmatprep.subr.mxu0 0.0
      %2337 = vmatpush1.msra.mxu0 0.0
      %2338 = vmatprep.subr.mxu0 0.0
      %2339 = vmatpush1.msra.mxu0 0.0
      %2340 = vmatprep.subr.mxu0 0.0
      %2341 = vmatpush1.msra.mxu0 0.0
      %2342 = vmatprep.subr.mxu0 0.0
      %2343 = vmatpush1.msra.mxu0 0.0
      %2344 = vmatprep.subr.mxu0 0.0
      %2345 = vmatpush1.msra.mxu0 0.0
      %2346 = vmatprep.subr.mxu0 0.0
      %2347 = vmatpush1.msra.mxu0 0.0
      %2348 = vmatprep.subr.mxu0 0.0
      %2349 = vmatpush1.msra.mxu0 0.0
      %2350 = vmatprep.subr.mxu0 0.0
      %2351 = vmatpush1.msra.mxu0 0.0
      %2352 = vmatprep.subr.mxu0 0.0
      %2353 = vmatpush1.msra.mxu0 0.0
      %2354 = vmatprep.subr.mxu0 0.0
      %2355 = vmatpush1.msra.mxu0 0.0
      %2356 = vmatprep.subr.mxu0 0.0
      %2357 = vmatpush1.msra.mxu0 0.0
      %2358 = vmatprep.subr.mxu0 0.0
      %2359 = vmatpush1.msra.mxu0 0.0
      %2360 = vmatprep.subr.mxu0 0.0
      %2361 = vmatpush1.msra.mxu0 0.0
      %2362 = vmatprep.subr.mxu0 0.0
      %2363 = vmatpush1.msra.mxu0 0.0
      %2364 = vmatprep.subr.mxu0 0.0
      %2365 = vmatpush1.msra.mxu0 0.0
      %2366 = vmatprep.subr.mxu0 0.0
      %2367 = vmatpush1.msra.mxu0 0.0
      %2368 = vmatprep.subr.mxu0 0.0
      %2369 = vmatpush1.msra.mxu0 0.0
      %2370 = vmatprep.subr.mxu0 0.0
      %2371 = vmatpush1.msra.mxu0 0.0
      %2372 = vmatprep.subr.mxu0 0.0
      %2373 = vmatpush1.msra.mxu0 0.0
      %2374 = vmatprep.mubr.f32.mxu0 0.0
      %2375 = vmatmul.mubr.f32.gmra.mrb[0].mxu0 %v1012
      %v2376 = vpop.f32.mrb[0].mxu0
      %v2377 = vadd.f32 0.0, %v2376
      %v2378 = vpop.f32.mrb[0].mxu0
      %2379 = vmatprep.mubr.f32.mxu0 0.0
      %2380 = vmatmul.mubr.f32.gmra.mrb[0].mxu0 %v1015
      %v2381 = vpop.f32.mrb[0].mxu0
      %v2382 = vadd.f32 0.0, %v2381
      %v2383 = vpop.f32.mrb[0].mxu0
      %2384 = vdwg.mxu0
      %2385 = vrot.lane.b32.xlu0 %v621, 116
      %v2386 = vpop.permute.xlu0 %2385
      %2388 = vmatprep.subr.mxu0 0.0
      %2389 = vmatpush1.msra.mxu0 %v2386
      %2390 = vmatprep.subr.mxu0 0.0
      %2391 = vmatpush1.msra.mxu0 0.0
      %2392 = vmatprep.subr.mxu0 0.0
      %2393 = vmatpush1.msra.mxu0 0.0
      %2394 = vmatprep.subr.mxu0 0.0
      %2395 = vmatpush1.msra.mxu0 0.0
      %2396 = vmatprep.subr.mxu0 0.0
      %2397 = vmatpush1.msra.mxu0 0.0
      %2398 = vmatprep.subr.mxu0 0.0
      %2399 = vmatpush1.msra.mxu0 0.0
      %2400 = vmatprep.subr.mxu0 0.0
      %2401 = vmatpush1.msra.mxu0 0.0
      %2402 = vmatprep.subr.mxu0 0.0
      %2403 = vmatpush1.msra.mxu0 0.0
      %2404 = vmatprep.subr.mxu0 0.0
      %2405 = vmatpush1.msra.mxu0 0.0
      %2406 = vmatprep.subr.mxu0 0.0
      %2407 = vmatpush1.msra.mxu0 0.0
      %2408 = vmatprep.subr.mxu0 0.0
      %2409 = vmatpush1.msra.mxu0 0.0
      %2410 = vmatprep.subr.mxu0 0.0
      %2411 = vmatpush1.msra.mxu0 0.0
      %2412 = vmatprep.subr.mxu0 0.0
      %2413 = vmatpush1.msra.mxu0 0.0
      %2414 = vmatprep.subr.mxu0 0.0
      %2415 = vmatpush1.msra.mxu0 0.0
      %2416 = vmatprep.subr.mxu0 0.0
      %2417 = vmatpush1.msra.mxu0 0.0
      %2418 = vmatprep.subr.mxu0 0.0
      %2419 = vmatpush1.msra.mxu0 0.0
      %2420 = vmatprep.subr.mxu0 0.0
      %2421 = vmatpush1.msra.mxu0 0.0
      %2422 = vmatprep.subr.mxu0 0.0
      %2423 = vmatpush1.msra.mxu0 0.0
      %2424 = vmatprep.subr.mxu0 0.0
      %2425 = vmatpush1.msra.mxu0 0.0
      %2426 = vmatprep.subr.mxu0 0.0
      %2427 = vmatpush1.msra.mxu0 0.0
      %2428 = vmatprep.subr.mxu0 0.0
      %2429 = vmatpush1.msra.mxu0 0.0
      %2430 = vmatprep.subr.mxu0 0.0
      %2431 = vmatpush1.msra.mxu0 0.0
      %2432 = vmatprep.subr.mxu0 0.0
      %2433 = vmatpush1.msra.mxu0 0.0
      %2434 = vmatprep.subr.mxu0 0.0
      %2435 = vmatpush1.msra.mxu0 0.0
      %2436 = vmatprep.subr.mxu0 0.0
      %2437 = vmatpush1.msra.mxu0 0.0
      %2438 = vmatprep.subr.mxu0 0.0
      %2439 = vmatpush1.msra.mxu0 0.0
      %2440 = vmatprep.subr.mxu0 0.0
      %2441 = vmatpush1.msra.mxu0 0.0
      %2442 = vmatprep.subr.mxu0 0.0
      %2443 = vmatpush1.msra.mxu0 0.0
      %2444 = vmatprep.subr.mxu0 0.0
      %2445 = vmatpush1.msra.mxu0 0.0
      %2446 = vmatprep.subr.mxu0 0.0
      %2447 = vmatpush1.msra.mxu0 0.0
      %2448 = vmatprep.subr.mxu0 0.0
      %2449 = vmatpush1.msra.mxu0 0.0
      %2450 = vmatprep.subr.mxu0 0.0
      %2451 = vmatpush1.msra.mxu0 0.0
      %2452 = vmatprep.mubr.f32.mxu0 0.0
      %2453 = vmatmul.mubr.f32.gmra.mrb[0].mxu0 %v1097
      %v2454 = vpop.f32.mrb[0].mxu0
      %v2455 = vadd.f32 0.0, %v2454
      %v2456 = vpop.f32.mrb[0].mxu0
      %2457 = vmatprep.mubr.f32.mxu0 0.0
      %2458 = vmatmul.mubr.f32.gmra.mrb[0].mxu0 %v1100
      %v2459 = vpop.f32.mrb[0].mxu0
      %v2460 = vadd.f32 0.0, %v2459
      %v2461 = vpop.f32.mrb[0].mxu0
      %2462 = vdwg.mxu0
      %2463 = vrot.lane.b32.xlu0 %v626, 116
      %v2464 = vpop.permute.xlu0 %2463
      %2466 = vmatprep.subr.mxu0 0.0
      %2467 = vmatpush1.msra.mxu0 %v2464
      %2468 = vmatprep.subr.mxu0 0.0
      %2469 = vmatpush1.msra.mxu0 0.0
      %2470 = vmatprep.subr.mxu0 0.0
      %2471 = vmatpush1.msra.mxu0 0.0
      %2472 = vmatprep.subr.mxu0 0.0
      %2473 = vmatpush1.msra.mxu0 0.0
      %2474 = vmatprep.subr.mxu0 0.0
      %2475 = vmatpush1.msra.mxu0 0.0
      %2476 = vmatprep.subr.mxu0 0.0
      %2477 = vmatpush1.msra.mxu0 0.0
      %2478 = vmatprep.subr.mxu0 0.0
      %2479 = vmatpush1.msra.mxu0 0.0
      %2480 = vmatprep.subr.mxu0 0.0
      %2481 = vmatpush1.msra.mxu0 0.0
      %2482 = vmatprep.subr.mxu0 0.0
      %2483 = vmatpush1.msra.mxu0 0.0
      %2484 = vmatprep.subr.mxu0 0.0
      %2485 = vmatpush1.msra.mxu0 0.0
      %2486 = vmatprep.subr.mxu0 0.0
      %2487 = vmatpush1.msra.mxu0 0.0
      %2488 = vmatprep.subr.mxu0 0.0
      %2489 = vmatpush1.msra.mxu0 0.0
      %2490 = vmatprep.subr.mxu0 0.0
      %2491 = vmatpush1.msra.mxu0 0.0
      %2492 = vmatprep.subr.mxu0 0.0
      %2493 = vmatpush1.msra.mxu0 0.0
      %2494 = vmatprep.subr.mxu0 0.0
      %2495 = vmatpush1.msra.mxu0 0.0
      %2496 = vmatprep.subr.mxu0 0.0
      %2497 = vmatpush1.msra.mxu0 0.0
      %2498 = vmatprep.subr.mxu0 0.0
      %2499 = vmatpush1.msra.mxu0 0.0
      %2500 = vmatprep.subr.mxu0 0.0
      %2501 = vmatpush1.msra.mxu0 0.0
      %2502 = vmatprep.subr.mxu0 0.0
      %2503 = vmatpush1.msra.mxu0 0.0
      %2504 = vmatprep.subr.mxu0 0.0
      %2505 = vmatpush1.msra.mxu0 0.0
      %2506 = vmatprep.subr.mxu0 0.0
      %2507 = vmatpush1.msra.mxu0 0.0
      %2508 = vmatprep.subr.mxu0 0.0
      %2509 = vmatpush1.msra.mxu0 0.0
      %2510 = vmatprep.subr.mxu0 0.0
      %2511 = vmatpush1.msra.mxu0 0.0
      %2512 = vmatprep.subr.mxu0 0.0
      %2513 = vmatpush1.msra.mxu0 0.0
      %2514 = vmatprep.subr.mxu0 0.0
      %2515 = vmatpush1.msra.mxu0 0.0
      %2516 = vmatprep.subr.mxu0 0.0
      %2517 = vmatpush1.msra.mxu0 0.0
      %2518 = vmatprep.subr.mxu0 0.0
      %2519 = vmatpush1.msra.mxu0 0.0
      %2520 = vmatprep.subr.mxu0 0.0
      %2521 = vmatpush1.msra.mxu0 0.0
      %2522 = vmatprep.subr.mxu0 0.0
      %2523 = vmatpush1.msra.mxu0 0.0
      %2524 = vmatprep.subr.mxu0 0.0
      %2525 = vmatpush1.msra.mxu0 0.0
      %2526 = vmatprep.subr.mxu0 0.0
      %2527 = vmatpush1.msra.mxu0 0.0
      %2528 = vmatprep.subr.mxu0 0.0
      %2529 = vmatpush1.msra.mxu0 0.0
      %2530 = vmatprep.mubr.f32.mxu0 0.0
      %2531 = vmatmul.mubr.f32.gmra.mrb[0].mxu0 %v1182
      %v2532 = vpop.f32.mrb[0].mxu0
      %v2533 = vadd.f32 0.0, %v2532
      %v2534 = vpop.f32.mrb[0].mxu0
      %2535 = vmatprep.mubr.f32.mxu0 0.0
      %2536 = vmatmul.mubr.f32.gmra.mrb[0].mxu0 %v1185
      %v2537 = vpop.f32.mrb[0].mxu0
      %v2538 = vadd.f32 0.0, %v2537
      %v2539 = vpop.f32.mrb[0].mxu0
      %2540 = vdwg.mxu0
      %2541 = vrot.lane.b32.xlu0 %v631, 116
      %v2542 = vpop.permute.xlu0 %2541
      %2544 = vmatprep.subr.mxu0 0.0
      %2545 = vmatpush1.msra.mxu0 %v2542
      %2546 = vmatprep.subr.mxu0 0.0
      %2547 = vmatpush1.msra.mxu0 0.0
      %2548 = vmatprep.subr.mxu0 0.0
      %2549 = vmatpush1.msra.mxu0 0.0
      %2550 = vmatprep.subr.mxu0 0.0
      %2551 = vmatpush1.msra.mxu0 0.0
      %2552 = vmatprep.subr.mxu0 0.0
      %2553 = vmatpush1.msra.mxu0 0.0
      %2554 = vmatprep.subr.mxu0 0.0
      %2555 = vmatpush1.msra.mxu0 0.0
      %2556 = vmatprep.subr.mxu0 0.0
      %2557 = vmatpush1.msra.mxu0 0.0
      %2558 = vmatprep.subr.mxu0 0.0
      %2559 = vmatpush1.msra.mxu0 0.0
      %2560 = vmatprep.subr.mxu0 0.0
      %2561 = vmatpush1.msra.mxu0 0.0
      %2562 = vmatprep.subr.mxu0 0.0
      %2563 = vmatpush1.msra.mxu0 0.0
      %2564 = vmatprep.subr.mxu0 0.0
      %2565 = vmatpush1.msra.mxu0 0.0
      %2566 = vmatprep.subr.mxu0 0.0
      %2567 = vmatpush1.msra.mxu0 0.0
      %2568 = vmatprep.subr.mxu0 0.0
      %2569 = vmatpush1.msra.mxu0 0.0
      %2570 = vmatprep.subr.mxu0 0.0
      %2571 = vmatpush1.msra.mxu0 0.0
      %2572 = vmatprep.subr.mxu0 0.0
      %2573 = vmatpush1.msra.mxu0 0.0
      %2574 = vmatprep.subr.mxu0 0.0
      %2575 = vmatpush1.msra.mxu0 0.0
      %2576 = vmatprep.subr.mxu0 0.0
      %2577 = vmatpush1.msra.mxu0 0.0
      %2578 = vmatprep.subr.mxu0 0.0
      %2579 = vmatpush1.msra.mxu0 0.0
      %2580 = vmatprep.subr.mxu0 0.0
      %2581 = vmatpush1.msra.mxu0 0.0
      %2582 = vmatprep.subr.mxu0 0.0
      %2583 = vmatpush1.msra.mxu0 0.0
      %2584 = vmatprep.subr.mxu0 0.0
      %2585 = vmatpush1.msra.mxu0 0.0
      %2586 = vmatprep.subr.mxu0 0.0
      %2587 = vmatpush1.msra.mxu0 0.0
      %2588 = vmatprep.subr.mxu0 0.0
      %2589 = vmatpush1.msra.mxu0 0.0
      %2590 = vmatprep.subr.mxu0 0.0
      %2591 = vmatpush1.msra.mxu0 0.0
      %2592 = vmatprep.subr.mxu0 0.0
      %2593 = vmatpush1.msra.mxu0 0.0
      %2594 = vmatprep.subr.mxu0 0.0
      %2595 = vmatpush1.msra.mxu0 0.0
      %2596 = vmatprep.subr.mxu0 0.0
      %2597 = vmatpush1.msra.mxu0 0.0
      %2598 = vmatprep.subr.mxu0 0.0
      %2599 = vmatpush1.msra.mxu0 0.0
      %2600 = vmatprep.subr.mxu0 0.0
      %2601 = vmatpush1.msra.mxu0 0.0
      %2602 = vmatprep.subr.mxu0 0.0
      %2603 = vmatpush1.msra.mxu0 0.0
      %2604 = vmatprep.subr.mxu0 0.0
      %2605 = vmatpush1.msra.mxu0 0.0
      %2606 = vmatprep.subr.mxu0 0.0
      %2607 = vmatpush1.msra.mxu0 0.0
      %2608 = vmatprep.mubr.f32.mxu0 0.0
      %2609 = vmatmul.mubr.f32.gmra.mrb[0].mxu0 %v1267
      %v2610 = vpop.f32.mrb[0].mxu0
      %v2611 = vadd.f32 0.0, %v2610
      %v2612 = vpop.f32.mrb[0].mxu0
      %2613 = vmatprep.mubr.f32.mxu0 0.0
      %2614 = vmatmul.mubr.f32.gmra.mrb[0].mxu0 %v1270
      %v2615 = vpop.f32.mrb[0].mxu0
      %v2616 = vadd.f32 0.0, %v2615
      %v2617 = vpop.f32.mrb[0].mxu0
      %2618 = vdwg.mxu0
      %2619 = vrot.lane.b32.xlu0 %v596, 120
      %v2620 = vpop.permute.xlu0 %2619
      %2622 = vmatprep.subr.mxu0 0.0
      %2623 = vmatpush1.msra.mxu0 %v2620
      %2624 = vmatprep.subr.mxu0 0.0
      %2625 = vmatpush1.msra.mxu0 0.0
      %2626 = vmatprep.subr.mxu0 0.0
      %2627 = vmatpush1.msra.mxu0 0.0
      %2628 = vmatprep.subr.mxu0 0.0
      %2629 = vmatpush1.msra.mxu0 0.0
      %2630 = vmatprep.subr.mxu0 0.0
      %2631 = vmatpush1.msra.mxu0 0.0
      %2632 = vmatprep.subr.mxu0 0.0
      %2633 = vmatpush1.msra.mxu0 0.0
      %2634 = vmatprep.subr.mxu0 0.0
      %2635 = vmatpush1.msra.mxu0 0.0
      %2636 = vmatprep.subr.mxu0 0.0
      %2637 = vmatpush1.msra.mxu0 0.0
      %2638 = vmatprep.subr.mxu0 0.0
      %2639 = vmatpush1.msra.mxu0 0.0
      %2640 = vmatprep.subr.mxu0 0.0
      %2641 = vmatpush1.msra.mxu0 0.0
      %2642 = vmatprep.subr.mxu0 0.0
      %2643 = vmatpush1.msra.mxu0 0.0
      %2644 = vmatprep.subr.mxu0 0.0
      %2645 = vmatpush1.msra.mxu0 0.0
      %2646 = vmatprep.subr.mxu0 0.0
      %2647 = vmatpush1.msra.mxu0 0.0
      %2648 = vmatprep.subr.mxu0 0.0
      %2649 = vmatpush1.msra.mxu0 0.0
      %2650 = vmatprep.subr.mxu0 0.0
      %2651 = vmatpush1.msra.mxu0 0.0
      %2652 = vmatprep.subr.mxu0 0.0
      %2653 = vmatpush1.msra.mxu0 0.0
      %2654 = vmatprep.subr.mxu0 0.0
      %2655 = vmatpush1.msra.mxu0 0.0
      %2656 = vmatprep.subr.mxu0 0.0
      %2657 = vmatpush1.msra.mxu0 0.0
      %2658 = vmatprep.subr.mxu0 0.0
      %2659 = vmatpush1.msra.mxu0 0.0
      %2660 = vmatprep.subr.mxu0 0.0
      %2661 = vmatpush1.msra.mxu0 0.0
      %2662 = vmatprep.subr.mxu0 0.0
      %2663 = vmatpush1.msra.mxu0 0.0
      %2664 = vmatprep.subr.mxu0 0.0
      %2665 = vmatpush1.msra.mxu0 0.0
      %2666 = vmatprep.subr.mxu0 0.0
      %2667 = vmatpush1.msra.mxu0 0.0
      %2668 = vmatprep.subr.mxu0 0.0
      %2669 = vmatpush1.msra.mxu0 0.0
      %2670 = vmatprep.subr.mxu0 0.0
      %2671 = vmatpush1.msra.mxu0 0.0
      %2672 = vmatprep.subr.mxu0 0.0
      %2673 = vmatpush1.msra.mxu0 0.0
      %2674 = vmatprep.subr.mxu0 0.0
      %2675 = vmatpush1.msra.mxu0 0.0
      %2676 = vmatprep.subr.mxu0 0.0
      %2677 = vmatpush1.msra.mxu0 0.0
      %2678 = vmatprep.subr.mxu0 0.0
      %2679 = vmatpush1.msra.mxu0 0.0
      %2680 = vmatprep.subr.mxu0 0.0
      %2681 = vmatpush1.msra.mxu0 0.0
      %2682 = vmatprep.subr.mxu0 0.0
      %2683 = vmatpush1.msra.mxu0 0.0
      %2684 = vmatprep.subr.mxu0 0.0
      %2685 = vmatpush1.msra.mxu0 0.0
      %2686 = vmatprep.mubr.f32.mxu0 0.0
      %2687 = vmatmul.mubr.f32.gmra.mrb[0].mxu0 %v1348
      %v2688 = vpop.f32.mrb[0].mxu0
      %v2689 = vadd.f32 %v2065, %v2688
      %v2690 = vpop.f32.mrb[0].mxu0
      %2691 = vmatprep.mubr.f32.mxu0 0.0
      %2692 = vmatmul.mubr.f32.gmra.mrb[0].mxu0 %v1351
      %v2693 = vpop.f32.mrb[0].mxu0
      %v2694 = vadd.f32 %v2070, %v2693
      %v2695 = vpop.f32.mrb[0].mxu0
      %2696 = vdwg.mxu0
      %2697 = vrot.lane.b32.xlu0 %v601, 120
      %v2698 = vpop.permute.xlu0 %2697
      %2700 = vmatprep.subr.mxu0 0.0
      %2701 = vmatpush1.msra.mxu0 %v2698
      %2702 = vmatprep.subr.mxu0 0.0
      %2703 = vmatpush1.msra.mxu0 0.0
      %2704 = vmatprep.subr.mxu0 0.0
      %2705 = vmatpush1.msra.mxu0 0.0
      %2706 = vmatprep.subr.mxu0 0.0
      %2707 = vmatpush1.msra.mxu0 0.0
      %2708 = vmatprep.subr.mxu0 0.0
      %2709 = vmatpush1.msra.mxu0 0.0
      %2710 = vmatprep.subr.mxu0 0.0
      %2711 = vmatpush1.msra.mxu0 0.0
      %2712 = vmatprep.subr.mxu0 0.0
      %2713 = vmatpush1.msra.mxu0 0.0
      %2714 = vmatprep.subr.mxu0 0.0
      %2715 = vmatpush1.msra.mxu0 0.0
      %2716 = vmatprep.subr.mxu0 0.0
      %2717 = vmatpush1.msra.mxu0 0.0
      %2718 = vmatprep.subr.mxu0 0.0
      %2719 = vmatpush1.msra.mxu0 0.0
      %2720 = vmatprep.subr.mxu0 0.0
      %2721 = vmatpush1.msra.mxu0 0.0
      %2722 = vmatprep.subr.mxu0 0.0
      %2723 = vmatpush1.msra.mxu0 0.0
      %2724 = vmatprep.subr.mxu0 0.0
      %2725 = vmatpush1.msra.mxu0 0.0
      %2726 = vmatprep.subr.mxu0 0.0
      %2727 = vmatpush1.msra.mxu0 0.0
      %2728 = vmatprep.subr.mxu0 0.0
      %2729 = vmatpush1.msra.mxu0 0.0
      %2730 = vmatprep.subr.mxu0 0.0
      %2731 = vmatpush1.msra.mxu0 0.0
      %2732 = vmatprep.subr.mxu0 0.0
      %2733 = vmatpush1.msra.mxu0 0.0
      %2734 = vmatprep.subr.mxu0 0.0
      %2735 = vmatpush1.msra.mxu0 0.0
      %2736 = vmatprep.subr.mxu0 0.0
      %2737 = vmatpush1.msra.mxu0 0.0
      %2738 = vmatprep.subr.mxu0 0.0
      %2739 = vmatpush1.msra.mxu0 0.0
      %2740 = vmatprep.subr.mxu0 0.0
      %2741 = vmatpush1.msra.mxu0 0.0
      %2742 = vmatprep.subr.mxu0 0.0
      %2743 = vmatpush1.msra.mxu0 0.0
      %2744 = vmatprep.subr.mxu0 0.0
      %2745 = vmatpush1.msra.mxu0 0.0
      %2746 = vmatprep.subr.mxu0 0.0
      %2747 = vmatpush1.msra.mxu0 0.0
      %2748 = vmatprep.subr.mxu0 0.0
      %2749 = vmatpush1.msra.mxu0 0.0
      %2750 = vmatprep.subr.mxu0 0.0
      %2751 = vmatpush1.msra.mxu0 0.0
      %2752 = vmatprep.subr.mxu0 0.0
      %2753 = vmatpush1.msra.mxu0 0.0
      %2754 = vmatprep.subr.mxu0 0.0
      %2755 = vmatpush1.msra.mxu0 0.0
      %2756 = vmatprep.subr.mxu0 0.0
      %2757 = vmatpush1.msra.mxu0 0.0
      %2758 = vmatprep.subr.mxu0 0.0
      %2759 = vmatpush1.msra.mxu0 0.0
      %2760 = vmatprep.subr.mxu0 0.0
      %2761 = vmatpush1.msra.mxu0 0.0
      %2762 = vmatprep.subr.mxu0 0.0
      %2763 = vmatpush1.msra.mxu0 0.0
      %2764 = vmatprep.mubr.f32.mxu0 0.0
      %2765 = vmatmul.mubr.f32.gmra.mrb[0].mxu0 %v1429
      %v2766 = vpop.f32.mrb[0].mxu0
      %v2767 = vadd.f32 %v2143, %v2766
      %v2768 = vpop.f32.mrb[0].mxu0
      %2769 = vmatprep.mubr.f32.mxu0 0.0
      %2770 = vmatmul.mubr.f32.gmra.mrb[0].mxu0 %v1432
      %v2771 = vpop.f32.mrb[0].mxu0
      %v2772 = vadd.f32 %v2148, %v2771
      %v2773 = vpop.f32.mrb[0].mxu0
      %2774 = vdwg.mxu0
      %2775 = vrot.lane.b32.xlu0 %v606, 120
      %v2776 = vpop.permute.xlu0 %2775
      %2778 = vmatprep.subr.mxu0 0.0
      %2779 = vmatpush1.msra.mxu0 %v2776
      %2780 = vmatprep.subr.mxu0 0.0
      %2781 = vmatpush1.msra.mxu0 0.0
      %2782 = vmatprep.subr.mxu0 0.0
      %2783 = vmatpush1.msra.mxu0 0.0
      %2784 = vmatprep.subr.mxu0 0.0
      %2785 = vmatpush1.msra.mxu0 0.0
      %2786 = vmatprep.subr.mxu0 0.0
      %2787 = vmatpush1.msra.mxu0 0.0
      %2788 = vmatprep.subr.mxu0 0.0
      %2789 = vmatpush1.msra.mxu0 0.0
      %2790 = vmatprep.subr.mxu0 0.0
      %2791 = vmatpush1.msra.mxu0 0.0
      %2792 = vmatprep.subr.mxu0 0.0
      %2793 = vmatpush1.msra.mxu0 0.0
      %2794 = vmatprep.subr.mxu0 0.0
      %2795 = vmatpush1.msra.mxu0 0.0
      %2796 = vmatprep.subr.mxu0 0.0
      %2797 = vmatpush1.msra.mxu0 0.0
      %2798 = vmatprep.subr.mxu0 0.0
      %2799 = vmatpush1.msra.mxu0 0.0
      %2800 = vmatprep.subr.mxu0 0.0
      %2801 = vmatpush1.msra.mxu0 0.0
      %2802 = vmatprep.subr.mxu0 0.0
      %2803 = vmatpush1.msra.mxu0 0.0
      %2804 = vmatprep.subr.mxu0 0.0
      %2805 = vmatpush1.msra.mxu0 0.0
      %2806 = vmatprep.subr.mxu0 0.0
      %2807 = vmatpush1.msra.mxu0 0.0
      %2808 = vmatprep.subr.mxu0 0.0
      %2809 = vmatpush1.msra.mxu0 0.0
      %2810 = vmatprep.subr.mxu0 0.0
      %2811 = vmatpush1.msra.mxu0 0.0
      %2812 = vmatprep.subr.mxu0 0.0
      %2813 = vmatpush1.msra.mxu0 0.0
      %2814 = vmatprep.subr.mxu0 0.0
      %2815 = vmatpush1.msra.mxu0 0.0
      %2816 = vmatprep.subr.mxu0 0.0
      %2817 = vmatpush1.msra.mxu0 0.0
      %2818 = vmatprep.subr.mxu0 0.0
      %2819 = vmatpush1.msra.mxu0 0.0
      %2820 = vmatprep.subr.mxu0 0.0
      %2821 = vmatpush1.msra.mxu0 0.0
      %2822 = vmatprep.subr.mxu0 0.0
      %2823 = vmatpush1.msra.mxu0 0.0
      %2824 = vmatprep.subr.mxu0 0.0
      %2825 = vmatpush1.msra.mxu0 0.0
      %2826 = vmatprep.subr.mxu0 0.0
      %2827 = vmatpush1.msra.mxu0 0.0
      %2828 = vmatprep.subr.mxu0 0.0
      %2829 = vmatpush1.msra.mxu0 0.0
      %2830 = vmatprep.subr.mxu0 0.0
      %2831 = vmatpush1.msra.mxu0 0.0
      %2832 = vmatprep.subr.mxu0 0.0
      %2833 = vmatpush1.msra.mxu0 0.0
      %2834 = vmatprep.subr.mxu0 0.0
      %2835 = vmatpush1.msra.mxu0 0.0
      %2836 = vmatprep.subr.mxu0 0.0
      %2837 = vmatpush1.msra.mxu0 0.0
      %2838 = vmatprep.subr.mxu0 0.0
      %2839 = vmatpush1.msra.mxu0 0.0
      %2840 = vmatprep.subr.mxu0 0.0
      %2841 = vmatpush1.msra.mxu0 0.0
      %2842 = vmatprep.mubr.f32.mxu0 0.0
      %2843 = vmatmul.mubr.f32.gmra.mrb[0].mxu0 %v1510
      %v2844 = vpop.f32.mrb[0].mxu0
      %v2845 = vadd.f32 %v2221, %v2844
      %v2846 = vpop.f32.mrb[0].mxu0
      %2847 = vmatprep.mubr.f32.mxu0 0.0
      %2848 = vmatmul.mubr.f32.gmra.mrb[0].mxu0 %v1513
      %v2849 = vpop.f32.mrb[0].mxu0
      %v2850 = vadd.f32 %v2226, %v2849
      %v2851 = vpop.f32.mrb[0].mxu0
      %2852 = vdwg.mxu0
      %2853 = vrot.lane.b32.xlu0 %v611, 120
      %v2854 = vpop.permute.xlu0 %2853
      %2856 = vmatprep.subr.mxu0 0.0
      %2857 = vmatpush1.msra.mxu0 %v2854
      %2858 = vmatprep.subr.mxu0 0.0
      %2859 = vmatpush1.msra.mxu0 0.0
      %2860 = vmatprep.subr.mxu0 0.0
      %2861 = vmatpush1.msra.mxu0 0.0
      %2862 = vmatprep.subr.mxu0 0.0
      %2863 = vmatpush1.msra.mxu0 0.0
      %2864 = vmatprep.subr.mxu0 0.0
      %2865 = vmatpush1.msra.mxu0 0.0
      %2866 = vmatprep.subr.mxu0 0.0
      %2867 = vmatpush1.msra.mxu0 0.0
      %2868 = vmatprep.subr.mxu0 0.0
      %2869 = vmatpush1.msra.mxu0 0.0
      %2870 = vmatprep.subr.mxu0 0.0
      %2871 = vmatpush1.msra.mxu0 0.0
      %2872 = vmatprep.subr.mxu0 0.0
      %2873 = vmatpush1.msra.mxu0 0.0
      %2874 = vmatprep.subr.mxu0 0.0
      %2875 = vmatpush1.msra.mxu0 0.0
      %2876 = vmatprep.subr.mxu0 0.0
      %2877 = vmatpush1.msra.mxu0 0.0
      %2878 = vmatprep.subr.mxu0 0.0
      %2879 = vmatpush1.msra.mxu0 0.0
      %2880 = vmatprep.subr.mxu0 0.0
      %2881 = vmatpush1.msra.mxu0 0.0
      %2882 = vmatprep.subr.mxu0 0.0
      %2883 = vmatpush1.msra.mxu0 0.0
      %2884 = vmatprep.subr.mxu0 0.0
      %2885 = vmatpush1.msra.mxu0 0.0
      %2886 = vmatprep.subr.mxu0 0.0
      %2887 = vmatpush1.msra.mxu0 0.0
      %2888 = vmatprep.subr.mxu0 0.0
      %2889 = vmatpush1.msra.mxu0 0.0
      %2890 = vmatprep.subr.mxu0 0.0
      %2891 = vmatpush1.msra.mxu0 0.0
      %2892 = vmatprep.subr.mxu0 0.0
      %2893 = vmatpush1.msra.mxu0 0.0
      %2894 = vmatprep.subr.mxu0 0.0
      %2895 = vmatpush1.msra.mxu0 0.0
      %2896 = vmatprep.subr.mxu0 0.0
      %2897 = vmatpush1.msra.mxu0 0.0
      %2898 = vmatprep.subr.mxu0 0.0
      %2899 = vmatpush1.msra.mxu0 0.0
      %2900 = vmatprep.subr.mxu0 0.0
      %2901 = vmatpush1.msra.mxu0 0.0
      %2902 = vmatprep.subr.mxu0 0.0
      %2903 = vmatpush1.msra.mxu0 0.0
      %2904 = vmatprep.subr.mxu0 0.0
      %2905 = vmatpush1.msra.mxu0 0.0
      %2906 = vmatprep.subr.mxu0 0.0
      %2907 = vmatpush1.msra.mxu0 0.0
      %2908 = vmatprep.subr.mxu0 0.0
      %2909 = vmatpush1.msra.mxu0 0.0
      %2910 = vmatprep.subr.mxu0 0.0
      %2911 = vmatpush1.msra.mxu0 0.0
      %2912 = vmatprep.subr.mxu0 0.0
      %2913 = vmatpush1.msra.mxu0 0.0
      %2914 = vmatprep.subr.mxu0 0.0
      %2915 = vmatpush1.msra.mxu0 0.0
      %2916 = vmatprep.subr.mxu0 0.0
      %2917 = vmatpush1.msra.mxu0 0.0
      %2918 = vmatprep.subr.mxu0 0.0
      %2919 = vmatpush1.msra.mxu0 0.0
      %2920 = vmatprep.mubr.f32.mxu0 0.0
      %2921 = vmatmul.mubr.f32.gmra.mrb[0].mxu0 %v1591
      %v2922 = vpop.f32.mrb[0].mxu0
      %v2923 = vadd.f32 %v2299, %v2922
      %v2924 = vpop.f32.mrb[0].mxu0
      %2925 = vmatprep.mubr.f32.mxu0 0.0
      %2926 = vmatmul.mubr.f32.gmra.mrb[0].mxu0 %v1594
      %v2927 = vpop.f32.mrb[0].mxu0
      %v2928 = vadd.f32 %v2304, %v2927
      %v2929 = vpop.f32.mrb[0].mxu0
      %2930 = vdwg.mxu0
      %2931 = vrot.lane.b32.xlu0 %v616, 120
      %v2932 = vpop.permute.xlu0 %2931
      %2934 = vmatprep.subr.mxu0 0.0
      %2935 = vmatpush1.msra.mxu0 %v2932
      %2936 = vmatprep.subr.mxu0 0.0
      %2937 = vmatpush1.msra.mxu0 0.0
      %2938 = vmatprep.subr.mxu0 0.0
      %2939 = vmatpush1.msra.mxu0 0.0
      %2940 = vmatprep.subr.mxu0 0.0
      %2941 = vmatpush1.msra.mxu0 0.0
      %2942 = vmatprep.subr.mxu0 0.0
      %2943 = vmatpush1.msra.mxu0 0.0
      %2944 = vmatprep.subr.mxu0 0.0
      %2945 = vmatpush1.msra.mxu0 0.0
      %2946 = vmatprep.subr.mxu0 0.0
      %2947 = vmatpush1.msra.mxu0 0.0
      %2948 = vmatprep.subr.mxu0 0.0
      %2949 = vmatpush1.msra.mxu0 0.0
      %2950 = vmatprep.subr.mxu0 0.0
      %2951 = vmatpush1.msra.mxu0 0.0
      %2952 = vmatprep.subr.mxu0 0.0
      %2953 = vmatpush1.msra.mxu0 0.0
      %2954 = vmatprep.subr.mxu0 0.0
      %2955 = vmatpush1.msra.mxu0 0.0
      %2956 = vmatprep.subr.mxu0 0.0
      %2957 = vmatpush1.msra.mxu0 0.0
      %2958 = vmatprep.subr.mxu0 0.0
      %2959 = vmatpush1.msra.mxu0 0.0
      %2960 = vmatprep.subr.mxu0 0.0
      %2961 = vmatpush1.msra.mxu0 0.0
      %2962 = vmatprep.subr.mxu0 0.0
      %2963 = vmatpush1.msra.mxu0 0.0
      %2964 = vmatprep.subr.mxu0 0.0
      %2965 = vmatpush1.msra.mxu0 0.0
      %2966 = vmatprep.subr.mxu0 0.0
      %2967 = vmatpush1.msra.mxu0 0.0
      %2968 = vmatprep.subr.mxu0 0.0
      %2969 = vmatpush1.msra.mxu0 0.0
      %2970 = vmatprep.subr.mxu0 0.0
      %2971 = vmatpush1.msra.mxu0 0.0
      %2972 = vmatprep.subr.mxu0 0.0
      %2973 = vmatpush1.msra.mxu0 0.0
      %2974 = vmatprep.subr.mxu0 0.0
      %2975 = vmatpush1.msra.mxu0 0.0
      %2976 = vmatprep.subr.mxu0 0.0
      %2977 = vmatpush1.msra.mxu0 0.0
      %2978 = vmatprep.subr.mxu0 0.0
      %2979 = vmatpush1.msra.mxu0 0.0
      %2980 = vmatprep.subr.mxu0 0.0
      %2981 = vmatpush1.msra.mxu0 0.0
      %2982 = vmatprep.subr.mxu0 0.0
      %2983 = vmatpush1.msra.mxu0 0.0
      %2984 = vmatprep.subr.mxu0 0.0
      %2985 = vmatpush1.msra.mxu0 0.0
      %2986 = vmatprep.subr.mxu0 0.0
      %2987 = vmatpush1.msra.mxu0 0.0
      %2988 = vmatprep.subr.mxu0 0.0
      %2989 = vmatpush1.msra.mxu0 0.0
      %2990 = vmatprep.subr.mxu0 0.0
      %2991 = vmatpush1.msra.mxu0 0.0
      %2992 = vmatprep.subr.mxu0 0.0
      %2993 = vmatpush1.msra.mxu0 0.0
      %2994 = vmatprep.subr.mxu0 0.0
      %2995 = vmatpush1.msra.mxu0 0.0
      %2996 = vmatprep.subr.mxu0 0.0
      %2997 = vmatpush1.msra.mxu0 0.0
      %2998 = vmatprep.mubr.f32.mxu0 0.0
      %2999 = vmatmul.mubr.f32.gmra.mrb[0].mxu0 %v1672
      %v3000 = vpop.f32.mrb[0].mxu0
      %v3001 = vadd.f32 %v2377, %v3000
      %v3002 = vpop.f32.mrb[0].mxu0
      %3003 = vmatprep.mubr.f32.mxu0 0.0
      %3004 = vmatmul.mubr.f32.gmra.mrb[0].mxu0 %v1675
      %v3005 = vpop.f32.mrb[0].mxu0
      %v3006 = vadd.f32 %v2382, %v3005
      %v3007 = vpop.f32.mrb[0].mxu0
      %3008 = vdwg.mxu0
      %3009 = vrot.lane.b32.xlu0 %v621, 120
      %v3010 = vpop.permute.xlu0 %3009
      %3012 = vmatprep.subr.mxu0 0.0
      %3013 = vmatpush1.msra.mxu0 %v3010
      %3014 = vmatprep.subr.mxu0 0.0
      %3015 = vmatpush1.msra.mxu0 0.0
      %3016 = vmatprep.subr.mxu0 0.0
      %3017 = vmatpush1.msra.mxu0 0.0
      %3018 = vmatprep.subr.mxu0 0.0
      %3019 = vmatpush1.msra.mxu0 0.0
      %3020 = vmatprep.subr.mxu0 0.0
      %3021 = vmatpush1.msra.mxu0 0.0
      %3022 = vmatprep.subr.mxu0 0.0
      %3023 = vmatpush1.msra.mxu0 0.0
      %3024 = vmatprep.subr.mxu0 0.0
      %3025 = vmatpush1.msra.mxu0 0.0
      %3026 = vmatprep.subr.mxu0 0.0
      %3027 = vmatpush1.msra.mxu0 0.0
      %3028 = vmatprep.subr.mxu0 0.0
      %3029 = vmatpush1.msra.mxu0 0.0
      %3030 = vmatprep.subr.mxu0 0.0
      %3031 = vmatpush1.msra.mxu0 0.0
      %3032 = vmatprep.subr.mxu0 0.0
      %3033 = vmatpush1.msra.mxu0 0.0
      %3034 = vmatprep.subr.mxu0 0.0
      %3035 = vmatpush1.msra.mxu0 0.0
      %3036 = vmatprep.subr.mxu0 0.0
      %3037 = vmatpush1.msra.mxu0 0.0
      %3038 = vmatprep.subr.mxu0 0.0
      %3039 = vmatpush1.msra.mxu0 0.0
      %3040 = vmatprep.subr.mxu0 0.0
      %3041 = vmatpush1.msra.mxu0 0.0
      %3042 = vmatprep.subr.mxu0 0.0
      %3043 = vmatpush1.msra.mxu0 0.0
      %3044 = vmatprep.subr.mxu0 0.0
      %3045 = vmatpush1.msra.mxu0 0.0
      %3046 = vmatprep.subr.mxu0 0.0
      %3047 = vmatpush1.msra.mxu0 0.0
      %3048 = vmatprep.subr.mxu0 0.0
      %3049 = vmatpush1.msra.mxu0 0.0
      %3050 = vmatprep.subr.mxu0 0.0
      %3051 = vmatpush1.msra.mxu0 0.0
      %3052 = vmatprep.subr.mxu0 0.0
      %3053 = vmatpush1.msra.mxu0 0.0
      %3054 = vmatprep.subr.mxu0 0.0
      %3055 = vmatpush1.msra.mxu0 0.0
      %3056 = vmatprep.subr.mxu0 0.0
      %3057 = vmatpush1.msra.mxu0 0.0
      %3058 = vmatprep.subr.mxu0 0.0
      %3059 = vmatpush1.msra.mxu0 0.0
      %3060 = vmatprep.subr.mxu0 0.0
      %3061 = vmatpush1.msra.mxu0 0.0
      %3062 = vmatprep.subr.mxu0 0.0
      %3063 = vmatpush1.msra.mxu0 0.0
      %3064 = vmatprep.subr.mxu0 0.0
      %3065 = vmatpush1.msra.mxu0 0.0
      %3066 = vmatprep.subr.mxu0 0.0
      %3067 = vmatpush1.msra.mxu0 0.0
      %3068 = vmatprep.subr.mxu0 0.0
      %3069 = vmatpush1.msra.mxu0 0.0
      %3070 = vmatprep.subr.mxu0 0.0
      %3071 = vmatpush1.msra.mxu0 0.0
      %3072 = vmatprep.subr.mxu0 0.0
      %3073 = vmatpush1.msra.mxu0 0.0
      %3074 = vmatprep.subr.mxu0 0.0
      %3075 = vmatpush1.msra.mxu0 0.0
      %3076 = vmatprep.mubr.f32.mxu0 0.0
      %3077 = vmatmul.mubr.f32.gmra.mrb[0].mxu0 %v1753
      %v3078 = vpop.f32.mrb[0].mxu0
      %v3079 = vadd.f32 %v2455, %v3078
      %v3080 = vpop.f32.mrb[0].mxu0
      %3081 = vmatprep.mubr.f32.mxu0 0.0
      %3082 = vmatmul.mubr.f32.gmra.mrb[0].mxu0 %v1756
      %v3083 = vpop.f32.mrb[0].mxu0
      %v3084 = vadd.f32 %v2460, %v3083
      %v3085 = vpop.f32.mrb[0].mxu0
      %3086 = vdwg.mxu0
      %3087 = vrot.lane.b32.xlu0 %v626, 120
      %v3088 = vpop.permute.xlu0 %3087
      %3090 = vmatprep.subr.mxu0 0.0
      %3091 = vmatpush1.msra.mxu0 %v3088
      %3092 = vmatprep.subr.mxu0 0.0
      %3093 = vmatpush1.msra.mxu0 0.0
      %3094 = vmatprep.subr.mxu0 0.0
      %3095 = vmatpush1.msra.mxu0 0.0
      %3096 = vmatprep.subr.mxu0 0.0
      %3097 = vmatpush1.msra.mxu0 0.0
      %3098 = vmatprep.subr.mxu0 0.0
      %3099 = vmatpush1.msra.mxu0 0.0
      %3100 = vmatprep.subr.mxu0 0.0
      %3101 = vmatpush1.msra.mxu0 0.0
      %3102 = vmatprep.subr.mxu0 0.0
      %3103 = vmatpush1.msra.mxu0 0.0
      %3104 = vmatprep.subr.mxu0 0.0
      %3105 = vmatpush1.msra.mxu0 0.0
      %3106 = vmatprep.subr.mxu0 0.0
      %3107 = vmatpush1.msra.mxu0 0.0
      %3108 = vmatprep.subr.mxu0 0.0
      %3109 = vmatpush1.msra.mxu0 0.0
      %3110 = vmatprep.subr.mxu0 0.0
      %3111 = vmatpush1.msra.mxu0 0.0
      %3112 = vmatprep.subr.mxu0 0.0
      %3113 = vmatpush1.msra.mxu0 0.0
      %3114 = vmatprep.subr.mxu0 0.0
      %3115 = vmatpush1.msra.mxu0 0.0
      %3116 = vmatprep.subr.mxu0 0.0
      %3117 = vmatpush1.msra.mxu0 0.0
      %3118 = vmatprep.subr.mxu0 0.0
      %3119 = vmatpush1.msra.mxu0 0.0
      %3120 = vmatprep.subr.mxu0 0.0
      %3121 = vmatpush1.msra.mxu0 0.0
      %3122 = vmatprep.subr.mxu0 0.0
      %3123 = vmatpush1.msra.mxu0 0.0
      %3124 = vmatprep.subr.mxu0 0.0
      %3125 = vmatpush1.msra.mxu0 0.0
      %3126 = vmatprep.subr.mxu0 0.0
      %3127 = vmatpush1.msra.mxu0 0.0
      %3128 = vmatprep.subr.mxu0 0.0
      %3129 = vmatpush1.msra.mxu0 0.0
      %3130 = vmatprep.subr.mxu0 0.0
      %3131 = vmatpush1.msra.mxu0 0.0
      %3132 = vmatprep.subr.mxu0 0.0
      %3133 = vmatpush1.msra.mxu0 0.0
      %3134 = vmatprep.subr.mxu0 0.0
      %3135 = vmatpush1.msra.mxu0 0.0
      %3136 = vmatprep.subr.mxu0 0.0
      %3137 = vmatpush1.msra.mxu0 0.0
      %3138 = vmatprep.subr.mxu0 0.0
      %3139 = vmatpush1.msra.mxu0 0.0
      %3140 = vmatprep.subr.mxu0 0.0
      %3141 = vmatpush1.msra.mxu0 0.0
      %3142 = vmatprep.subr.mxu0 0.0
      %3143 = vmatpush1.msra.mxu0 0.0
      %3144 = vmatprep.subr.mxu0 0.0
      %3145 = vmatpush1.msra.mxu0 0.0
      %3146 = vmatprep.subr.mxu0 0.0
      %3147 = vmatpush1.msra.mxu0 0.0
      %3148 = vmatprep.subr.mxu0 0.0
      %3149 = vmatpush1.msra.mxu0 0.0
      %3150 = vmatprep.subr.mxu0 0.0
      %3151 = vmatpush1.msra.mxu0 0.0
      %3152 = vmatprep.subr.mxu0 0.0
      %3153 = vmatpush1.msra.mxu0 0.0
      %3154 = vmatprep.mubr.f32.mxu0 0.0
      %3155 = vmatmul.mubr.f32.gmra.mrb[0].mxu0 %v1834
      %v3156 = vpop.f32.mrb[0].mxu0
      %v3157 = vadd.f32 %v2533, %v3156
      %v3158 = vpop.f32.mrb[0].mxu0
      %3159 = vmatprep.mubr.f32.mxu0 0.0
      %3160 = vmatmul.mubr.f32.gmra.mrb[0].mxu0 %v1837
      %v3161 = vpop.f32.mrb[0].mxu0
      %v3162 = vadd.f32 %v2538, %v3161
      %v3163 = vpop.f32.mrb[0].mxu0
      %3164 = vdwg.mxu0
      %3165 = vrot.lane.b32.xlu0 %v631, 120
      %v3166 = vpop.permute.xlu0 %3165
      %3168 = vmatprep.subr.mxu0 0.0
      %3169 = vmatpush1.msra.mxu0 %v3166
      %3170 = vmatprep.subr.mxu0 0.0
      %3171 = vmatpush1.msra.mxu0 0.0
      %3172 = vmatprep.subr.mxu0 0.0
      %3173 = vmatpush1.msra.mxu0 0.0
      %3174 = vmatprep.subr.mxu0 0.0
      %3175 = vmatpush1.msra.mxu0 0.0
      %3176 = vmatprep.subr.mxu0 0.0
      %3177 = vmatpush1.msra.mxu0 0.0
      %3178 = vmatprep.subr.mxu0 0.0
      %3179 = vmatpush1.msra.mxu0 0.0
      %3180 = vmatprep.subr.mxu0 0.0
      %3181 = vmatpush1.msra.mxu0 0.0
      %3182 = vmatprep.subr.mxu0 0.0
      %3183 = vmatpush1.msra.mxu0 0.0
      %3184 = vmatprep.subr.mxu0 0.0
      %3185 = vmatpush1.msra.mxu0 0.0
      %3186 = vmatprep.subr.mxu0 0.0
      %3187 = vmatpush1.msra.mxu0 0.0
      %3188 = vmatprep.subr.mxu0 0.0
      %3189 = vmatpush1.msra.mxu0 0.0
      %3190 = vmatprep.subr.mxu0 0.0
      %3191 = vmatpush1.msra.mxu0 0.0
      %3192 = vmatprep.subr.mxu0 0.0
      %3193 = vmatpush1.msra.mxu0 0.0
      %3194 = vmatprep.subr.mxu0 0.0
      %3195 = vmatpush1.msra.mxu0 0.0
      %3196 = vmatprep.subr.mxu0 0.0
      %3197 = vmatpush1.msra.mxu0 0.0
      %3198 = vmatprep.subr.mxu0 0.0
      %3199 = vmatpush1.msra.mxu0 0.0
      %3200 = vmatprep.subr.mxu0 0.0
      %3201 = vmatpush1.msra.mxu0 0.0
      %3202 = vmatprep.subr.mxu0 0.0
      %3203 = vmatpush1.msra.mxu0 0.0
      %3204 = vmatprep.subr.mxu0 0.0
      %3205 = vmatpush1.msra.mxu0 0.0
      %3206 = vmatprep.subr.mxu0 0.0
      %3207 = vmatpush1.msra.mxu0 0.0
      %3208 = vmatprep.subr.mxu0 0.0
      %3209 = vmatpush1.msra.mxu0 0.0
      %3210 = vmatprep.subr.mxu0 0.0
      %3211 = vmatpush1.msra.mxu0 0.0
      %3212 = vmatprep.subr.mxu0 0.0
      %3213 = vmatpush1.msra.mxu0 0.0
      %3214 = vmatprep.subr.mxu0 0.0
      %3215 = vmatpush1.msra.mxu0 0.0
      %3216 = vmatprep.subr.mxu0 0.0
      %3217 = vmatpush1.msra.mxu0 0.0
      %3218 = vmatprep.subr.mxu0 0.0
      %3219 = vmatpush1.msra.mxu0 0.0
      %3220 = vmatprep.subr.mxu0 0.0
      %3221 = vmatpush1.msra.mxu0 0.0
      %3222 = vmatprep.subr.mxu0 0.0
      %3223 = vmatpush1.msra.mxu0 0.0
      %3224 = vmatprep.subr.mxu0 0.0
      %3225 = vmatpush1.msra.mxu0 0.0
      %3226 = vmatprep.subr.mxu0 0.0
      %3227 = vmatpush1.msra.mxu0 0.0
      %3228 = vmatprep.subr.mxu0 0.0
      %3229 = vmatpush1.msra.mxu0 0.0
      %3230 = vmatprep.subr.mxu0 0.0
      %3231 = vmatpush1.msra.mxu0 0.0
      %3232 = vmatprep.mubr.f32.mxu0 0.0
      %3233 = vmatmul.mubr.f32.gmra.mrb[0].mxu0 %v1915
      %v3234 = vpop.f32.mrb[0].mxu0
      %v3235 = vadd.f32 %v2611, %v3234
      %v3236 = vpop.f32.mrb[0].mxu0
      %3237 = vmatprep.mubr.f32.mxu0 0.0
      %3238 = vmatmul.mubr.f32.gmra.mrb[0].mxu0 %v1918
      %v3239 = vpop.f32.mrb[0].mxu0
      %v3240 = vadd.f32 %v2616, %v3239
      %v3241 = vpop.f32.mrb[0].mxu0
      %3242 = vdwg.mxu0
      %v3243 = vld [vmem:[%s3] sm:$0x1]
      %v3245 = vlaneseq
      %v3246 = vshrl.u32 %v3245, 7
      %v3247 = vsub.s32 0, %v3246
      %v3248 = vrot.slane %v3243, %v3247
      %v3250 = vadd.f32 %v1420, %v3248
      %v3251 = vadd.f32 %v1425, %v3248
      %v3252 = vadd.f32 %v2689, %v3248
      %v3253 = vadd.f32 %v2694, %v3248
      %v3254 = vadd.f32 %v1501, %v3248
      %v3255 = vadd.f32 %v1506, %v3248
      %v3256 = vadd.f32 %v2767, %v3248
      %v3257 = vadd.f32 %v2772, %v3248
      %v3258 = vadd.f32 %v1582, %v3248
      %v3259 = vadd.f32 %v1587, %v3248
      %v3260 = vadd.f32 %v2845, %v3248
      %v3261 = vadd.f32 %v2850, %v3248
      %v3262 = vadd.f32 %v1663, %v3248
      %v3263 = vadd.f32 %v1668, %v3248
      %v3264 = vadd.f32 %v2923, %v3248
      %v3265 = vadd.f32 %v2928, %v3248
      %v3266 = vadd.f32 %v1744, %v3248
      %v3267 = vadd.f32 %v1749, %v3248
      %v3268 = vadd.f32 %v3001, %v3248
      %v3269 = vadd.f32 %v3006, %v3248
      %v3270 = vadd.f32 %v1825, %v3248
      %v3271 = vadd.f32 %v1830, %v3248
      %v3272 = vadd.f32 %v3079, %v3248
      %v3273 = vadd.f32 %v3084, %v3248
      %v3274 = vadd.f32 %v1906, %v3248
      %v3275 = vadd.f32 %v1911, %v3248
      %v3276 = vadd.f32 %v3157, %v3248
      %v3277 = vadd.f32 %v3162, %v3248
      %v3278 = vadd.f32 %v1987, %v3248
      %v3279 = vadd.f32 %v1992, %v3248
      %v3280 = vadd.f32 %v3235, %v3248
      %v3281 = vadd.f32 %v3240, %v3248
      %s3282 = scalar_lea.vmem [#allocation2], 24
      %vm3283 = vcmask 31744
      %3284 = vst.msk [vmem:[%s3282 + $0x1] sm:$0xff] %vm3283, %v3250
      %3285 = vst.msk [vmem:[%s3282 + $0x9] sm:$0xff] %vm3283, %v3251
      %3286 = vst.msk [vmem:[%s3282 + $0x19] sm:$0xff] %vm3283, %v3252
      %3287 = vst.msk [vmem:[%s3282 + $0x21] sm:$0xff] %vm3283, %v3253
      %3288 = vst.msk [vmem:[%s3282 + $0x31] sm:$0xff] %vm3283, %v3254
      %3289 = vst.msk [vmem:[%s3282 + $0x39] sm:$0xff] %vm3283, %v3255
      %3290 = vst.msk [vmem:[%s3282 + $0x49] sm:$0xff] %vm3283, %v3256
      %3291 = vst.msk [vmem:[%s3282 + $0x51] sm:$0xff] %vm3283, %v3257
      %3292 = vst.msk [vmem:[%s3282 + $0x61] sm:$0xff] %vm3283, %v3258
      %3293 = vst.msk [vmem:[%s3282 + $0x69] sm:$0xff] %vm3283, %v3259
      %3294 = vst.msk [vmem:[%s3282 + $0x79] sm:$0xff] %vm3283, %v3260
      %3295 = vst.msk [vmem:[%s3282 + $0x81] sm:$0xff] %vm3283, %v3261
      %3296 = vst.msk [vmem:[%s3282 + $0x91] sm:$0xff] %vm3283, %v3262
      %3297 = vst.msk [vmem:[%s3282 + $0x99] sm:$0xff] %vm3283, %v3263
      %3298 = vst.msk [vmem:[%s3282 + $0xa9] sm:$0xff] %vm3283, %v3264
      %3299 = vst.msk [vmem:[%s3282 + $0xb1] sm:$0xff] %vm3283, %v3265
      %3300 = vst.msk [vmem:[%s3282 + $0xc1] sm:$0xff] %vm3283, %v3266
      %3301 = vst.msk [vmem:[%s3282 + $0xc9] sm:$0xff] %vm3283, %v3267
      %3302 = vst.msk [vmem:[%s3282 + $0xd9] sm:$0xff] %vm3283, %v3268
      %3303 = vst.msk [vmem:[%s3282 + $0xe1] sm:$0xff] %vm3283, %v3269
      %3304 = vst.msk [vmem:[%s3282 + $0xf1] sm:$0xff] %vm3283, %v3270
      %3305 = vst.msk [vmem:[%s3282 + $0xf9] sm:$0xff] %vm3283, %v3271
      %3306 = vst.msk [vmem:[%s3282 + $0x109] sm:$0xff] %vm3283, %v3272
      %3307 = vst.msk [vmem:[%s3282 + $0x111] sm:$0xff] %vm3283, %v3273
      %3308 = vst.msk [vmem:[%s3282 + $0x121] sm:$0xff] %vm3283, %v3274
      %3309 = vst.msk [vmem:[%s3282 + $0x129] sm:$0xff] %vm3283, %v3275
      %3310 = vst.msk [vmem:[%s3282 + $0x139] sm:$0xff] %vm3283, %v3276
      %3311 = vst.msk [vmem:[%s3282 + $0x141] sm:$0xff] %vm3283, %v3277
      %3312 = vst.msk [vmem:[%s3282 + $0x151] sm:$0xff] %vm3283, %v3278
      %3313 = vst.msk [vmem:[%s3282 + $0x159] sm:$0xff] %vm3283, %v3279
      %3314 = vst.msk [vmem:[%s3282 + $0x169] sm:$0xff] %vm3283, %v3280
      %3315 = vst.msk [vmem:[%s3282 + $0x171] sm:$0xff] %vm3283, %v3281
      %v3316 = vld [vmem:[%s401] sm:$0xff]
      %v3317 = vld [vmem:[%s401 + $0x8] sm:$0xff]
      %v3318 = vld [vmem:[%s401 + $0x10] sm:$0xff]
      %v3319 = vld [vmem:[%s401 + $0x18] sm:$0xff]
      %v3320 = vld [vmem:[%s401 + $0x20] sm:$0xff]
      %v3321 = vld [vmem:[%s401 + $0x28] sm:$0xff]
      %v3322 = vld [vmem:[%s401 + $0x30] sm:$0xff]
      %v3323 = vld [vmem:[%s401 + $0x38] sm:$0xff]
      %v3324 = vld [vmem:[%s401 + $0x40] sm:$0xff]
      %v3325 = vld [vmem:[%s401 + $0x48] sm:$0xff]
      %v3326 = vld [vmem:[%s401 + $0x50] sm:$0xff]
      %v3327 = vld [vmem:[%s401 + $0x58] sm:$0xff]
      %v3328 = vld [vmem:[%s401 + $0x60] sm:$0xff]
      %v3329 = vld [vmem:[%s401 + $0x68] sm:$0xff]
      %v3330 = vld [vmem:[%s401 + $0x70] sm:$0xff]
      %v3331 = vld [vmem:[%s401 + $0x78] sm:$0xff]
      %v3332 = vld [vmem:[%s401 + $0x80] sm:$0xff]
      %v3333 = vld [vmem:[%s401 + $0x88] sm:$0xff]
      %v3334 = vld [vmem:[%s401 + $0x90] sm:$0xff]
      %v3335 = vld [vmem:[%s401 + $0x98] sm:$0xff]
      %v3336 = vld [vmem:[%s401 + $0xa0] sm:$0xff]
      %v3337 = vld [vmem:[%s401 + $0xa8] sm:$0xff]
      %v3338 = vld [vmem:[%s401 + $0xb0] sm:$0xff]
      %v3339 = vld [vmem:[%s401 + $0xb8] sm:$0xff]
      %v3340 = vld [vmem:[%s401 + $0xc0] sm:$0xff]
      %v3341 = vld [vmem:[%s401 + $0xc8] sm:$0xff]
      %v3342 = vld [vmem:[%s401 + $0xd0] sm:$0xff]
      %v3343 = vld [vmem:[%s401 + $0xd8] sm:$0xff]
      %v3344 = vld [vmem:[%s401 + $0xe0] sm:$0xff]
      %v3345 = vld [vmem:[%s401 + $0xe8] sm:$0xff]
      %v3346 = vld [vmem:[%s401 + $0xf0] sm:$0xff]
      %v3347 = vld [vmem:[%s401 + $0xf8] sm:$0xff]
      %v3348 = vld [vmem:[%s4] sm:$0x3f]
      %v3349 = vld [vmem:[%s5] sm:$0x1]
      %v3351 = vlaneseq
      %v3352 = vshrl.u32 %v3351, 7
      %v3353 = vsub.s32 0, %v3352
      %v3354 = vrot.slane %v3349, %v3353
      %vm3356 = vcmask 48128
      %v3358 = vsel %vm3356, %v3316, 0
      %v3361 = vsel %vm3356, %v3317, 0
      %v3364 = vsel %vm3356, %v3318, 0
      %v3367 = vsel %vm3356, %v3319, 0
      %v3370 = vsel %vm3356, %v3320, 0
      %v3373 = vsel %vm3356, %v3321, 0
      %v3376 = vsel %vm3356, %v3322, 0
      %v3379 = vsel %vm3356, %v3323, 0
      %v3382 = vsel %vm3356, %v3324, 0
      %v3385 = vsel %vm3356, %v3325, 0
      %v3388 = vsel %vm3356, %v3326, 0
      %v3391 = vsel %vm3356, %v3327, 0
      %v3394 = vsel %vm3356, %v3328, 0
      %v3397 = vsel %vm3356, %v3329, 0
      %v3400 = vsel %vm3356, %v3330, 0
      %v3403 = vsel %vm3356, %v3331, 0
      %v3406 = vsel %vm3356, %v3332, 0
      %v3409 = vsel %vm3356, %v3333, 0
      %v3412 = vsel %vm3356, %v3334, 0
      %v3415 = vsel %vm3356, %v3335, 0
      %v3418 = vsel %vm3356, %v3336, 0
      %v3421 = vsel %vm3356, %v3337, 0
      %v3424 = vsel %vm3356, %v3338, 0
      %v3427 = vsel %vm3356, %v3339, 0
      %v3430 = vsel %vm3356, %v3340, 0
      %v3433 = vsel %vm3356, %v3341, 0
      %v3436 = vsel %vm3356, %v3342, 0
      %v3439 = vsel %vm3356, %v3343, 0
      %v3442 = vsel %vm3356, %v3344, 0
      %v3445 = vsel %vm3356, %v3345, 0
      %v3448 = vsel %vm3356, %v3346, 0
      %v3451 = vsel %vm3356, %v3347, 0
      %vm3453 = vcmask 1045504
      %v3455 = vsel %vm3453, %v3348, 0
      %3457 = vmatprep.subr.mxu0 0.0
      %3458 = vmatpush1.msra.mxu0 %v3455
      %3459 = vmatprep.subr.mxu0 0.0
      %3460 = vmatpush1.msra.mxu0 0.0
      %3461 = vmatprep.subr.mxu0 0.0
      %3462 = vmatpush1.msra.mxu0 0.0
      %3463 = vmatprep.subr.mxu0 0.0
      %3464 = vmatpush1.msra.mxu0 0.0
      %3465 = vmatprep.subr.mxu0 0.0
      %3466 = vmatpush1.msra.mxu0 0.0
      %3467 = vmatprep.subr.mxu0 0.0
      %3468 = vmatpush1.msra.mxu0 0.0
      %3469 = vmatprep.subr.mxu0 0.0
      %3470 = vmatpush1.msra.mxu0 0.0
      %3471 = vmatprep.subr.mxu0 0.0
      %3472 = vmatpush1.msra.mxu0 0.0
      %3473 = vmatprep.subr.mxu0 0.0
      %3474 = vmatpush1.msra.mxu0 0.0
      %3475 = vmatprep.subr.mxu0 0.0
      %3476 = vmatpush1.msra.mxu0 0.0
      %3477 = vmatprep.subr.mxu0 0.0
      %3478 = vmatpush1.msra.mxu0 0.0
      %3479 = vmatprep.subr.mxu0 0.0
      %3480 = vmatpush1.msra.mxu0 0.0
      %3481 = vmatprep.subr.mxu0 0.0
      %3482 = vmatpush1.msra.mxu0 0.0
      %3483 = vmatprep.subr.mxu0 0.0
      %3484 = vmatpush1.msra.mxu0 0.0
      %3485 = vmatprep.subr.mxu0 0.0
      %3486 = vmatpush1.msra.mxu0 0.0
      %3487 = vmatprep.subr.mxu0 0.0
      %3488 = vmatpush1.msra.mxu0 0.0
      %3489 = vmatprep.subr.mxu0 0.0
      %3490 = vmatpush1.msra.mxu0 0.0
      %3491 = vmatprep.subr.mxu0 0.0
      %3492 = vmatpush1.msra.mxu0 0.0
      %3493 = vmatprep.subr.mxu0 0.0
      %3494 = vmatpush1.msra.mxu0 0.0
      %3495 = vmatprep.subr.mxu0 0.0
      %3496 = vmatpush1.msra.mxu0 0.0
      %3497 = vmatprep.subr.mxu0 0.0
      %3498 = vmatpush1.msra.mxu0 0.0
      %3499 = vmatprep.subr.mxu0 0.0
      %3500 = vmatpush1.msra.mxu0 0.0
      %3501 = vmatprep.subr.mxu0 0.0
      %3502 = vmatpush1.msra.mxu0 0.0
      %3503 = vmatprep.subr.mxu0 0.0
      %3504 = vmatpush1.msra.mxu0 0.0
      %3505 = vmatprep.subr.mxu0 0.0
      %3506 = vmatpush1.msra.mxu0 0.0
      %3507 = vmatprep.subr.mxu0 0.0
      %3508 = vmatpush1.msra.mxu0 0.0
      %3509 = vmatprep.subr.mxu0 0.0
      %3510 = vmatpush1.msra.mxu0 0.0
      %3511 = vmatprep.subr.mxu0 0.0
      %3512 = vmatpush1.msra.mxu0 0.0
      %3513 = vmatprep.subr.mxu0 0.0
      %3514 = vmatpush1.msra.mxu0 0.0
      %3515 = vmatprep.subr.mxu0 0.0
      %3516 = vmatpush1.msra.mxu0 0.0
      %3517 = vmatprep.subr.mxu0 0.0
      %3518 = vmatpush1.msra.mxu0 0.0
      %3519 = vmatprep.subr.mxu0 0.0
      %3520 = vmatpush1.msra.mxu0 0.0
      %3521 = vmatprep.mubr.f32.mxu0 0.0
      %3522 = vmatmul.mubr.f32.gmra.mrb[0].mxu0 %v3358
      %v3523 = vpop.f32.mrb[0].mxu0
      %v3524 = vadd.f32 %v3354, %v3523
      %v3525 = vpop.f32.mrb[0].mxu0
      %3526 = vmatprep.mubr.f32.mxu0 0.0
      %3527 = vmatmul.mubr.f32.gmra.mrb[0].mxu0 %v3361
      %v3528 = vpop.f32.mrb[0].mxu0
      %v3529 = vadd.f32 %v3354, %v3528
      %v3530 = vpop.f32.mrb[0].mxu0
      %3531 = vmatprep.mubr.f32.mxu0 0.0
      %3532 = vmatmul.mubr.f32.gmra.mrb[0].mxu0 %v3364
      %v3533 = vpop.f32.mrb[0].mxu0
      %v3534 = vadd.f32 %v3354, %v3533
      %v3535 = vpop.f32.mrb[0].mxu0
      %3536 = vmatprep.mubr.f32.mxu0 0.0
      %3537 = vmatmul.mubr.f32.gmra.mrb[0].mxu0 %v3367
      %v3538 = vpop.f32.mrb[0].mxu0
      %v3539 = vadd.f32 %v3354, %v3538
      %v3540 = vpop.f32.mrb[0].mxu0
      %3541 = vmatprep.mubr.f32.mxu0 0.0
      %3542 = vmatmul.mubr.f32.gmra.mrb[0].mxu0 %v3370
      %v3543 = vpop.f32.mrb[0].mxu0
      %v3544 = vadd.f32 %v3354, %v3543
      %v3545 = vpop.f32.mrb[0].mxu0
      %3546 = vmatprep.mubr.f32.mxu0 0.0
      %3547 = vmatmul.mubr.f32.gmra.mrb[0].mxu0 %v3373
      %v3548 = vpop.f32.mrb[0].mxu0
      %v3549 = vadd.f32 %v3354, %v3548
      %v3550 = vpop.f32.mrb[0].mxu0
      %3551 = vmatprep.mubr.f32.mxu0 0.0
      %3552 = vmatmul.mubr.f32.gmra.mrb[0].mxu0 %v3376
      %v3553 = vpop.f32.mrb[0].mxu0
      %v3554 = vadd.f32 %v3354, %v3553
      %v3555 = vpop.f32.mrb[0].mxu0
      %3556 = vmatprep.mubr.f32.mxu0 0.0
      %3557 = vmatmul.mubr.f32.gmra.mrb[0].mxu0 %v3379
      %v3558 = vpop.f32.mrb[0].mxu0
      %v3559 = vadd.f32 %v3354, %v3558
      %v3560 = vpop.f32.mrb[0].mxu0
      %3561 = vmatprep.mubr.f32.mxu0 0.0
      %3562 = vmatmul.mubr.f32.gmra.mrb[0].mxu0 %v3382
      %v3563 = vpop.f32.mrb[0].mxu0
      %v3564 = vadd.f32 %v3354, %v3563
      %v3565 = vpop.f32.mrb[0].mxu0
      %3566 = vmatprep.mubr.f32.mxu0 0.0
      %3567 = vmatmul.mubr.f32.gmra.mrb[0].mxu0 %v3385
      %v3568 = vpop.f32.mrb[0].mxu0
      %v3569 = vadd.f32 %v3354, %v3568
      %v3570 = vpop.f32.mrb[0].mxu0
      %3571 = vmatprep.mubr.f32.mxu0 0.0
      %3572 = vmatmul.mubr.f32.gmra.mrb[0].mxu0 %v3388
      %v3573 = vpop.f32.mrb[0].mxu0
      %v3574 = vadd.f32 %v3354, %v3573
      %v3575 = vpop.f32.mrb[0].mxu0
      %3576 = vmatprep.mubr.f32.mxu0 0.0
      %3577 = vmatmul.mubr.f32.gmra.mrb[0].mxu0 %v3391
      %v3578 = vpop.f32.mrb[0].mxu0
      %v3579 = vadd.f32 %v3354, %v3578
      %v3580 = vpop.f32.mrb[0].mxu0
      %3581 = vmatprep.mubr.f32.mxu0 0.0
      %3582 = vmatmul.mubr.f32.gmra.mrb[0].mxu0 %v3394
      %v3583 = vpop.f32.mrb[0].mxu0
      %v3584 = vadd.f32 %v3354, %v3583
      %v3585 = vpop.f32.mrb[0].mxu0
      %3586 = vmatprep.mubr.f32.mxu0 0.0
      %3587 = vmatmul.mubr.f32.gmra.mrb[0].mxu0 %v3397
      %v3588 = vpop.f32.mrb[0].mxu0
      %v3589 = vadd.f32 %v3354, %v3588
      %v3590 = vpop.f32.mrb[0].mxu0
      %3591 = vmatprep.mubr.f32.mxu0 0.0
      %3592 = vmatmul.mubr.f32.gmra.mrb[0].mxu0 %v3400
      %v3593 = vpop.f32.mrb[0].mxu0
      %v3594 = vadd.f32 %v3354, %v3593
      %v3595 = vpop.f32.mrb[0].mxu0
      %3596 = vmatprep.mubr.f32.mxu0 0.0
      %3597 = vmatmul.mubr.f32.gmra.mrb[0].mxu0 %v3403
      %v3598 = vpop.f32.mrb[0].mxu0
      %v3599 = vadd.f32 %v3354, %v3598
      %v3600 = vpop.f32.mrb[0].mxu0
      %3601 = vmatprep.mubr.f32.mxu0 0.0
      %3602 = vmatmul.mubr.f32.gmra.mrb[0].mxu0 %v3406
      %v3603 = vpop.f32.mrb[0].mxu0
      %v3604 = vadd.f32 %v3354, %v3603
      %v3605 = vpop.f32.mrb[0].mxu0
      %3606 = vmatprep.mubr.f32.mxu0 0.0
      %3607 = vmatmul.mubr.f32.gmra.mrb[0].mxu0 %v3409
      %v3608 = vpop.f32.mrb[0].mxu0
      %v3609 = vadd.f32 %v3354, %v3608
      %v3610 = vpop.f32.mrb[0].mxu0
      %3611 = vmatprep.mubr.f32.mxu0 0.0
      %3612 = vmatmul.mubr.f32.gmra.mrb[0].mxu0 %v3412
      %v3613 = vpop.f32.mrb[0].mxu0
      %v3614 = vadd.f32 %v3354, %v3613
      %v3615 = vpop.f32.mrb[0].mxu0
      %3616 = vmatprep.mubr.f32.mxu0 0.0
      %3617 = vmatmul.mubr.f32.gmra.mrb[0].mxu0 %v3415
      %v3618 = vpop.f32.mrb[0].mxu0
      %v3619 = vadd.f32 %v3354, %v3618
      %v3620 = vpop.f32.mrb[0].mxu0
      %3621 = vmatprep.mubr.f32.mxu0 0.0
      %3622 = vmatmul.mubr.f32.gmra.mrb[0].mxu0 %v3418
      %v3623 = vpop.f32.mrb[0].mxu0
      %v3624 = vadd.f32 %v3354, %v3623
      %v3625 = vpop.f32.mrb[0].mxu0
      %3626 = vmatprep.mubr.f32.mxu0 0.0
      %3627 = vmatmul.mubr.f32.gmra.mrb[0].mxu0 %v3421
      %v3628 = vpop.f32.mrb[0].mxu0
      %v3629 = vadd.f32 %v3354, %v3628
      %v3630 = vpop.f32.mrb[0].mxu0
      %3631 = vmatprep.mubr.f32.mxu0 0.0
      %3632 = vmatmul.mubr.f32.gmra.mrb[0].mxu0 %v3424
      %v3633 = vpop.f32.mrb[0].mxu0
      %v3634 = vadd.f32 %v3354, %v3633
      %v3635 = vpop.f32.mrb[0].mxu0
      %3636 = vmatprep.mubr.f32.mxu0 0.0
      %3637 = vmatmul.mubr.f32.gmra.mrb[0].mxu0 %v3427
      %v3638 = vpop.f32.mrb[0].mxu0
      %v3639 = vadd.f32 %v3354, %v3638
      %v3640 = vpop.f32.mrb[0].mxu0
      %3641 = vmatprep.mubr.f32.mxu0 0.0
      %3642 = vmatmul.mubr.f32.gmra.mrb[0].mxu0 %v3430
      %v3643 = vpop.f32.mrb[0].mxu0
      %v3644 = vadd.f32 %v3354, %v3643
      %v3645 = vpop.f32.mrb[0].mxu0
      %3646 = vmatprep.mubr.f32.mxu0 0.0
      %3647 = vmatmul.mubr.f32.gmra.mrb[0].mxu0 %v3433
      %v3648 = vpop.f32.mrb[0].mxu0
      %v3649 = vadd.f32 %v3354, %v3648
      %v3650 = vpop.f32.mrb[0].mxu0
      %3651 = vmatprep.mubr.f32.mxu0 0.0
      %3652 = vmatmul.mubr.f32.gmra.mrb[0].mxu0 %v3436
      %v3653 = vpop.f32.mrb[0].mxu0
      %v3654 = vadd.f32 %v3354, %v3653
      %v3655 = vpop.f32.mrb[0].mxu0
      %3656 = vmatprep.mubr.f32.mxu0 0.0
      %3657 = vmatmul.mubr.f32.gmra.mrb[0].mxu0 %v3439
      %v3658 = vpop.f32.mrb[0].mxu0
      %v3659 = vadd.f32 %v3354, %v3658
      %v3660 = vpop.f32.mrb[0].mxu0
      %3661 = vmatprep.mubr.f32.mxu0 0.0
      %3662 = vmatmul.mubr.f32.gmra.mrb[0].mxu0 %v3442
      %v3663 = vpop.f32.mrb[0].mxu0
      %v3664 = vadd.f32 %v3354, %v3663
      %v3665 = vpop.f32.mrb[0].mxu0
      %3666 = vmatprep.mubr.f32.mxu0 0.0
      %3667 = vmatmul.mubr.f32.gmra.mrb[0].mxu0 %v3445
      %v3668 = vpop.f32.mrb[0].mxu0
      %v3669 = vadd.f32 %v3354, %v3668
      %v3670 = vpop.f32.mrb[0].mxu0
      %3671 = vmatprep.mubr.f32.mxu0 0.0
      %3672 = vmatmul.mubr.f32.gmra.mrb[0].mxu0 %v3448
      %v3673 = vpop.f32.mrb[0].mxu0
      %v3674 = vadd.f32 %v3354, %v3673
      %v3675 = vpop.f32.mrb[0].mxu0
      %3676 = vmatprep.mubr.f32.mxu0 0.0
      %3677 = vmatmul.mubr.f32.gmra.mrb[0].mxu0 %v3451
      %v3678 = vpop.f32.mrb[0].mxu0
      %v3679 = vadd.f32 %v3354, %v3678
      %v3680 = vpop.f32.mrb[0].mxu0
      %3681 = vdwg.mxu0
      %3714 = vrot.lane.b32.xlu0 %v3524, 4
      %v3715 = vpop.permute.xlu0 %3714
      %3716 = vrot.lane.b32.xlu0 %v3529, 4
      %v3717 = vpop.permute.xlu0 %3716
      %3718 = vrot.lane.b32.xlu0 %v3534, 4
      %v3719 = vpop.permute.xlu0 %3718
      %3720 = vrot.lane.b32.xlu0 %v3539, 4
      %v3721 = vpop.permute.xlu0 %3720
      %3722 = vrot.lane.b32.xlu0 %v3544, 4
      %v3723 = vpop.permute.xlu0 %3722
      %3724 = vrot.lane.b32.xlu0 %v3549, 4
      %v3725 = vpop.permute.xlu0 %3724
      %3726 = vrot.lane.b32.xlu0 %v3554, 4
      %v3727 = vpop.permute.xlu0 %3726
      %3728 = vrot.lane.b32.xlu0 %v3559, 4
      %v3729 = vpop.permute.xlu0 %3728
      %3730 = vrot.lane.b32.xlu0 %v3564, 4
      %v3731 = vpop.permute.xlu0 %3730
      %3732 = vrot.lane.b32.xlu0 %v3569, 4
      %v3733 = vpop.permute.xlu0 %3732
      %3734 = vrot.lane.b32.xlu0 %v3574, 4
      %v3735 = vpop.permute.xlu0 %3734
      %3736 = vrot.lane.b32.xlu0 %v3579, 4
      %v3737 = vpop.permute.xlu0 %3736
      %3738 = vrot.lane.b32.xlu0 %v3584, 4
      %v3739 = vpop.permute.xlu0 %3738
      %3740 = vrot.lane.b32.xlu0 %v3589, 4
      %v3741 = vpop.permute.xlu0 %3740
      %3742 = vrot.lane.b32.xlu0 %v3594, 4
      %v3743 = vpop.permute.xlu0 %3742
      %3744 = vrot.lane.b32.xlu0 %v3599, 4
      %v3745 = vpop.permute.xlu0 %3744
      %3746 = vrot.lane.b32.xlu0 %v3604, 4
      %v3747 = vpop.permute.xlu0 %3746
      %3748 = vrot.lane.b32.xlu0 %v3609, 4
      %v3749 = vpop.permute.xlu0 %3748
      %3750 = vrot.lane.b32.xlu0 %v3614, 4
      %v3751 = vpop.permute.xlu0 %3750
      %3752 = vrot.lane.b32.xlu0 %v3619, 4
      %v3753 = vpop.permute.xlu0 %3752
      %3754 = vrot.lane.b32.xlu0 %v3624, 4
      %v3755 = vpop.permute.xlu0 %3754
      %3756 = vrot.lane.b32.xlu0 %v3629, 4
      %v3757 = vpop.permute.xlu0 %3756
      %3758 = vrot.lane.b32.xlu0 %v3634, 4
      %v3759 = vpop.permute.xlu0 %3758
      %3760 = vrot.lane.b32.xlu0 %v3639, 4
      %v3761 = vpop.permute.xlu0 %3760
      %3762 = vrot.lane.b32.xlu0 %v3644, 4
      %v3763 = vpop.permute.xlu0 %3762
      %3764 = vrot.lane.b32.xlu0 %v3649, 4
      %v3765 = vpop.permute.xlu0 %3764
      %3766 = vrot.lane.b32.xlu0 %v3654, 4
      %v3767 = vpop.permute.xlu0 %3766
      %3768 = vrot.lane.b32.xlu0 %v3659, 4
      %v3769 = vpop.permute.xlu0 %3768
      %3770 = vrot.lane.b32.xlu0 %v3664, 4
      %v3771 = vpop.permute.xlu0 %3770
      %3772 = vrot.lane.b32.xlu0 %v3669, 4
      %v3773 = vpop.permute.xlu0 %3772
      %3774 = vrot.lane.b32.xlu0 %v3674, 4
      %v3775 = vpop.permute.xlu0 %3774
      %3776 = vrot.lane.b32.xlu0 %v3679, 4
      %v3777 = vpop.permute.xlu0 %3776
      %vm3810 = vcmask 64544
      %3811 = vst.msk [vmem:[%s3282 + $0x1] sm:$0xff] %vm3810, %v3715
      %3812 = vst.msk [vmem:[%s3282 + $0x9] sm:$0xff] %vm3810, %v3717
      %3813 = vst.msk [vmem:[%s3282 + $0x19] sm:$0xff] %vm3810, %v3719
      %3814 = vst.msk [vmem:[%s3282 + $0x21] sm:$0xff] %vm3810, %v3721
      %3815 = vst.msk [vmem:[%s3282 + $0x31] sm:$0xff] %vm3810, %v3723
      %3816 = vst.msk [vmem:[%s3282 + $0x39] sm:$0xff] %vm3810, %v3725
      %3817 = vst.msk [vmem:[%s3282 + $0x49] sm:$0xff] %vm3810, %v3727
      %3818 = vst.msk [vmem:[%s3282 + $0x51] sm:$0xff] %vm3810, %v3729
      %3819 = vst.msk [vmem:[%s3282 + $0x61] sm:$0xff] %vm3810, %v3731
      %3820 = vst.msk [vmem:[%s3282 + $0x69] sm:$0xff] %vm3810, %v3733
      %3821 = vst.msk [vmem:[%s3282 + $0x79] sm:$0xff] %vm3810, %v3735
      %3822 = vst.msk [vmem:[%s3282 + $0x81] sm:$0xff] %vm3810, %v3737
      %3823 = vst.msk [vmem:[%s3282 + $0x91] sm:$0xff] %vm3810, %v3739
      %3824 = vst.msk [vmem:[%s3282 + $0x99] sm:$0xff] %vm3810, %v3741
      %3825 = vst.msk [vmem:[%s3282 + $0xa9] sm:$0xff] %vm3810, %v3743
      %3826 = vst.msk [vmem:[%s3282 + $0xb1] sm:$0xff] %vm3810, %v3745
      %3827 = vst.msk [vmem:[%s3282 + $0xc1] sm:$0xff] %vm3810, %v3747
      %3828 = vst.msk [vmem:[%s3282 + $0xc9] sm:$0xff] %vm3810, %v3749
      %3829 = vst.msk [vmem:[%s3282 + $0xd9] sm:$0xff] %vm3810, %v3751
      %3830 = vst.msk [vmem:[%s3282 + $0xe1] sm:$0xff] %vm3810, %v3753
      %3831 = vst.msk [vmem:[%s3282 + $0xf1] sm:$0xff] %vm3810, %v3755
      %3832 = vst.msk [vmem:[%s3282 + $0xf9] sm:$0xff] %vm3810, %v3757
      %3833 = vst.msk [vmem:[%s3282 + $0x109] sm:$0xff] %vm3810, %v3759
      %3834 = vst.msk [vmem:[%s3282 + $0x111] sm:$0xff] %vm3810, %v3761
      %3835 = vst.msk [vmem:[%s3282 + $0x121] sm:$0xff] %vm3810, %v3763
      %3836 = vst.msk [vmem:[%s3282 + $0x129] sm:$0xff] %vm3810, %v3765
      %3837 = vst.msk [vmem:[%s3282 + $0x139] sm:$0xff] %vm3810, %v3767
      %3838 = vst.msk [vmem:[%s3282 + $0x141] sm:$0xff] %vm3810, %v3769
      %3839 = vst.msk [vmem:[%s3282 + $0x151] sm:$0xff] %vm3810, %v3771
      %3840 = vst.msk [vmem:[%s3282 + $0x159] sm:$0xff] %vm3810, %v3773
      %3841 = vst.msk [vmem:[%s3282 + $0x169] sm:$0xff] %vm3810, %v3775
      %3842 = vst.msk [vmem:[%s3282 + $0x171] sm:$0xff] %vm3810, %v3777
      %v3843 = vld [vmem:[#allocation2] sm:$0xff]
      %v3844 = vld [vmem:[#allocation2 + $0x8] sm:$0xff]
      %v3845 = vld [vmem:[#allocation2 + $0x18] sm:$0xff]
      %v3846 = vld [vmem:[#allocation2 + $0x20] sm:$0xff]
      %v3847 = vld [vmem:[#allocation2 + $0x30] sm:$0xff]
      %v3848 = vld [vmem:[#allocation2 + $0x38] sm:$0xff]
      %v3849 = vld [vmem:[#allocation2 + $0x48] sm:$0xff]
      %v3850 = vld [vmem:[#allocation2 + $0x50] sm:$0xff]
      %v3851 = vld [vmem:[#allocation2 + $0x60] sm:$0xff]
      %v3852 = vld [vmem:[#allocation2 + $0x68] sm:$0xff]
      %v3853 = vld [vmem:[#allocation2 + $0x78] sm:$0xff]
      %v3854 = vld [vmem:[#allocation2 + $0x80] sm:$0xff]
      %v3855 = vld [vmem:[#allocation2 + $0x90] sm:$0xff]
      %v3856 = vld [vmem:[#allocation2 + $0x98] sm:$0xff]
      %v3857 = vld [vmem:[#allocation2 + $0xa8] sm:$0xff]
      %v3858 = vld [vmem:[#allocation2 + $0xb0] sm:$0xff]
      %v3859 = vld [vmem:[#allocation2 + $0xc0] sm:$0xff]
      %v3860 = vld [vmem:[#allocation2 + $0xc8] sm:$0xff]
      %v3861 = vld [vmem:[#allocation2 + $0xd8] sm:$0xff]
      %v3862 = vld [vmem:[#allocation2 + $0xe0] sm:$0xff]
      %v3863 = vld [vmem:[#allocation2 + $0xf0] sm:$0xff]
      %v3864 = vld [vmem:[#allocation2 + $0xf8] sm:$0xff]
      %v3865 = vld [vmem:[#allocation2 + $0x108] sm:$0xff]
      %v3866 = vld [vmem:[#allocation2 + $0x110] sm:$0xff]
      %v3867 = vld [vmem:[#allocation2 + $0x120] sm:$0xff]
      %v3868 = vld [vmem:[#allocation2 + $0x128] sm:$0xff]
      %v3869 = vld [vmem:[#allocation2 + $0x138] sm:$0xff]
      %v3870 = vld [vmem:[#allocation2 + $0x140] sm:$0xff]
      %v3871 = vld [vmem:[#allocation2 + $0x150] sm:$0xff]
      %v3872 = vld [vmem:[#allocation2 + $0x158] sm:$0xff]
      %v3873 = vld [vmem:[#allocation2 + $0x168] sm:$0xff]
      %v3874 = vld [vmem:[#allocation2 + $0x170] sm:$0xff]
      %v3875 = vld [vmem:[#allocation2 + $0x180] sm:$0xff]
      %v3876 = vld [vmem:[#allocation2 + $0x188] sm:$0xff]
      %v3877 = vld [vmem:[#allocation2 + $0x198] sm:$0xff]
      %v3878 = vld [vmem:[#allocation2 + $0x1a0] sm:$0xff]
      %3879 = vst.msk [vmem:[#allocation3] sm:$0xff] %vm407, %v3843
      %3880 = vst.msk [vmem:[#allocation3 + $0x8] sm:$0xff] %vm407, %v3844
      %3881 = vst.msk [vmem:[#allocation3 + $0x10] sm:$0xff] %vm407, %v3845
      %3882 = vst.msk [vmem:[#allocation3 + $0x18] sm:$0xff] %vm407, %v3846
      %3883 = vst.msk [vmem:[#allocation3 + $0x20] sm:$0xff] %vm407, %v3847
      %3884 = vst.msk [vmem:[#allocation3 + $0x28] sm:$0xff] %vm407, %v3848
      %3885 = vst.msk [vmem:[#allocation3 + $0x30] sm:$0xff] %vm407, %v3849
      %3886 = vst.msk [vmem:[#allocation3 + $0x38] sm:$0xff] %vm407, %v3850
      %3887 = vst.msk [vmem:[#allocation3 + $0x40] sm:$0xff] %vm407, %v3851
      %3888 = vst.msk [vmem:[#allocation3 + $0x48] sm:$0xff] %vm407, %v3852
      %3889 = vst.msk [vmem:[#allocation3 + $0x50] sm:$0xff] %vm407, %v3853
      %3890 = vst.msk [vmem:[#allocation3 + $0x58] sm:$0xff] %vm407, %v3854
      %3891 = vst.msk [vmem:[#allocation3 + $0x60] sm:$0xff] %vm407, %v3855
      %3892 = vst.msk [vmem:[#allocation3 + $0x68] sm:$0xff] %vm407, %v3856
      %3893 = vst.msk [vmem:[#allocation3 + $0x70] sm:$0xff] %vm407, %v3857
      %3894 = vst.msk [vmem:[#allocation3 + $0x78] sm:$0xff] %vm407, %v3858
      %3895 = vst.msk [vmem:[#allocation3 + $0x80] sm:$0xff] %vm407, %v3859
      %3896 = vst.msk [vmem:[#allocation3 + $0x88] sm:$0xff] %vm407, %v3860
      %3897 = vst.msk [vmem:[#allocation3 + $0x90] sm:$0xff] %vm407, %v3861
      %3898 = vst.msk [vmem:[#allocation3 + $0x98] sm:$0xff] %vm407, %v3862
      %3899 = vst.msk [vmem:[#allocation3 + $0xa0] sm:$0xff] %vm407, %v3863
      %3900 = vst.msk [vmem:[#allocation3 + $0xa8] sm:$0xff] %vm407, %v3864
      %3901 = vst.msk [vmem:[#allocation3 + $0xb0] sm:$0xff] %vm407, %v3865
      %3902 = vst.msk [vmem:[#allocation3 + $0xb8] sm:$0xff] %vm407, %v3866
      %3903 = vst.msk [vmem:[#allocation3 + $0xc0] sm:$0xff] %vm407, %v3867
      %3904 = vst.msk [vmem:[#allocation3 + $0xc8] sm:$0xff] %vm407, %v3868
      %3905 = vst.msk [vmem:[#allocation3 + $0xd0] sm:$0xff] %vm407, %v3869
      %3906 = vst.msk [vmem:[#allocation3 + $0xd8] sm:$0xff] %vm407, %v3870
      %3907 = vst.msk [vmem:[#allocation3 + $0xe0] sm:$0xff] %vm407, %v3871
      %3908 = vst.msk [vmem:[#allocation3 + $0xe8] sm:$0xff] %vm407, %v3872
      %3909 = vst.msk [vmem:[#allocation3 + $0xf0] sm:$0xff] %vm407, %v3873
      %3910 = vst.msk [vmem:[#allocation3 + $0xf8] sm:$0xff] %vm407, %v3874
      %3911 = vst.msk [vmem:[#allocation3 + $0x100] sm:$0xff] %vm407, %v3875
      %3912 = vst.msk [vmem:[#allocation3 + $0x108] sm:$0xff] %vm407, %v3876
      %3913 = vst.msk [vmem:[#allocation3 + $0x110] sm:$0xff] %vm407, %v3877
      %3914 = vst.msk [vmem:[#allocation3 + $0x118] sm:$0xff] %vm407, %v3878
      %v3915 = vld [vmem:[#allocation2 + $0x1] sm:$0xff]
      %v3916 = vld [vmem:[#allocation2 + $0x9] sm:$0xff]
      %v3917 = vld [vmem:[#allocation2 + $0x19] sm:$0xff]
      %v3918 = vld [vmem:[#allocation2 + $0x21] sm:$0xff]
      %v3919 = vld [vmem:[#allocation2 + $0x31] sm:$0xff]
      %v3920 = vld [vmem:[#allocation2 + $0x39] sm:$0xff]
      %v3921 = vld [vmem:[#allocation2 + $0x49] sm:$0xff]
      %v3922 = vld [vmem:[#allocation2 + $0x51] sm:$0xff]
      %v3923 = vld [vmem:[#allocation2 + $0x61] sm:$0xff]
      %v3924 = vld [vmem:[#allocation2 + $0x69] sm:$0xff]
      %v3925 = vld [vmem:[#allocation2 + $0x79] sm:$0xff]
      %v3926 = vld [vmem:[#allocation2 + $0x81] sm:$0xff]
      %v3927 = vld [vmem:[#allocation2 + $0x91] sm:$0xff]
      %v3928 = vld [vmem:[#allocation2 + $0x99] sm:$0xff]
      %v3929 = vld [vmem:[#allocation2 + $0xa9] sm:$0xff]
      %v3930 = vld [vmem:[#allocation2 + $0xb1] sm:$0xff]
      %v3931 = vld [vmem:[#allocation2 + $0xc1] sm:$0xff]
      %v3932 = vld [vmem:[#allocation2 + $0xc9] sm:$0xff]
      %v3933 = vld [vmem:[#allocation2 + $0xd9] sm:$0xff]
      %v3934 = vld [vmem:[#allocation2 + $0xe1] sm:$0xff]
      %v3935 = vld [vmem:[#allocation2 + $0xf1] sm:$0xff]
      %v3936 = vld [vmem:[#allocation2 + $0xf9] sm:$0xff]
      %v3937 = vld [vmem:[#allocation2 + $0x109] sm:$0xff]
      %v3938 = vld [vmem:[#allocation2 + $0x111] sm:$0xff]
      %v3939 = vld [vmem:[#allocation2 + $0x121] sm:$0xff]
      %v3940 = vld [vmem:[#allocation2 + $0x129] sm:$0xff]
      %v3941 = vld [vmem:[#allocation2 + $0x139] sm:$0xff]
      %v3942 = vld [vmem:[#allocation2 + $0x141] sm:$0xff]
      %v3943 = vld [vmem:[#allocation2 + $0x151] sm:$0xff]
      %v3944 = vld [vmem:[#allocation2 + $0x159] sm:$0xff]
      %v3945 = vld [vmem:[#allocation2 + $0x169] sm:$0xff]
      %v3946 = vld [vmem:[#allocation2 + $0x171] sm:$0xff]
      %v3947 = vld [vmem:[#allocation2 + $0x181] sm:$0xff]
      %v3948 = vld [vmem:[#allocation2 + $0x189] sm:$0xff]
      %v3949 = vld [vmem:[#allocation2 + $0x199] sm:$0xff]
      %v3950 = vld [vmem:[#allocation2 + $0x1a1] sm:$0xff]
      %3987 = vrot.lane.b32.xlu0 %v3915, 8
      %v3988 = vpop.permute.xlu0 %3987
      %3989 = vrot.lane.b32.xlu0 %v3916, 8
      %v3990 = vpop.permute.xlu0 %3989
      %3991 = vrot.lane.b32.xlu0 %v3917, 8
      %v3992 = vpop.permute.xlu0 %3991
      %3993 = vrot.lane.b32.xlu0 %v3918, 8
      %v3994 = vpop.permute.xlu0 %3993
      %3995 = vrot.lane.b32.xlu0 %v3919, 8
      %v3996 = vpop.permute.xlu0 %3995
      %3997 = vrot.lane.b32.xlu0 %v3920, 8
      %v3998 = vpop.permute.xlu0 %3997
      %3999 = vrot.lane.b32.xlu0 %v3921, 8
      %v4000 = vpop.permute.xlu0 %3999
      %4001 = vrot.lane.b32.xlu0 %v3922, 8
      %v4002 = vpop.permute.xlu0 %4001
      %4003 = vrot.lane.b32.xlu0 %v3923, 8
      %v4004 = vpop.permute.xlu0 %4003
      %4005 = vrot.lane.b32.xlu0 %v3924, 8
      %v4006 = vpop.permute.xlu0 %4005
      %4007 = vrot.lane.b32.xlu0 %v3925, 8
      %v4008 = vpop.permute.xlu0 %4007
      %4009 = vrot.lane.b32.xlu0 %v3926, 8
      %v4010 = vpop.permute.xlu0 %4009
      %4011 = vrot.lane.b32.xlu0 %v3927, 8
      %v4012 = vpop.permute.xlu0 %4011
      %4013 = vrot.lane.b32.xlu0 %v3928, 8
      %v4014 = vpop.permute.xlu0 %4013
      %4015 = vrot.lane.b32.xlu0 %v3929, 8
      %v4016 = vpop.permute.xlu0 %4015
      %4017 = vrot.lane.b32.xlu0 %v3930, 8
      %v4018 = vpop.permute.xlu0 %4017
      %4019 = vrot.lane.b32.xlu0 %v3931, 8
      %v4020 = vpop.permute.xlu0 %4019
      %4021 = vrot.lane.b32.xlu0 %v3932, 8
      %v4022 = vpop.permute.xlu0 %4021
      %4023 = vrot.lane.b32.xlu0 %v3933, 8
      %v4024 = vpop.permute.xlu0 %4023
      %4025 = vrot.lane.b32.xlu0 %v3934, 8
      %v4026 = vpop.permute.xlu0 %4025
      %4027 = vrot.lane.b32.xlu0 %v3935, 8
      %v4028 = vpop.permute.xlu0 %4027
      %4029 = vrot.lane.b32.xlu0 %v3936, 8
      %v4030 = vpop.permute.xlu0 %4029
      %4031 = vrot.lane.b32.xlu0 %v3937, 8
      %v4032 = vpop.permute.xlu0 %4031
      %4033 = vrot.lane.b32.xlu0 %v3938, 8
      %v4034 = vpop.permute.xlu0 %4033
      %4035 = vrot.lane.b32.xlu0 %v3939, 8
      %v4036 = vpop.permute.xlu0 %4035
      %4037 = vrot.lane.b32.xlu0 %v3940, 8
      %v4038 = vpop.permute.xlu0 %4037
      %4039 = vrot.lane.b32.xlu0 %v3941, 8
      %v4040 = vpop.permute.xlu0 %4039
      %4041 = vrot.lane.b32.xlu0 %v3942, 8
      %v4042 = vpop.permute.xlu0 %4041
      %4043 = vrot.lane.b32.xlu0 %v3943, 8
      %v4044 = vpop.permute.xlu0 %4043
      %4045 = vrot.lane.b32.xlu0 %v3944, 8
      %v4046 = vpop.permute.xlu0 %4045
      %4047 = vrot.lane.b32.xlu0 %v3945, 8
      %v4048 = vpop.permute.xlu0 %4047
      %4049 = vrot.lane.b32.xlu0 %v3946, 8
      %v4050 = vpop.permute.xlu0 %4049
      %4051 = vrot.lane.b32.xlu0 %v3947, 8
      %v4052 = vpop.permute.xlu0 %4051
      %4053 = vrot.lane.b32.xlu0 %v3948, 8
      %v4054 = vpop.permute.xlu0 %4053
      %4055 = vrot.lane.b32.xlu0 %v3949, 8
      %v4056 = vpop.permute.xlu0 %4055
      %4057 = vrot.lane.b32.xlu0 %v3950, 8
      %v4058 = vpop.permute.xlu0 %4057
      %vm4095 = vcmask 130112
      %4096 = vst.msk [vmem:[#allocation3] sm:$0xff] %vm4095, %v3988
      %4097 = vst.msk [vmem:[#allocation3 + $0x8] sm:$0xff] %vm4095, %v3990
      %4098 = vst.msk [vmem:[#allocation3 + $0x10] sm:$0xff] %vm4095, %v3992
      %4099 = vst.msk [vmem:[#allocation3 + $0x18] sm:$0xff] %vm4095, %v3994
      %4100 = vst.msk [vmem:[#allocation3 + $0x20] sm:$0xff] %vm4095, %v3996
      %4101 = vst.msk [vmem:[#allocation3 + $0x28] sm:$0xff] %vm4095, %v3998
      %4102 = vst.msk [vmem:[#allocation3 + $0x30] sm:$0xff] %vm4095, %v4000
      %4103 = vst.msk [vmem:[#allocation3 + $0x38] sm:$0xff] %vm4095, %v4002
      %4104 = vst.msk [vmem:[#allocation3 + $0x40] sm:$0xff] %vm4095, %v4004
      %4105 = vst.msk [vmem:[#allocation3 + $0x48] sm:$0xff] %vm4095, %v4006
      %4106 = vst.msk [vmem:[#allocation3 + $0x50] sm:$0xff] %vm4095, %v4008
      %4107 = vst.msk [vmem:[#allocation3 + $0x58] sm:$0xff] %vm4095, %v4010
      %4108 = vst.msk [vmem:[#allocation3 + $0x60] sm:$0xff] %vm4095, %v4012
      %4109 = vst.msk [vmem:[#allocation3 + $0x68] sm:$0xff] %vm4095, %v4014
      %4110 = vst.msk [vmem:[#allocation3 + $0x70] sm:$0xff] %vm4095, %v4016
      %4111 = vst.msk [vmem:[#allocation3 + $0x78] sm:$0xff] %vm4095, %v4018
      %4112 = vst.msk [vmem:[#allocation3 + $0x80] sm:$0xff] %vm4095, %v4020
      %4113 = vst.msk [vmem:[#allocation3 + $0x88] sm:$0xff] %vm4095, %v4022
      %4114 = vst.msk [vmem:[#allocation3 + $0x90] sm:$0xff] %vm4095, %v4024
      %4115 = vst.msk [vmem:[#allocation3 + $0x98] sm:$0xff] %vm4095, %v4026
      %4116 = vst.msk [vmem:[#allocation3 + $0xa0] sm:$0xff] %vm4095, %v4028
      %4117 = vst.msk [vmem:[#allocation3 + $0xa8] sm:$0xff] %vm4095, %v4030
      %4118 = vst.msk [vmem:[#allocation3 + $0xb0] sm:$0xff] %vm4095, %v4032
      %4119 = vst.msk [vmem:[#allocation3 + $0xb8] sm:$0xff] %vm4095, %v4034
      %4120 = vst.msk [vmem:[#allocation3 + $0xc0] sm:$0xff] %vm4095, %v4036
      %4121 = vst.msk [vmem:[#allocation3 + $0xc8] sm:$0xff] %vm4095, %v4038
      %4122 = vst.msk [vmem:[#allocation3 + $0xd0] sm:$0xff] %vm4095, %v4040
      %4123 = vst.msk [vmem:[#allocation3 + $0xd8] sm:$0xff] %vm4095, %v4042
      %4124 = vst.msk [vmem:[#allocation3 + $0xe0] sm:$0xff] %vm4095, %v4044
      %4125 = vst.msk [vmem:[#allocation3 + $0xe8] sm:$0xff] %vm4095, %v4046
      %4126 = vst.msk [vmem:[#allocation3 + $0xf0] sm:$0xff] %vm4095, %v4048
      %4127 = vst.msk [vmem:[#allocation3 + $0xf8] sm:$0xff] %vm4095, %v4050
      %4128 = vst.msk [vmem:[#allocation3 + $0x100] sm:$0xff] %vm4095, %v4052
      %4129 = vst.msk [vmem:[#allocation3 + $0x108] sm:$0xff] %vm4095, %v4054
      %4130 = vst.msk [vmem:[#allocation3 + $0x110] sm:$0xff] %vm4095, %v4056
      %4131 = vst.msk [vmem:[#allocation3 + $0x118] sm:$0xff] %vm4095, %v4058
      %v4132 = vld [vmem:[#allocation2 + $0x2] sm:$0xff]
      %v4133 = vld [vmem:[#allocation2 + $0xa] sm:$0xff]
      %v4134 = vld [vmem:[#allocation2 + $0x1a] sm:$0xff]
      %v4135 = vld [vmem:[#allocation2 + $0x22] sm:$0xff]
      %v4136 = vld [vmem:[#allocation2 + $0x32] sm:$0xff]
      %v4137 = vld [vmem:[#allocation2 + $0x3a] sm:$0xff]
      %v4138 = vld [vmem:[#allocation2 + $0x4a] sm:$0xff]
      %v4139 = vld [vmem:[#allocation2 + $0x52] sm:$0xff]
      %v4140 = vld [vmem:[#allocation2 + $0x62] sm:$0xff]
      %v4141 = vld [vmem:[#allocation2 + $0x6a] sm:$0xff]
      %v4142 = vld [vmem:[#allocation2 + $0x7a] sm:$0xff]
      %v4143 = vld [vmem:[#allocation2 + $0x82] sm:$0xff]
      %v4144 = vld [vmem:[#allocation2 + $0x92] sm:$0xff]
      %v4145 = vld [vmem:[#allocation2 + $0x9a] sm:$0xff]
      %v4146 = vld [vmem:[#allocation2 + $0xaa] sm:$0xff]
      %v4147 = vld [vmem:[#allocation2 + $0xb2] sm:$0xff]
      %v4148 = vld [vmem:[#allocation2 + $0xc2] sm:$0xff]
      %v4149 = vld [vmem:[#allocation2 + $0xca] sm:$0xff]
      %v4150 = vld [vmem:[#allocation2 + $0xda] sm:$0xff]
      %v4151 = vld [vmem:[#allocation2 + $0xe2] sm:$0xff]
      %v4152 = vld [vmem:[#allocation2 + $0xf2] sm:$0xff]
      %v4153 = vld [vmem:[#allocation2 + $0xfa] sm:$0xff]
      %v4154 = vld [vmem:[#allocation2 + $0x10a] sm:$0xff]
      %v4155 = vld [vmem:[#allocation2 + $0x112] sm:$0xff]
      %v4156 = vld [vmem:[#allocation2 + $0x122] sm:$0xff]
      %v4157 = vld [vmem:[#allocation2 + $0x12a] sm:$0xff]
      %v4158 = vld [vmem:[#allocation2 + $0x13a] sm:$0xff]
      %v4159 = vld [vmem:[#allocation2 + $0x142] sm:$0xff]
      %v4160 = vld [vmem:[#allocation2 + $0x152] sm:$0xff]
      %v4161 = vld [vmem:[#allocation2 + $0x15a] sm:$0xff]
      %v4162 = vld [vmem:[#allocation2 + $0x16a] sm:$0xff]
      %v4163 = vld [vmem:[#allocation2 + $0x172] sm:$0xff]
      %v4164 = vld [vmem:[#allocation2 + $0x182] sm:$0xff]
      %v4165 = vld [vmem:[#allocation2 + $0x18a] sm:$0xff]
      %v4166 = vld [vmem:[#allocation2 + $0x19a] sm:$0xff]
      %v4167 = vld [vmem:[#allocation2 + $0x1a2] sm:$0xff]
      %4204 = vrot.lane.b32.xlu0 %v4132, 16
      %v4205 = vpop.permute.xlu0 %4204
      %4206 = vrot.lane.b32.xlu0 %v4133, 16
      %v4207 = vpop.permute.xlu0 %4206
      %4208 = vrot.lane.b32.xlu0 %v4134, 16
      %v4209 = vpop.permute.xlu0 %4208
      %4210 = vrot.lane.b32.xlu0 %v4135, 16
      %v4211 = vpop.permute.xlu0 %4210
      %4212 = vrot.lane.b32.xlu0 %v4136, 16
      %v4213 = vpop.permute.xlu0 %4212
      %4214 = vrot.lane.b32.xlu0 %v4137, 16
      %v4215 = vpop.permute.xlu0 %4214
      %4216 = vrot.lane.b32.xlu0 %v4138, 16
      %v4217 = vpop.permute.xlu0 %4216
      %4218 = vrot.lane.b32.xlu0 %v4139, 16
      %v4219 = vpop.permute.xlu0 %4218
      %4220 = vrot.lane.b32.xlu0 %v4140, 16
      %v4221 = vpop.permute.xlu0 %4220
      %4222 = vrot.lane.b32.xlu0 %v4141, 16
      %v4223 = vpop.permute.xlu0 %4222
      %4224 = vrot.lane.b32.xlu0 %v4142, 16
      %v4225 = vpop.permute.xlu0 %4224
      %4226 = vrot.lane.b32.xlu0 %v4143, 16
      %v4227 = vpop.permute.xlu0 %4226
      %4228 = vrot.lane.b32.xlu0 %v4144, 16
      %v4229 = vpop.permute.xlu0 %4228
      %4230 = vrot.lane.b32.xlu0 %v4145, 16
      %v4231 = vpop.permute.xlu0 %4230
      %4232 = vrot.lane.b32.xlu0 %v4146, 16
      %v4233 = vpop.permute.xlu0 %4232
      %4234 = vrot.lane.b32.xlu0 %v4147, 16
      %v4235 = vpop.permute.xlu0 %4234
      %4236 = vrot.lane.b32.xlu0 %v4148, 16
      %v4237 = vpop.permute.xlu0 %4236
      %4238 = vrot.lane.b32.xlu0 %v4149, 16
      %v4239 = vpop.permute.xlu0 %4238
      %4240 = vrot.lane.b32.xlu0 %v4150, 16
      %v4241 = vpop.permute.xlu0 %4240
      %4242 = vrot.lane.b32.xlu0 %v4151, 16
      %v4243 = vpop.permute.xlu0 %4242
      %4244 = vrot.lane.b32.xlu0 %v4152, 16
      %v4245 = vpop.permute.xlu0 %4244
      %4246 = vrot.lane.b32.xlu0 %v4153, 16
      %v4247 = vpop.permute.xlu0 %4246
      %4248 = vrot.lane.b32.xlu0 %v4154, 16
      %v4249 = vpop.permute.xlu0 %4248
      %4250 = vrot.lane.b32.xlu0 %v4155, 16
      %v4251 = vpop.permute.xlu0 %4250
      %4252 = vrot.lane.b32.xlu0 %v4156, 16
      %v4253 = vpop.permute.xlu0 %4252
      %4254 = vrot.lane.b32.xlu0 %v4157, 16
      %v4255 = vpop.permute.xlu0 %4254
      %4256 = vrot.lane.b32.xlu0 %v4158, 16
      %v4257 = vpop.permute.xlu0 %4256
      %4258 = vrot.lane.b32.xlu0 %v4159, 16
      %v4259 = vpop.permute.xlu0 %4258
      %4260 = vrot.lane.b32.xlu0 %v4160, 16
      %v4261 = vpop.permute.xlu0 %4260
      %4262 = vrot.lane.b32.xlu0 %v4161, 16
      %v4263 = vpop.permute.xlu0 %4262
      %4264 = vrot.lane.b32.xlu0 %v4162, 16
      %v4265 = vpop.permute.xlu0 %4264
      %4266 = vrot.lane.b32.xlu0 %v4163, 16
      %v4267 = vpop.permute.xlu0 %4266
      %4268 = vrot.lane.b32.xlu0 %v4164, 16
      %v4269 = vpop.permute.xlu0 %4268
      %4270 = vrot.lane.b32.xlu0 %v4165, 16
      %v4271 = vpop.permute.xlu0 %4270
      %4272 = vrot.lane.b32.xlu0 %v4166, 16
      %v4273 = vpop.permute.xlu0 %4272
      %4274 = vrot.lane.b32.xlu0 %v4167, 16
      %v4275 = vpop.permute.xlu0 %4274
      %vm4312 = vcmask 195712
      %4313 = vst.msk [vmem:[#allocation3] sm:$0xff] %vm4312, %v4205
      %4314 = vst.msk [vmem:[#allocation3 + $0x8] sm:$0xff] %vm4312, %v4207
      %4315 = vst.msk [vmem:[#allocation3 + $0x10] sm:$0xff] %vm4312, %v4209
      %4316 = vst.msk [vmem:[#allocation3 + $0x18] sm:$0xff] %vm4312, %v4211
      %4317 = vst.msk [vmem:[#allocation3 + $0x20] sm:$0xff] %vm4312, %v4213
      %4318 = vst.msk [vmem:[#allocation3 + $0x28] sm:$0xff] %vm4312, %v4215
      %4319 = vst.msk [vmem:[#allocation3 + $0x30] sm:$0xff] %vm4312, %v4217
      %4320 = vst.msk [vmem:[#allocation3 + $0x38] sm:$0xff] %vm4312, %v4219
      %4321 = vst.msk [vmem:[#allocation3 + $0x40] sm:$0xff] %vm4312, %v4221
      %4322 = vst.msk [vmem:[#allocation3 + $0x48] sm:$0xff] %vm4312, %v4223
      %4323 = vst.msk [vmem:[#allocation3 + $0x50] sm:$0xff] %vm4312, %v4225
      %4324 = vst.msk [vmem:[#allocation3 + $0x58] sm:$0xff] %vm4312, %v4227
      %4325 = vst.msk [vmem:[#allocation3 + $0x60] sm:$0xff] %vm4312, %v4229
      %4326 = vst.msk [vmem:[#allocation3 + $0x68] sm:$0xff] %vm4312, %v4231
      %4327 = vst.msk [vmem:[#allocation3 + $0x70] sm:$0xff] %vm4312, %v4233
      %4328 = vst.msk [vmem:[#allocation3 + $0x78] sm:$0xff] %vm4312, %v4235
      %4329 = vst.msk [vmem:[#allocation3 + $0x80] sm:$0xff] %vm4312, %v4237
      %4330 = vst.msk [vmem:[#allocation3 + $0x88] sm:$0xff] %vm4312, %v4239
      %4331 = vst.msk [vmem:[#allocation3 + $0x90] sm:$0xff] %vm4312, %v4241
      %4332 = vst.msk [vmem:[#allocation3 + $0x98] sm:$0xff] %vm4312, %v4243
      %4333 = vst.msk [vmem:[#allocation3 + $0xa0] sm:$0xff] %vm4312, %v4245
      %4334 = vst.msk [vmem:[#allocation3 + $0xa8] sm:$0xff] %vm4312, %v4247
      %4335 = vst.msk [vmem:[#allocation3 + $0xb0] sm:$0xff] %vm4312, %v4249
      %4336 = vst.msk [vmem:[#allocation3 + $0xb8] sm:$0xff] %vm4312, %v4251
      %4337 = vst.msk [vmem:[#allocation3 + $0xc0] sm:$0xff] %vm4312, %v4253
      %4338 = vst.msk [vmem:[#allocation3 + $0xc8] sm:$0xff] %vm4312, %v4255
      %4339 = vst.msk [vmem:[#allocation3 + $0xd0] sm:$0xff] %vm4312, %v4257
      %4340 = vst.msk [vmem:[#allocation3 + $0xd8] sm:$0xff] %vm4312, %v4259
      %4341 = vst.msk [vmem:[#allocation3 + $0xe0] sm:$0xff] %vm4312, %v4261
      %4342 = vst.msk [vmem:[#allocation3 + $0xe8] sm:$0xff] %vm4312, %v4263
      %4343 = vst.msk [vmem:[#allocation3 + $0xf0] sm:$0xff] %vm4312, %v4265
      %4344 = vst.msk [vmem:[#allocation3 + $0xf8] sm:$0xff] %vm4312, %v4267
      %4345 = vst.msk [vmem:[#allocation3 + $0x100] sm:$0xff] %vm4312, %v4269
      %4346 = vst.msk [vmem:[#allocation3 + $0x108] sm:$0xff] %vm4312, %v4271
      %4347 = vst.msk [vmem:[#allocation3 + $0x110] sm:$0xff] %vm4312, %v4273
      %4348 = vst.msk [vmem:[#allocation3 + $0x118] sm:$0xff] %vm4312, %v4275
      %v4349 = vld [vmem:[#allocation3] sm:$0xff]
      %v4350 = vld [vmem:[#allocation3 + $0x8] sm:$0xff]
      %v4351 = vld [vmem:[#allocation3 + $0x10] sm:$0xff]
      %v4352 = vld [vmem:[#allocation3 + $0x18] sm:$0xff]
      %v4353 = vld [vmem:[#allocation3 + $0x20] sm:$0xff]
      %v4354 = vld [vmem:[#allocation3 + $0x28] sm:$0xff]
      %v4355 = vld [vmem:[#allocation3 + $0x30] sm:$0xff]
      %v4356 = vld [vmem:[#allocation3 + $0x38] sm:$0xff]
      %v4357 = vld [vmem:[#allocation3 + $0x40] sm:$0xff]
      %v4358 = vld [vmem:[#allocation3 + $0x48] sm:$0xff]
      %v4359 = vld [vmem:[#allocation3 + $0x50] sm:$0xff]
      %v4360 = vld [vmem:[#allocation3 + $0x58] sm:$0xff]
      %v4361 = vld [vmem:[#allocation3 + $0x60] sm:$0xff]
      %v4362 = vld [vmem:[#allocation3 + $0x68] sm:$0xff]
      %v4363 = vld [vmem:[#allocation3 + $0x70] sm:$0xff]
      %v4364 = vld [vmem:[#allocation3 + $0x78] sm:$0xff]
      %v4365 = vld [vmem:[#allocation3 + $0x80] sm:$0xff]
      %v4366 = vld [vmem:[#allocation3 + $0x88] sm:$0xff]
      %v4367 = vld [vmem:[#allocation3 + $0x90] sm:$0xff]
      %v4368 = vld [vmem:[#allocation3 + $0x98] sm:$0xff]
      %v4369 = vld [vmem:[#allocation3 + $0xa0] sm:$0xff]
      %v4370 = vld [vmem:[#allocation3 + $0xa8] sm:$0xff]
      %v4371 = vld [vmem:[#allocation3 + $0xb0] sm:$0xff]
      %v4372 = vld [vmem:[#allocation3 + $0xb8] sm:$0xff]
      %v4373 = vld [vmem:[#allocation3 + $0xc0] sm:$0xff]
      %v4374 = vld [vmem:[#allocation3 + $0xc8] sm:$0xff]
      %v4375 = vld [vmem:[#allocation3 + $0xd0] sm:$0xff]
      %v4376 = vld [vmem:[#allocation3 + $0xd8] sm:$0xff]
      %v4377 = vld [vmem:[#allocation3 + $0xe0] sm:$0xff]
      %v4378 = vld [vmem:[#allocation3 + $0xe8] sm:$0xff]
      %v4379 = vld [vmem:[#allocation3 + $0xf0] sm:$0xff]
      %v4380 = vld [vmem:[#allocation3 + $0xf8] sm:$0xff]
      %v4381 = vld [vmem:[%s7] sm:$0xff]
      %v4382 = vld [vmem:[%s7 + $0x8] sm:$0xff]
      %v4383 = vld [vmem:[%s7 + $0x10] sm:$0xff]
      %s4384 = scalar_lea.vmem [#allocation3], 16
      %v4385 = vld [vmem:[%s4384] sm:$0xff]
      %v4386 = vld [vmem:[%s4384 + $0x8] sm:$0xff]
      %v4387 = vld [vmem:[%s4384 + $0x10] sm:$0xff]
      %v4388 = vld [vmem:[%s4384 + $0x18] sm:$0xff]
      %v4389 = vld [vmem:[%s4384 + $0x20] sm:$0xff]
      %v4390 = vld [vmem:[%s4384 + $0x28] sm:$0xff]
      %v4391 = vld [vmem:[%s4384 + $0x30] sm:$0xff]
      %v4392 = vld [vmem:[%s4384 + $0x38] sm:$0xff]
      %v4393 = vld [vmem:[%s4384 + $0x40] sm:$0xff]
      %v4394 = vld [vmem:[%s4384 + $0x48] sm:$0xff]
      %v4395 = vld [vmem:[%s4384 + $0x50] sm:$0xff]
      %v4396 = vld [vmem:[%s4384 + $0x58] sm:$0xff]
      %v4397 = vld [vmem:[%s4384 + $0x60] sm:$0xff]
      %v4398 = vld [vmem:[%s4384 + $0x68] sm:$0xff]
      %v4399 = vld [vmem:[%s4384 + $0x70] sm:$0xff]
      %v4400 = vld [vmem:[%s4384 + $0x78] sm:$0xff]
      %v4401 = vld [vmem:[%s4384 + $0x80] sm:$0xff]
      %v4402 = vld [vmem:[%s4384 + $0x88] sm:$0xff]
      %v4403 = vld [vmem:[%s4384 + $0x90] sm:$0xff]
      %v4404 = vld [vmem:[%s4384 + $0x98] sm:$0xff]
      %v4405 = vld [vmem:[%s4384 + $0xa0] sm:$0xff]
      %v4406 = vld [vmem:[%s4384 + $0xa8] sm:$0xff]
      %v4407 = vld [vmem:[%s4384 + $0xb0] sm:$0xff]
      %v4408 = vld [vmem:[%s4384 + $0xb8] sm:$0xff]
      %v4409 = vld [vmem:[%s4384 + $0xc0] sm:$0xff]
      %v4410 = vld [vmem:[%s4384 + $0xc8] sm:$0xff]
      %v4411 = vld [vmem:[%s4384 + $0xd0] sm:$0xff]
      %v4412 = vld [vmem:[%s4384 + $0xd8] sm:$0xff]
      %v4413 = vld [vmem:[%s4384 + $0xe0] sm:$0xff]
      %v4414 = vld [vmem:[%s4384 + $0xe8] sm:$0xff]
      %v4415 = vld [vmem:[%s4384 + $0xf0] sm:$0xff]
      %v4416 = vld [vmem:[%s4384 + $0xf8] sm:$0xff]
      %s4417 = scalar_lea.vmem %s7, 24
      %v4418 = vld [vmem:[%s4417] sm:$0xff]
      %v4419 = vld [vmem:[%s4417 + $0x8] sm:$0xff]
      %v4420 = vld [vmem:[%s4417 + $0x10] sm:$0xff]
      %vm4421 = vcmask 195584
      %v4423 = vsel %vm4421, %v4385, 0
      %v4426 = vsel %vm4421, %v4386, 0
      %v4429 = vsel %vm4421, %v4387, 0
      %v4432 = vsel %vm4421, %v4388, 0
      %v4435 = vsel %vm4421, %v4389, 0
      %v4438 = vsel %vm4421, %v4390, 0
      %v4441 = vsel %vm4421, %v4391, 0
      %v4444 = vsel %vm4421, %v4392, 0
      %v4447 = vsel %vm4421, %v4393, 0
      %v4450 = vsel %vm4421, %v4394, 0
      %v4453 = vsel %vm4421, %v4395, 0
      %v4456 = vsel %vm4421, %v4396, 0
      %v4459 = vsel %vm4421, %v4397, 0
      %v4462 = vsel %vm4421, %v4398, 0
      %v4465 = vsel %vm4421, %v4399, 0
      %v4468 = vsel %vm4421, %v4400, 0
      %v4471 = vsel %vm4421, %v4401, 0
      %v4474 = vsel %vm4421, %v4402, 0
      %v4477 = vsel %vm4421, %v4403, 0
      %v4480 = vsel %vm4421, %v4404, 0
      %v4483 = vsel %vm4421, %v4405, 0
      %v4486 = vsel %vm4421, %v4406, 0
      %v4489 = vsel %vm4421, %v4407, 0
      %v4492 = vsel %vm4421, %v4408, 0
      %v4495 = vsel %vm4421, %v4409, 0
      %v4498 = vsel %vm4421, %v4410, 0
      %v4501 = vsel %vm4421, %v4411, 0
      %v4504 = vsel %vm4421, %v4412, 0
      %v4507 = vsel %vm4421, %v4413, 0
      %v4510 = vsel %vm4421, %v4414, 0
      %v4513 = vsel %vm4421, %v4415, 0
      %v4516 = vsel %vm4421, %v4416, 0
      %4518 = vmatprep.subr.mxu0 0.0
      %4519 = vmatpush1.msra.mxu0 %v4418
      %4520 = vmatprep.subr.mxu0 0.0
      %4521 = vmatpush1.msra.mxu0 %v4419
      %4522 = vmatprep.subr.mxu0 0.0
      %4523 = vmatpush1.msra.mxu0 %v4420
      %4524 = vmatprep.subr.mxu0 0.0
      %4525 = vmatpush1.msra.mxu0 0.0
      %4526 = vmatprep.subr.mxu0 0.0
      %4527 = vmatpush1.msra.mxu0 0.0
      %4528 = vmatprep.subr.mxu0 0.0
      %4529 = vmatpush1.msra.mxu0 0.0
      %4530 = vmatprep.subr.mxu0 0.0
      %4531 = vmatpush1.msra.mxu0 0.0
      %4532 = vmatprep.subr.mxu0 0.0
      %4533 = vmatpush1.msra.mxu0 0.0
      %4534 = vmatprep.subr.mxu0 0.0
      %4535 = vmatpush1.msra.mxu0 0.0
      %4536 = vmatprep.subr.mxu0 0.0
      %4537 = vmatpush1.msra.mxu0 0.0
      %4538 = vmatprep.subr.mxu0 0.0
      %4539 = vmatpush1.msra.mxu0 0.0
      %4540 = vmatprep.subr.mxu0 0.0
      %4541 = vmatpush1.msra.mxu0 0.0
      %4542 = vmatprep.subr.mxu0 0.0
      %4543 = vmatpush1.msra.mxu0 0.0
      %4544 = vmatprep.subr.mxu0 0.0
      %4545 = vmatpush1.msra.mxu0 0.0
      %4546 = vmatprep.subr.mxu0 0.0
      %4547 = vmatpush1.msra.mxu0 0.0
      %4548 = vmatprep.subr.mxu0 0.0
      %4549 = vmatpush1.msra.mxu0 0.0
      %4550 = vmatprep.subr.mxu0 0.0
      %4551 = vmatpush1.msra.mxu0 0.0
      %4552 = vmatprep.subr.mxu0 0.0
      %4553 = vmatpush1.msra.mxu0 0.0
      %4554 = vmatprep.subr.mxu0 0.0
      %4555 = vmatpush1.msra.mxu0 0.0
      %4556 = vmatprep.subr.mxu0 0.0
      %4557 = vmatpush1.msra.mxu0 0.0
      %4558 = vmatprep.subr.mxu0 0.0
      %4559 = vmatpush1.msra.mxu0 0.0
      %4560 = vmatprep.subr.mxu0 0.0
      %4561 = vmatpush1.msra.mxu0 0.0
      %4562 = vmatprep.subr.mxu0 0.0
      %4563 = vmatpush1.msra.mxu0 0.0
      %4564 = vmatprep.subr.mxu0 0.0
      %4565 = vmatpush1.msra.mxu0 0.0
      %4566 = vmatprep.subr.mxu0 0.0
      %4567 = vmatpush1.msra.mxu0 0.0
      %4568 = vmatprep.subr.mxu0 0.0
      %4569 = vmatpush1.msra.mxu0 0.0
      %4570 = vmatprep.subr.mxu0 0.0
      %4571 = vmatpush1.msra.mxu0 0.0
      %4572 = vmatprep.subr.mxu0 0.0
      %4573 = vmatpush1.msra.mxu0 0.0
      %4574 = vmatprep.subr.mxu0 0.0
      %4575 = vmatpush1.msra.mxu0 0.0
      %4576 = vmatprep.subr.mxu0 0.0
      %4577 = vmatpush1.msra.mxu0 0.0
      %4578 = vmatprep.subr.mxu0 0.0
      %4579 = vmatpush1.msra.mxu0 0.0
      %4580 = vmatprep.subr.mxu0 0.0
      %4581 = vmatpush1.msra.mxu0 0.0
      %4582 = vmatprep.mubr.f32.mxu0 0.0
      %4583 = vmatmul.mubr.f32.gmra.mrb[0].mxu0 %v4423
      %v4584 = vpop.f32.mrb[0].mxu0
      %v4585 = vadd.f32 0.0, %v4584
      %v4586 = vpop.f32.mrb[0].mxu0
      %4587 = vmatprep.mubr.f32.mxu0 0.0
      %4588 = vmatmul.mubr.f32.gmra.mrb[0].mxu0 %v4426
      %v4589 = vpop.f32.mrb[0].mxu0
      %v4590 = vadd.f32 0.0, %v4589
      %v4591 = vpop.f32.mrb[0].mxu0
      %4592 = vmatprep.mubr.f32.mxu0 0.0
      %4593 = vmatmul.mubr.f32.gmra.mrb[0].mxu0 %v4429
      %v4594 = vpop.f32.mrb[0].mxu0
      %v4595 = vadd.f32 0.0, %v4594
      %v4596 = vpop.f32.mrb[0].mxu0
      %4597 = vmatprep.mubr.f32.mxu0 0.0
      %4598 = vmatmul.mubr.f32.gmra.mrb[0].mxu0 %v4432
      %v4599 = vpop.f32.mrb[0].mxu0
      %v4600 = vadd.f32 0.0, %v4599
      %v4601 = vpop.f32.mrb[0].mxu0
      %4602 = vmatprep.mubr.f32.mxu0 0.0
      %4603 = vmatmul.mubr.f32.gmra.mrb[0].mxu0 %v4435
      %v4604 = vpop.f32.mrb[0].mxu0
      %v4605 = vadd.f32 0.0, %v4604
      %v4606 = vpop.f32.mrb[0].mxu0
      %4607 = vmatprep.mubr.f32.mxu0 0.0
      %4608 = vmatmul.mubr.f32.gmra.mrb[0].mxu0 %v4438
      %v4609 = vpop.f32.mrb[0].mxu0
      %v4610 = vadd.f32 0.0, %v4609
      %v4611 = vpop.f32.mrb[0].mxu0
      %4612 = vmatprep.mubr.f32.mxu0 0.0
      %4613 = vmatmul.mubr.f32.gmra.mrb[0].mxu0 %v4441
      %v4614 = vpop.f32.mrb[0].mxu0
      %v4615 = vadd.f32 0.0, %v4614
      %v4616 = vpop.f32.mrb[0].mxu0
      %4617 = vmatprep.mubr.f32.mxu0 0.0
      %4618 = vmatmul.mubr.f32.gmra.mrb[0].mxu0 %v4444
      %v4619 = vpop.f32.mrb[0].mxu0
      %v4620 = vadd.f32 0.0, %v4619
      %v4621 = vpop.f32.mrb[0].mxu0
      %4622 = vmatprep.mubr.f32.mxu0 0.0
      %4623 = vmatmul.mubr.f32.gmra.mrb[0].mxu0 %v4447
      %v4624 = vpop.f32.mrb[0].mxu0
      %v4625 = vadd.f32 0.0, %v4624
      %v4626 = vpop.f32.mrb[0].mxu0
      %4627 = vmatprep.mubr.f32.mxu0 0.0
      %4628 = vmatmul.mubr.f32.gmra.mrb[0].mxu0 %v4450
      %v4629 = vpop.f32.mrb[0].mxu0
      %v4630 = vadd.f32 0.0, %v4629
      %v4631 = vpop.f32.mrb[0].mxu0
      %4632 = vmatprep.mubr.f32.mxu0 0.0
      %4633 = vmatmul.mubr.f32.gmra.mrb[0].mxu0 %v4453
      %v4634 = vpop.f32.mrb[0].mxu0
      %v4635 = vadd.f32 0.0, %v4634
      %v4636 = vpop.f32.mrb[0].mxu0
      %4637 = vmatprep.mubr.f32.mxu0 0.0
      %4638 = vmatmul.mubr.f32.gmra.mrb[0].mxu0 %v4456
      %v4639 = vpop.f32.mrb[0].mxu0
      %v4640 = vadd.f32 0.0, %v4639
      %v4641 = vpop.f32.mrb[0].mxu0
      %4642 = vmatprep.mubr.f32.mxu0 0.0
      %4643 = vmatmul.mubr.f32.gmra.mrb[0].mxu0 %v4459
      %v4644 = vpop.f32.mrb[0].mxu0
      %v4645 = vadd.f32 0.0, %v4644
      %v4646 = vpop.f32.mrb[0].mxu0
      %4647 = vmatprep.mubr.f32.mxu0 0.0
      %4648 = vmatmul.mubr.f32.gmra.mrb[0].mxu0 %v4462
      %v4649 = vpop.f32.mrb[0].mxu0
      %v4650 = vadd.f32 0.0, %v4649
      %v4651 = vpop.f32.mrb[0].mxu0
      %4652 = vmatprep.mubr.f32.mxu0 0.0
      %4653 = vmatmul.mubr.f32.gmra.mrb[0].mxu0 %v4465
      %v4654 = vpop.f32.mrb[0].mxu0
      %v4655 = vadd.f32 0.0, %v4654
      %v4656 = vpop.f32.mrb[0].mxu0
      %4657 = vmatprep.mubr.f32.mxu0 0.0
      %4658 = vmatmul.mubr.f32.gmra.mrb[0].mxu0 %v4468
      %v4659 = vpop.f32.mrb[0].mxu0
      %v4660 = vadd.f32 0.0, %v4659
      %v4661 = vpop.f32.mrb[0].mxu0
      %4662 = vmatprep.mubr.f32.mxu0 0.0
      %4663 = vmatmul.mubr.f32.gmra.mrb[0].mxu0 %v4471
      %v4664 = vpop.f32.mrb[0].mxu0
      %v4665 = vadd.f32 0.0, %v4664
      %v4666 = vpop.f32.mrb[0].mxu0
      %4667 = vmatprep.mubr.f32.mxu0 0.0
      %4668 = vmatmul.mubr.f32.gmra.mrb[0].mxu0 %v4474
      %v4669 = vpop.f32.mrb[0].mxu0
      %v4670 = vadd.f32 0.0, %v4669
      %v4671 = vpop.f32.mrb[0].mxu0
      %4672 = vmatprep.mubr.f32.mxu0 0.0
      %4673 = vmatmul.mubr.f32.gmra.mrb[0].mxu0 %v4477
      %v4674 = vpop.f32.mrb[0].mxu0
      %v4675 = vadd.f32 0.0, %v4674
      %v4676 = vpop.f32.mrb[0].mxu0
      %4677 = vmatprep.mubr.f32.mxu0 0.0
      %4678 = vmatmul.mubr.f32.gmra.mrb[0].mxu0 %v4480
      %v4679 = vpop.f32.mrb[0].mxu0
      %v4680 = vadd.f32 0.0, %v4679
      %v4681 = vpop.f32.mrb[0].mxu0
      %4682 = vmatprep.mubr.f32.mxu0 0.0
      %4683 = vmatmul.mubr.f32.gmra.mrb[0].mxu0 %v4483
      %v4684 = vpop.f32.mrb[0].mxu0
      %v4685 = vadd.f32 0.0, %v4684
      %v4686 = vpop.f32.mrb[0].mxu0
      %4687 = vmatprep.mubr.f32.mxu0 0.0
      %4688 = vmatmul.mubr.f32.gmra.mrb[0].mxu0 %v4486
      %v4689 = vpop.f32.mrb[0].mxu0
      %v4690 = vadd.f32 0.0, %v4689
      %v4691 = vpop.f32.mrb[0].mxu0
      %4692 = vmatprep.mubr.f32.mxu0 0.0
      %4693 = vmatmul.mubr.f32.gmra.mrb[0].mxu0 %v4489
      %v4694 = vpop.f32.mrb[0].mxu0
      %v4695 = vadd.f32 0.0, %v4694
      %v4696 = vpop.f32.mrb[0].mxu0
      %4697 = vmatprep.mubr.f32.mxu0 0.0
      %4698 = vmatmul.mubr.f32.gmra.mrb[0].mxu0 %v4492
      %v4699 = vpop.f32.mrb[0].mxu0
      %v4700 = vadd.f32 0.0, %v4699
      %v4701 = vpop.f32.mrb[0].mxu0
      %4702 = vmatprep.mubr.f32.mxu0 0.0
      %4703 = vmatmul.mubr.f32.gmra.mrb[0].mxu0 %v4495
      %v4704 = vpop.f32.mrb[0].mxu0
      %v4705 = vadd.f32 0.0, %v4704
      %v4706 = vpop.f32.mrb[0].mxu0
      %4707 = vmatprep.mubr.f32.mxu0 0.0
      %4708 = vmatmul.mubr.f32.gmra.mrb[0].mxu0 %v4498
      %v4709 = vpop.f32.mrb[0].mxu0
      %v4710 = vadd.f32 0.0, %v4709
      %v4711 = vpop.f32.mrb[0].mxu0
      %4712 = vmatprep.mubr.f32.mxu0 0.0
      %4713 = vmatmul.mubr.f32.gmra.mrb[0].mxu0 %v4501
      %v4714 = vpop.f32.mrb[0].mxu0
      %v4715 = vadd.f32 0.0, %v4714
      %v4716 = vpop.f32.mrb[0].mxu0
      %4717 = vmatprep.mubr.f32.mxu0 0.0
      %4718 = vmatmul.mubr.f32.gmra.mrb[0].mxu0 %v4504
      %v4719 = vpop.f32.mrb[0].mxu0
      %v4720 = vadd.f32 0.0, %v4719
      %v4721 = vpop.f32.mrb[0].mxu0
      %4722 = vmatprep.mubr.f32.mxu0 0.0
      %4723 = vmatmul.mubr.f32.gmra.mrb[0].mxu0 %v4507
      %v4724 = vpop.f32.mrb[0].mxu0
      %v4725 = vadd.f32 0.0, %v4724
      %v4726 = vpop.f32.mrb[0].mxu0
      %4727 = vmatprep.mubr.f32.mxu0 0.0
      %4728 = vmatmul.mubr.f32.gmra.mrb[0].mxu0 %v4510
      %v4729 = vpop.f32.mrb[0].mxu0
      %v4730 = vadd.f32 0.0, %v4729
      %v4731 = vpop.f32.mrb[0].mxu0
      %4732 = vmatprep.mubr.f32.mxu0 0.0
      %4733 = vmatmul.mubr.f32.gmra.mrb[0].mxu0 %v4513
      %v4734 = vpop.f32.mrb[0].mxu0
      %v4735 = vadd.f32 0.0, %v4734
      %v4736 = vpop.f32.mrb[0].mxu0
      %4737 = vmatprep.mubr.f32.mxu0 0.0
      %4738 = vmatmul.mubr.f32.gmra.mrb[0].mxu0 %v4516
      %v4739 = vpop.f32.mrb[0].mxu0
      %v4740 = vadd.f32 0.0, %v4739
      %v4741 = vpop.f32.mrb[0].mxu0
      %4742 = vdwg.mxu0
      %v4744 = vsel %vm4421, %v4349, 0
      %v4747 = vsel %vm4421, %v4350, 0
      %v4750 = vsel %vm4421, %v4351, 0
      %v4753 = vsel %vm4421, %v4352, 0
      %v4756 = vsel %vm4421, %v4353, 0
      %v4759 = vsel %vm4421, %v4354, 0
      %v4762 = vsel %vm4421, %v4355, 0
      %v4765 = vsel %vm4421, %v4356, 0
      %v4768 = vsel %vm4421, %v4357, 0
      %v4771 = vsel %vm4421, %v4358, 0
      %v4774 = vsel %vm4421, %v4359, 0
      %v4777 = vsel %vm4421, %v4360, 0
      %v4780 = vsel %vm4421, %v4361, 0
      %v4783 = vsel %vm4421, %v4362, 0
      %v4786 = vsel %vm4421, %v4363, 0
      %v4789 = vsel %vm4421, %v4364, 0
      %v4792 = vsel %vm4421, %v4365, 0
      %v4795 = vsel %vm4421, %v4366, 0
      %v4798 = vsel %vm4421, %v4367, 0
      %v4801 = vsel %vm4421, %v4368, 0
      %v4804 = vsel %vm4421, %v4369, 0
      %v4807 = vsel %vm4421, %v4370, 0
      %v4810 = vsel %vm4421, %v4371, 0
      %v4813 = vsel %vm4421, %v4372, 0
      %v4816 = vsel %vm4421, %v4373, 0
      %v4819 = vsel %vm4421, %v4374, 0
      %v4822 = vsel %vm4421, %v4375, 0
      %v4825 = vsel %vm4421, %v4376, 0
      %v4828 = vsel %vm4421, %v4377, 0
      %v4831 = vsel %vm4421, %v4378, 0
      %v4834 = vsel %vm4421, %v4379, 0
      %v4837 = vsel %vm4421, %v4380, 0
      %4839 = vmatprep.subr.mxu0 0.0
      %4840 = vmatpush1.msra.mxu0 %v4381
      %4841 = vmatprep.subr.mxu0 0.0
      %4842 = vmatpush1.msra.mxu0 %v4382
      %4843 = vmatprep.subr.mxu0 0.0
      %4844 = vmatpush1.msra.mxu0 %v4383
      %4845 = vmatprep.subr.mxu0 0.0
      %4846 = vmatpush1.msra.mxu0 0.0
      %4847 = vmatprep.subr.mxu0 0.0
      %4848 = vmatpush1.msra.mxu0 0.0
      %4849 = vmatprep.subr.mxu0 0.0
      %4850 = vmatpush1.msra.mxu0 0.0
      %4851 = vmatprep.subr.mxu0 0.0
      %4852 = vmatpush1.msra.mxu0 0.0
      %4853 = vmatprep.subr.mxu0 0.0
      %4854 = vmatpush1.msra.mxu0 0.0
      %4855 = vmatprep.subr.mxu0 0.0
      %4856 = vmatpush1.msra.mxu0 0.0
      %4857 = vmatprep.subr.mxu0 0.0
      %4858 = vmatpush1.msra.mxu0 0.0
      %4859 = vmatprep.subr.mxu0 0.0
      %4860 = vmatpush1.msra.mxu0 0.0
      %4861 = vmatprep.subr.mxu0 0.0
      %4862 = vmatpush1.msra.mxu0 0.0
      %4863 = vmatprep.subr.mxu0 0.0
      %4864 = vmatpush1.msra.mxu0 0.0
      %4865 = vmatprep.subr.mxu0 0.0
      %4866 = vmatpush1.msra.mxu0 0.0
      %4867 = vmatprep.subr.mxu0 0.0
      %4868 = vmatpush1.msra.mxu0 0.0
      %4869 = vmatprep.subr.mxu0 0.0
      %4870 = vmatpush1.msra.mxu0 0.0
      %4871 = vmatprep.subr.mxu0 0.0
      %4872 = vmatpush1.msra.mxu0 0.0
      %4873 = vmatprep.subr.mxu0 0.0
      %4874 = vmatpush1.msra.mxu0 0.0
      %4875 = vmatprep.subr.mxu0 0.0
      %4876 = vmatpush1.msra.mxu0 0.0
      %4877 = vmatprep.subr.mxu0 0.0
      %4878 = vmatpush1.msra.mxu0 0.0
      %4879 = vmatprep.subr.mxu0 0.0
      %4880 = vmatpush1.msra.mxu0 0.0
      %4881 = vmatprep.subr.mxu0 0.0
      %4882 = vmatpush1.msra.mxu0 0.0
      %4883 = vmatprep.subr.mxu0 0.0
      %4884 = vmatpush1.msra.mxu0 0.0
      %4885 = vmatprep.subr.mxu0 0.0
      %4886 = vmatpush1.msra.mxu0 0.0
      %4887 = vmatprep.subr.mxu0 0.0
      %4888 = vmatpush1.msra.mxu0 0.0
      %4889 = vmatprep.subr.mxu0 0.0
      %4890 = vmatpush1.msra.mxu0 0.0
      %4891 = vmatprep.subr.mxu0 0.0
      %4892 = vmatpush1.msra.mxu0 0.0
      %4893 = vmatprep.subr.mxu0 0.0
      %4894 = vmatpush1.msra.mxu0 0.0
      %4895 = vmatprep.subr.mxu0 0.0
      %4896 = vmatpush1.msra.mxu0 0.0
      %4897 = vmatprep.subr.mxu0 0.0
      %4898 = vmatpush1.msra.mxu0 0.0
      %4899 = vmatprep.subr.mxu0 0.0
      %4900 = vmatpush1.msra.mxu0 0.0
      %4901 = vmatprep.subr.mxu0 0.0
      %4902 = vmatpush1.msra.mxu0 0.0
      %4903 = vmatprep.mubr.f32.mxu0 0.0
      %4904 = vmatmul.mubr.f32.gmra.mrb[0].mxu0 %v4744
      %v4905 = vpop.f32.mrb[0].mxu0
      %v4906 = vadd.f32 %v4585, %v4905
      %v4907 = vpop.f32.mrb[0].mxu0
      %4908 = vmatprep.mubr.f32.mxu0 0.0
      %4909 = vmatmul.mubr.f32.gmra.mrb[0].mxu0 %v4747
      %v4910 = vpop.f32.mrb[0].mxu0
      %v4911 = vadd.f32 %v4590, %v4910
      %v4912 = vpop.f32.mrb[0].mxu0
      %4913 = vmatprep.mubr.f32.mxu0 0.0
      %4914 = vmatmul.mubr.f32.gmra.mrb[0].mxu0 %v4750
      %v4915 = vpop.f32.mrb[0].mxu0
      %v4916 = vadd.f32 %v4595, %v4915
      %v4917 = vpop.f32.mrb[0].mxu0
      %4918 = vmatprep.mubr.f32.mxu0 0.0
      %4919 = vmatmul.mubr.f32.gmra.mrb[0].mxu0 %v4753
      %v4920 = vpop.f32.mrb[0].mxu0
      %v4921 = vadd.f32 %v4600, %v4920
      %v4922 = vpop.f32.mrb[0].mxu0
      %4923 = vmatprep.mubr.f32.mxu0 0.0
      %4924 = vmatmul.mubr.f32.gmra.mrb[0].mxu0 %v4756
      %v4925 = vpop.f32.mrb[0].mxu0
      %v4926 = vadd.f32 %v4605, %v4925
      %v4927 = vpop.f32.mrb[0].mxu0
      %4928 = vmatprep.mubr.f32.mxu0 0.0
      %4929 = vmatmul.mubr.f32.gmra.mrb[0].mxu0 %v4759
      %v4930 = vpop.f32.mrb[0].mxu0
      %v4931 = vadd.f32 %v4610, %v4930
      %v4932 = vpop.f32.mrb[0].mxu0
      %4933 = vmatprep.mubr.f32.mxu0 0.0
      %4934 = vmatmul.mubr.f32.gmra.mrb[0].mxu0 %v4762
      %v4935 = vpop.f32.mrb[0].mxu0
      %v4936 = vadd.f32 %v4615, %v4935
      %v4937 = vpop.f32.mrb[0].mxu0
      %4938 = vmatprep.mubr.f32.mxu0 0.0
      %4939 = vmatmul.mubr.f32.gmra.mrb[0].mxu0 %v4765
      %v4940 = vpop.f32.mrb[0].mxu0
      %v4941 = vadd.f32 %v4620, %v4940
      %v4942 = vpop.f32.mrb[0].mxu0
      %4943 = vmatprep.mubr.f32.mxu0 0.0
      %4944 = vmatmul.mubr.f32.gmra.mrb[0].mxu0 %v4768
      %v4945 = vpop.f32.mrb[0].mxu0
      %v4946 = vadd.f32 %v4625, %v4945
      %v4947 = vpop.f32.mrb[0].mxu0
      %4948 = vmatprep.mubr.f32.mxu0 0.0
      %4949 = vmatmul.mubr.f32.gmra.mrb[0].mxu0 %v4771
      %v4950 = vpop.f32.mrb[0].mxu0
      %v4951 = vadd.f32 %v4630, %v4950
      %v4952 = vpop.f32.mrb[0].mxu0
      %4953 = vmatprep.mubr.f32.mxu0 0.0
      %4954 = vmatmul.mubr.f32.gmra.mrb[0].mxu0 %v4774
      %v4955 = vpop.f32.mrb[0].mxu0
      %v4956 = vadd.f32 %v4635, %v4955
      %v4957 = vpop.f32.mrb[0].mxu0
      %4958 = vmatprep.mubr.f32.mxu0 0.0
      %4959 = vmatmul.mubr.f32.gmra.mrb[0].mxu0 %v4777
      %v4960 = vpop.f32.mrb[0].mxu0
      %v4961 = vadd.f32 %v4640, %v4960
      %v4962 = vpop.f32.mrb[0].mxu0
      %4963 = vmatprep.mubr.f32.mxu0 0.0
      %4964 = vmatmul.mubr.f32.gmra.mrb[0].mxu0 %v4780
      %v4965 = vpop.f32.mrb[0].mxu0
      %v4966 = vadd.f32 %v4645, %v4965
      %v4967 = vpop.f32.mrb[0].mxu0
      %4968 = vmatprep.mubr.f32.mxu0 0.0
      %4969 = vmatmul.mubr.f32.gmra.mrb[0].mxu0 %v4783
      %v4970 = vpop.f32.mrb[0].mxu0
      %v4971 = vadd.f32 %v4650, %v4970
      %v4972 = vpop.f32.mrb[0].mxu0
      %4973 = vmatprep.mubr.f32.mxu0 0.0
      %4974 = vmatmul.mubr.f32.gmra.mrb[0].mxu0 %v4786
      %v4975 = vpop.f32.mrb[0].mxu0
      %v4976 = vadd.f32 %v4655, %v4975
      %v4977 = vpop.f32.mrb[0].mxu0
      %4978 = vmatprep.mubr.f32.mxu0 0.0
      %4979 = vmatmul.mubr.f32.gmra.mrb[0].mxu0 %v4789
      %v4980 = vpop.f32.mrb[0].mxu0
      %v4981 = vadd.f32 %v4660, %v4980
      %v4982 = vpop.f32.mrb[0].mxu0
      %4983 = vmatprep.mubr.f32.mxu0 0.0
      %4984 = vmatmul.mubr.f32.gmra.mrb[0].mxu0 %v4792
      %v4985 = vpop.f32.mrb[0].mxu0
      %v4986 = vadd.f32 %v4665, %v4985
      %v4987 = vpop.f32.mrb[0].mxu0
      %4988 = vmatprep.mubr.f32.mxu0 0.0
      %4989 = vmatmul.mubr.f32.gmra.mrb[0].mxu0 %v4795
      %v4990 = vpop.f32.mrb[0].mxu0
      %v4991 = vadd.f32 %v4670, %v4990
      %v4992 = vpop.f32.mrb[0].mxu0
      %4993 = vmatprep.mubr.f32.mxu0 0.0
      %4994 = vmatmul.mubr.f32.gmra.mrb[0].mxu0 %v4798
      %v4995 = vpop.f32.mrb[0].mxu0
      %v4996 = vadd.f32 %v4675, %v4995
      %v4997 = vpop.f32.mrb[0].mxu0
      %4998 = vmatprep.mubr.f32.mxu0 0.0
      %4999 = vmatmul.mubr.f32.gmra.mrb[0].mxu0 %v4801
      %v5000 = vpop.f32.mrb[0].mxu0
      %v5001 = vadd.f32 %v4680, %v5000
      %v5002 = vpop.f32.mrb[0].mxu0
      %5003 = vmatprep.mubr.f32.mxu0 0.0
      %5004 = vmatmul.mubr.f32.gmra.mrb[0].mxu0 %v4804
      %v5005 = vpop.f32.mrb[0].mxu0
      %v5006 = vadd.f32 %v4685, %v5005
      %v5007 = vpop.f32.mrb[0].mxu0
      %5008 = vmatprep.mubr.f32.mxu0 0.0
      %5009 = vmatmul.mubr.f32.gmra.mrb[0].mxu0 %v4807
      %v5010 = vpop.f32.mrb[0].mxu0
      %v5011 = vadd.f32 %v4690, %v5010
      %v5012 = vpop.f32.mrb[0].mxu0
      %5013 = vmatprep.mubr.f32.mxu0 0.0
      %5014 = vmatmul.mubr.f32.gmra.mrb[0].mxu0 %v4810
      %v5015 = vpop.f32.mrb[0].mxu0
      %v5016 = vadd.f32 %v4695, %v5015
      %v5017 = vpop.f32.mrb[0].mxu0
      %5018 = vmatprep.mubr.f32.mxu0 0.0
      %5019 = vmatmul.mubr.f32.gmra.mrb[0].mxu0 %v4813
      %v5020 = vpop.f32.mrb[0].mxu0
      %v5021 = vadd.f32 %v4700, %v5020
      %v5022 = vpop.f32.mrb[0].mxu0
      %5023 = vmatprep.mubr.f32.mxu0 0.0
      %5024 = vmatmul.mubr.f32.gmra.mrb[0].mxu0 %v4816
      %v5025 = vpop.f32.mrb[0].mxu0
      %v5026 = vadd.f32 %v4705, %v5025
      %v5027 = vpop.f32.mrb[0].mxu0
      %5028 = vmatprep.mubr.f32.mxu0 0.0
      %5029 = vmatmul.mubr.f32.gmra.mrb[0].mxu0 %v4819
      %v5030 = vpop.f32.mrb[0].mxu0
      %v5031 = vadd.f32 %v4710, %v5030
      %v5032 = vpop.f32.mrb[0].mxu0
      %5033 = vmatprep.mubr.f32.mxu0 0.0
      %5034 = vmatmul.mubr.f32.gmra.mrb[0].mxu0 %v4822
      %v5035 = vpop.f32.mrb[0].mxu0
      %v5036 = vadd.f32 %v4715, %v5035
      %v5037 = vpop.f32.mrb[0].mxu0
      %5038 = vmatprep.mubr.f32.mxu0 0.0
      %5039 = vmatmul.mubr.f32.gmra.mrb[0].mxu0 %v4825
      %v5040 = vpop.f32.mrb[0].mxu0
      %v5041 = vadd.f32 %v4720, %v5040
      %v5042 = vpop.f32.mrb[0].mxu0
      %5043 = vmatprep.mubr.f32.mxu0 0.0
      %5044 = vmatmul.mubr.f32.gmra.mrb[0].mxu0 %v4828
      %v5045 = vpop.f32.mrb[0].mxu0
      %v5046 = vadd.f32 %v4725, %v5045
      %v5047 = vpop.f32.mrb[0].mxu0
      %5048 = vmatprep.mubr.f32.mxu0 0.0
      %5049 = vmatmul.mubr.f32.gmra.mrb[0].mxu0 %v4831
      %v5050 = vpop.f32.mrb[0].mxu0
      %v5051 = vadd.f32 %v4730, %v5050
      %v5052 = vpop.f32.mrb[0].mxu0
      %5053 = vmatprep.mubr.f32.mxu0 0.0
      %5054 = vmatmul.mubr.f32.gmra.mrb[0].mxu0 %v4834
      %v5055 = vpop.f32.mrb[0].mxu0
      %v5056 = vadd.f32 %v4735, %v5055
      %v5057 = vpop.f32.mrb[0].mxu0
      %5058 = vmatprep.mubr.f32.mxu0 0.0
      %5059 = vmatmul.mubr.f32.gmra.mrb[0].mxu0 %v4837
      %v5060 = vpop.f32.mrb[0].mxu0
      %v5061 = vadd.f32 %v4740, %v5060
      %v5062 = vpop.f32.mrb[0].mxu0
      %5063 = vdwg.mxu0
      %s5064 = scalar_lea.vmem [#allocation3], 32
      %v5065 = vld [vmem:[%s5064] sm:$0xff]
      %v5066 = vld [vmem:[%s5064 + $0x8] sm:$0xff]
      %v5067 = vld [vmem:[%s5064 + $0x10] sm:$0xff]
      %v5068 = vld [vmem:[%s5064 + $0x18] sm:$0xff]
      %v5069 = vld [vmem:[%s5064 + $0x20] sm:$0xff]
      %v5070 = vld [vmem:[%s5064 + $0x28] sm:$0xff]
      %v5071 = vld [vmem:[%s5064 + $0x30] sm:$0xff]
      %v5072 = vld [vmem:[%s5064 + $0x38] sm:$0xff]
      %v5073 = vld [vmem:[%s5064 + $0x40] sm:$0xff]
      %v5074 = vld [vmem:[%s5064 + $0x48] sm:$0xff]
      %v5075 = vld [vmem:[%s5064 + $0x50] sm:$0xff]
      %v5076 = vld [vmem:[%s5064 + $0x58] sm:$0xff]
      %v5077 = vld [vmem:[%s5064 + $0x60] sm:$0xff]
      %v5078 = vld [vmem:[%s5064 + $0x68] sm:$0xff]
      %v5079 = vld [vmem:[%s5064 + $0x70] sm:$0xff]
      %v5080 = vld [vmem:[%s5064 + $0x78] sm:$0xff]
      %v5081 = vld [vmem:[%s5064 + $0x80] sm:$0xff]
      %v5082 = vld [vmem:[%s5064 + $0x88] sm:$0xff]
      %v5083 = vld [vmem:[%s5064 + $0x90] sm:$0xff]
      %v5084 = vld [vmem:[%s5064 + $0x98] sm:$0xff]
      %v5085 = vld [vmem:[%s5064 + $0xa0] sm:$0xff]
      %v5086 = vld [vmem:[%s5064 + $0xa8] sm:$0xff]
      %v5087 = vld [vmem:[%s5064 + $0xb0] sm:$0xff]
      %v5088 = vld [vmem:[%s5064 + $0xb8] sm:$0xff]
      %v5089 = vld [vmem:[%s5064 + $0xc0] sm:$0xff]
      %v5090 = vld [vmem:[%s5064 + $0xc8] sm:$0xff]
      %v5091 = vld [vmem:[%s5064 + $0xd0] sm:$0xff]
      %v5092 = vld [vmem:[%s5064 + $0xd8] sm:$0xff]
      %v5093 = vld [vmem:[%s5064 + $0xe0] sm:$0xff]
      %v5094 = vld [vmem:[%s5064 + $0xe8] sm:$0xff]
      %v5095 = vld [vmem:[%s5064 + $0xf0] sm:$0xff]
      %v5096 = vld [vmem:[%s5064 + $0xf8] sm:$0xff]
      %s5097 = scalar_lea.vmem %s7, 48
      %v5098 = vld [vmem:[%s5097] sm:$0xff]
      %v5099 = vld [vmem:[%s5097 + $0x8] sm:$0xff]
      %v5100 = vld [vmem:[%s5097 + $0x10] sm:$0xff]
      %v5102 = vsel %vm4421, %v5065, 0
      %v5105 = vsel %vm4421, %v5066, 0
      %v5108 = vsel %vm4421, %v5067, 0
      %v5111 = vsel %vm4421, %v5068, 0
      %v5114 = vsel %vm4421, %v5069, 0
      %v5117 = vsel %vm4421, %v5070, 0
      %v5120 = vsel %vm4421, %v5071, 0
      %v5123 = vsel %vm4421, %v5072, 0
      %v5126 = vsel %vm4421, %v5073, 0
      %v5129 = vsel %vm4421, %v5074, 0
      %v5132 = vsel %vm4421, %v5075, 0
      %v5135 = vsel %vm4421, %v5076, 0
      %v5138 = vsel %vm4421, %v5077, 0
      %v5141 = vsel %vm4421, %v5078, 0
      %v5144 = vsel %vm4421, %v5079, 0
      %v5147 = vsel %vm4421, %v5080, 0
      %v5150 = vsel %vm4421, %v5081, 0
      %v5153 = vsel %vm4421, %v5082, 0
      %v5156 = vsel %vm4421, %v5083, 0
      %v5159 = vsel %vm4421, %v5084, 0
      %v5162 = vsel %vm4421, %v5085, 0
      %v5165 = vsel %vm4421, %v5086, 0
      %v5168 = vsel %vm4421, %v5087, 0
      %v5171 = vsel %vm4421, %v5088, 0
      %v5174 = vsel %vm4421, %v5089, 0
      %v5177 = vsel %vm4421, %v5090, 0
      %v5180 = vsel %vm4421, %v5091, 0
      %v5183 = vsel %vm4421, %v5092, 0
      %v5186 = vsel %vm4421, %v5093, 0
      %v5189 = vsel %vm4421, %v5094, 0
      %v5192 = vsel %vm4421, %v5095, 0
      %v5195 = vsel %vm4421, %v5096, 0
      %5197 = vmatprep.subr.mxu0 0.0
      %5198 = vmatpush1.msra.mxu0 %v5098
      %5199 = vmatprep.subr.mxu0 0.0
      %5200 = vmatpush1.msra.mxu0 %v5099
      %5201 = vmatprep.subr.mxu0 0.0
      %5202 = vmatpush1.msra.mxu0 %v5100
      %5203 = vmatprep.subr.mxu0 0.0
      %5204 = vmatpush1.msra.mxu0 0.0
      %5205 = vmatprep.subr.mxu0 0.0
      %5206 = vmatpush1.msra.mxu0 0.0
      %5207 = vmatprep.subr.mxu0 0.0
      %5208 = vmatpush1.msra.mxu0 0.0
      %5209 = vmatprep.subr.mxu0 0.0
      %5210 = vmatpush1.msra.mxu0 0.0
      %5211 = vmatprep.subr.mxu0 0.0
      %5212 = vmatpush1.msra.mxu0 0.0
      %5213 = vmatprep.subr.mxu0 0.0
      %5214 = vmatpush1.msra.mxu0 0.0
      %5215 = vmatprep.subr.mxu0 0.0
      %5216 = vmatpush1.msra.mxu0 0.0
      %5217 = vmatprep.subr.mxu0 0.0
      %5218 = vmatpush1.msra.mxu0 0.0
      %5219 = vmatprep.subr.mxu0 0.0
      %5220 = vmatpush1.msra.mxu0 0.0
      %5221 = vmatprep.subr.mxu0 0.0
      %5222 = vmatpush1.msra.mxu0 0.0
      %5223 = vmatprep.subr.mxu0 0.0
      %5224 = vmatpush1.msra.mxu0 0.0
      %5225 = vmatprep.subr.mxu0 0.0
      %5226 = vmatpush1.msra.mxu0 0.0
      %5227 = vmatprep.subr.mxu0 0.0
      %5228 = vmatpush1.msra.mxu0 0.0
      %5229 = vmatprep.subr.mxu0 0.0
      %5230 = vmatpush1.msra.mxu0 0.0
      %5231 = vmatprep.subr.mxu0 0.0
      %5232 = vmatpush1.msra.mxu0 0.0
      %5233 = vmatprep.subr.mxu0 0.0
      %5234 = vmatpush1.msra.mxu0 0.0
      %5235 = vmatprep.subr.mxu0 0.0
      %5236 = vmatpush1.msra.mxu0 0.0
      %5237 = vmatprep.subr.mxu0 0.0
      %5238 = vmatpush1.msra.mxu0 0.0
      %5239 = vmatprep.subr.mxu0 0.0
      %5240 = vmatpush1.msra.mxu0 0.0
      %5241 = vmatprep.subr.mxu0 0.0
      %5242 = vmatpush1.msra.mxu0 0.0
      %5243 = vmatprep.subr.mxu0 0.0
      %5244 = vmatpush1.msra.mxu0 0.0
      %5245 = vmatprep.subr.mxu0 0.0
      %5246 = vmatpush1.msra.mxu0 0.0
      %5247 = vmatprep.subr.mxu0 0.0
      %5248 = vmatpush1.msra.mxu0 0.0
      %5249 = vmatprep.subr.mxu0 0.0
      %5250 = vmatpush1.msra.mxu0 0.0
      %5251 = vmatprep.subr.mxu0 0.0
      %5252 = vmatpush1.msra.mxu0 0.0
      %5253 = vmatprep.subr.mxu0 0.0
      %5254 = vmatpush1.msra.mxu0 0.0
      %5255 = vmatprep.subr.mxu0 0.0
      %5256 = vmatpush1.msra.mxu0 0.0
      %5257 = vmatprep.subr.mxu0 0.0
      %5258 = vmatpush1.msra.mxu0 0.0
      %5259 = vmatprep.subr.mxu0 0.0
      %5260 = vmatpush1.msra.mxu0 0.0
      %5261 = vmatprep.mubr.f32.mxu0 0.0
      %5262 = vmatmul.mubr.f32.gmra.mrb[0].mxu0 %v5102
      %v5263 = vpop.f32.mrb[0].mxu0
      %v5264 = vadd.f32 0.0, %v5263
      %v5265 = vpop.f32.mrb[0].mxu0
      %5266 = vmatprep.mubr.f32.mxu0 0.0
      %5267 = vmatmul.mubr.f32.gmra.mrb[0].mxu0 %v5105
      %v5268 = vpop.f32.mrb[0].mxu0
      %v5269 = vadd.f32 0.0, %v5268
      %v5270 = vpop.f32.mrb[0].mxu0
      %5271 = vmatprep.mubr.f32.mxu0 0.0
      %5272 = vmatmul.mubr.f32.gmra.mrb[0].mxu0 %v5108
      %v5273 = vpop.f32.mrb[0].mxu0
      %v5274 = vadd.f32 0.0, %v5273
      %v5275 = vpop.f32.mrb[0].mxu0
      %5276 = vmatprep.mubr.f32.mxu0 0.0
      %5277 = vmatmul.mubr.f32.gmra.mrb[0].mxu0 %v5111
      %v5278 = vpop.f32.mrb[0].mxu0
      %v5279 = vadd.f32 0.0, %v5278
      %v5280 = vpop.f32.mrb[0].mxu0
      %5281 = vmatprep.mubr.f32.mxu0 0.0
      %5282 = vmatmul.mubr.f32.gmra.mrb[0].mxu0 %v5114
      %v5283 = vpop.f32.mrb[0].mxu0
      %v5284 = vadd.f32 0.0, %v5283
      %v5285 = vpop.f32.mrb[0].mxu0
      %5286 = vmatprep.mubr.f32.mxu0 0.0
      %5287 = vmatmul.mubr.f32.gmra.mrb[0].mxu0 %v5117
      %v5288 = vpop.f32.mrb[0].mxu0
      %v5289 = vadd.f32 0.0, %v5288
      %v5290 = vpop.f32.mrb[0].mxu0
      %5291 = vmatprep.mubr.f32.mxu0 0.0
      %5292 = vmatmul.mubr.f32.gmra.mrb[0].mxu0 %v5120
      %v5293 = vpop.f32.mrb[0].mxu0
      %v5294 = vadd.f32 0.0, %v5293
      %v5295 = vpop.f32.mrb[0].mxu0
      %5296 = vmatprep.mubr.f32.mxu0 0.0
      %5297 = vmatmul.mubr.f32.gmra.mrb[0].mxu0 %v5123
      %v5298 = vpop.f32.mrb[0].mxu0
      %v5299 = vadd.f32 0.0, %v5298
      %v5300 = vpop.f32.mrb[0].mxu0
      %5301 = vmatprep.mubr.f32.mxu0 0.0
      %5302 = vmatmul.mubr.f32.gmra.mrb[0].mxu0 %v5126
      %v5303 = vpop.f32.mrb[0].mxu0
      %v5304 = vadd.f32 0.0, %v5303
      %v5305 = vpop.f32.mrb[0].mxu0
      %5306 = vmatprep.mubr.f32.mxu0 0.0
      %5307 = vmatmul.mubr.f32.gmra.mrb[0].mxu0 %v5129
      %v5308 = vpop.f32.mrb[0].mxu0
      %v5309 = vadd.f32 0.0, %v5308
      %v5310 = vpop.f32.mrb[0].mxu0
      %5311 = vmatprep.mubr.f32.mxu0 0.0
      %5312 = vmatmul.mubr.f32.gmra.mrb[0].mxu0 %v5132
      %v5313 = vpop.f32.mrb[0].mxu0
      %v5314 = vadd.f32 0.0, %v5313
      %v5315 = vpop.f32.mrb[0].mxu0
      %5316 = vmatprep.mubr.f32.mxu0 0.0
      %5317 = vmatmul.mubr.f32.gmra.mrb[0].mxu0 %v5135
      %v5318 = vpop.f32.mrb[0].mxu0
      %v5319 = vadd.f32 0.0, %v5318
      %v5320 = vpop.f32.mrb[0].mxu0
      %5321 = vmatprep.mubr.f32.mxu0 0.0
      %5322 = vmatmul.mubr.f32.gmra.mrb[0].mxu0 %v5138
      %v5323 = vpop.f32.mrb[0].mxu0
      %v5324 = vadd.f32 0.0, %v5323
      %v5325 = vpop.f32.mrb[0].mxu0
      %5326 = vmatprep.mubr.f32.mxu0 0.0
      %5327 = vmatmul.mubr.f32.gmra.mrb[0].mxu0 %v5141
      %v5328 = vpop.f32.mrb[0].mxu0
      %v5329 = vadd.f32 0.0, %v5328
      %v5330 = vpop.f32.mrb[0].mxu0
      %5331 = vmatprep.mubr.f32.mxu0 0.0
      %5332 = vmatmul.mubr.f32.gmra.mrb[0].mxu0 %v5144
      %v5333 = vpop.f32.mrb[0].mxu0
      %v5334 = vadd.f32 0.0, %v5333
      %v5335 = vpop.f32.mrb[0].mxu0
      %5336 = vmatprep.mubr.f32.mxu0 0.0
      %5337 = vmatmul.mubr.f32.gmra.mrb[0].mxu0 %v5147
      %v5338 = vpop.f32.mrb[0].mxu0
      %v5339 = vadd.f32 0.0, %v5338
      %v5340 = vpop.f32.mrb[0].mxu0
      %5341 = vmatprep.mubr.f32.mxu0 0.0
      %5342 = vmatmul.mubr.f32.gmra.mrb[0].mxu0 %v5150
      %v5343 = vpop.f32.mrb[0].mxu0
      %v5344 = vadd.f32 0.0, %v5343
      %v5345 = vpop.f32.mrb[0].mxu0
      %5346 = vmatprep.mubr.f32.mxu0 0.0
      %5347 = vmatmul.mubr.f32.gmra.mrb[0].mxu0 %v5153
      %v5348 = vpop.f32.mrb[0].mxu0
      %v5349 = vadd.f32 0.0, %v5348
      %v5350 = vpop.f32.mrb[0].mxu0
      %5351 = vmatprep.mubr.f32.mxu0 0.0
      %5352 = vmatmul.mubr.f32.gmra.mrb[0].mxu0 %v5156
      %v5353 = vpop.f32.mrb[0].mxu0
      %v5354 = vadd.f32 0.0, %v5353
      %v5355 = vpop.f32.mrb[0].mxu0
      %5356 = vmatprep.mubr.f32.mxu0 0.0
      %5357 = vmatmul.mubr.f32.gmra.mrb[0].mxu0 %v5159
      %v5358 = vpop.f32.mrb[0].mxu0
      %v5359 = vadd.f32 0.0, %v5358
      %v5360 = vpop.f32.mrb[0].mxu0
      %5361 = vmatprep.mubr.f32.mxu0 0.0
      %5362 = vmatmul.mubr.f32.gmra.mrb[0].mxu0 %v5162
      %v5363 = vpop.f32.mrb[0].mxu0
      %v5364 = vadd.f32 0.0, %v5363
      %v5365 = vpop.f32.mrb[0].mxu0
      %5366 = vmatprep.mubr.f32.mxu0 0.0
      %5367 = vmatmul.mubr.f32.gmra.mrb[0].mxu0 %v5165
      %v5368 = vpop.f32.mrb[0].mxu0
      %v5369 = vadd.f32 0.0, %v5368
      %v5370 = vpop.f32.mrb[0].mxu0
      %5371 = vmatprep.mubr.f32.mxu0 0.0
      %5372 = vmatmul.mubr.f32.gmra.mrb[0].mxu0 %v5168
      %v5373 = vpop.f32.mrb[0].mxu0
      %v5374 = vadd.f32 0.0, %v5373
      %v5375 = vpop.f32.mrb[0].mxu0
      %5376 = vmatprep.mubr.f32.mxu0 0.0
      %5377 = vmatmul.mubr.f32.gmra.mrb[0].mxu0 %v5171
      %v5378 = vpop.f32.mrb[0].mxu0
      %v5379 = vadd.f32 0.0, %v5378
      %v5380 = vpop.f32.mrb[0].mxu0
      %5381 = vmatprep.mubr.f32.mxu0 0.0
      %5382 = vmatmul.mubr.f32.gmra.mrb[0].mxu0 %v5174
      %v5383 = vpop.f32.mrb[0].mxu0
      %v5384 = vadd.f32 0.0, %v5383
      %v5385 = vpop.f32.mrb[0].mxu0
      %5386 = vmatprep.mubr.f32.mxu0 0.0
      %5387 = vmatmul.mubr.f32.gmra.mrb[0].mxu0 %v5177
      %v5388 = vpop.f32.mrb[0].mxu0
      %v5389 = vadd.f32 0.0, %v5388
      %v5390 = vpop.f32.mrb[0].mxu0
      %5391 = vmatprep.mubr.f32.mxu0 0.0
      %5392 = vmatmul.mubr.f32.gmra.mrb[0].mxu0 %v5180
      %v5393 = vpop.f32.mrb[0].mxu0
      %v5394 = vadd.f32 0.0, %v5393
      %v5395 = vpop.f32.mrb[0].mxu0
      %5396 = vmatprep.mubr.f32.mxu0 0.0
      %5397 = vmatmul.mubr.f32.gmra.mrb[0].mxu0 %v5183
      %v5398 = vpop.f32.mrb[0].mxu0
      %v5399 = vadd.f32 0.0, %v5398
      %v5400 = vpop.f32.mrb[0].mxu0
      %5401 = vmatprep.mubr.f32.mxu0 0.0
      %5402 = vmatmul.mubr.f32.gmra.mrb[0].mxu0 %v5186
      %v5403 = vpop.f32.mrb[0].mxu0
      %v5404 = vadd.f32 0.0, %v5403
      %v5405 = vpop.f32.mrb[0].mxu0
      %5406 = vmatprep.mubr.f32.mxu0 0.0
      %5407 = vmatmul.mubr.f32.gmra.mrb[0].mxu0 %v5189
      %v5408 = vpop.f32.mrb[0].mxu0
      %v5409 = vadd.f32 0.0, %v5408
      %v5410 = vpop.f32.mrb[0].mxu0
      %5411 = vmatprep.mubr.f32.mxu0 0.0
      %5412 = vmatmul.mubr.f32.gmra.mrb[0].mxu0 %v5192
      %v5413 = vpop.f32.mrb[0].mxu0
      %v5414 = vadd.f32 0.0, %v5413
      %v5415 = vpop.f32.mrb[0].mxu0
      %5416 = vmatprep.mubr.f32.mxu0 0.0
      %5417 = vmatmul.mubr.f32.gmra.mrb[0].mxu0 %v5195
      %v5418 = vpop.f32.mrb[0].mxu0
      %v5419 = vadd.f32 0.0, %v5418
      %v5420 = vpop.f32.mrb[0].mxu0
      %5421 = vdwg.mxu0
      %v5422 = vadd.f32 %v4906, %v5264
      %v5423 = vadd.f32 %v4911, %v5269
      %v5424 = vadd.f32 %v4916, %v5274
      %v5425 = vadd.f32 %v4921, %v5279
      %v5426 = vadd.f32 %v4926, %v5284
      %v5427 = vadd.f32 %v4931, %v5289
      %v5428 = vadd.f32 %v4936, %v5294
      %v5429 = vadd.f32 %v4941, %v5299
      %v5430 = vadd.f32 %v4946, %v5304
      %v5431 = vadd.f32 %v4951, %v5309
      %v5432 = vadd.f32 %v4956, %v5314
      %v5433 = vadd.f32 %v4961, %v5319
      %v5434 = vadd.f32 %v4966, %v5324
      %v5435 = vadd.f32 %v4971, %v5329
      %v5436 = vadd.f32 %v4976, %v5334
      %v5437 = vadd.f32 %v4981, %v5339
      %v5438 = vadd.f32 %v4986, %v5344
      %v5439 = vadd.f32 %v4991, %v5349
      %v5440 = vadd.f32 %v4996, %v5354
      %v5441 = vadd.f32 %v5001, %v5359
      %v5442 = vadd.f32 %v5006, %v5364
      %v5443 = vadd.f32 %v5011, %v5369
      %v5444 = vadd.f32 %v5016, %v5374
      %v5445 = vadd.f32 %v5021, %v5379
      %v5446 = vadd.f32 %v5026, %v5384
      %v5447 = vadd.f32 %v5031, %v5389
      %v5448 = vadd.f32 %v5036, %v5394
      %v5449 = vadd.f32 %v5041, %v5399
      %v5450 = vadd.f32 %v5046, %v5404
      %v5451 = vadd.f32 %v5051, %v5409
      %v5452 = vadd.f32 %v5056, %v5414
      %v5453 = vadd.f32 %v5061, %v5419
      %v5454 = vld [vmem:[%s8] sm:$0x1]
      %v5456 = vlaneseq
      %v5457 = vshrl.u32 %v5456, 7
      %v5458 = vsub.s32 0, %v5457
      %v5459 = vrot.slane %v5454, %v5458
      %v5461 = vadd.f32 %v5422, %v5459
      %v5462 = vadd.f32 %v5423, %v5459
      %v5463 = vadd.f32 %v5424, %v5459
      %v5464 = vadd.f32 %v5425, %v5459
      %v5465 = vadd.f32 %v5426, %v5459
      %v5466 = vadd.f32 %v5427, %v5459
      %v5467 = vadd.f32 %v5428, %v5459
      %v5468 = vadd.f32 %v5429, %v5459
      %v5469 = vadd.f32 %v5430, %v5459
      %v5470 = vadd.f32 %v5431, %v5459
      %v5471 = vadd.f32 %v5432, %v5459
      %v5472 = vadd.f32 %v5433, %v5459
      %v5473 = vadd.f32 %v5434, %v5459
      %v5474 = vadd.f32 %v5435, %v5459
      %v5475 = vadd.f32 %v5436, %v5459
      %v5476 = vadd.f32 %v5437, %v5459
      %v5477 = vadd.f32 %v5438, %v5459
      %v5478 = vadd.f32 %v5439, %v5459
      %v5479 = vadd.f32 %v5440, %v5459
      %v5480 = vadd.f32 %v5441, %v5459
      %v5481 = vadd.f32 %v5442, %v5459
      %v5482 = vadd.f32 %v5443, %v5459
      %v5483 = vadd.f32 %v5444, %v5459
      %v5484 = vadd.f32 %v5445, %v5459
      %v5485 = vadd.f32 %v5446, %v5459
      %v5486 = vadd.f32 %v5447, %v5459
      %v5487 = vadd.f32 %v5448, %v5459
      %v5488 = vadd.f32 %v5449, %v5459
      %v5489 = vadd.f32 %v5450, %v5459
      %v5490 = vadd.f32 %v5451, %v5459
      %v5491 = vadd.f32 %v5452, %v5459
      %v5492 = vadd.f32 %v5453, %v5459
      %v5493 = vmax.f32 %v5461, 0.0
      %v5494 = vmax.f32 %v5462, 0.0
      %v5495 = vmax.f32 %v5463, 0.0
      %v5496 = vmax.f32 %v5464, 0.0
      %v5497 = vmax.f32 %v5465, 0.0
      %v5498 = vmax.f32 %v5466, 0.0
      %v5499 = vmax.f32 %v5467, 0.0
      %v5500 = vmax.f32 %v5468, 0.0
      %v5501 = vmax.f32 %v5469, 0.0
      %v5502 = vmax.f32 %v5470, 0.0
      %v5503 = vmax.f32 %v5471, 0.0
      %v5504 = vmax.f32 %v5472, 0.0
      %v5505 = vmax.f32 %v5473, 0.0
      %v5506 = vmax.f32 %v5474, 0.0
      %v5507 = vmax.f32 %v5475, 0.0
      %v5508 = vmax.f32 %v5476, 0.0
      %v5509 = vmax.f32 %v5477, 0.0
      %v5510 = vmax.f32 %v5478, 0.0
      %v5511 = vmax.f32 %v5479, 0.0
      %v5512 = vmax.f32 %v5480, 0.0
      %v5513 = vmax.f32 %v5481, 0.0
      %v5514 = vmax.f32 %v5482, 0.0
      %v5515 = vmax.f32 %v5483, 0.0
      %v5516 = vmax.f32 %v5484, 0.0
      %v5517 = vmax.f32 %v5485, 0.0
      %v5518 = vmax.f32 %v5486, 0.0
      %v5519 = vmax.f32 %v5487, 0.0
      %v5520 = vmax.f32 %v5488, 0.0
      %v5521 = vmax.f32 %v5489, 0.0
      %v5522 = vmax.f32 %v5490, 0.0
      %v5523 = vmax.f32 %v5491, 0.0
      %v5524 = vmax.f32 %v5492, 0.0
      %s5525 = scalar_lea.vmem [#allocation4], 24
      %5526 = vst.msk [vmem:[%s5525 + $0x1] sm:$0xff] %vm407, %v5493
      %5527 = vst.msk [vmem:[%s5525 + $0x9] sm:$0xff] %vm407, %v5494
      %5528 = vst.msk [vmem:[%s5525 + $0x19] sm:$0xff] %vm407, %v5495
      %5529 = vst.msk [vmem:[%s5525 + $0x21] sm:$0xff] %vm407, %v5496
      %5530 = vst.msk [vmem:[%s5525 + $0x31] sm:$0xff] %vm407, %v5497
      %5531 = vst.msk [vmem:[%s5525 + $0x39] sm:$0xff] %vm407, %v5498
      %5532 = vst.msk [vmem:[%s5525 + $0x49] sm:$0xff] %vm407, %v5499
      %5533 = vst.msk [vmem:[%s5525 + $0x51] sm:$0xff] %vm407, %v5500
      %5534 = vst.msk [vmem:[%s5525 + $0x61] sm:$0xff] %vm407, %v5501
      %5535 = vst.msk [vmem:[%s5525 + $0x69] sm:$0xff] %vm407, %v5502
      %5536 = vst.msk [vmem:[%s5525 + $0x79] sm:$0xff] %vm407, %v5503
      %5537 = vst.msk [vmem:[%s5525 + $0x81] sm:$0xff] %vm407, %v5504
      %5538 = vst.msk [vmem:[%s5525 + $0x91] sm:$0xff] %vm407, %v5505
      %5539 = vst.msk [vmem:[%s5525 + $0x99] sm:$0xff] %vm407, %v5506
      %5540 = vst.msk [vmem:[%s5525 + $0xa9] sm:$0xff] %vm407, %v5507
      %5541 = vst.msk [vmem:[%s5525 + $0xb1] sm:$0xff] %vm407, %v5508
      %5542 = vst.msk [vmem:[%s5525 + $0xc1] sm:$0xff] %vm407, %v5509
      %5543 = vst.msk [vmem:[%s5525 + $0xc9] sm:$0xff] %vm407, %v5510
      %5544 = vst.msk [vmem:[%s5525 + $0xd9] sm:$0xff] %vm407, %v5511
      %5545 = vst.msk [vmem:[%s5525 + $0xe1] sm:$0xff] %vm407, %v5512
      %5546 = vst.msk [vmem:[%s5525 + $0xf1] sm:$0xff] %vm407, %v5513
      %5547 = vst.msk [vmem:[%s5525 + $0xf9] sm:$0xff] %vm407, %v5514
      %5548 = vst.msk [vmem:[%s5525 + $0x109] sm:$0xff] %vm407, %v5515
      %5549 = vst.msk [vmem:[%s5525 + $0x111] sm:$0xff] %vm407, %v5516
      %5550 = vst.msk [vmem:[%s5525 + $0x121] sm:$0xff] %vm407, %v5517
      %5551 = vst.msk [vmem:[%s5525 + $0x129] sm:$0xff] %vm407, %v5518
      %5552 = vst.msk [vmem:[%s5525 + $0x139] sm:$0xff] %vm407, %v5519
      %5553 = vst.msk [vmem:[%s5525 + $0x141] sm:$0xff] %vm407, %v5520
      %5554 = vst.msk [vmem:[%s5525 + $0x151] sm:$0xff] %vm407, %v5521
      %5555 = vst.msk [vmem:[%s5525 + $0x159] sm:$0xff] %vm407, %v5522
      %5556 = vst.msk [vmem:[%s5525 + $0x169] sm:$0xff] %vm407, %v5523
      %5557 = vst.msk [vmem:[%s5525 + $0x171] sm:$0xff] %vm407, %v5524
      %v5558 = vld [vmem:[#allocation4] sm:$0xff]
      %v5559 = vld [vmem:[#allocation4 + $0x8] sm:$0xff]
      %v5560 = vld [vmem:[#allocation4 + $0x18] sm:$0xff]
      %v5561 = vld [vmem:[#allocation4 + $0x20] sm:$0xff]
      %v5562 = vld [vmem:[#allocation4 + $0x30] sm:$0xff]
      %v5563 = vld [vmem:[#allocation4 + $0x38] sm:$0xff]
      %v5564 = vld [vmem:[#allocation4 + $0x48] sm:$0xff]
      %v5565 = vld [vmem:[#allocation4 + $0x50] sm:$0xff]
      %v5566 = vld [vmem:[#allocation4 + $0x60] sm:$0xff]
      %v5567 = vld [vmem:[#allocation4 + $0x68] sm:$0xff]
      %v5568 = vld [vmem:[#allocation4 + $0x78] sm:$0xff]
      %v5569 = vld [vmem:[#allocation4 + $0x80] sm:$0xff]
      %v5570 = vld [vmem:[#allocation4 + $0x90] sm:$0xff]
      %v5571 = vld [vmem:[#allocation4 + $0x98] sm:$0xff]
      %v5572 = vld [vmem:[#allocation4 + $0xa8] sm:$0xff]
      %v5573 = vld [vmem:[#allocation4 + $0xb0] sm:$0xff]
      %v5574 = vld [vmem:[#allocation4 + $0xc0] sm:$0xff]
      %v5575 = vld [vmem:[#allocation4 + $0xc8] sm:$0xff]
      %v5576 = vld [vmem:[#allocation4 + $0xd8] sm:$0xff]
      %v5577 = vld [vmem:[#allocation4 + $0xe0] sm:$0xff]
      %v5578 = vld [vmem:[#allocation4 + $0xf0] sm:$0xff]
      %v5579 = vld [vmem:[#allocation4 + $0xf8] sm:$0xff]
      %v5580 = vld [vmem:[#allocation4 + $0x108] sm:$0xff]
      %v5581 = vld [vmem:[#allocation4 + $0x110] sm:$0xff]
      %v5582 = vld [vmem:[#allocation4 + $0x120] sm:$0xff]
      %v5583 = vld [vmem:[#allocation4 + $0x128] sm:$0xff]
      %v5584 = vld [vmem:[#allocation4 + $0x138] sm:$0xff]
      %v5585 = vld [vmem:[#allocation4 + $0x140] sm:$0xff]
      %v5586 = vld [vmem:[#allocation4 + $0x150] sm:$0xff]
      %v5587 = vld [vmem:[#allocation4 + $0x158] sm:$0xff]
      %v5588 = vld [vmem:[#allocation4 + $0x168] sm:$0xff]
      %v5589 = vld [vmem:[#allocation4 + $0x170] sm:$0xff]
      %v5590 = vld [vmem:[#allocation4 + $0x180] sm:$0xff]
      %v5591 = vld [vmem:[#allocation4 + $0x188] sm:$0xff]
      %v5592 = vld [vmem:[#allocation4 + $0x198] sm:$0xff]
      %v5593 = vld [vmem:[#allocation4 + $0x1a0] sm:$0xff]
      %5594 = vst.msk [vmem:[#allocation5] sm:$0xff] %vm407, %v5558
      %5595 = vst.msk [vmem:[#allocation5 + $0x8] sm:$0xff] %vm407, %v5559
      %5596 = vst.msk [vmem:[#allocation5 + $0x10] sm:$0xff] %vm407, %v5560
      %5597 = vst.msk [vmem:[#allocation5 + $0x18] sm:$0xff] %vm407, %v5561
      %5598 = vst.msk [vmem:[#allocation5 + $0x20] sm:$0xff] %vm407, %v5562
      %5599 = vst.msk [vmem:[#allocation5 + $0x28] sm:$0xff] %vm407, %v5563
      %5600 = vst.msk [vmem:[#allocation5 + $0x30] sm:$0xff] %vm407, %v5564
      %5601 = vst.msk [vmem:[#allocation5 + $0x38] sm:$0xff] %vm407, %v5565
      %5602 = vst.msk [vmem:[#allocation5 + $0x40] sm:$0xff] %vm407, %v5566
      %5603 = vst.msk [vmem:[#allocation5 + $0x48] sm:$0xff] %vm407, %v5567
      %5604 = vst.msk [vmem:[#allocation5 + $0x50] sm:$0xff] %vm407, %v5568
      %5605 = vst.msk [vmem:[#allocation5 + $0x58] sm:$0xff] %vm407, %v5569
      %5606 = vst.msk [vmem:[#allocation5 + $0x60] sm:$0xff] %vm407, %v5570
      %5607 = vst.msk [vmem:[#allocation5 + $0x68] sm:$0xff] %vm407, %v5571
      %5608 = vst.msk [vmem:[#allocation5 + $0x70] sm:$0xff] %vm407, %v5572
      %5609 = vst.msk [vmem:[#allocation5 + $0x78] sm:$0xff] %vm407, %v5573
      %5610 = vst.msk [vmem:[#allocation5 + $0x80] sm:$0xff] %vm407, %v5574
      %5611 = vst.msk [vmem:[#allocation5 + $0x88] sm:$0xff] %vm407, %v5575
      %5612 = vst.msk [vmem:[#allocation5 + $0x90] sm:$0xff] %vm407, %v5576
      %5613 = vst.msk [vmem:[#allocation5 + $0x98] sm:$0xff] %vm407, %v5577
      %5614 = vst.msk [vmem:[#allocation5 + $0xa0] sm:$0xff] %vm407, %v5578
      %5615 = vst.msk [vmem:[#allocation5 + $0xa8] sm:$0xff] %vm407, %v5579
      %5616 = vst.msk [vmem:[#allocation5 + $0xb0] sm:$0xff] %vm407, %v5580
      %5617 = vst.msk [vmem:[#allocation5 + $0xb8] sm:$0xff] %vm407, %v5581
      %5618 = vst.msk [vmem:[#allocation5 + $0xc0] sm:$0xff] %vm407, %v5582
      %5619 = vst.msk [vmem:[#allocation5 + $0xc8] sm:$0xff] %vm407, %v5583
      %5620 = vst.msk [vmem:[#allocation5 + $0xd0] sm:$0xff] %vm407, %v5584
      %5621 = vst.msk [vmem:[#allocation5 + $0xd8] sm:$0xff] %vm407, %v5585
      %5622 = vst.msk [vmem:[#allocation5 + $0xe0] sm:$0xff] %vm407, %v5586
      %5623 = vst.msk [vmem:[#allocation5 + $0xe8] sm:$0xff] %vm407, %v5587
      %5624 = vst.msk [vmem:[#allocation5 + $0xf0] sm:$0xff] %vm407, %v5588
      %5625 = vst.msk [vmem:[#allocation5 + $0xf8] sm:$0xff] %vm407, %v5589
      %5626 = vst.msk [vmem:[#allocation5 + $0x100] sm:$0xff] %vm407, %v5590
      %5627 = vst.msk [vmem:[#allocation5 + $0x108] sm:$0xff] %vm407, %v5591
      %5628 = vst.msk [vmem:[#allocation5 + $0x110] sm:$0xff] %vm407, %v5592
      %5629 = vst.msk [vmem:[#allocation5 + $0x118] sm:$0xff] %vm407, %v5593
      %v5630 = vld [vmem:[#allocation4 + $0x1] sm:$0xff]
      %v5631 = vld [vmem:[#allocation4 + $0x9] sm:$0xff]
      %v5632 = vld [vmem:[#allocation4 + $0x19] sm:$0xff]
      %v5633 = vld [vmem:[#allocation4 + $0x21] sm:$0xff]
      %v5634 = vld [vmem:[#allocation4 + $0x31] sm:$0xff]
      %v5635 = vld [vmem:[#allocation4 + $0x39] sm:$0xff]
      %v5636 = vld [vmem:[#allocation4 + $0x49] sm:$0xff]
      %v5637 = vld [vmem:[#allocation4 + $0x51] sm:$0xff]
      %v5638 = vld [vmem:[#allocation4 + $0x61] sm:$0xff]
      %v5639 = vld [vmem:[#allocation4 + $0x69] sm:$0xff]
      %v5640 = vld [vmem:[#allocation4 + $0x79] sm:$0xff]
      %v5641 = vld [vmem:[#allocation4 + $0x81] sm:$0xff]
      %v5642 = vld [vmem:[#allocation4 + $0x91] sm:$0xff]
      %v5643 = vld [vmem:[#allocation4 + $0x99] sm:$0xff]
      %v5644 = vld [vmem:[#allocation4 + $0xa9] sm:$0xff]
      %v5645 = vld [vmem:[#allocation4 + $0xb1] sm:$0xff]
      %v5646 = vld [vmem:[#allocation4 + $0xc1] sm:$0xff]
      %v5647 = vld [vmem:[#allocation4 + $0xc9] sm:$0xff]
      %v5648 = vld [vmem:[#allocation4 + $0xd9] sm:$0xff]
      %v5649 = vld [vmem:[#allocation4 + $0xe1] sm:$0xff]
      %v5650 = vld [vmem:[#allocation4 + $0xf1] sm:$0xff]
      %v5651 = vld [vmem:[#allocation4 + $0xf9] sm:$0xff]
      %v5652 = vld [vmem:[#allocation4 + $0x109] sm:$0xff]
      %v5653 = vld [vmem:[#allocation4 + $0x111] sm:$0xff]
      %v5654 = vld [vmem:[#allocation4 + $0x121] sm:$0xff]
      %v5655 = vld [vmem:[#allocation4 + $0x129] sm:$0xff]
      %v5656 = vld [vmem:[#allocation4 + $0x139] sm:$0xff]
      %v5657 = vld [vmem:[#allocation4 + $0x141] sm:$0xff]
      %v5658 = vld [vmem:[#allocation4 + $0x151] sm:$0xff]
      %v5659 = vld [vmem:[#allocation4 + $0x159] sm:$0xff]
      %v5660 = vld [vmem:[#allocation4 + $0x169] sm:$0xff]
      %v5661 = vld [vmem:[#allocation4 + $0x171] sm:$0xff]
      %v5662 = vld [vmem:[#allocation4 + $0x181] sm:$0xff]
      %v5663 = vld [vmem:[#allocation4 + $0x189] sm:$0xff]
      %v5664 = vld [vmem:[#allocation4 + $0x199] sm:$0xff]
      %v5665 = vld [vmem:[#allocation4 + $0x1a1] sm:$0xff]
      %5702 = vrot.lane.b32.xlu0 %v5630, 8
      %v5703 = vpop.permute.xlu0 %5702
      %5704 = vrot.lane.b32.xlu0 %v5631, 8
      %v5705 = vpop.permute.xlu0 %5704
      %5706 = vrot.lane.b32.xlu0 %v5632, 8
      %v5707 = vpop.permute.xlu0 %5706
      %5708 = vrot.lane.b32.xlu0 %v5633, 8
      %v5709 = vpop.permute.xlu0 %5708
      %5710 = vrot.lane.b32.xlu0 %v5634, 8
      %v5711 = vpop.permute.xlu0 %5710
      %5712 = vrot.lane.b32.xlu0 %v5635, 8
      %v5713 = vpop.permute.xlu0 %5712
      %5714 = vrot.lane.b32.xlu0 %v5636, 8
      %v5715 = vpop.permute.xlu0 %5714
      %5716 = vrot.lane.b32.xlu0 %v5637, 8
      %v5717 = vpop.permute.xlu0 %5716
      %5718 = vrot.lane.b32.xlu0 %v5638, 8
      %v5719 = vpop.permute.xlu0 %5718
      %5720 = vrot.lane.b32.xlu0 %v5639, 8
      %v5721 = vpop.permute.xlu0 %5720
      %5722 = vrot.lane.b32.xlu0 %v5640, 8
      %v5723 = vpop.permute.xlu0 %5722
      %5724 = vrot.lane.b32.xlu0 %v5641, 8
      %v5725 = vpop.permute.xlu0 %5724
      %5726 = vrot.lane.b32.xlu0 %v5642, 8
      %v5727 = vpop.permute.xlu0 %5726
      %5728 = vrot.lane.b32.xlu0 %v5643, 8
      %v5729 = vpop.permute.xlu0 %5728
      %5730 = vrot.lane.b32.xlu0 %v5644, 8
      %v5731 = vpop.permute.xlu0 %5730
      %5732 = vrot.lane.b32.xlu0 %v5645, 8
      %v5733 = vpop.permute.xlu0 %5732
      %5734 = vrot.lane.b32.xlu0 %v5646, 8
      %v5735 = vpop.permute.xlu0 %5734
      %5736 = vrot.lane.b32.xlu0 %v5647, 8
      %v5737 = vpop.permute.xlu0 %5736
      %5738 = vrot.lane.b32.xlu0 %v5648, 8
      %v5739 = vpop.permute.xlu0 %5738
      %5740 = vrot.lane.b32.xlu0 %v5649, 8
      %v5741 = vpop.permute.xlu0 %5740
      %5742 = vrot.lane.b32.xlu0 %v5650, 8
      %v5743 = vpop.permute.xlu0 %5742
      %5744 = vrot.lane.b32.xlu0 %v5651, 8
      %v5745 = vpop.permute.xlu0 %5744
      %5746 = vrot.lane.b32.xlu0 %v5652, 8
      %v5747 = vpop.permute.xlu0 %5746
      %5748 = vrot.lane.b32.xlu0 %v5653, 8
      %v5749 = vpop.permute.xlu0 %5748
      %5750 = vrot.lane.b32.xlu0 %v5654, 8
      %v5751 = vpop.permute.xlu0 %5750
      %5752 = vrot.lane.b32.xlu0 %v5655, 8
      %v5753 = vpop.permute.xlu0 %5752
      %5754 = vrot.lane.b32.xlu0 %v5656, 8
      %v5755 = vpop.permute.xlu0 %5754
      %5756 = vrot.lane.b32.xlu0 %v5657, 8
      %v5757 = vpop.permute.xlu0 %5756
      %5758 = vrot.lane.b32.xlu0 %v5658, 8
      %v5759 = vpop.permute.xlu0 %5758
      %5760 = vrot.lane.b32.xlu0 %v5659, 8
      %v5761 = vpop.permute.xlu0 %5760
      %5762 = vrot.lane.b32.xlu0 %v5660, 8
      %v5763 = vpop.permute.xlu0 %5762
      %5764 = vrot.lane.b32.xlu0 %v5661, 8
      %v5765 = vpop.permute.xlu0 %5764
      %5766 = vrot.lane.b32.xlu0 %v5662, 8
      %v5767 = vpop.permute.xlu0 %5766
      %5768 = vrot.lane.b32.xlu0 %v5663, 8
      %v5769 = vpop.permute.xlu0 %5768
      %5770 = vrot.lane.b32.xlu0 %v5664, 8
      %v5771 = vpop.permute.xlu0 %5770
      %5772 = vrot.lane.b32.xlu0 %v5665, 8
      %v5773 = vpop.permute.xlu0 %5772
      %5810 = vst.msk [vmem:[#allocation5] sm:$0xff] %vm4095, %v5703
      %5811 = vst.msk [vmem:[#allocation5 + $0x8] sm:$0xff] %vm4095, %v5705
      %5812 = vst.msk [vmem:[#allocation5 + $0x10] sm:$0xff] %vm4095, %v5707
      %5813 = vst.msk [vmem:[#allocation5 + $0x18] sm:$0xff] %vm4095, %v5709
      %5814 = vst.msk [vmem:[#allocation5 + $0x20] sm:$0xff] %vm4095, %v5711
      %5815 = vst.msk [vmem:[#allocation5 + $0x28] sm:$0xff] %vm4095, %v5713
      %5816 = vst.msk [vmem:[#allocation5 + $0x30] sm:$0xff] %vm4095, %v5715
      %5817 = vst.msk [vmem:[#allocation5 + $0x38] sm:$0xff] %vm4095, %v5717
      %5818 = vst.msk [vmem:[#allocation5 + $0x40] sm:$0xff] %vm4095, %v5719
      %5819 = vst.msk [vmem:[#allocation5 + $0x48] sm:$0xff] %vm4095, %v5721
      %5820 = vst.msk [vmem:[#allocation5 + $0x50] sm:$0xff] %vm4095, %v5723
      %5821 = vst.msk [vmem:[#allocation5 + $0x58] sm:$0xff] %vm4095, %v5725
      %5822 = vst.msk [vmem:[#allocation5 + $0x60] sm:$0xff] %vm4095, %v5727
      %5823 = vst.msk [vmem:[#allocation5 + $0x68] sm:$0xff] %vm4095, %v5729
      %5824 = vst.msk [vmem:[#allocation5 + $0x70] sm:$0xff] %vm4095, %v5731
      %5825 = vst.msk [vmem:[#allocation5 + $0x78] sm:$0xff] %vm4095, %v5733
      %5826 = vst.msk [vmem:[#allocation5 + $0x80] sm:$0xff] %vm4095, %v5735
      %5827 = vst.msk [vmem:[#allocation5 + $0x88] sm:$0xff] %vm4095, %v5737
      %5828 = vst.msk [vmem:[#allocation5 + $0x90] sm:$0xff] %vm4095, %v5739
      %5829 = vst.msk [vmem:[#allocation5 + $0x98] sm:$0xff] %vm4095, %v5741
      %5830 = vst.msk [vmem:[#allocation5 + $0xa0] sm:$0xff] %vm4095, %v5743
      %5831 = vst.msk [vmem:[#allocation5 + $0xa8] sm:$0xff] %vm4095, %v5745
      %5832 = vst.msk [vmem:[#allocation5 + $0xb0] sm:$0xff] %vm4095, %v5747
      %5833 = vst.msk [vmem:[#allocation5 + $0xb8] sm:$0xff] %vm4095, %v5749
      %5834 = vst.msk [vmem:[#allocation5 + $0xc0] sm:$0xff] %vm4095, %v5751
      %5835 = vst.msk [vmem:[#allocation5 + $0xc8] sm:$0xff] %vm4095, %v5753
      %5836 = vst.msk [vmem:[#allocation5 + $0xd0] sm:$0xff] %vm4095, %v5755
      %5837 = vst.msk [vmem:[#allocation5 + $0xd8] sm:$0xff] %vm4095, %v5757
      %5838 = vst.msk [vmem:[#allocation5 + $0xe0] sm:$0xff] %vm4095, %v5759
      %5839 = vst.msk [vmem:[#allocation5 + $0xe8] sm:$0xff] %vm4095, %v5761
      %5840 = vst.msk [vmem:[#allocation5 + $0xf0] sm:$0xff] %vm4095, %v5763
      %5841 = vst.msk [vmem:[#allocation5 + $0xf8] sm:$0xff] %vm4095, %v5765
      %5842 = vst.msk [vmem:[#allocation5 + $0x100] sm:$0xff] %vm4095, %v5767
      %5843 = vst.msk [vmem:[#allocation5 + $0x108] sm:$0xff] %vm4095, %v5769
      %5844 = vst.msk [vmem:[#allocation5 + $0x110] sm:$0xff] %vm4095, %v5771
      %5845 = vst.msk [vmem:[#allocation5 + $0x118] sm:$0xff] %vm4095, %v5773
      %v5846 = vld [vmem:[#allocation4 + $0x2] sm:$0xff]
      %v5847 = vld [vmem:[#allocation4 + $0xa] sm:$0xff]
      %v5848 = vld [vmem:[#allocation4 + $0x1a] sm:$0xff]
      %v5849 = vld [vmem:[#allocation4 + $0x22] sm:$0xff]
      %v5850 = vld [vmem:[#allocation4 + $0x32] sm:$0xff]
      %v5851 = vld [vmem:[#allocation4 + $0x3a] sm:$0xff]
      %v5852 = vld [vmem:[#allocation4 + $0x4a] sm:$0xff]
      %v5853 = vld [vmem:[#allocation4 + $0x52] sm:$0xff]
      %v5854 = vld [vmem:[#allocation4 + $0x62] sm:$0xff]
      %v5855 = vld [vmem:[#allocation4 + $0x6a] sm:$0xff]
      %v5856 = vld [vmem:[#allocation4 + $0x7a] sm:$0xff]
      %v5857 = vld [vmem:[#allocation4 + $0x82] sm:$0xff]
      %v5858 = vld [vmem:[#allocation4 + $0x92] sm:$0xff]
      %v5859 = vld [vmem:[#allocation4 + $0x9a] sm:$0xff]
      %v5860 = vld [vmem:[#allocation4 + $0xaa] sm:$0xff]
      %v5861 = vld [vmem:[#allocation4 + $0xb2] sm:$0xff]
      %v5862 = vld [vmem:[#allocation4 + $0xc2] sm:$0xff]
      %v5863 = vld [vmem:[#allocation4 + $0xca] sm:$0xff]
      %v5864 = vld [vmem:[#allocation4 + $0xda] sm:$0xff]
      %v5865 = vld [vmem:[#allocation4 + $0xe2] sm:$0xff]
      %v5866 = vld [vmem:[#allocation4 + $0xf2] sm:$0xff]
      %v5867 = vld [vmem:[#allocation4 + $0xfa] sm:$0xff]
      %v5868 = vld [vmem:[#allocation4 + $0x10a] sm:$0xff]
      %v5869 = vld [vmem:[#allocation4 + $0x112] sm:$0xff]
      %v5870 = vld [vmem:[#allocation4 + $0x122] sm:$0xff]
      %v5871 = vld [vmem:[#allocation4 + $0x12a] sm:$0xff]
      %v5872 = vld [vmem:[#allocation4 + $0x13a] sm:$0xff]
      %v5873 = vld [vmem:[#allocation4 + $0x142] sm:$0xff]
      %v5874 = vld [vmem:[#allocation4 + $0x152] sm:$0xff]
      %v5875 = vld [vmem:[#allocation4 + $0x15a] sm:$0xff]
      %v5876 = vld [vmem:[#allocation4 + $0x16a] sm:$0xff]
      %v5877 = vld [vmem:[#allocation4 + $0x172] sm:$0xff]
      %v5878 = vld [vmem:[#allocation4 + $0x182] sm:$0xff]
      %v5879 = vld [vmem:[#allocation4 + $0x18a] sm:$0xff]
      %v5880 = vld [vmem:[#allocation4 + $0x19a] sm:$0xff]
      %v5881 = vld [vmem:[#allocation4 + $0x1a2] sm:$0xff]
      %5918 = vrot.lane.b32.xlu0 %v5846, 16
      %v5919 = vpop.permute.xlu0 %5918
      %5920 = vrot.lane.b32.xlu0 %v5847, 16
      %v5921 = vpop.permute.xlu0 %5920
      %5922 = vrot.lane.b32.xlu0 %v5848, 16
      %v5923 = vpop.permute.xlu0 %5922
      %5924 = vrot.lane.b32.xlu0 %v5849, 16
      %v5925 = vpop.permute.xlu0 %5924
      %5926 = vrot.lane.b32.xlu0 %v5850, 16
      %v5927 = vpop.permute.xlu0 %5926
      %5928 = vrot.lane.b32.xlu0 %v5851, 16
      %v5929 = vpop.permute.xlu0 %5928
      %5930 = vrot.lane.b32.xlu0 %v5852, 16
      %v5931 = vpop.permute.xlu0 %5930
      %5932 = vrot.lane.b32.xlu0 %v5853, 16
      %v5933 = vpop.permute.xlu0 %5932
      %5934 = vrot.lane.b32.xlu0 %v5854, 16
      %v5935 = vpop.permute.xlu0 %5934
      %5936 = vrot.lane.b32.xlu0 %v5855, 16
      %v5937 = vpop.permute.xlu0 %5936
      %5938 = vrot.lane.b32.xlu0 %v5856, 16
      %v5939 = vpop.permute.xlu0 %5938
      %5940 = vrot.lane.b32.xlu0 %v5857, 16
      %v5941 = vpop.permute.xlu0 %5940
      %5942 = vrot.lane.b32.xlu0 %v5858, 16
      %v5943 = vpop.permute.xlu0 %5942
      %5944 = vrot.lane.b32.xlu0 %v5859, 16
      %v5945 = vpop.permute.xlu0 %5944
      %5946 = vrot.lane.b32.xlu0 %v5860, 16
      %v5947 = vpop.permute.xlu0 %5946
      %5948 = vrot.lane.b32.xlu0 %v5861, 16
      %v5949 = vpop.permute.xlu0 %5948
      %5950 = vrot.lane.b32.xlu0 %v5862, 16
      %v5951 = vpop.permute.xlu0 %5950
      %5952 = vrot.lane.b32.xlu0 %v5863, 16
      %v5953 = vpop.permute.xlu0 %5952
      %5954 = vrot.lane.b32.xlu0 %v5864, 16
      %v5955 = vpop.permute.xlu0 %5954
      %5956 = vrot.lane.b32.xlu0 %v5865, 16
      %v5957 = vpop.permute.xlu0 %5956
      %5958 = vrot.lane.b32.xlu0 %v5866, 16
      %v5959 = vpop.permute.xlu0 %5958
      %5960 = vrot.lane.b32.xlu0 %v5867, 16
      %v5961 = vpop.permute.xlu0 %5960
      %5962 = vrot.lane.b32.xlu0 %v5868, 16
      %v5963 = vpop.permute.xlu0 %5962
      %5964 = vrot.lane.b32.xlu0 %v5869, 16
      %v5965 = vpop.permute.xlu0 %5964
      %5966 = vrot.lane.b32.xlu0 %v5870, 16
      %v5967 = vpop.permute.xlu0 %5966
      %5968 = vrot.lane.b32.xlu0 %v5871, 16
      %v5969 = vpop.permute.xlu0 %5968
      %5970 = vrot.lane.b32.xlu0 %v5872, 16
      %v5971 = vpop.permute.xlu0 %5970
      %5972 = vrot.lane.b32.xlu0 %v5873, 16
      %v5973 = vpop.permute.xlu0 %5972
      %5974 = vrot.lane.b32.xlu0 %v5874, 16
      %v5975 = vpop.permute.xlu0 %5974
      %5976 = vrot.lane.b32.xlu0 %v5875, 16
      %v5977 = vpop.permute.xlu0 %5976
      %5978 = vrot.lane.b32.xlu0 %v5876, 16
      %v5979 = vpop.permute.xlu0 %5978
      %5980 = vrot.lane.b32.xlu0 %v5877, 16
      %v5981 = vpop.permute.xlu0 %5980
      %5982 = vrot.lane.b32.xlu0 %v5878, 16
      %v5983 = vpop.permute.xlu0 %5982
      %5984 = vrot.lane.b32.xlu0 %v5879, 16
      %v5985 = vpop.permute.xlu0 %5984
      %5986 = vrot.lane.b32.xlu0 %v5880, 16
      %v5987 = vpop.permute.xlu0 %5986
      %5988 = vrot.lane.b32.xlu0 %v5881, 16
      %v5989 = vpop.permute.xlu0 %5988
      %6026 = vst.msk [vmem:[#allocation5] sm:$0xff] %vm4312, %v5919
      %6027 = vst.msk [vmem:[#allocation5 + $0x8] sm:$0xff] %vm4312, %v5921
      %6028 = vst.msk [vmem:[#allocation5 + $0x10] sm:$0xff] %vm4312, %v5923
      %6029 = vst.msk [vmem:[#allocation5 + $0x18] sm:$0xff] %vm4312, %v5925
      %6030 = vst.msk [vmem:[#allocation5 + $0x20] sm:$0xff] %vm4312, %v5927
      %6031 = vst.msk [vmem:[#allocation5 + $0x28] sm:$0xff] %vm4312, %v5929
      %6032 = vst.msk [vmem:[#allocation5 + $0x30] sm:$0xff] %vm4312, %v5931
      %6033 = vst.msk [vmem:[#allocation5 + $0x38] sm:$0xff] %vm4312, %v5933
      %6034 = vst.msk [vmem:[#allocation5 + $0x40] sm:$0xff] %vm4312, %v5935
      %6035 = vst.msk [vmem:[#allocation5 + $0x48] sm:$0xff] %vm4312, %v5937
      %6036 = vst.msk [vmem:[#allocation5 + $0x50] sm:$0xff] %vm4312, %v5939
      %6037 = vst.msk [vmem:[#allocation5 + $0x58] sm:$0xff] %vm4312, %v5941
      %6038 = vst.msk [vmem:[#allocation5 + $0x60] sm:$0xff] %vm4312, %v5943
      %6039 = vst.msk [vmem:[#allocation5 + $0x68] sm:$0xff] %vm4312, %v5945
      %6040 = vst.msk [vmem:[#allocation5 + $0x70] sm:$0xff] %vm4312, %v5947
      %6041 = vst.msk [vmem:[#allocation5 + $0x78] sm:$0xff] %vm4312, %v5949
      %6042 = vst.msk [vmem:[#allocation5 + $0x80] sm:$0xff] %vm4312, %v5951
      %6043 = vst.msk [vmem:[#allocation5 + $0x88] sm:$0xff] %vm4312, %v5953
      %6044 = vst.msk [vmem:[#allocation5 + $0x90] sm:$0xff] %vm4312, %v5955
      %6045 = vst.msk [vmem:[#allocation5 + $0x98] sm:$0xff] %vm4312, %v5957
      %6046 = vst.msk [vmem:[#allocation5 + $0xa0] sm:$0xff] %vm4312, %v5959
      %6047 = vst.msk [vmem:[#allocation5 + $0xa8] sm:$0xff] %vm4312, %v5961
      %6048 = vst.msk [vmem:[#allocation5 + $0xb0] sm:$0xff] %vm4312, %v5963
      %6049 = vst.msk [vmem:[#allocation5 + $0xb8] sm:$0xff] %vm4312, %v5965
      %6050 = vst.msk [vmem:[#allocation5 + $0xc0] sm:$0xff] %vm4312, %v5967
      %6051 = vst.msk [vmem:[#allocation5 + $0xc8] sm:$0xff] %vm4312, %v5969
      %6052 = vst.msk [vmem:[#allocation5 + $0xd0] sm:$0xff] %vm4312, %v5971
      %6053 = vst.msk [vmem:[#allocation5 + $0xd8] sm:$0xff] %vm4312, %v5973
      %6054 = vst.msk [vmem:[#allocation5 + $0xe0] sm:$0xff] %vm4312, %v5975
      %6055 = vst.msk [vmem:[#allocation5 + $0xe8] sm:$0xff] %vm4312, %v5977
      %6056 = vst.msk [vmem:[#allocation5 + $0xf0] sm:$0xff] %vm4312, %v5979
      %6057 = vst.msk [vmem:[#allocation5 + $0xf8] sm:$0xff] %vm4312, %v5981
      %6058 = vst.msk [vmem:[#allocation5 + $0x100] sm:$0xff] %vm4312, %v5983
      %6059 = vst.msk [vmem:[#allocation5 + $0x108] sm:$0xff] %vm4312, %v5985
      %6060 = vst.msk [vmem:[#allocation5 + $0x110] sm:$0xff] %vm4312, %v5987
      %6061 = vst.msk [vmem:[#allocation5 + $0x118] sm:$0xff] %vm4312, %v5989
      %v6062 = vld [vmem:[#allocation5] sm:$0xff]
      %v6063 = vld [vmem:[#allocation5 + $0x8] sm:$0xff]
      %v6064 = vld [vmem:[#allocation5 + $0x10] sm:$0xff]
      %v6065 = vld [vmem:[#allocation5 + $0x18] sm:$0xff]
      %v6066 = vld [vmem:[#allocation5 + $0x20] sm:$0xff]
      %v6067 = vld [vmem:[#allocation5 + $0x28] sm:$0xff]
      %v6068 = vld [vmem:[#allocation5 + $0x30] sm:$0xff]
      %v6069 = vld [vmem:[#allocation5 + $0x38] sm:$0xff]
      %v6070 = vld [vmem:[#allocation5 + $0x40] sm:$0xff]
      %v6071 = vld [vmem:[#allocation5 + $0x48] sm:$0xff]
      %v6072 = vld [vmem:[#allocation5 + $0x50] sm:$0xff]
      %v6073 = vld [vmem:[#allocation5 + $0x58] sm:$0xff]
      %v6074 = vld [vmem:[#allocation5 + $0x60] sm:$0xff]
      %v6075 = vld [vmem:[#allocation5 + $0x68] sm:$0xff]
      %v6076 = vld [vmem:[#allocation5 + $0x70] sm:$0xff]
      %v6077 = vld [vmem:[#allocation5 + $0x78] sm:$0xff]
      %v6078 = vld [vmem:[#allocation5 + $0x80] sm:$0xff]
      %v6079 = vld [vmem:[#allocation5 + $0x88] sm:$0xff]
      %v6080 = vld [vmem:[#allocation5 + $0x90] sm:$0xff]
      %v6081 = vld [vmem:[#allocation5 + $0x98] sm:$0xff]
      %v6082 = vld [vmem:[#allocation5 + $0xa0] sm:$0xff]
      %v6083 = vld [vmem:[#allocation5 + $0xa8] sm:$0xff]
      %v6084 = vld [vmem:[#allocation5 + $0xb0] sm:$0xff]
      %v6085 = vld [vmem:[#allocation5 + $0xb8] sm:$0xff]
      %v6086 = vld [vmem:[#allocation5 + $0xc0] sm:$0xff]
      %v6087 = vld [vmem:[#allocation5 + $0xc8] sm:$0xff]
      %v6088 = vld [vmem:[#allocation5 + $0xd0] sm:$0xff]
      %v6089 = vld [vmem:[#allocation5 + $0xd8] sm:$0xff]
      %v6090 = vld [vmem:[#allocation5 + $0xe0] sm:$0xff]
      %v6091 = vld [vmem:[#allocation5 + $0xe8] sm:$0xff]
      %v6092 = vld [vmem:[#allocation5 + $0xf0] sm:$0xff]
      %v6093 = vld [vmem:[#allocation5 + $0xf8] sm:$0xff]
      %v6094 = vld [vmem:[%s9] sm:$0xff]
      %v6095 = vld [vmem:[%s9 + $0x8] sm:$0xff]
      %v6096 = vld [vmem:[%s9 + $0x10] sm:$0xff]
      %s6097 = scalar_lea.vmem [#allocation5], 16
      %v6098 = vld [vmem:[%s6097] sm:$0xff]
      %v6099 = vld [vmem:[%s6097 + $0x8] sm:$0xff]
      %v6100 = vld [vmem:[%s6097 + $0x10] sm:$0xff]
      %v6101 = vld [vmem:[%s6097 + $0x18] sm:$0xff]
      %v6102 = vld [vmem:[%s6097 + $0x20] sm:$0xff]
      %v6103 = vld [vmem:[%s6097 + $0x28] sm:$0xff]
      %v6104 = vld [vmem:[%s6097 + $0x30] sm:$0xff]
      %v6105 = vld [vmem:[%s6097 + $0x38] sm:$0xff]
      %v6106 = vld [vmem:[%s6097 + $0x40] sm:$0xff]
      %v6107 = vld [vmem:[%s6097 + $0x48] sm:$0xff]
      %v6108 = vld [vmem:[%s6097 + $0x50] sm:$0xff]
      %v6109 = vld [vmem:[%s6097 + $0x58] sm:$0xff]
      %v6110 = vld [vmem:[%s6097 + $0x60] sm:$0xff]
      %v6111 = vld [vmem:[%s6097 + $0x68] sm:$0xff]
      %v6112 = vld [vmem:[%s6097 + $0x70] sm:$0xff]
      %v6113 = vld [vmem:[%s6097 + $0x78] sm:$0xff]
      %v6114 = vld [vmem:[%s6097 + $0x80] sm:$0xff]
      %v6115 = vld [vmem:[%s6097 + $0x88] sm:$0xff]
      %v6116 = vld [vmem:[%s6097 + $0x90] sm:$0xff]
      %v6117 = vld [vmem:[%s6097 + $0x98] sm:$0xff]
      %v6118 = vld [vmem:[%s6097 + $0xa0] sm:$0xff]
      %v6119 = vld [vmem:[%s6097 + $0xa8] sm:$0xff]
      %v6120 = vld [vmem:[%s6097 + $0xb0] sm:$0xff]
      %v6121 = vld [vmem:[%s6097 + $0xb8] sm:$0xff]
      %v6122 = vld [vmem:[%s6097 + $0xc0] sm:$0xff]
      %v6123 = vld [vmem:[%s6097 + $0xc8] sm:$0xff]
      %v6124 = vld [vmem:[%s6097 + $0xd0] sm:$0xff]
      %v6125 = vld [vmem:[%s6097 + $0xd8] sm:$0xff]
      %v6126 = vld [vmem:[%s6097 + $0xe0] sm:$0xff]
      %v6127 = vld [vmem:[%s6097 + $0xe8] sm:$0xff]
      %v6128 = vld [vmem:[%s6097 + $0xf0] sm:$0xff]
      %v6129 = vld [vmem:[%s6097 + $0xf8] sm:$0xff]
      %s6130 = scalar_lea.vmem %s9, 24
      %v6131 = vld [vmem:[%s6130] sm:$0xff]
      %v6132 = vld [vmem:[%s6130 + $0x8] sm:$0xff]
      %v6133 = vld [vmem:[%s6130 + $0x10] sm:$0xff]
      %v6135 = vsel %vm4421, %v6098, 0
      %v6138 = vsel %vm4421, %v6099, 0
      %v6141 = vsel %vm4421, %v6100, 0
      %v6144 = vsel %vm4421, %v6101, 0
      %v6147 = vsel %vm4421, %v6102, 0
      %v6150 = vsel %vm4421, %v6103, 0
      %v6153 = vsel %vm4421, %v6104, 0
      %v6156 = vsel %vm4421, %v6105, 0
      %v6159 = vsel %vm4421, %v6106, 0
      %v6162 = vsel %vm4421, %v6107, 0
      %v6165 = vsel %vm4421, %v6108, 0
      %v6168 = vsel %vm4421, %v6109, 0
      %v6171 = vsel %vm4421, %v6110, 0
      %v6174 = vsel %vm4421, %v6111, 0
      %v6177 = vsel %vm4421, %v6112, 0
      %v6180 = vsel %vm4421, %v6113, 0
      %v6183 = vsel %vm4421, %v6114, 0
      %v6186 = vsel %vm4421, %v6115, 0
      %v6189 = vsel %vm4421, %v6116, 0
      %v6192 = vsel %vm4421, %v6117, 0
      %v6195 = vsel %vm4421, %v6118, 0
      %v6198 = vsel %vm4421, %v6119, 0
      %v6201 = vsel %vm4421, %v6120, 0
      %v6204 = vsel %vm4421, %v6121, 0
      %v6207 = vsel %vm4421, %v6122, 0
      %v6210 = vsel %vm4421, %v6123, 0
      %v6213 = vsel %vm4421, %v6124, 0
      %v6216 = vsel %vm4421, %v6125, 0
      %v6219 = vsel %vm4421, %v6126, 0
      %v6222 = vsel %vm4421, %v6127, 0
      %v6225 = vsel %vm4421, %v6128, 0
      %v6228 = vsel %vm4421, %v6129, 0
      %6230 = vmatprep.subr.mxu0 0.0
      %6231 = vmatpush1.msra.mxu0 %v6131
      %6232 = vmatprep.subr.mxu0 0.0
      %6233 = vmatpush1.msra.mxu0 %v6132
      %6234 = vmatprep.subr.mxu0 0.0
      %6235 = vmatpush1.msra.mxu0 %v6133
      %6236 = vmatprep.subr.mxu0 0.0
      %6237 = vmatpush1.msra.mxu0 0.0
      %6238 = vmatprep.subr.mxu0 0.0
      %6239 = vmatpush1.msra.mxu0 0.0
      %6240 = vmatprep.subr.mxu0 0.0
      %6241 = vmatpush1.msra.mxu0 0.0
      %6242 = vmatprep.subr.mxu0 0.0
      %6243 = vmatpush1.msra.mxu0 0.0
      %6244 = vmatprep.subr.mxu0 0.0
      %6245 = vmatpush1.msra.mxu0 0.0
      %6246 = vmatprep.subr.mxu0 0.0
      %6247 = vmatpush1.msra.mxu0 0.0
      %6248 = vmatprep.subr.mxu0 0.0
      %6249 = vmatpush1.msra.mxu0 0.0
      %6250 = vmatprep.subr.mxu0 0.0
      %6251 = vmatpush1.msra.mxu0 0.0
      %6252 = vmatprep.subr.mxu0 0.0
      %6253 = vmatpush1.msra.mxu0 0.0
      %6254 = vmatprep.subr.mxu0 0.0
      %6255 = vmatpush1.msra.mxu0 0.0
      %6256 = vmatprep.subr.mxu0 0.0
      %6257 = vmatpush1.msra.mxu0 0.0
      %6258 = vmatprep.subr.mxu0 0.0
      %6259 = vmatpush1.msra.mxu0 0.0
      %6260 = vmatprep.subr.mxu0 0.0
      %6261 = vmatpush1.msra.mxu0 0.0
      %6262 = vmatprep.subr.mxu0 0.0
      %6263 = vmatpush1.msra.mxu0 0.0
      %6264 = vmatprep.subr.mxu0 0.0
      %6265 = vmatpush1.msra.mxu0 0.0
      %6266 = vmatprep.subr.mxu0 0.0
      %6267 = vmatpush1.msra.mxu0 0.0
      %6268 = vmatprep.subr.mxu0 0.0
      %6269 = vmatpush1.msra.mxu0 0.0
      %6270 = vmatprep.subr.mxu0 0.0
      %6271 = vmatpush1.msra.mxu0 0.0
      %6272 = vmatprep.subr.mxu0 0.0
      %6273 = vmatpush1.msra.mxu0 0.0
      %6274 = vmatprep.subr.mxu0 0.0
      %6275 = vmatpush1.msra.mxu0 0.0
      %6276 = vmatprep.subr.mxu0 0.0
      %6277 = vmatpush1.msra.mxu0 0.0
      %6278 = vmatprep.subr.mxu0 0.0
      %6279 = vmatpush1.msra.mxu0 0.0
      %6280 = vmatprep.subr.mxu0 0.0
      %6281 = vmatpush1.msra.mxu0 0.0
      %6282 = vmatprep.subr.mxu0 0.0
      %6283 = vmatpush1.msra.mxu0 0.0
      %6284 = vmatprep.subr.mxu0 0.0
      %6285 = vmatpush1.msra.mxu0 0.0
      %6286 = vmatprep.subr.mxu0 0.0
      %6287 = vmatpush1.msra.mxu0 0.0
      %6288 = vmatprep.subr.mxu0 0.0
      %6289 = vmatpush1.msra.mxu0 0.0
      %6290 = vmatprep.subr.mxu0 0.0
      %6291 = vmatpush1.msra.mxu0 0.0
      %6292 = vmatprep.subr.mxu0 0.0
      %6293 = vmatpush1.msra.mxu0 0.0
      %6294 = vmatprep.mubr.f32.mxu0 0.0
      %6295 = vmatmul.mubr.f32.gmra.mrb[0].mxu0 %v6135
      %v6296 = vpop.f32.mrb[0].mxu0
      %v6297 = vadd.f32 0.0, %v6296
      %v6298 = vpop.f32.mrb[0].mxu0
      %6299 = vmatprep.mubr.f32.mxu0 0.0
      %6300 = vmatmul.mubr.f32.gmra.mrb[0].mxu0 %v6138
      %v6301 = vpop.f32.mrb[0].mxu0
      %v6302 = vadd.f32 0.0, %v6301
      %v6303 = vpop.f32.mrb[0].mxu0
      %6304 = vmatprep.mubr.f32.mxu0 0.0
      %6305 = vmatmul.mubr.f32.gmra.mrb[0].mxu0 %v6141
      %v6306 = vpop.f32.mrb[0].mxu0
      %v6307 = vadd.f32 0.0, %v6306
      %v6308 = vpop.f32.mrb[0].mxu0
      %6309 = vmatprep.mubr.f32.mxu0 0.0
      %6310 = vmatmul.mubr.f32.gmra.mrb[0].mxu0 %v6144
      %v6311 = vpop.f32.mrb[0].mxu0
      %v6312 = vadd.f32 0.0, %v6311
      %v6313 = vpop.f32.mrb[0].mxu0
      %6314 = vmatprep.mubr.f32.mxu0 0.0
      %6315 = vmatmul.mubr.f32.gmra.mrb[0].mxu0 %v6147
      %v6316 = vpop.f32.mrb[0].mxu0
      %v6317 = vadd.f32 0.0, %v6316
      %v6318 = vpop.f32.mrb[0].mxu0
      %6319 = vmatprep.mubr.f32.mxu0 0.0
      %6320 = vmatmul.mubr.f32.gmra.mrb[0].mxu0 %v6150
      %v6321 = vpop.f32.mrb[0].mxu0
      %v6322 = vadd.f32 0.0, %v6321
      %v6323 = vpop.f32.mrb[0].mxu0
      %6324 = vmatprep.mubr.f32.mxu0 0.0
      %6325 = vmatmul.mubr.f32.gmra.mrb[0].mxu0 %v6153
      %v6326 = vpop.f32.mrb[0].mxu0
      %v6327 = vadd.f32 0.0, %v6326
      %v6328 = vpop.f32.mrb[0].mxu0
      %6329 = vmatprep.mubr.f32.mxu0 0.0
      %6330 = vmatmul.mubr.f32.gmra.mrb[0].mxu0 %v6156
      %v6331 = vpop.f32.mrb[0].mxu0
      %v6332 = vadd.f32 0.0, %v6331
      %v6333 = vpop.f32.mrb[0].mxu0
      %6334 = vmatprep.mubr.f32.mxu0 0.0
      %6335 = vmatmul.mubr.f32.gmra.mrb[0].mxu0 %v6159
      %v6336 = vpop.f32.mrb[0].mxu0
      %v6337 = vadd.f32 0.0, %v6336
      %v6338 = vpop.f32.mrb[0].mxu0
      %6339 = vmatprep.mubr.f32.mxu0 0.0
      %6340 = vmatmul.mubr.f32.gmra.mrb[0].mxu0 %v6162
      %v6341 = vpop.f32.mrb[0].mxu0
      %v6342 = vadd.f32 0.0, %v6341
      %v6343 = vpop.f32.mrb[0].mxu0
      %6344 = vmatprep.mubr.f32.mxu0 0.0
      %6345 = vmatmul.mubr.f32.gmra.mrb[0].mxu0 %v6165
      %v6346 = vpop.f32.mrb[0].mxu0
      %v6347 = vadd.f32 0.0, %v6346
      %v6348 = vpop.f32.mrb[0].mxu0
      %6349 = vmatprep.mubr.f32.mxu0 0.0
      %6350 = vmatmul.mubr.f32.gmra.mrb[0].mxu0 %v6168
      %v6351 = vpop.f32.mrb[0].mxu0
      %v6352 = vadd.f32 0.0, %v6351
      %v6353 = vpop.f32.mrb[0].mxu0
      %6354 = vmatprep.mubr.f32.mxu0 0.0
      %6355 = vmatmul.mubr.f32.gmra.mrb[0].mxu0 %v6171
      %v6356 = vpop.f32.mrb[0].mxu0
      %v6357 = vadd.f32 0.0, %v6356
      %v6358 = vpop.f32.mrb[0].mxu0
      %6359 = vmatprep.mubr.f32.mxu0 0.0
      %6360 = vmatmul.mubr.f32.gmra.mrb[0].mxu0 %v6174
      %v6361 = vpop.f32.mrb[0].mxu0
      %v6362 = vadd.f32 0.0, %v6361
      %v6363 = vpop.f32.mrb[0].mxu0
      %6364 = vmatprep.mubr.f32.mxu0 0.0
      %6365 = vmatmul.mubr.f32.gmra.mrb[0].mxu0 %v6177
      %v6366 = vpop.f32.mrb[0].mxu0
      %v6367 = vadd.f32 0.0, %v6366
      %v6368 = vpop.f32.mrb[0].mxu0
      %6369 = vmatprep.mubr.f32.mxu0 0.0
      %6370 = vmatmul.mubr.f32.gmra.mrb[0].mxu0 %v6180
      %v6371 = vpop.f32.mrb[0].mxu0
      %v6372 = vadd.f32 0.0, %v6371
      %v6373 = vpop.f32.mrb[0].mxu0
      %6374 = vmatprep.mubr.f32.mxu0 0.0
      %6375 = vmatmul.mubr.f32.gmra.mrb[0].mxu0 %v6183
      %v6376 = vpop.f32.mrb[0].mxu0
      %v6377 = vadd.f32 0.0, %v6376
      %v6378 = vpop.f32.mrb[0].mxu0
      %6379 = vmatprep.mubr.f32.mxu0 0.0
      %6380 = vmatmul.mubr.f32.gmra.mrb[0].mxu0 %v6186
      %v6381 = vpop.f32.mrb[0].mxu0
      %v6382 = vadd.f32 0.0, %v6381
      %v6383 = vpop.f32.mrb[0].mxu0
      %6384 = vmatprep.mubr.f32.mxu0 0.0
      %6385 = vmatmul.mubr.f32.gmra.mrb[0].mxu0 %v6189
      %v6386 = vpop.f32.mrb[0].mxu0
      %v6387 = vadd.f32 0.0, %v6386
      %v6388 = vpop.f32.mrb[0].mxu0
      %6389 = vmatprep.mubr.f32.mxu0 0.0
      %6390 = vmatmul.mubr.f32.gmra.mrb[0].mxu0 %v6192
      %v6391 = vpop.f32.mrb[0].mxu0
      %v6392 = vadd.f32 0.0, %v6391
      %v6393 = vpop.f32.mrb[0].mxu0
      %6394 = vmatprep.mubr.f32.mxu0 0.0
      %6395 = vmatmul.mubr.f32.gmra.mrb[0].mxu0 %v6195
      %v6396 = vpop.f32.mrb[0].mxu0
      %v6397 = vadd.f32 0.0, %v6396
      %v6398 = vpop.f32.mrb[0].mxu0
      %6399 = vmatprep.mubr.f32.mxu0 0.0
      %6400 = vmatmul.mubr.f32.gmra.mrb[0].mxu0 %v6198
      %v6401 = vpop.f32.mrb[0].mxu0
      %v6402 = vadd.f32 0.0, %v6401
      %v6403 = vpop.f32.mrb[0].mxu0
      %6404 = vmatprep.mubr.f32.mxu0 0.0
      %6405 = vmatmul.mubr.f32.gmra.mrb[0].mxu0 %v6201
      %v6406 = vpop.f32.mrb[0].mxu0
      %v6407 = vadd.f32 0.0, %v6406
      %v6408 = vpop.f32.mrb[0].mxu0
      %6409 = vmatprep.mubr.f32.mxu0 0.0
      %6410 = vmatmul.mubr.f32.gmra.mrb[0].mxu0 %v6204
      %v6411 = vpop.f32.mrb[0].mxu0
      %v6412 = vadd.f32 0.0, %v6411
      %v6413 = vpop.f32.mrb[0].mxu0
      %6414 = vmatprep.mubr.f32.mxu0 0.0
      %6415 = vmatmul.mubr.f32.gmra.mrb[0].mxu0 %v6207
      %v6416 = vpop.f32.mrb[0].mxu0
      %v6417 = vadd.f32 0.0, %v6416
      %v6418 = vpop.f32.mrb[0].mxu0
      %6419 = vmatprep.mubr.f32.mxu0 0.0
      %6420 = vmatmul.mubr.f32.gmra.mrb[0].mxu0 %v6210
      %v6421 = vpop.f32.mrb[0].mxu0
      %v6422 = vadd.f32 0.0, %v6421
      %v6423 = vpop.f32.mrb[0].mxu0
      %6424 = vmatprep.mubr.f32.mxu0 0.0
      %6425 = vmatmul.mubr.f32.gmra.mrb[0].mxu0 %v6213
      %v6426 = vpop.f32.mrb[0].mxu0
      %v6427 = vadd.f32 0.0, %v6426
      %v6428 = vpop.f32.mrb[0].mxu0
      %6429 = vmatprep.mubr.f32.mxu0 0.0
      %6430 = vmatmul.mubr.f32.gmra.mrb[0].mxu0 %v6216
      %v6431 = vpop.f32.mrb[0].mxu0
      %v6432 = vadd.f32 0.0, %v6431
      %v6433 = vpop.f32.mrb[0].mxu0
      %6434 = vmatprep.mubr.f32.mxu0 0.0
      %6435 = vmatmul.mubr.f32.gmra.mrb[0].mxu0 %v6219
      %v6436 = vpop.f32.mrb[0].mxu0
      %v6437 = vadd.f32 0.0, %v6436
      %v6438 = vpop.f32.mrb[0].mxu0
      %6439 = vmatprep.mubr.f32.mxu0 0.0
      %6440 = vmatmul.mubr.f32.gmra.mrb[0].mxu0 %v6222
      %v6441 = vpop.f32.mrb[0].mxu0
      %v6442 = vadd.f32 0.0, %v6441
      %v6443 = vpop.f32.mrb[0].mxu0
      %6444 = vmatprep.mubr.f32.mxu0 0.0
      %6445 = vmatmul.mubr.f32.gmra.mrb[0].mxu0 %v6225
      %v6446 = vpop.f32.mrb[0].mxu0
      %v6447 = vadd.f32 0.0, %v6446
      %v6448 = vpop.f32.mrb[0].mxu0
      %6449 = vmatprep.mubr.f32.mxu0 0.0
      %6450 = vmatmul.mubr.f32.gmra.mrb[0].mxu0 %v6228
      %v6451 = vpop.f32.mrb[0].mxu0
      %v6452 = vadd.f32 0.0, %v6451
      %v6453 = vpop.f32.mrb[0].mxu0
      %6454 = vdwg.mxu0
      %v6456 = vsel %vm4421, %v6062, 0
      %v6459 = vsel %vm4421, %v6063, 0
      %v6462 = vsel %vm4421, %v6064, 0
      %v6465 = vsel %vm4421, %v6065, 0
      %v6468 = vsel %vm4421, %v6066, 0
      %v6471 = vsel %vm4421, %v6067, 0
      %v6474 = vsel %vm4421, %v6068, 0
      %v6477 = vsel %vm4421, %v6069, 0
      %v6480 = vsel %vm4421, %v6070, 0
      %v6483 = vsel %vm4421, %v6071, 0
      %v6486 = vsel %vm4421, %v6072, 0
      %v6489 = vsel %vm4421, %v6073, 0
      %v6492 = vsel %vm4421, %v6074, 0
      %v6495 = vsel %vm4421, %v6075, 0
      %v6498 = vsel %vm4421, %v6076, 0
      %v6501 = vsel %vm4421, %v6077, 0
      %v6504 = vsel %vm4421, %v6078, 0
      %v6507 = vsel %vm4421, %v6079, 0
      %v6510 = vsel %vm4421, %v6080, 0
      %v6513 = vsel %vm4421, %v6081, 0
      %v6516 = vsel %vm4421, %v6082, 0
      %v6519 = vsel %vm4421, %v6083, 0
      %v6522 = vsel %vm4421, %v6084, 0
      %v6525 = vsel %vm4421, %v6085, 0
      %v6528 = vsel %vm4421, %v6086, 0
      %v6531 = vsel %vm4421, %v6087, 0
      %v6534 = vsel %vm4421, %v6088, 0
      %v6537 = vsel %vm4421, %v6089, 0
      %v6540 = vsel %vm4421, %v6090, 0
      %v6543 = vsel %vm4421, %v6091, 0
      %v6546 = vsel %vm4421, %v6092, 0
      %v6549 = vsel %vm4421, %v6093, 0
      %6551 = vmatprep.subr.mxu0 0.0
      %6552 = vmatpush1.msra.mxu0 %v6094
      %6553 = vmatprep.subr.mxu0 0.0
      %6554 = vmatpush1.msra.mxu0 %v6095
      %6555 = vmatprep.subr.mxu0 0.0
      %6556 = vmatpush1.msra.mxu0 %v6096
      %6557 = vmatprep.subr.mxu0 0.0
      %6558 = vmatpush1.msra.mxu0 0.0
      %6559 = vmatprep.subr.mxu0 0.0
      %6560 = vmatpush1.msra.mxu0 0.0
      %6561 = vmatprep.subr.mxu0 0.0
      %6562 = vmatpush1.msra.mxu0 0.0
      %6563 = vmatprep.subr.mxu0 0.0
      %6564 = vmatpush1.msra.mxu0 0.0
      %6565 = vmatprep.subr.mxu0 0.0
      %6566 = vmatpush1.msra.mxu0 0.0
      %6567 = vmatprep.subr.mxu0 0.0
      %6568 = vmatpush1.msra.mxu0 0.0
      %6569 = vmatprep.subr.mxu0 0.0
      %6570 = vmatpush1.msra.mxu0 0.0
      %6571 = vmatprep.subr.mxu0 0.0
      %6572 = vmatpush1.msra.mxu0 0.0
      %6573 = vmatprep.subr.mxu0 0.0
      %6574 = vmatpush1.msra.mxu0 0.0
      %6575 = vmatprep.subr.mxu0 0.0
      %6576 = vmatpush1.msra.mxu0 0.0
      %6577 = vmatprep.subr.mxu0 0.0
      %6578 = vmatpush1.msra.mxu0 0.0
      %6579 = vmatprep.subr.mxu0 0.0
      %6580 = vmatpush1.msra.mxu0 0.0
      %6581 = vmatprep.subr.mxu0 0.0
      %6582 = vmatpush1.msra.mxu0 0.0
      %6583 = vmatprep.subr.mxu0 0.0
      %6584 = vmatpush1.msra.mxu0 0.0
      %6585 = vmatprep.subr.mxu0 0.0
      %6586 = vmatpush1.msra.mxu0 0.0
      %6587 = vmatprep.subr.mxu0 0.0
      %6588 = vmatpush1.msra.mxu0 0.0
      %6589 = vmatprep.subr.mxu0 0.0
      %6590 = vmatpush1.msra.mxu0 0.0
      %6591 = vmatprep.subr.mxu0 0.0
      %6592 = vmatpush1.msra.mxu0 0.0
      %6593 = vmatprep.subr.mxu0 0.0
      %6594 = vmatpush1.msra.mxu0 0.0
      %6595 = vmatprep.subr.mxu0 0.0
      %6596 = vmatpush1.msra.mxu0 0.0
      %6597 = vmatprep.subr.mxu0 0.0
      %6598 = vmatpush1.msra.mxu0 0.0
      %6599 = vmatprep.subr.mxu0 0.0
      %6600 = vmatpush1.msra.mxu0 0.0
      %6601 = vmatprep.subr.mxu0 0.0
      %6602 = vmatpush1.msra.mxu0 0.0
      %6603 = vmatprep.subr.mxu0 0.0
      %6604 = vmatpush1.msra.mxu0 0.0
      %6605 = vmatprep.subr.mxu0 0.0
      %6606 = vmatpush1.msra.mxu0 0.0
      %6607 = vmatprep.subr.mxu0 0.0
      %6608 = vmatpush1.msra.mxu0 0.0
      %6609 = vmatprep.subr.mxu0 0.0
      %6610 = vmatpush1.msra.mxu0 0.0
      %6611 = vmatprep.subr.mxu0 0.0
      %6612 = vmatpush1.msra.mxu0 0.0
      %6613 = vmatprep.subr.mxu0 0.0
      %6614 = vmatpush1.msra.mxu0 0.0
      %6615 = vmatprep.mubr.f32.mxu0 0.0
      %6616 = vmatmul.mubr.f32.gmra.mrb[0].mxu0 %v6456
      %v6617 = vpop.f32.mrb[0].mxu0
      %v6618 = vadd.f32 %v6297, %v6617
      %v6619 = vpop.f32.mrb[0].mxu0
      %6620 = vmatprep.mubr.f32.mxu0 0.0
      %6621 = vmatmul.mubr.f32.gmra.mrb[0].mxu0 %v6459
      %v6622 = vpop.f32.mrb[0].mxu0
      %v6623 = vadd.f32 %v6302, %v6622
      %v6624 = vpop.f32.mrb[0].mxu0
      %6625 = vmatprep.mubr.f32.mxu0 0.0
      %6626 = vmatmul.mubr.f32.gmra.mrb[0].mxu0 %v6462
      %v6627 = vpop.f32.mrb[0].mxu0
      %v6628 = vadd.f32 %v6307, %v6627
      %v6629 = vpop.f32.mrb[0].mxu0
      %6630 = vmatprep.mubr.f32.mxu0 0.0
      %6631 = vmatmul.mubr.f32.gmra.mrb[0].mxu0 %v6465
      %v6632 = vpop.f32.mrb[0].mxu0
      %v6633 = vadd.f32 %v6312, %v6632
      %v6634 = vpop.f32.mrb[0].mxu0
      %6635 = vmatprep.mubr.f32.mxu0 0.0
      %6636 = vmatmul.mubr.f32.gmra.mrb[0].mxu0 %v6468
      %v6637 = vpop.f32.mrb[0].mxu0
      %v6638 = vadd.f32 %v6317, %v6637
      %v6639 = vpop.f32.mrb[0].mxu0
      %6640 = vmatprep.mubr.f32.mxu0 0.0
      %6641 = vmatmul.mubr.f32.gmra.mrb[0].mxu0 %v6471
      %v6642 = vpop.f32.mrb[0].mxu0
      %v6643 = vadd.f32 %v6322, %v6642
      %v6644 = vpop.f32.mrb[0].mxu0
      %6645 = vmatprep.mubr.f32.mxu0 0.0
      %6646 = vmatmul.mubr.f32.gmra.mrb[0].mxu0 %v6474
      %v6647 = vpop.f32.mrb[0].mxu0
      %v6648 = vadd.f32 %v6327, %v6647
      %v6649 = vpop.f32.mrb[0].mxu0
      %6650 = vmatprep.mubr.f32.mxu0 0.0
      %6651 = vmatmul.mubr.f32.gmra.mrb[0].mxu0 %v6477
      %v6652 = vpop.f32.mrb[0].mxu0
      %v6653 = vadd.f32 %v6332, %v6652
      %v6654 = vpop.f32.mrb[0].mxu0
      %6655 = vmatprep.mubr.f32.mxu0 0.0
      %6656 = vmatmul.mubr.f32.gmra.mrb[0].mxu0 %v6480
      %v6657 = vpop.f32.mrb[0].mxu0
      %v6658 = vadd.f32 %v6337, %v6657
      %v6659 = vpop.f32.mrb[0].mxu0
      %6660 = vmatprep.mubr.f32.mxu0 0.0
      %6661 = vmatmul.mubr.f32.gmra.mrb[0].mxu0 %v6483
      %v6662 = vpop.f32.mrb[0].mxu0
      %v6663 = vadd.f32 %v6342, %v6662
      %v6664 = vpop.f32.mrb[0].mxu0
      %6665 = vmatprep.mubr.f32.mxu0 0.0
      %6666 = vmatmul.mubr.f32.gmra.mrb[0].mxu0 %v6486
      %v6667 = vpop.f32.mrb[0].mxu0
      %v6668 = vadd.f32 %v6347, %v6667
      %v6669 = vpop.f32.mrb[0].mxu0
      %6670 = vmatprep.mubr.f32.mxu0 0.0
      %6671 = vmatmul.mubr.f32.gmra.mrb[0].mxu0 %v6489
      %v6672 = vpop.f32.mrb[0].mxu0
      %v6673 = vadd.f32 %v6352, %v6672
      %v6674 = vpop.f32.mrb[0].mxu0
      %6675 = vmatprep.mubr.f32.mxu0 0.0
      %6676 = vmatmul.mubr.f32.gmra.mrb[0].mxu0 %v6492
      %v6677 = vpop.f32.mrb[0].mxu0
      %v6678 = vadd.f32 %v6357, %v6677
      %v6679 = vpop.f32.mrb[0].mxu0
      %6680 = vmatprep.mubr.f32.mxu0 0.0
      %6681 = vmatmul.mubr.f32.gmra.mrb[0].mxu0 %v6495
      %v6682 = vpop.f32.mrb[0].mxu0
      %v6683 = vadd.f32 %v6362, %v6682
      %v6684 = vpop.f32.mrb[0].mxu0
      %6685 = vmatprep.mubr.f32.mxu0 0.0
      %6686 = vmatmul.mubr.f32.gmra.mrb[0].mxu0 %v6498
      %v6687 = vpop.f32.mrb[0].mxu0
      %v6688 = vadd.f32 %v6367, %v6687
      %v6689 = vpop.f32.mrb[0].mxu0
      %6690 = vmatprep.mubr.f32.mxu0 0.0
      %6691 = vmatmul.mubr.f32.gmra.mrb[0].mxu0 %v6501
      %v6692 = vpop.f32.mrb[0].mxu0
      %v6693 = vadd.f32 %v6372, %v6692
      %v6694 = vpop.f32.mrb[0].mxu0
      %6695 = vmatprep.mubr.f32.mxu0 0.0
      %6696 = vmatmul.mubr.f32.gmra.mrb[0].mxu0 %v6504
      %v6697 = vpop.f32.mrb[0].mxu0
      %v6698 = vadd.f32 %v6377, %v6697
      %v6699 = vpop.f32.mrb[0].mxu0
      %6700 = vmatprep.mubr.f32.mxu0 0.0
      %6701 = vmatmul.mubr.f32.gmra.mrb[0].mxu0 %v6507
      %v6702 = vpop.f32.mrb[0].mxu0
      %v6703 = vadd.f32 %v6382, %v6702
      %v6704 = vpop.f32.mrb[0].mxu0
      %6705 = vmatprep.mubr.f32.mxu0 0.0
      %6706 = vmatmul.mubr.f32.gmra.mrb[0].mxu0 %v6510
      %v6707 = vpop.f32.mrb[0].mxu0
      %v6708 = vadd.f32 %v6387, %v6707
      %v6709 = vpop.f32.mrb[0].mxu0
      %6710 = vmatprep.mubr.f32.mxu0 0.0
      %6711 = vmatmul.mubr.f32.gmra.mrb[0].mxu0 %v6513
      %v6712 = vpop.f32.mrb[0].mxu0
      %v6713 = vadd.f32 %v6392, %v6712
      %v6714 = vpop.f32.mrb[0].mxu0
      %6715 = vmatprep.mubr.f32.mxu0 0.0
      %6716 = vmatmul.mubr.f32.gmra.mrb[0].mxu0 %v6516
      %v6717 = vpop.f32.mrb[0].mxu0
      %v6718 = vadd.f32 %v6397, %v6717
      %v6719 = vpop.f32.mrb[0].mxu0
      %6720 = vmatprep.mubr.f32.mxu0 0.0
      %6721 = vmatmul.mubr.f32.gmra.mrb[0].mxu0 %v6519
      %v6722 = vpop.f32.mrb[0].mxu0
      %v6723 = vadd.f32 %v6402, %v6722
      %v6724 = vpop.f32.mrb[0].mxu0
      %6725 = vmatprep.mubr.f32.mxu0 0.0
      %6726 = vmatmul.mubr.f32.gmra.mrb[0].mxu0 %v6522
      %v6727 = vpop.f32.mrb[0].mxu0
      %v6728 = vadd.f32 %v6407, %v6727
      %v6729 = vpop.f32.mrb[0].mxu0
      %6730 = vmatprep.mubr.f32.mxu0 0.0
      %6731 = vmatmul.mubr.f32.gmra.mrb[0].mxu0 %v6525
      %v6732 = vpop.f32.mrb[0].mxu0
      %v6733 = vadd.f32 %v6412, %v6732
      %v6734 = vpop.f32.mrb[0].mxu0
      %6735 = vmatprep.mubr.f32.mxu0 0.0
      %6736 = vmatmul.mubr.f32.gmra.mrb[0].mxu0 %v6528
      %v6737 = vpop.f32.mrb[0].mxu0
      %v6738 = vadd.f32 %v6417, %v6737
      %v6739 = vpop.f32.mrb[0].mxu0
      %6740 = vmatprep.mubr.f32.mxu0 0.0
      %6741 = vmatmul.mubr.f32.gmra.mrb[0].mxu0 %v6531
      %v6742 = vpop.f32.mrb[0].mxu0
      %v6743 = vadd.f32 %v6422, %v6742
      %v6744 = vpop.f32.mrb[0].mxu0
      %6745 = vmatprep.mubr.f32.mxu0 0.0
      %6746 = vmatmul.mubr.f32.gmra.mrb[0].mxu0 %v6534
      %v6747 = vpop.f32.mrb[0].mxu0
      %v6748 = vadd.f32 %v6427, %v6747
      %v6749 = vpop.f32.mrb[0].mxu0
      %6750 = vmatprep.mubr.f32.mxu0 0.0
      %6751 = vmatmul.mubr.f32.gmra.mrb[0].mxu0 %v6537
      %v6752 = vpop.f32.mrb[0].mxu0
      %v6753 = vadd.f32 %v6432, %v6752
      %v6754 = vpop.f32.mrb[0].mxu0
      %6755 = vmatprep.mubr.f32.mxu0 0.0
      %6756 = vmatmul.mubr.f32.gmra.mrb[0].mxu0 %v6540
      %v6757 = vpop.f32.mrb[0].mxu0
      %v6758 = vadd.f32 %v6437, %v6757
      %v6759 = vpop.f32.mrb[0].mxu0
      %6760 = vmatprep.mubr.f32.mxu0 0.0
      %6761 = vmatmul.mubr.f32.gmra.mrb[0].mxu0 %v6543
      %v6762 = vpop.f32.mrb[0].mxu0
      %v6763 = vadd.f32 %v6442, %v6762
      %v6764 = vpop.f32.mrb[0].mxu0
      %6765 = vmatprep.mubr.f32.mxu0 0.0
      %6766 = vmatmul.mubr.f32.gmra.mrb[0].mxu0 %v6546
      %v6767 = vpop.f32.mrb[0].mxu0
      %v6768 = vadd.f32 %v6447, %v6767
      %v6769 = vpop.f32.mrb[0].mxu0
      %6770 = vmatprep.mubr.f32.mxu0 0.0
      %6771 = vmatmul.mubr.f32.gmra.mrb[0].mxu0 %v6549
      %v6772 = vpop.f32.mrb[0].mxu0
      %v6773 = vadd.f32 %v6452, %v6772
      %v6774 = vpop.f32.mrb[0].mxu0
      %6775 = vdwg.mxu0
      %s6776 = scalar_lea.vmem [#allocation5], 32
      %v6777 = vld [vmem:[%s6776] sm:$0xff]
      %v6778 = vld [vmem:[%s6776 + $0x8] sm:$0xff]
      %v6779 = vld [vmem:[%s6776 + $0x10] sm:$0xff]
      %v6780 = vld [vmem:[%s6776 + $0x18] sm:$0xff]
      %v6781 = vld [vmem:[%s6776 + $0x20] sm:$0xff]
      %v6782 = vld [vmem:[%s6776 + $0x28] sm:$0xff]
      %v6783 = vld [vmem:[%s6776 + $0x30] sm:$0xff]
      %v6784 = vld [vmem:[%s6776 + $0x38] sm:$0xff]
      %v6785 = vld [vmem:[%s6776 + $0x40] sm:$0xff]
      %v6786 = vld [vmem:[%s6776 + $0x48] sm:$0xff]
      %v6787 = vld [vmem:[%s6776 + $0x50] sm:$0xff]
      %v6788 = vld [vmem:[%s6776 + $0x58] sm:$0xff]
      %v6789 = vld [vmem:[%s6776 + $0x60] sm:$0xff]
      %v6790 = vld [vmem:[%s6776 + $0x68] sm:$0xff]
      %v6791 = vld [vmem:[%s6776 + $0x70] sm:$0xff]
      %v6792 = vld [vmem:[%s6776 + $0x78] sm:$0xff]
      %v6793 = vld [vmem:[%s6776 + $0x80] sm:$0xff]
      %v6794 = vld [vmem:[%s6776 + $0x88] sm:$0xff]
      %v6795 = vld [vmem:[%s6776 + $0x90] sm:$0xff]
      %v6796 = vld [vmem:[%s6776 + $0x98] sm:$0xff]
      %v6797 = vld [vmem:[%s6776 + $0xa0] sm:$0xff]
      %v6798 = vld [vmem:[%s6776 + $0xa8] sm:$0xff]
      %v6799 = vld [vmem:[%s6776 + $0xb0] sm:$0xff]
      %v6800 = vld [vmem:[%s6776 + $0xb8] sm:$0xff]
      %v6801 = vld [vmem:[%s6776 + $0xc0] sm:$0xff]
      %v6802 = vld [vmem:[%s6776 + $0xc8] sm:$0xff]
      %v6803 = vld [vmem:[%s6776 + $0xd0] sm:$0xff]
      %v6804 = vld [vmem:[%s6776 + $0xd8] sm:$0xff]
      %v6805 = vld [vmem:[%s6776 + $0xe0] sm:$0xff]
      %v6806 = vld [vmem:[%s6776 + $0xe8] sm:$0xff]
      %v6807 = vld [vmem:[%s6776 + $0xf0] sm:$0xff]
      %v6808 = vld [vmem:[%s6776 + $0xf8] sm:$0xff]
      %s6809 = scalar_lea.vmem %s9, 48
      %v6810 = vld [vmem:[%s6809] sm:$0xff]
      %v6811 = vld [vmem:[%s6809 + $0x8] sm:$0xff]
      %v6812 = vld [vmem:[%s6809 + $0x10] sm:$0xff]
      %v6814 = vsel %vm4421, %v6777, 0
      %v6817 = vsel %vm4421, %v6778, 0
      %v6820 = vsel %vm4421, %v6779, 0
      %v6823 = vsel %vm4421, %v6780, 0
      %v6826 = vsel %vm4421, %v6781, 0
      %v6829 = vsel %vm4421, %v6782, 0
      %v6832 = vsel %vm4421, %v6783, 0
      %v6835 = vsel %vm4421, %v6784, 0
      %v6838 = vsel %vm4421, %v6785, 0
      %v6841 = vsel %vm4421, %v6786, 0
      %v6844 = vsel %vm4421, %v6787, 0
      %v6847 = vsel %vm4421, %v6788, 0
      %v6850 = vsel %vm4421, %v6789, 0
      %v6853 = vsel %vm4421, %v6790, 0
      %v6856 = vsel %vm4421, %v6791, 0
      %v6859 = vsel %vm4421, %v6792, 0
      %v6862 = vsel %vm4421, %v6793, 0
      %v6865 = vsel %vm4421, %v6794, 0
      %v6868 = vsel %vm4421, %v6795, 0
      %v6871 = vsel %vm4421, %v6796, 0
      %v6874 = vsel %vm4421, %v6797, 0
      %v6877 = vsel %vm4421, %v6798, 0
      %v6880 = vsel %vm4421, %v6799, 0
      %v6883 = vsel %vm4421, %v6800, 0
      %v6886 = vsel %vm4421, %v6801, 0
      %v6889 = vsel %vm4421, %v6802, 0
      %v6892 = vsel %vm4421, %v6803, 0
      %v6895 = vsel %vm4421, %v6804, 0
      %v6898 = vsel %vm4421, %v6805, 0
      %v6901 = vsel %vm4421, %v6806, 0
      %v6904 = vsel %vm4421, %v6807, 0
      %v6907 = vsel %vm4421, %v6808, 0
      %6909 = vmatprep.subr.mxu0 0.0
      %6910 = vmatpush1.msra.mxu0 %v6810
      %6911 = vmatprep.subr.mxu0 0.0
      %6912 = vmatpush1.msra.mxu0 %v6811
      %6913 = vmatprep.subr.mxu0 0.0
      %6914 = vmatpush1.msra.mxu0 %v6812
      %6915 = vmatprep.subr.mxu0 0.0
      %6916 = vmatpush1.msra.mxu0 0.0
      %6917 = vmatprep.subr.mxu0 0.0
      %6918 = vmatpush1.msra.mxu0 0.0
      %6919 = vmatprep.subr.mxu0 0.0
      %6920 = vmatpush1.msra.mxu0 0.0
      %6921 = vmatprep.subr.mxu0 0.0
      %6922 = vmatpush1.msra.mxu0 0.0
      %6923 = vmatprep.subr.mxu0 0.0
      %6924 = vmatpush1.msra.mxu0 0.0
      %6925 = vmatprep.subr.mxu0 0.0
      %6926 = vmatpush1.msra.mxu0 0.0
      %6927 = vmatprep.subr.mxu0 0.0
      %6928 = vmatpush1.msra.mxu0 0.0
      %6929 = vmatprep.subr.mxu0 0.0
      %6930 = vmatpush1.msra.mxu0 0.0
      %6931 = vmatprep.subr.mxu0 0.0
      %6932 = vmatpush1.msra.mxu0 0.0
      %6933 = vmatprep.subr.mxu0 0.0
      %6934 = vmatpush1.msra.mxu0 0.0
      %6935 = vmatprep.subr.mxu0 0.0
      %6936 = vmatpush1.msra.mxu0 0.0
      %6937 = vmatprep.subr.mxu0 0.0
      %6938 = vmatpush1.msra.mxu0 0.0
      %6939 = vmatprep.subr.mxu0 0.0
      %6940 = vmatpush1.msra.mxu0 0.0
      %6941 = vmatprep.subr.mxu0 0.0
      %6942 = vmatpush1.msra.mxu0 0.0
      %6943 = vmatprep.subr.mxu0 0.0
      %6944 = vmatpush1.msra.mxu0 0.0
      %6945 = vmatprep.subr.mxu0 0.0
      %6946 = vmatpush1.msra.mxu0 0.0
      %6947 = vmatprep.subr.mxu0 0.0
      %6948 = vmatpush1.msra.mxu0 0.0
      %6949 = vmatprep.subr.mxu0 0.0
      %6950 = vmatpush1.msra.mxu0 0.0
      %6951 = vmatprep.subr.mxu0 0.0
      %6952 = vmatpush1.msra.mxu0 0.0
      %6953 = vmatprep.subr.mxu0 0.0
      %6954 = vmatpush1.msra.mxu0 0.0
      %6955 = vmatprep.subr.mxu0 0.0
      %6956 = vmatpush1.msra.mxu0 0.0
      %6957 = vmatprep.subr.mxu0 0.0
      %6958 = vmatpush1.msra.mxu0 0.0
      %6959 = vmatprep.subr.mxu0 0.0
      %6960 = vmatpush1.msra.mxu0 0.0
      %6961 = vmatprep.subr.mxu0 0.0
      %6962 = vmatpush1.msra.mxu0 0.0
      %6963 = vmatprep.subr.mxu0 0.0
      %6964 = vmatpush1.msra.mxu0 0.0
      %6965 = vmatprep.subr.mxu0 0.0
      %6966 = vmatpush1.msra.mxu0 0.0
      %6967 = vmatprep.subr.mxu0 0.0
      %6968 = vmatpush1.msra.mxu0 0.0
      %6969 = vmatprep.subr.mxu0 0.0
      %6970 = vmatpush1.msra.mxu0 0.0
      %6971 = vmatprep.subr.mxu0 0.0
      %6972 = vmatpush1.msra.mxu0 0.0
      %6973 = vmatprep.mubr.f32.mxu0 0.0
      %6974 = vmatmul.mubr.f32.gmra.mrb[0].mxu0 %v6814
      %v6975 = vpop.f32.mrb[0].mxu0
      %v6976 = vadd.f32 0.0, %v6975
      %v6977 = vpop.f32.mrb[0].mxu0
      %6978 = vmatprep.mubr.f32.mxu0 0.0
      %6979 = vmatmul.mubr.f32.gmra.mrb[0].mxu0 %v6817
      %v6980 = vpop.f32.mrb[0].mxu0
      %v6981 = vadd.f32 0.0, %v6980
      %v6982 = vpop.f32.mrb[0].mxu0
      %6983 = vmatprep.mubr.f32.mxu0 0.0
      %6984 = vmatmul.mubr.f32.gmra.mrb[0].mxu0 %v6820
      %v6985 = vpop.f32.mrb[0].mxu0
      %v6986 = vadd.f32 0.0, %v6985
      %v6987 = vpop.f32.mrb[0].mxu0
      %6988 = vmatprep.mubr.f32.mxu0 0.0
      %6989 = vmatmul.mubr.f32.gmra.mrb[0].mxu0 %v6823
      %v6990 = vpop.f32.mrb[0].mxu0
      %v6991 = vadd.f32 0.0, %v6990
      %v6992 = vpop.f32.mrb[0].mxu0
      %6993 = vmatprep.mubr.f32.mxu0 0.0
      %6994 = vmatmul.mubr.f32.gmra.mrb[0].mxu0 %v6826
      %v6995 = vpop.f32.mrb[0].mxu0
      %v6996 = vadd.f32 0.0, %v6995
      %v6997 = vpop.f32.mrb[0].mxu0
      %6998 = vmatprep.mubr.f32.mxu0 0.0
      %6999 = vmatmul.mubr.f32.gmra.mrb[0].mxu0 %v6829
      %v7000 = vpop.f32.mrb[0].mxu0
      %v7001 = vadd.f32 0.0, %v7000
      %v7002 = vpop.f32.mrb[0].mxu0
      %7003 = vmatprep.mubr.f32.mxu0 0.0
      %7004 = vmatmul.mubr.f32.gmra.mrb[0].mxu0 %v6832
      %v7005 = vpop.f32.mrb[0].mxu0
      %v7006 = vadd.f32 0.0, %v7005
      %v7007 = vpop.f32.mrb[0].mxu0
      %7008 = vmatprep.mubr.f32.mxu0 0.0
      %7009 = vmatmul.mubr.f32.gmra.mrb[0].mxu0 %v6835
      %v7010 = vpop.f32.mrb[0].mxu0
      %v7011 = vadd.f32 0.0, %v7010
      %v7012 = vpop.f32.mrb[0].mxu0
      %7013 = vmatprep.mubr.f32.mxu0 0.0
      %7014 = vmatmul.mubr.f32.gmra.mrb[0].mxu0 %v6838
      %v7015 = vpop.f32.mrb[0].mxu0
      %v7016 = vadd.f32 0.0, %v7015
      %v7017 = vpop.f32.mrb[0].mxu0
      %7018 = vmatprep.mubr.f32.mxu0 0.0
      %7019 = vmatmul.mubr.f32.gmra.mrb[0].mxu0 %v6841
      %v7020 = vpop.f32.mrb[0].mxu0
      %v7021 = vadd.f32 0.0, %v7020
      %v7022 = vpop.f32.mrb[0].mxu0
      %7023 = vmatprep.mubr.f32.mxu0 0.0
      %7024 = vmatmul.mubr.f32.gmra.mrb[0].mxu0 %v6844
      %v7025 = vpop.f32.mrb[0].mxu0
      %v7026 = vadd.f32 0.0, %v7025
      %v7027 = vpop.f32.mrb[0].mxu0
      %7028 = vmatprep.mubr.f32.mxu0 0.0
      %7029 = vmatmul.mubr.f32.gmra.mrb[0].mxu0 %v6847
      %v7030 = vpop.f32.mrb[0].mxu0
      %v7031 = vadd.f32 0.0, %v7030
      %v7032 = vpop.f32.mrb[0].mxu0
      %7033 = vmatprep.mubr.f32.mxu0 0.0
      %7034 = vmatmul.mubr.f32.gmra.mrb[0].mxu0 %v6850
      %v7035 = vpop.f32.mrb[0].mxu0
      %v7036 = vadd.f32 0.0, %v7035
      %v7037 = vpop.f32.mrb[0].mxu0
      %7038 = vmatprep.mubr.f32.mxu0 0.0
      %7039 = vmatmul.mubr.f32.gmra.mrb[0].mxu0 %v6853
      %v7040 = vpop.f32.mrb[0].mxu0
      %v7041 = vadd.f32 0.0, %v7040
      %v7042 = vpop.f32.mrb[0].mxu0
      %7043 = vmatprep.mubr.f32.mxu0 0.0
      %7044 = vmatmul.mubr.f32.gmra.mrb[0].mxu0 %v6856
      %v7045 = vpop.f32.mrb[0].mxu0
      %v7046 = vadd.f32 0.0, %v7045
      %v7047 = vpop.f32.mrb[0].mxu0
      %7048 = vmatprep.mubr.f32.mxu0 0.0
      %7049 = vmatmul.mubr.f32.gmra.mrb[0].mxu0 %v6859
      %v7050 = vpop.f32.mrb[0].mxu0
      %v7051 = vadd.f32 0.0, %v7050
      %v7052 = vpop.f32.mrb[0].mxu0
      %7053 = vmatprep.mubr.f32.mxu0 0.0
      %7054 = vmatmul.mubr.f32.gmra.mrb[0].mxu0 %v6862
      %v7055 = vpop.f32.mrb[0].mxu0
      %v7056 = vadd.f32 0.0, %v7055
      %v7057 = vpop.f32.mrb[0].mxu0
      %7058 = vmatprep.mubr.f32.mxu0 0.0
      %7059 = vmatmul.mubr.f32.gmra.mrb[0].mxu0 %v6865
      %v7060 = vpop.f32.mrb[0].mxu0
      %v7061 = vadd.f32 0.0, %v7060
      %v7062 = vpop.f32.mrb[0].mxu0
      %7063 = vmatprep.mubr.f32.mxu0 0.0
      %7064 = vmatmul.mubr.f32.gmra.mrb[0].mxu0 %v6868
      %v7065 = vpop.f32.mrb[0].mxu0
      %v7066 = vadd.f32 0.0, %v7065
      %v7067 = vpop.f32.mrb[0].mxu0
      %7068 = vmatprep.mubr.f32.mxu0 0.0
      %7069 = vmatmul.mubr.f32.gmra.mrb[0].mxu0 %v6871
      %v7070 = vpop.f32.mrb[0].mxu0
      %v7071 = vadd.f32 0.0, %v7070
      %v7072 = vpop.f32.mrb[0].mxu0
      %7073 = vmatprep.mubr.f32.mxu0 0.0
      %7074 = vmatmul.mubr.f32.gmra.mrb[0].mxu0 %v6874
      %v7075 = vpop.f32.mrb[0].mxu0
      %v7076 = vadd.f32 0.0, %v7075
      %v7077 = vpop.f32.mrb[0].mxu0
      %7078 = vmatprep.mubr.f32.mxu0 0.0
      %7079 = vmatmul.mubr.f32.gmra.mrb[0].mxu0 %v6877
      %v7080 = vpop.f32.mrb[0].mxu0
      %v7081 = vadd.f32 0.0, %v7080
      %v7082 = vpop.f32.mrb[0].mxu0
      %7083 = vmatprep.mubr.f32.mxu0 0.0
      %7084 = vmatmul.mubr.f32.gmra.mrb[0].mxu0 %v6880
      %v7085 = vpop.f32.mrb[0].mxu0
      %v7086 = vadd.f32 0.0, %v7085
      %v7087 = vpop.f32.mrb[0].mxu0
      %7088 = vmatprep.mubr.f32.mxu0 0.0
      %7089 = vmatmul.mubr.f32.gmra.mrb[0].mxu0 %v6883
      %v7090 = vpop.f32.mrb[0].mxu0
      %v7091 = vadd.f32 0.0, %v7090
      %v7092 = vpop.f32.mrb[0].mxu0
      %7093 = vmatprep.mubr.f32.mxu0 0.0
      %7094 = vmatmul.mubr.f32.gmra.mrb[0].mxu0 %v6886
      %v7095 = vpop.f32.mrb[0].mxu0
      %v7096 = vadd.f32 0.0, %v7095
      %v7097 = vpop.f32.mrb[0].mxu0
      %7098 = vmatprep.mubr.f32.mxu0 0.0
      %7099 = vmatmul.mubr.f32.gmra.mrb[0].mxu0 %v6889
      %v7100 = vpop.f32.mrb[0].mxu0
      %v7101 = vadd.f32 0.0, %v7100
      %v7102 = vpop.f32.mrb[0].mxu0
      %7103 = vmatprep.mubr.f32.mxu0 0.0
      %7104 = vmatmul.mubr.f32.gmra.mrb[0].mxu0 %v6892
      %v7105 = vpop.f32.mrb[0].mxu0
      %v7106 = vadd.f32 0.0, %v7105
      %v7107 = vpop.f32.mrb[0].mxu0
      %7108 = vmatprep.mubr.f32.mxu0 0.0
      %7109 = vmatmul.mubr.f32.gmra.mrb[0].mxu0 %v6895
      %v7110 = vpop.f32.mrb[0].mxu0
      %v7111 = vadd.f32 0.0, %v7110
      %v7112 = vpop.f32.mrb[0].mxu0
      %7113 = vmatprep.mubr.f32.mxu0 0.0
      %7114 = vmatmul.mubr.f32.gmra.mrb[0].mxu0 %v6898
      %v7115 = vpop.f32.mrb[0].mxu0
      %v7116 = vadd.f32 0.0, %v7115
      %v7117 = vpop.f32.mrb[0].mxu0
      %7118 = vmatprep.mubr.f32.mxu0 0.0
      %7119 = vmatmul.mubr.f32.gmra.mrb[0].mxu0 %v6901
      %v7120 = vpop.f32.mrb[0].mxu0
      %v7121 = vadd.f32 0.0, %v7120
      %v7122 = vpop.f32.mrb[0].mxu0
      %7123 = vmatprep.mubr.f32.mxu0 0.0
      %7124 = vmatmul.mubr.f32.gmra.mrb[0].mxu0 %v6904
      %v7125 = vpop.f32.mrb[0].mxu0
      %v7126 = vadd.f32 0.0, %v7125
      %v7127 = vpop.f32.mrb[0].mxu0
      %7128 = vmatprep.mubr.f32.mxu0 0.0
      %7129 = vmatmul.mubr.f32.gmra.mrb[0].mxu0 %v6907
      %v7130 = vpop.f32.mrb[0].mxu0
      %v7131 = vadd.f32 0.0, %v7130
      %v7132 = vpop.f32.mrb[0].mxu0
      %7133 = vdwg.mxu0
      %v7134 = vadd.f32 %v6618, %v6976
      %v7135 = vadd.f32 %v6623, %v6981
      %v7136 = vadd.f32 %v6628, %v6986
      %v7137 = vadd.f32 %v6633, %v6991
      %v7138 = vadd.f32 %v6638, %v6996
      %v7139 = vadd.f32 %v6643, %v7001
      %v7140 = vadd.f32 %v6648, %v7006
      %v7141 = vadd.f32 %v6653, %v7011
      %v7142 = vadd.f32 %v6658, %v7016
      %v7143 = vadd.f32 %v6663, %v7021
      %v7144 = vadd.f32 %v6668, %v7026
      %v7145 = vadd.f32 %v6673, %v7031
      %v7146 = vadd.f32 %v6678, %v7036
      %v7147 = vadd.f32 %v6683, %v7041
      %v7148 = vadd.f32 %v6688, %v7046
      %v7149 = vadd.f32 %v6693, %v7051
      %v7150 = vadd.f32 %v6698, %v7056
      %v7151 = vadd.f32 %v6703, %v7061
      %v7152 = vadd.f32 %v6708, %v7066
      %v7153 = vadd.f32 %v6713, %v7071
      %v7154 = vadd.f32 %v6718, %v7076
      %v7155 = vadd.f32 %v6723, %v7081
      %v7156 = vadd.f32 %v6728, %v7086
      %v7157 = vadd.f32 %v6733, %v7091
      %v7158 = vadd.f32 %v6738, %v7096
      %v7159 = vadd.f32 %v6743, %v7101
      %v7160 = vadd.f32 %v6748, %v7106
      %v7161 = vadd.f32 %v6753, %v7111
      %v7162 = vadd.f32 %v6758, %v7116
      %v7163 = vadd.f32 %v6763, %v7121
      %v7164 = vadd.f32 %v6768, %v7126
      %v7165 = vadd.f32 %v6773, %v7131
      %v7166 = vld [vmem:[%s10] sm:$0x1]
      %v7168 = vlaneseq
      %v7169 = vshrl.u32 %v7168, 7
      %v7170 = vsub.s32 0, %v7169
      %v7171 = vrot.slane %v7166, %v7170
      %v7173 = vadd.f32 %v7134, %v7171
      %v7174 = vadd.f32 %v7135, %v7171
      %v7175 = vadd.f32 %v7136, %v7171
      %v7176 = vadd.f32 %v7137, %v7171
      %v7177 = vadd.f32 %v7138, %v7171
      %v7178 = vadd.f32 %v7139, %v7171
      %v7179 = vadd.f32 %v7140, %v7171
      %v7180 = vadd.f32 %v7141, %v7171
      %v7181 = vadd.f32 %v7142, %v7171
      %v7182 = vadd.f32 %v7143, %v7171
      %v7183 = vadd.f32 %v7144, %v7171
      %v7184 = vadd.f32 %v7145, %v7171
      %v7185 = vadd.f32 %v7146, %v7171
      %v7186 = vadd.f32 %v7147, %v7171
      %v7187 = vadd.f32 %v7148, %v7171
      %v7188 = vadd.f32 %v7149, %v7171
      %v7189 = vadd.f32 %v7150, %v7171
      %v7190 = vadd.f32 %v7151, %v7171
      %v7191 = vadd.f32 %v7152, %v7171
      %v7192 = vadd.f32 %v7153, %v7171
      %v7193 = vadd.f32 %v7154, %v7171
      %v7194 = vadd.f32 %v7155, %v7171
      %v7195 = vadd.f32 %v7156, %v7171
      %v7196 = vadd.f32 %v7157, %v7171
      %v7197 = vadd.f32 %v7158, %v7171
      %v7198 = vadd.f32 %v7159, %v7171
      %v7199 = vadd.f32 %v7160, %v7171
      %v7200 = vadd.f32 %v7161, %v7171
      %v7201 = vadd.f32 %v7162, %v7171
      %v7202 = vadd.f32 %v7163, %v7171
      %v7203 = vadd.f32 %v7164, %v7171
      %v7204 = vadd.f32 %v7165, %v7171
      %v7205 = vmax.f32 %v7173, 0.0
      %v7206 = vmax.f32 %v7174, 0.0
      %v7207 = vmax.f32 %v7175, 0.0
      %v7208 = vmax.f32 %v7176, 0.0
      %v7209 = vmax.f32 %v7177, 0.0
      %v7210 = vmax.f32 %v7178, 0.0
      %v7211 = vmax.f32 %v7179, 0.0
      %v7212 = vmax.f32 %v7180, 0.0
      %v7213 = vmax.f32 %v7181, 0.0
      %v7214 = vmax.f32 %v7182, 0.0
      %v7215 = vmax.f32 %v7183, 0.0
      %v7216 = vmax.f32 %v7184, 0.0
      %v7217 = vmax.f32 %v7185, 0.0
      %v7218 = vmax.f32 %v7186, 0.0
      %v7219 = vmax.f32 %v7187, 0.0
      %v7220 = vmax.f32 %v7188, 0.0
      %v7221 = vmax.f32 %v7189, 0.0
      %v7222 = vmax.f32 %v7190, 0.0
      %v7223 = vmax.f32 %v7191, 0.0
      %v7224 = vmax.f32 %v7192, 0.0
      %v7225 = vmax.f32 %v7193, 0.0
      %v7226 = vmax.f32 %v7194, 0.0
      %v7227 = vmax.f32 %v7195, 0.0
      %v7228 = vmax.f32 %v7196, 0.0
      %v7229 = vmax.f32 %v7197, 0.0
      %v7230 = vmax.f32 %v7198, 0.0
      %v7231 = vmax.f32 %v7199, 0.0
      %v7232 = vmax.f32 %v7200, 0.0
      %v7233 = vmax.f32 %v7201, 0.0
      %v7234 = vmax.f32 %v7202, 0.0
      %v7235 = vmax.f32 %v7203, 0.0
      %v7236 = vmax.f32 %v7204, 0.0
      %7237 = vst.msk [vmem:[%s406] sm:$0xff] %vm407, %v7205
      %7238 = vst.msk [vmem:[%s406 + $0x8] sm:$0xff] %vm407, %v7206
      %7239 = vst.msk [vmem:[%s406 + $0x10] sm:$0xff] %vm407, %v7207
      %7240 = vst.msk [vmem:[%s406 + $0x18] sm:$0xff] %vm407, %v7208
      %7241 = vst.msk [vmem:[%s406 + $0x20] sm:$0xff] %vm407, %v7209
      %7242 = vst.msk [vmem:[%s406 + $0x28] sm:$0xff] %vm407, %v7210
      %7243 = vst.msk [vmem:[%s406 + $0x30] sm:$0xff] %vm407, %v7211
      %7244 = vst.msk [vmem:[%s406 + $0x38] sm:$0xff] %vm407, %v7212
      %7245 = vst.msk [vmem:[%s406 + $0x40] sm:$0xff] %vm407, %v7213
      %7246 = vst.msk [vmem:[%s406 + $0x48] sm:$0xff] %vm407, %v7214
      %7247 = vst.msk [vmem:[%s406 + $0x50] sm:$0xff] %vm407, %v7215
      %7248 = vst.msk [vmem:[%s406 + $0x58] sm:$0xff] %vm407, %v7216
      %7249 = vst.msk [vmem:[%s406 + $0x60] sm:$0xff] %vm407, %v7217
      %7250 = vst.msk [vmem:[%s406 + $0x68] sm:$0xff] %vm407, %v7218
      %7251 = vst.msk [vmem:[%s406 + $0x70] sm:$0xff] %vm407, %v7219
      %7252 = vst.msk [vmem:[%s406 + $0x78] sm:$0xff] %vm407, %v7220
      %7253 = vst.msk [vmem:[%s406 + $0x80] sm:$0xff] %vm407, %v7221
      %7254 = vst.msk [vmem:[%s406 + $0x88] sm:$0xff] %vm407, %v7222
      %7255 = vst.msk [vmem:[%s406 + $0x90] sm:$0xff] %vm407, %v7223
      %7256 = vst.msk [vmem:[%s406 + $0x98] sm:$0xff] %vm407, %v7224
      %7257 = vst.msk [vmem:[%s406 + $0xa0] sm:$0xff] %vm407, %v7225
      %7258 = vst.msk [vmem:[%s406 + $0xa8] sm:$0xff] %vm407, %v7226
      %7259 = vst.msk [vmem:[%s406 + $0xb0] sm:$0xff] %vm407, %v7227
      %7260 = vst.msk [vmem:[%s406 + $0xb8] sm:$0xff] %vm407, %v7228
      %7261 = vst.msk [vmem:[%s406 + $0xc0] sm:$0xff] %vm407, %v7229
      %7262 = vst.msk [vmem:[%s406 + $0xc8] sm:$0xff] %vm407, %v7230
      %7263 = vst.msk [vmem:[%s406 + $0xd0] sm:$0xff] %vm407, %v7231
      %7264 = vst.msk [vmem:[%s406 + $0xd8] sm:$0xff] %vm407, %v7232
      %7265 = vst.msk [vmem:[%s406 + $0xe0] sm:$0xff] %vm407, %v7233
      %7266 = vst.msk [vmem:[%s406 + $0xe8] sm:$0xff] %vm407, %v7234
      %7267 = vst.msk [vmem:[%s406 + $0xf0] sm:$0xff] %vm407, %v7235
      %7268 = vst.msk [vmem:[%s406 + $0xf8] sm:$0xff] %vm407, %v7236
      %p7269 = scmp.lt.s32.totalorder %s22, 1
      %s7270 = scalar_select %p7269, %s22, 1
      %s7271 = smul.addr %s7270, 32
      %s7272 = smul.addr %s7271, 8
      %s7273 = scalar_lea.vmem %s11, %s7272
      // Predicated region
      $region65: #{upsample_da_pallas.1} parent=63 // pred_check
        %p7274 = pneg %p281
      $region66: #{upsample_da_pallas.1} parent=63 // pred_check_branch
        %7276 = sbr.rel (%p7274) target = $region68
      $region67: #{upsample_da_pallas.1} parent=63 // pred_region
        _
      $region68: #{upsample_da_pallas.1} parent=63 // pred_fallthru
        _
    $region64: #{upsample_da_pallas.1} parent=5 // pred_fallthru
      _
    %p7277 = scmp.le.s32.totalorder 2, %s17
    // Predicated region
    $region69: #{upsample_da_pallas.1} parent=5 // pred_check
      %p7278 = pneg %p7277
    $region70: #{upsample_da_pallas.1} parent=5 // pred_check_branch
      %7280 = sbr.rel (%p7278) target = $region72
    $region71: #{upsample_da_pallas.1} parent=5 // pred_region
      %s7281 = ssub.s32 %s17, 2
      // Predicated region
      $region73: #{upsample_da_pallas.1} parent=71 // pred_check
        %p7282 = pneg %p287
      $region74: #{upsample_da_pallas.1} parent=71 // pred_check_branch
        %7284 = sbr.rel (%p7282) target = $region76
      $region75: #{upsample_da_pallas.1} parent=71 // pred_region
        %p7285 = scmp.lt.s32.totalorder %s23, 1
        %s7286 = scalar_select %p7285, %s23, 1
        %s7287 = smul.addr %s7286, 32
        %s7288 = smul.addr %s7287, 8
        %s7289 = scalar_lea.vmem %s11, %s7288
      $region76: #{upsample_da_pallas.1} parent=71 // pred_fallthru
        _
    $region72: #{upsample_da_pallas.1} parent=5 // pred_fallthru
      _
  $region6: #{upsample_da_pallas.1} parent=0 // loop_footer
    %s21 = sadd.s32 1, %s17
  $region7: #{upsample_da_pallas.1} parent=0 // loop_footer_branch
    %16 = sbr.rel target = $region3
  $region8: #{upsample_da_pallas.1} parent=0 // loop_exit
    _

</llo_original>
